<compile_context>
chip_gen: v5e
topology: v5e:2x2
jax: 0.10.0
libtpu: 0.0.40
codegen_flags: <defaults>
</compile_context>

<pallas_src>
import functools

import jax
import jax.numpy as jnp
from jax.experimental import pallas as pl
from jax.experimental.pallas import tpu as pltpu

ACT_DTYPE = jnp.bfloat16      # on-HBM activation / weight dtype
CPAD = 128                    # universal padded channel width (lane-dense)


# ----------------------------------------------------------------------------
# Hardware-aware knobs
# ----------------------------------------------------------------------------
def _vmem_capacity_bytes():
    try:
        return int(pltpu.get_tpu_info().vmem_capacity_bytes)
    except Exception:          # unknown chip / interpret mode: assume v7x-sized
        return 64 << 20


_VMEM_CAP = _vmem_capacity_bytes()
_VMEM_LIMIT = int(min(_VMEM_CAP * 3 // 4, 96 << 20))


def _ceil_to(x, m):
    return -(-x // m) * m


def _choose_tm(M, in_c, out_c, n_f32_live=2, weight_bytes=0):
    """Largest row tile that fits a generation-aware VMEM budget, counting
    double-buffered bf16 in/out rows, live f32 intermediates and the resident
    weight blocks; always keeps >=2 grid steps when the problem allows it so
    both v7x TensorCores stay fed (harmless on v5e/v6e)."""
    budget = max(2 << 20, _VMEM_CAP // 6) - weight_bytes
    per_row = 2 * 2 * (in_c + out_c) + n_f32_live * 4 * max(in_c, out_c)
    tm = 64
    for cand in (128, 256, 512, 1024):
        if cand * per_row > budget or cand > _ceil_to(M, 64):
            break
        tm = cand
    while tm > 64 and pl.cdiv(M, tm) < 2:      # >= 2 parallel grid steps
        tm //= 2
    return tm


# ----------------------------------------------------------------------------
# Weight padding helpers (wrapper-side, tiny, one-time)
# ----------------------------------------------------------------------------
def _pad2(w):
    """(k, n) f32 -> (ceil128(k), ceil128(n)) bf16, zero padded."""
    k, n = w.shape
    return jnp.pad(w, ((0, _ceil_to(k, CPAD) - k),
                       (0, _ceil_to(n, CPAD) - n))).astype(ACT_DTYPE)


def _padb(b):
    """(n,) f32 bias -> (1, ceil128(n)) f32 (zero on padded lanes)."""
    n = b.shape[0]
    return jnp.pad(b, (0, _ceil_to(n, CPAD) - n)).reshape(1, -1).astype(jnp.float32)


def _pad_w3(w):
    """(3, 3, cin, cout) -> (9*CPAD, CPAD) bf16: tap-major K packing that
    matches the in-kernel (H*W, 9*CPAD) shifted-tap operand."""
    kh, kw, cin, cout = w.shape
    w = jnp.pad(w, ((0, 0), (0, 0), (0, CPAD - cin), (0, CPAD - cout)))
    return w.reshape(kh * kw * CPAD, CPAD).astype(ACT_DTYPE)


def _pad_split_k(w, n_blocks):
    """Weight over a channel concat of n_blocks CPAD-padded activations:
    (n_blocks*k, n) -> (n_blocks*CPAD, CPAD) with each real k-row block at the
    start of its CPAD-row slot."""
    k = w.shape[0] // n_blocks
    return jnp.concatenate(
        [_pad2(w[i * k:(i + 1) * k]) for i in range(n_blocks)], axis=0)


# ----------------------------------------------------------------------------
# In-kernel building blocks
# ----------------------------------------------------------------------------
def _leaky(x):
    return jnp.where(x >= 0.0, x, 0.1 * x)            # LeakyReLU(0.1)


def _linear(h, w_ref, b_ref, act=True):
    acc = jnp.dot(h.astype(ACT_DTYPE), w_ref[...],
                  preferred_element_type=jnp.float32) + b_ref[...]
    return _leaky(acc) if act else acc


def _pixel_coords(H, W, C):
    """(i, j) pixel coordinates for every row of the flattened (H*W, C) plane."""
    r = jax.lax.broadcasted_iota(jnp.int32, (H * W, C), 0)
    if W & (W - 1) == 0:                               # power of two: shift/and
        sh = W.bit_length() - 1
        return r >> sh, r & (W - 1)
    return r // W, r % W


def _conv3x3(x32, w9_ref, b_ref, ih, jw, H, W):
    """3x3 / stride-1 / pad-1 conv on a flattened (H*W, C) plane.  The 9 taps
    are realized with pltpu.roll along the sublane axis (XLU, no relayout
    copies, no HBM halo pad) + border masks, and K-packed into a single
    (H*W, 9C) bf16 operand -> one MXU dot.  Returns f32 with bias+LeakyReLU."""
    M, C = x32.shape
    taps = []
    for dh in (-1, 0, 1):
        vh = None
        if dh < 0:
            vh = ih >= -dh
        elif dh > 0:
            vh = ih <= H - 1 - dh
        for dw in (-1, 0, 1):
            vw = None
            if dw < 0:
                vw = jw >= -dw
            elif dw > 0:
                vw = jw <= W - 1 - dw
            off = dh * W + dw
            s = x32 if off == 0 else pltpu.roll(x32, (-off) % M, axis=0)
            if vh is not None and vw is not None:
                s = jnp.where(vh & vw, s, 0.0)
            elif vh is not None:
                s = jnp.where(vh, s, 0.0)
            elif vw is not None:
                s = jnp.where(vw, s, 0.0)
            taps.append(s.astype(ACT_DTYPE))
    packed = jnp.concatenate(taps, axis=-1)            # (M, 9C) bf16
    acc = jnp.dot(packed, w9_ref[...], preferred_element_type=jnp.float32)
    return _leaky(acc + b_ref[...])


def _pool5(x32, ih, jw, H, W):
    """5x5 / stride-1 / 'same' max-pool (border taps = -inf, matching
    F.max_pool2d padding), separable, shifts via pltpu.roll + masks."""
    M = x32.shape[0]
    NEG = jnp.float32(-3e38)
    t = x32
    for dw in (-2, -1, 1, 2):
        s = pltpu.roll(x32, (-dw) % M, axis=0)
        v = jw >= -dw if dw < 0 else jw <= W - 1 - dw
        t = jnp.maximum(t, jnp.where(v, s, NEG))
    out = t
    for dh in (-2, -1, 1, 2):
        s = pltpu.roll(t, (-dh * W) % M, axis=0)
        v = ih >= -dh if dh < 0 else ih <= H - 1 - dh
        out = jnp.maximum(out, jnp.where(v, s, NEG))
    return out


# ----------------------------------------------------------------------------
# Pallas kernels
# ----------------------------------------------------------------------------
def _chain1x1_kernel(*refs, n_stages):
    """Row-tiled fused chain of 1x1 convs: h <- LeakyReLU(h @ W_i + b_i)."""
    x_ref, o_ref = refs[0], refs[-1]
    h = x_ref[...]
    for i in range(n_stages):
        h = _linear(h, refs[1 + 2 * i], refs[2 + 2 * i])
    o_ref[...] = h.astype(o_ref.dtype)


def _spp_front_kernel(x_ref, w1_ref, b1_ref, wm_ref, bm_ref, w2_ref, b2_ref,
                      t_ref, y2_ref, *, H, W):
    """SPPv2 pyramid (in-kernel, no sentinel pad) fused with the spp CSP's
    cv1 -> m0.cv1 chain (output t) and cv2+BN-half2 (output y2); the 4x
    channel concat never touches HBM."""
    x = x_ref[0].astype(jnp.float32)
    ih, jw = _pixel_coords(H, W, x.shape[-1])
    p5 = _pool5(x, ih, jw, H, W)
    p9 = _pool5(p5, ih, jw, H, W)       # maxpool9  == pool5(pool5(x))
    p13 = _pool5(p9, ih, jw, H, W)      # maxpool13 == pool5(pool9(x))
    cat = jnp.concatenate([x, p5, p9, p13], axis=-1).astype(ACT_DTYPE)
    h1 = _linear(cat, w1_ref, b1_ref)                  # cv1 (K = 4*CPAD)
    t = _linear(h1, wm_ref, bm_ref)                    # m0.cv1
    y2 = _linear(cat, w2_ref, b2_ref)                  # cv2 + BN half 2
    t_ref[0] = t.astype(t_ref.dtype)
    y2_ref[0] = y2.astype(y2_ref.dtype)


def _bottleneck_kernel(t_ref, w3_ref, b3_ref, wn_ref, bn_ref, o_ref, *, H, W):
    """Bottleneck body: m_i.cv2 (3x3) fused with the next m_{i+1}.cv1 (1x1)."""
    t = t_ref[0].astype(jnp.float32)
    ih, jw = _pixel_coords(H, W, t.shape[-1])
    h = _conv3x3(t, w3_ref, b3_ref, ih, jw, H, W)
    o = _linear(h, wn_ref, bn_ref)
    o_ref[0] = o.astype(o_ref.dtype)


def _csp_bridge_kernel(t_ref, y2_ref, w3_ref, b3_ref, wc3_ref, bc3_ref,
                       w4a_ref, w4b_ref, b4_ref, wsam_ref, bsam_ref,
                       wn1_ref, bn1_ref, wnm_ref, bnm_ref, wn2_ref, bn2_ref,
                       tcs_ref, y2cs_ref, *, H, W):
    """spp_csp m0.cv2 (3x3) + cv3 + [concat folded] cv4 + SAM gate, fused with
    the conv_set CSP front (cv1 -> m0.cv1 and cv2+BN-half2): the SAM output
    never touches HBM."""
    t = t_ref[0].astype(jnp.float32)
    ih, jw = _pixel_coords(H, W, t.shape[-1])
    h = _conv3x3(t, w3_ref, b3_ref, ih, jw, H, W)      # m0.cv2
    y1 = _linear(h, wc3_ref, bc3_ref)                  # cv3 + BN half 1
    z = jnp.dot(y1.astype(ACT_DTYPE), w4a_ref[...],
                preferred_element_type=jnp.float32)
    z = z + jnp.dot(y2_ref[0], w4b_ref[...], preferred_element_type=jnp.float32)
    z = _leaky(z + b4_ref[...])                        # concat + cv4
    g = jax.nn.sigmoid(_linear(z, wsam_ref, bsam_ref, act=False))
    z = z * g                                          # SAM
    h1 = _linear(z, wn1_ref, bn1_ref)                  # conv_set.cv1
    tcs = _linear(h1, wnm_ref, bnm_ref)                # conv_set.m0.cv1
    y2cs = _linear(z, wn2_ref, bn2_ref)                # conv_set.cv2 + BN half 2
    tcs_ref[0] = tcs.astype(tcs_ref.dtype)
    y2cs_ref[0] = y2cs.astype(y2cs_ref.dtype)


def _csp_head_kernel(t_ref, y2_ref, w3_ref, b3_ref, wc3_ref, bc3_ref,
                     w4a_ref, w4b_ref, b4_ref, wh_ref, bh_ref, o_ref, *, H, W):
    """conv_set m2.cv2 (3x3) + cv3 + [concat folded] cv4 + fused cls/box heads
    (single lane-dense store; heads have no activation)."""
    t = t_ref[0].astype(jnp.float32)
    ih, jw = _pixel_coords(H, W, t.shape[-1])
    h = _conv3x3(t, w3_ref, b3_ref, ih, jw, H, W)      # m2.cv2
    y1 = _linear(h, wc3_ref, bc3_ref)                  # cv3 + BN half 1
    z = jnp.dot(y1.astype(ACT_DTYPE), w4a_ref[...],
                preferred_element_type=jnp.float32)
    z = z + jnp.dot(y2_ref[0], w4b_ref[...], preferred_element_type=jnp.float32)
    z = _leaky(z + b4_ref[...])                        # concat + cv4
    out = _linear(z, wh_ref, bh_ref, act=False)        # cls + box heads
    o_ref[0] = out.astype(o_ref.dtype)


# ----------------------------------------------------------------------------
# pallas_call wrappers
# ----------------------------------------------------------------------------
def _bcast_spec(shape):
    zeros = (0,) * len(shape)
    return pl.BlockSpec(shape, lambda i, _z=zeros: _z)


def _act_spec(HW):
    return pl.BlockSpec((1, HW, CPAD), lambda n: (n, 0, 0))


def conv1x1_chain(x2d, stages, out_dtype=ACT_DTYPE):
    """Row-tiled fused chain of 1x1 convs (+ folded BN + LeakyReLU) on a
    (M, K) activation whose channel dims are already CPAD-padded."""
    M, K = x2d.shape
    Cout = stages[-1][0].shape[1]
    wbytes = sum(int(w.size) * 2 + int(b.size) * 4 for w, b in stages)
    tm = _choose_tm(M, K, Cout, n_f32_live=2, weight_bytes=wbytes)

    in_specs = [pl.BlockSpec((tm, K), lambda i: (i, 0))]
    args = [x2d]
    flops = 0
    for w, b in stages:
        in_specs += [_bcast_spec(w.shape), _bcast_spec(b.shape)]
        args += [w, b]
        flops += 2 * M * int(w.shape[0]) * int(w.shape[1])

    return pl.pallas_call(
        functools.partial(_chain1x1_kernel, n_stages=len(stages)),
        grid=(pl.cdiv(M, tm),),
        in_specs=in_specs,
        out_specs=pl.BlockSpec((tm, Cout), lambda i: (i, 0)),
        out_shape=jax.ShapeDtypeStruct((M, Cout), out_dtype),
        compiler_params=pltpu.CompilerParams(
            dimension_semantics=("parallel",),
            vmem_limit_bytes=_VMEM_LIMIT),
        cost_estimate=pl.CostEstimate(
            flops=int(flops), transcendentals=0,
            bytes_accessed=int(x2d.size * 2 + M * Cout * 2 + wbytes)),
    )(*args)


def _spatial_call(kernel, acts, weights, out_dtypes, *, H, W, flops,
                  transcendentals=0):
    """Batch-gridded spatial kernel: one (1, H*W, CPAD) plane per grid step.
    # TODO(synk): for large feature maps, tile H with a 1-row halo
    # (grid over (N, H/tile_h)) so each step's plane fits v7x's 64 MiB VMEM."""
    N = acts[0].shape[0]
    HW = H * W
    in_specs = [_act_spec(HW) for _ in acts] + [_bcast_spec(w.shape) for w in weights]
    multi = len(out_dtypes) > 1
    out_specs = [_act_spec(HW) for _ in out_dtypes]
    out_shape = [jax.ShapeDtypeStruct((N, HW, CPAD), dt) for dt in out_dtypes]
    bytes_accessed = (sum(int(a.size) * a.dtype.itemsize for a in acts)
                      + sum(int(w.size) * w.dtype.itemsize for w in weights)
                      + sum(N * HW * CPAD * jnp.dtype(dt).itemsize
                            for dt in out_dtypes))
    return pl.pallas_call(
        kernel,
        grid=(N,),
        in_specs=in_specs,
        out_specs=tuple(out_specs) if multi else out_specs[0],
        out_shape=tuple(out_shape) if multi else out_shape[0],
        compiler_params=pltpu.CompilerParams(
            dimension_semantics=("parallel",),
            vmem_limit_bytes=_VMEM_LIMIT),
        cost_estimate=pl.CostEstimate(
            flops=int(flops), transcendentals=int(transcendentals),
            bytes_accessed=int(bytes_accessed)),
    )(*acts, *weights)


# ----------------------------------------------------------------------------
# Parameters (deterministic, synthetic)
# ----------------------------------------------------------------------------
def _init(key, shape, std=0.1):
    return std * jax.random.normal(key, shape, dtype=jnp.float32)


def make_fconv(key, cin, cout, k=1):
    """FConv2d = Conv2d(bias=False) + BatchNorm (eval affine) + LeakyReLU.
    Weight layout: (cin, cout) for k=1, (kh, kw, cin, cout) for k=3.
    NOTE: real PyTorch weights (cout, cin, kh, kw) must be permuted to
    (kh, kw, cin, cout), and running stats folded into s/b, before use."""
    k1, k2, k3 = jax.random.split(key, 3)
    shape = (cin, cout) if k == 1 else (k, k, cin, cout)
    return dict(w=_init(k1, shape), s=1.0 + _init(k2, (cout,)), b=_init(k3, (cout,)))


def _fold(fc):
    """Fold the eval-mode BN scale into the conv weight; keep only the bias."""
    return fc["w"] * fc["s"], fc["b"]


def make_csp(key, c1, c2, n):
    """BottleneckCSP(c1, c2, n, shortcut=False), e=0.5, inner e=1.0."""
    c_ = c2 // 2
    keys = jax.random.split(key, 6 + 2 * n)
    return dict(
        cv1=make_fconv(keys[0], c1, c_, 1),
        cv2_w=_init(keys[1], (c1, c_)),              # plain conv, no bias
        cv3_w=_init(keys[2], (c_, c_)),              # plain conv, no bias
        cv4=make_fconv(keys[3], 2 * c_, c2, 1),
        bn_s=1.0 + _init(keys[4], (2 * c_,)),
        bn_b=_init(keys[5], (2 * c_,)),
        m=[dict(cv1=make_fconv(keys[6 + 2 * i], c_, c_, 1),
                cv2=make_fconv(keys[7 + 2 * i], c_, c_, 3)) for i in range(n)],
    )


def make_params(key, cin=3, dim_layer=32, num_classes=4, num_reg=1):
    dim256 = dim_layer // 2
    keys = jax.random.split(key, 8)
    return dict(
        # TODO(synk): backbone is an external module in the reference; stand-in
        # here is a single stride-2 FConv2d block with dim_out = dim_layer.
        backbone=make_fconv(keys[0], cin, dim_layer, 3),
        spp_conv=make_fconv(keys[1], dim_layer, dim256, 1),
        spp_csp=make_csp(keys[2], dim256 * 4, dim_layer, 1),
        sam_w=_init(keys[3], (dim_layer, dim_layer)),
        sam_b=_init(jax.random.fold_in(keys[3], 1), (dim_layer,)),
        conv_set=make_csp(keys[4], dim_layer, dim_layer, 3),
        head_cls_w=_init(keys[5], (dim_layer, num_classes)),
        head_cls_b=_init(jax.random.fold_in(keys[5], 1), (num_classes,)),
        head_box_w=_init(keys[6], (dim_layer, num_reg * 4)),
        head_box_b=_init(jax.random.fold_in(keys[6], 1), (num_reg * 4,)),
    )


# ----------------------------------------------------------------------------
# Forward pass (matches YOLOv1_Net.forward)
# ----------------------------------------------------------------------------
def _im2col(x, k, stride, pad):
    """Wrapper-side im2col -- used ONLY for the 3-channel stride-2 backbone
    stand-in (negligible size); every other conv runs im2col-free in-kernel."""
    N, H, W, C = x.shape
    Ho = (H + 2 * pad - k) // stride + 1
    Wo = (W + 2 * pad - k) // stride + 1
    xp = jnp.pad(x, ((0, 0), (pad, pad), (pad, pad), (0, 0)))
    cols = [xp[:, dh:dh + stride * (Ho - 1) + 1:stride,
               dw:dw + stride * (Wo - 1) + 1:stride, :]
            for dh in range(k) for dw in range(k)]
    return jnp.concatenate(cols, axis=-1), Ho, Wo


def yolov1_forward(x_nchw, params):
    N = x_nchw.shape[0]
    x = jnp.transpose(x_nchw, (0, 2, 3, 1))                       # NHWC f32

    # -- backbone stand-in (FConv2d 3x3 s2) fused with the spp 1x1 FConv in a
    #    single row-tiled chain kernel; the 27-channel im2col is zero-padded
    #    to K=128 so the MXU contraction and loads are lane-dense.
    cols, Ho, Wo = _im2col(x, 3, 2, 1)
    HW = Ho * Wo
    M = N * HW
    cols = cols.reshape(M, -1)
    cols = jnp.pad(cols, ((0, 0), (0, _ceil_to(cols.shape[1], CPAD)
                                   - cols.shape[1]))).astype(ACT_DTYPE)
    w_bb, b_bb = _fold(params["backbone"])
    w_sp, b_sp = _fold(params["spp_conv"])
    x16 = conv1x1_chain(
        cols,
        [(_pad2(w_bb.reshape(-1, w_bb.shape[-1])), _padb(b_bb)),
         (_pad2(w_sp), _padb(b_sp))])
    x16 = x16.reshape(N, HW, CPAD)

    # -- SPPv2 + spp_csp front (cv1 -> m0.cv1 ; cv2 + BN half 2), one kernel
    p = params["spp_csp"]
    c_ = p["cv3_w"].shape[1]
    w_cv1, b_cv1 = _fold(p["cv1"])
    w_m0, b_m0 = _fold(p["m"][0]["cv1"])
    w_cv2 = p["cv2_w"] * p["bn_s"][c_:]
    b_cv2 = p["bn_b"][c_:]
    t, y2 = _spatial_call(
        functools.partial(_spp_front_kernel, H=Ho, W=Wo),
        acts=[x16],
        weights=[_pad_split_k(w_cv1, 4), _padb(b_cv1),
                 _pad2(w_m0), _padb(b_m0),
                 _pad_split_k(w_cv2, 4), _padb(b_cv2)],
        out_dtypes=[ACT_DTYPE, ACT_DTYPE],
        H=Ho, W=Wo, flops=2 * M * CPAD * (4 * CPAD + CPAD + 4 * CPAD))

    # -- spp_csp 3x3 + cv3 + cv4 + SAM, fused with the conv_set CSP front
    w3, b3 = _fold(p["m"][0]["cv2"])
    w_cv3 = p["cv3_w"] * p["bn_s"][:c_]
    b_cv3 = p["bn_b"][:c_]
    w_cv4, b_cv4 = _fold(p["cv4"])
    q = params["conv_set"]
    cq = q["cv3_w"].shape[1]
    wq1, bq1 = _fold(q["cv1"])
    wqm0, bqm0 = _fold(q["m"][0]["cv1"])
    wq2 = q["cv2_w"] * q["bn_s"][cq:]
    bq2 = q["bn_b"][cq:]
    t_cs, y2_cs = _spatial_call(
        functools.partial(_csp_bridge_kernel, H=Ho, W=Wo),
        acts=[t, y2],
        weights=[_pad_w3(w3), _padb(b3),
                 _pad2(w_cv3), _padb(b_cv3),
                 _pad2(w_cv4[:c_]), _pad2(w_cv4[c_:]), _padb(b_cv4),
                 _pad2(params["sam_w"]), _padb(params["sam_b"]),
                 _pad2(wq1), _padb(bq1),
                 _pad2(wqm0), _padb(bqm0),
                 _pad2(wq2), _padb(bq2)],
        out_dtypes=[ACT_DTYPE, ACT_DTYPE],
        H=Ho, W=Wo,
        flops=2 * M * CPAD * (9 * CPAD + 7 * CPAD),
        transcendentals=M * CPAD)

    # -- conv_set bottlenecks: m0.cv2 + m1.cv1, then m1.cv2 + m2.cv1
    w30, b30 = _fold(q["m"][0]["cv2"])
    wqm1, bqm1 = _fold(q["m"][1]["cv1"])
    t2 = _spatial_call(
        functools.partial(_bottleneck_kernel, H=Ho, W=Wo),
        acts=[t_cs],
        weights=[_pad_w3(w30), _padb(b30), _pad2(wqm1), _padb(bqm1)],
        out_dtypes=[ACT_DTYPE],
        H=Ho, W=Wo, flops=2 * M * CPAD * (9 * CPAD + CPAD))

    w31, b31 = _fold(q["m"][1]["cv2"])
    wqm2, bqm2 = _fold(q["m"][2]["cv1"])
    t3 = _spatial_call(
        functools.partial(_bottleneck_kernel, H=Ho, W=Wo),
        acts=[t2],
        weights=[_pad_w3(w31), _padb(b31), _pad2(wqm2), _padb(bqm2)],
        out_dtypes=[ACT_DTYPE],
        H=Ho, W=Wo, flops=2 * M * CPAD * (9 * CPAD + CPAD))

    # -- conv_set m2.cv2 + cv3 + cv4 + fused cls/box heads
    w32, b32 = _fold(q["m"][2]["cv2"])
    wq_cv3 = q["cv3_w"] * q["bn_s"][:cq]
    bq_cv3 = q["bn_b"][:cq]
    wq4, bq4 = _fold(q["cv4"])
    head_w = jnp.concatenate([params["head_cls_w"], params["head_box_w"]], axis=1)
    head_b = jnp.concatenate([params["head_cls_b"], params["head_box_b"]])
    c_out = head_w.shape[1]
    out = _spatial_call(
        functools.partial(_csp_head_kernel, H=Ho, W=Wo),
        acts=[t3, y2_cs],
        weights=[_pad_w3(w32), _padb(b32),
                 _pad2(wq_cv3), _padb(bq_cv3),
                 _pad2(wq4[:cq]), _pad2(wq4[cq:]), _padb(bq4),
                 _pad2(head_w), _padb(head_b)],
        out_dtypes=[jnp.float32],
        H=Ho, W=Wo, flops=2 * M * CPAD * (9 * CPAD + 4 * CPAD))

    out = out[:, :, :c_out].reshape(N, Ho, Wo, c_out)
    return jnp.transpose(out, (0, 3, 1, 2))                       # back to NCHW


if __name__ == "__main__":
    key = jax.random.PRNGKey(0)
    kx, kp = jax.random.split(key)
    x = jax.random.normal(kx, (2, 3, 16, 16), dtype=jnp.float32)  # NCHW
    params = make_params(kp, cin=3, dim_layer=32, num_classes=4, num_reg=1)

    fwd = jax.jit(yolov1_forward)
    out = fwd(x, params)
    jax.block_until_ready(out)
    assert out.shape == (2, 4 + 4, 8, 8), out.shape
    assert bool(jnp.all(jnp.isfinite(out)))
    print("KERNEL_OK")
</pallas_src>

<mosaic_0001>
module attributes {stable_mosaic.version = 11 : i64} {
  func.func @_chain1x1_kernel(%arg0: i32, %arg1: memref<64x128xbf16, #tpu.memory_space<vmem>>, %arg2: memref<128x128xbf16, #tpu.memory_space<vmem>>, %arg3: memref<1x128xf32, #tpu.memory_space<vmem>>, %arg4: memref<128x128xbf16, #tpu.memory_space<vmem>>, %arg5: memref<1x128xf32, #tpu.memory_space<vmem>>, %arg6: memref<64x128xbf16, #tpu.memory_space<vmem>>) attributes {dimension_semantics = [#tpu.dimension_semantics<parallel>], iteration_bounds = array<i64: 2>, scalar_prefetch = 0 : i64, scratch_operands = 0 : i64, tpu.core_type = #tpu.core_type<tc>, window_params = [{transform_indices = @transform_0, window_bounds = array<i64: 64, 128>}, {pipeline_mode = #tpu.pipeline_mode<synchronous>, transform_indices = @transform_1, window_bounds = array<i64: 128, 128>}, {pipeline_mode = #tpu.pipeline_mode<synchronous>, transform_indices = @transform_2, window_bounds = array<i64: 1, 128>}, {pipeline_mode = #tpu.pipeline_mode<synchronous>, transform_indices = @transform_3, window_bounds = array<i64: 128, 128>}, {pipeline_mode = #tpu.pipeline_mode<synchronous>, transform_indices = @transform_4, window_bounds = array<i64: 1, 128>}, {transform_indices = @transform_5, window_bounds = array<i64: 64, 128>}]} {
    %c0 = arith.constant 0 : index
    %c0_0 = arith.constant 0 : index
    %0 = vector.load %arg1[%c0, %c0_0] : memref<64x128xbf16, #tpu.memory_space<vmem>>, vector<64x128xbf16>
    %c0_1 = arith.constant 0 : index
    %c0_2 = arith.constant 0 : index
    %1 = vector.load %arg2[%c0_1, %c0_2] : memref<128x128xbf16, #tpu.memory_space<vmem>>, vector<128x128xbf16>
    %cst = arith.constant dense<0.000000e+00> : vector<64x128xf32>
    %2 = tpu.matmul %0, %1, %cst {dimension_numbers = #tpu.dot_dimension_numbers<[1], [0], [0], [1], [0, 0, 1, 1], [], []>} : vector<64x128xbf16>, vector<128x128xbf16>, vector<64x128xf32> -> vector<64x128xf32>
    %c0_3 = arith.constant 0 : index
    %c0_4 = arith.constant 0 : index
    %3 = vector.load %arg3[%c0_3, %c0_4] : memref<1x128xf32, #tpu.memory_space<vmem>>, vector<1x128xf32>
    %4 = vector.broadcast %3 : vector<1x128xf32> to vector<64x128xf32>
    %5 = arith.addf %2, %4 : vector<64x128xf32>
    %cst_5 = arith.constant 0.000000e+00 : f32
    %6 = vector.broadcast %cst_5 : f32 to vector<64x128xf32>
    %7 = arith.cmpf oge, %5, %6 : vector<64x128xf32>
    %cst_6 = arith.constant 1.000000e-01 : f32
    %8 = vector.broadcast %cst_6 : f32 to vector<64x128xf32>
    %9 = arith.mulf %8, %5 : vector<64x128xf32>
    %10 = arith.select %7, %5, %9 : vector<64x128xi1>, vector<64x128xf32>
    %11 = arith.truncf %10 : vector<64x128xf32> to vector<64x128xbf16>
    %c0_7 = arith.constant 0 : index
    %c0_8 = arith.constant 0 : index
    %12 = vector.load %arg4[%c0_7, %c0_8] : memref<128x128xbf16, #tpu.memory_space<vmem>>, vector<128x128xbf16>
    %cst_9 = arith.constant dense<0.000000e+00> : vector<64x128xf32>
    %13 = tpu.matmul %11, %12, %cst_9 {dimension_numbers = #tpu.dot_dimension_numbers<[1], [0], [0], [1], [0, 0, 1, 1], [], []>} : vector<64x128xbf16>, vector<128x128xbf16>, vector<64x128xf32> -> vector<64x128xf32>
    %c0_10 = arith.constant 0 : index
    %c0_11 = arith.constant 0 : index
    %14 = vector.load %arg5[%c0_10, %c0_11] : memref<1x128xf32, #tpu.memory_space<vmem>>, vector<1x128xf32>
    %15 = vector.broadcast %14 : vector<1x128xf32> to vector<64x128xf32>
    %16 = arith.addf %13, %15 : vector<64x128xf32>
    %cst_12 = arith.constant 0.000000e+00 : f32
    %17 = vector.broadcast %cst_12 : f32 to vector<64x128xf32>
    %18 = arith.cmpf oge, %16, %17 : vector<64x128xf32>
    %cst_13 = arith.constant 1.000000e-01 : f32
    %19 = vector.broadcast %cst_13 : f32 to vector<64x128xf32>
    %20 = arith.mulf %19, %16 : vector<64x128xf32>
    %21 = arith.select %18, %16, %20 : vector<64x128xi1>, vector<64x128xf32>
    %22 = arith.truncf %21 : vector<64x128xf32> to vector<64x128xbf16>
    %c0_14 = arith.constant 0 : index
    %c0_15 = arith.constant 0 : index
    %23 = vector.load %arg6[%c0_14, %c0_15] : memref<64x128xbf16, #tpu.memory_space<vmem>>, vector<64x128xbf16>
    tpu.vector_store %arg6[%c0_14, %c0_15], %22 {strides = array<i32>} : memref<64x128xbf16, #tpu.memory_space<vmem>>, vector<64x128xbf16>,
    return
  }
  func.func @transform_0(%arg0: i32) -> (i32, i32) {
    %c0_i32 = arith.constant 0 : i32
    %c0_i32_0 = arith.constant 0 : i32
    return %arg0, %c0_i32 : i32, i32
  }
  func.func @transform_1(%arg0: i32) -> (i32, i32) {
    %c0_i32 = arith.constant 0 : i32
    %c0_i32_0 = arith.constant 0 : i32
    %c0_i32_1 = arith.constant 0 : i32
    return %c0_i32, %c0_i32_0 : i32, i32
  }
  func.func @transform_2(%arg0: i32) -> (i32, i32) {
    %c0_i32 = arith.constant 0 : i32
    %c0_i32_0 = arith.constant 0 : i32
    %c0_i32_1 = arith.constant 0 : i32
    return %c0_i32, %c0_i32_0 : i32, i32
  }
  func.func @transform_3(%arg0: i32) -> (i32, i32) {
    %c0_i32 = arith.constant 0 : i32
    %c0_i32_0 = arith.constant 0 : i32
    %c0_i32_1 = arith.constant 0 : i32
    return %c0_i32, %c0_i32_0 : i32, i32
  }
  func.func @transform_4(%arg0: i32) -> (i32, i32) {
    %c0_i32 = arith.constant 0 : i32
    %c0_i32_0 = arith.constant 0 : i32
    %c0_i32_1 = arith.constant 0 : i32
    return %c0_i32, %c0_i32_0 : i32, i32
  }
  func.func @transform_5(%arg0: i32) -> (i32, i32) {
    %c0_i32 = arith.constant 0 : i32
    %c0_i32_0 = arith.constant 0 : i32
    return %arg0, %c0_i32 : i32, i32
  }
}

module attributes {stable_mosaic.version = 11 : i64} {
  func.func @_spp_front_kernel(%arg0: i32, %arg1: memref<1x64x128xbf16, #tpu.memory_space<vmem>>, %arg2: memref<512x128xbf16, #tpu.memory_space<vmem>>, %arg3: memref<1x128xf32, #tpu.memory_space<vmem>>, %arg4: memref<128x128xbf16, #tpu.memory_space<vmem>>, %arg5: memref<1x128xf32, #tpu.memory_space<vmem>>, %arg6: memref<512x128xbf16, #tpu.memory_space<vmem>>, %arg7: memref<1x128xf32, #tpu.memory_space<vmem>>, %arg8: memref<1x64x128xbf16, #tpu.memory_space<vmem>>, %arg9: memref<1x64x128xbf16, #tpu.memory_space<vmem>>) attributes {dimension_semantics = [#tpu.dimension_semantics<parallel>], iteration_bounds = array<i64: 2>, scalar_prefetch = 0 : i64, scratch_operands = 0 : i64, tpu.core_type = #tpu.core_type<tc>, window_params = [{transform_indices = @transform_0, window_bounds = array<i64: 1, 64, 128>}, {pipeline_mode = #tpu.pipeline_mode<synchronous>, transform_indices = @transform_1, window_bounds = array<i64: 512, 128>}, {pipeline_mode = #tpu.pipeline_mode<synchronous>, transform_indices = @transform_2, window_bounds = array<i64: 1, 128>}, {pipeline_mode = #tpu.pipeline_mode<synchronous>, transform_indices = @transform_3, window_bounds = array<i64: 128, 128>}, {pipeline_mode = #tpu.pipeline_mode<synchronous>, transform_indices = @transform_4, window_bounds = array<i64: 1, 128>}, {pipeline_mode = #tpu.pipeline_mode<synchronous>, transform_indices = @transform_5, window_bounds = array<i64: 512, 128>}, {pipeline_mode = #tpu.pipeline_mode<synchronous>, transform_indices = @transform_6, window_bounds = array<i64: 1, 128>}, {transform_indices = @transform_7, window_bounds = array<i64: 1, 64, 128>}, {transform_indices = @transform_8, window_bounds = array<i64: 1, 64, 128>}]} {
    %c0 = arith.constant 0 : index
    %c0_0 = arith.constant 0 : index
    %c0_1 = arith.constant 0 : index
    %0 = vector.load %arg1[%c0, %c0_0, %c0_1] : memref<1x64x128xbf16, #tpu.memory_space<vmem>>, vector<1x64x128xbf16>
    %1 = vector.shape_cast %0 : vector<1x64x128xbf16> to vector<64x128xbf16>
    %2 = arith.extf %1 : vector<64x128xbf16> to vector<64x128xf32>
    %3 = tpu.iota {dimensions = array<i32: 0>} : vector<64x128xi32>
    %c3_i32 = arith.constant 3 : i32
    %4 = vector.broadcast %c3_i32 : i32 to vector<64x128xi32>
    %5 = arith.shrsi %3, %4 : vector<64x128xi32>
    %c7_i32 = arith.constant 7 : i32
    %6 = vector.broadcast %c7_i32 : i32 to vector<64x128xi32>
    %7 = arith.andi %3, %6 : vector<64x128xi32>
    %c2_i32 = arith.constant 2 : i32
    %8 = tpu.dynamic_rotate %2 by %c2_i32 dim 0 : vector<64x128xf32>, i32 -> vector<64x128xf32>
    %c2_i32_2 = arith.constant 2 : i32
    %9 = vector.broadcast %c2_i32_2 : i32 to vector<64x128xi32>
    %10 = arith.cmpi sge, %7, %9 : vector<64x128xi32>
    %cst = arith.constant -3.000000e+38 : f32
    %11 = vector.broadcast %cst : f32 to vector<64x128xf32>
    %12 = arith.select %10, %8, %11 : vector<64x128xi1>, vector<64x128xf32>
    %13 = arith.maximumf %2, %12 : vector<64x128xf32>
    %c1_i32 = arith.constant 1 : i32
    %14 = tpu.dynamic_rotate %2 by %c1_i32 dim 0 : vector<64x128xf32>, i32 -> vector<64x128xf32>
    %c1_i32_3 = arith.constant 1 : i32
    %15 = vector.broadcast %c1_i32_3 : i32 to vector<64x128xi32>
    %16 = arith.cmpi sge, %7, %15 : vector<64x128xi32>
    %cst_4 = arith.constant -3.000000e+38 : f32
    %17 = vector.broadcast %cst_4 : f32 to vector<64x128xf32>
    %18 = arith.select %16, %14, %17 : vector<64x128xi1>, vector<64x128xf32>
    %19 = arith.maximumf %13, %18 : vector<64x128xf32>
    %c63_i32 = arith.constant 63 : i32
    %20 = tpu.dynamic_rotate %2 by %c63_i32 dim 0 : vector<64x128xf32>, i32 -> vector<64x128xf32>
    %c6_i32 = arith.constant 6 : i32
    %21 = vector.broadcast %c6_i32 : i32 to vector<64x128xi32>
    %22 = arith.cmpi sle, %7, %21 : vector<64x128xi32>
    %cst_5 = arith.constant -3.000000e+38 : f32
    %23 = vector.broadcast %cst_5 : f32 to vector<64x128xf32>
    %24 = arith.select %22, %20, %23 : vector<64x128xi1>, vector<64x128xf32>
    %25 = arith.maximumf %19, %24 : vector<64x128xf32>
    %c62_i32 = arith.constant 62 : i32
    %26 = tpu.dynamic_rotate %2 by %c62_i32 dim 0 : vector<64x128xf32>, i32 -> vector<64x128xf32>
    %c5_i32 = arith.constant 5 : i32
    %27 = vector.broadcast %c5_i32 : i32 to vector<64x128xi32>
    %28 = arith.cmpi sle, %7, %27 : vector<64x128xi32>
    %cst_6 = arith.constant -3.000000e+38 : f32
    %29 = vector.broadcast %cst_6 : f32 to vector<64x128xf32>
    %30 = arith.select %28, %26, %29 : vector<64x128xi1>, vector<64x128xf32>
    %31 = arith.maximumf %25, %30 : vector<64x128xf32>
    %c16_i32 = arith.constant 16 : i32
    %32 = tpu.dynamic_rotate %31 by %c16_i32 dim 0 : vector<64x128xf32>, i32 -> vector<64x128xf32>
    %c2_i32_7 = arith.constant 2 : i32
    %33 = vector.broadcast %c2_i32_7 : i32 to vector<64x128xi32>
    %34 = arith.cmpi sge, %5, %33 : vector<64x128xi32>
    %cst_8 = arith.constant -3.000000e+38 : f32
    %35 = vector.broadcast %cst_8 : f32 to vector<64x128xf32>
    %36 = arith.select %34, %32, %35 : vector<64x128xi1>, vector<64x128xf32>
    %37 = arith.maximumf %31, %36 : vector<64x128xf32>
    %c8_i32 = arith.constant 8 : i32
    %38 = tpu.dynamic_rotate %31 by %c8_i32 dim 0 : vector<64x128xf32>, i32 -> vector<64x128xf32>
    %c1_i32_9 = arith.constant 1 : i32
    %39 = vector.broadcast %c1_i32_9 : i32 to vector<64x128xi32>
    %40 = arith.cmpi sge, %5, %39 : vector<64x128xi32>
    %cst_10 = arith.constant -3.000000e+38 : f32
    %41 = vector.broadcast %cst_10 : f32 to vector<64x128xf32>
    %42 = arith.select %40, %38, %41 : vector<64x128xi1>, vector<64x128xf32>
    %43 = arith.maximumf %37, %42 : vector<64x128xf32>
    %c56_i32 = arith.constant 56 : i32
    %44 = tpu.dynamic_rotate %31 by %c56_i32 dim 0 : vector<64x128xf32>, i32 -> vector<64x128xf32>
    %c6_i32_11 = arith.constant 6 : i32
    %45 = vector.broadcast %c6_i32_11 : i32 to vector<64x128xi32>
    %46 = arith.cmpi sle, %5, %45 : vector<64x128xi32>
    %cst_12 = arith.constant -3.000000e+38 : f32
    %47 = vector.broadcast %cst_12 : f32 to vector<64x128xf32>
    %48 = arith.select %46, %44, %47 : vector<64x128xi1>, vector<64x128xf32>
    %49 = arith.maximumf %43, %48 : vector<64x128xf32>
    %c48_i32 = arith.constant 48 : i32
    %50 = tpu.dynamic_rotate %31 by %c48_i32 dim 0 : vector<64x128xf32>, i32 -> vector<64x128xf32>
    %c5_i32_13 = arith.constant 5 : i32
    %51 = vector.broadcast %c5_i32_13 : i32 to vector<64x128xi32>
    %52 = arith.cmpi sle, %5, %51 : vector<64x128xi32>
    %cst_14 = arith.constant -3.000000e+38 : f32
    %53 = vector.broadcast %cst_14 : f32 to vector<64x128xf32>
    %54 = arith.select %52, %50, %53 : vector<64x128xi1>, vector<64x128xf32>
    %55 = arith.maximumf %49, %54 : vector<64x128xf32>
    %c2_i32_15 = arith.constant 2 : i32
    %56 = tpu.dynamic_rotate %55 by %c2_i32_15 dim 0 : vector<64x128xf32>, i32 -> vector<64x128xf32>
    %c2_i32_16 = arith.constant 2 : i32
    %57 = vector.broadcast %c2_i32_16 : i32 to vector<64x128xi32>
    %58 = arith.cmpi sge, %7, %57 : vector<64x128xi32>
    %cst_17 = arith.constant -3.000000e+38 : f32
    %59 = vector.broadcast %cst_17 : f32 to vector<64x128xf32>
    %60 = arith.select %58, %56, %59 : vector<64x128xi1>, vector<64x128xf32>
    %61 = arith.maximumf %55, %60 : vector<64x128xf32>
    %c1_i32_18 = arith.constant 1 : i32
    %62 = tpu.dynamic_rotate %55 by %c1_i32_18 dim 0 : vector<64x128xf32>, i32 -> vector<64x128xf32>
    %c1_i32_19 = arith.constant 1 : i32
    %63 = vector.broadcast %c1_i32_19 : i32 to vector<64x128xi32>
    %64 = arith.cmpi sge, %7, %63 : vector<64x128xi32>
    %cst_20 = arith.constant -3.000000e+38 : f32
    %65 = vector.broadcast %cst_20 : f32 to vector<64x128xf32>
    %66 = arith.select %64, %62, %65 : vector<64x128xi1>, vector<64x128xf32>
    %67 = arith.maximumf %61, %66 : vector<64x128xf32>
    %c63_i32_21 = arith.constant 63 : i32
    %68 = tpu.dynamic_rotate %55 by %c63_i32_21 dim 0 : vector<64x128xf32>, i32 -> vector<64x128xf32>
    %c6_i32_22 = arith.constant 6 : i32
    %69 = vector.broadcast %c6_i32_22 : i32 to vector<64x128xi32>
    %70 = arith.cmpi sle, %7, %69 : vector<64x128xi32>
    %cst_23 = arith.constant -3.000000e+38 : f32
    %71 = vector.broadcast %cst_23 : f32 to vector<64x128xf32>
    %72 = arith.select %70, %68, %71 : vector<64x128xi1>, vector<64x128xf32>
    %73 = arith.maximumf %67, %72 : vector<64x128xf32>
    %c62_i32_24 = arith.constant 62 : i32
    %74 = tpu.dynamic_rotate %55 by %c62_i32_24 dim 0 : vector<64x128xf32>, i32 -> vector<64x128xf32>
    %c5_i32_25 = arith.constant 5 : i32
    %75 = vector.broadcast %c5_i32_25 : i32 to vector<64x128xi32>
    %76 = arith.cmpi sle, %7, %75 : vector<64x128xi32>
    %cst_26 = arith.constant -3.000000e+38 : f32
    %77 = vector.broadcast %cst_26 : f32 to vector<64x128xf32>
    %78 = arith.select %76, %74, %77 : vector<64x128xi1>, vector<64x128xf32>
    %79 = arith.maximumf %73, %78 : vector<64x128xf32>
    %c16_i32_27 = arith.constant 16 : i32
    %80 = tpu.dynamic_rotate %79 by %c16_i32_27 dim 0 : vector<64x128xf32>, i32 -> vector<64x128xf32>
    %c2_i32_28 = arith.constant 2 : i32
    %81 = vector.broadcast %c2_i32_28 : i32 to vector<64x128xi32>
    %82 = arith.cmpi sge, %5, %81 : vector<64x128xi32>
    %cst_29 = arith.constant -3.000000e+38 : f32
    %83 = vector.broadcast %cst_29 : f32 to vector<64x128xf32>
    %84 = arith.select %82, %80, %83 : vector<64x128xi1>, vector<64x128xf32>
    %85 = arith.maximumf %79, %84 : vector<64x128xf32>
    %c8_i32_30 = arith.constant 8 : i32
    %86 = tpu.dynamic_rotate %79 by %c8_i32_30 dim 0 : vector<64x128xf32>, i32 -> vector<64x128xf32>
    %c1_i32_31 = arith.constant 1 : i32
    %87 = vector.broadcast %c1_i32_31 : i32 to vector<64x128xi32>
    %88 = arith.cmpi sge, %5, %87 : vector<64x128xi32>
    %cst_32 = arith.constant -3.000000e+38 : f32
    %89 = vector.broadcast %cst_32 : f32 to vector<64x128xf32>
    %90 = arith.select %88, %86, %89 : vector<64x128xi1>, vector<64x128xf32>
    %91 = arith.maximumf %85, %90 : vector<64x128xf32>
    %c56_i32_33 = arith.constant 56 : i32
    %92 = tpu.dynamic_rotate %79 by %c56_i32_33 dim 0 : vector<64x128xf32>, i32 -> vector<64x128xf32>
    %c6_i32_34 = arith.constant 6 : i32
    %93 = vector.broadcast %c6_i32_34 : i32 to vector<64x128xi32>
    %94 = arith.cmpi sle, %5, %93 : vector<64x128xi32>
    %cst_35 = arith.constant -3.000000e+38 : f32
    %95 = vector.broadcast %cst_35 : f32 to vector<64x128xf32>
    %96 = arith.select %94, %92, %95 : vector<64x128xi1>, vector<64x128xf32>
    %97 = arith.maximumf %91, %96 : vector<64x128xf32>
    %c48_i32_36 = arith.constant 48 : i32
    %98 = tpu.dynamic_rotate %79 by %c48_i32_36 dim 0 : vector<64x128xf32>, i32 -> vector<64x128xf32>
    %c5_i32_37 = arith.constant 5 : i32
    %99 = vector.broadcast %c5_i32_37 : i32 to vector<64x128xi32>
    %100 = arith.cmpi sle, %5, %99 : vector<64x128xi32>
    %cst_38 = arith.constant -3.000000e+38 : f32
    %101 = vector.broadcast %cst_38 : f32 to vector<64x128xf32>
    %102 = arith.select %100, %98, %101 : vector<64x128xi1>, vector<64x128xf32>
    %103 = arith.maximumf %97, %102 : vector<64x128xf32>
    %c2_i32_39 = arith.constant 2 : i32
    %104 = tpu.dynamic_rotate %103 by %c2_i32_39 dim 0 : vector<64x128xf32>, i32 -> vector<64x128xf32>
    %c2_i32_40 = arith.constant 2 : i32
    %105 = vector.broadcast %c2_i32_40 : i32 to vector<64x128xi32>
    %106 = arith.cmpi sge, %7, %105 : vector<64x128xi32>
    %cst_41 = arith.constant -3.000000e+38 : f32
    %107 = vector.broadcast %cst_41 : f32 to vector<64x128xf32>
    %108 = arith.select %106, %104, %107 : vector<64x128xi1>, vector<64x128xf32>
    %109 = arith.maximumf %103, %108 : vector<64x128xf32>
    %c1_i32_42 = arith.constant 1 : i32
    %110 = tpu.dynamic_rotate %103 by %c1_i32_42 dim 0 : vector<64x128xf32>, i32 -> vector<64x128xf32>
    %c1_i32_43 = arith.constant 1 : i32
    %111 = vector.broadcast %c1_i32_43 : i32 to vector<64x128xi32>
    %112 = arith.cmpi sge, %7, %111 : vector<64x128xi32>
    %cst_44 = arith.constant -3.000000e+38 : f32
    %113 = vector.broadcast %cst_44 : f32 to vector<64x128xf32>
    %114 = arith.select %112, %110, %113 : vector<64x128xi1>, vector<64x128xf32>
    %115 = arith.maximumf %109, %114 : vector<64x128xf32>
    %c63_i32_45 = arith.constant 63 : i32
    %116 = tpu.dynamic_rotate %103 by %c63_i32_45 dim 0 : vector<64x128xf32>, i32 -> vector<64x128xf32>
    %c6_i32_46 = arith.constant 6 : i32
    %117 = vector.broadcast %c6_i32_46 : i32 to vector<64x128xi32>
    %118 = arith.cmpi sle, %7, %117 : vector<64x128xi32>
    %cst_47 = arith.constant -3.000000e+38 : f32
    %119 = vector.broadcast %cst_47 : f32 to vector<64x128xf32>
    %120 = arith.select %118, %116, %119 : vector<64x128xi1>, vector<64x128xf32>
    %121 = arith.maximumf %115, %120 : vector<64x128xf32>
    %c62_i32_48 = arith.constant 62 : i32
    %122 = tpu.dynamic_rotate %103 by %c62_i32_48 dim 0 : vector<64x128xf32>, i32 -> vector<64x128xf32>
    %c5_i32_49 = arith.constant 5 : i32
    %123 = vector.broadcast %c5_i32_49 : i32 to vector<64x128xi32>
    %124 = arith.cmpi sle, %7, %123 : vector<64x128xi32>
    %cst_50 = arith.constant -3.000000e+38 : f32
    %125 = vector.broadcast %cst_50 : f32 to vector<64x128xf32>
    %126 = arith.select %124, %122, %125 : vector<64x128xi1>, vector<64x128xf32>
    %127 = arith.maximumf %121, %126 : vector<64x128xf32>
    %c16_i32_51 = arith.constant 16 : i32
    %128 = tpu.dynamic_rotate %127 by %c16_i32_51 dim 0 : vector<64x128xf32>, i32 -> vector<64x128xf32>
    %c2_i32_52 = arith.constant 2 : i32
    %129 = vector.broadcast %c2_i32_52 : i32 to vector<64x128xi32>
    %130 = arith.cmpi sge, %5, %129 : vector<64x128xi32>
    %cst_53 = arith.constant -3.000000e+38 : f32
    %131 = vector.broadcast %cst_53 : f32 to vector<64x128xf32>
    %132 = arith.select %130, %128, %131 : vector<64x128xi1>, vector<64x128xf32>
    %133 = arith.maximumf %127, %132 : vector<64x128xf32>
    %c8_i32_54 = arith.constant 8 : i32
    %134 = tpu.dynamic_rotate %127 by %c8_i32_54 dim 0 : vector<64x128xf32>, i32 -> vector<64x128xf32>
    %c1_i32_55 = arith.constant 1 : i32
    %135 = vector.broadcast %c1_i32_55 : i32 to vector<64x128xi32>
    %136 = arith.cmpi sge, %5, %135 : vector<64x128xi32>
    %cst_56 = arith.constant -3.000000e+38 : f32
    %137 = vector.broadcast %cst_56 : f32 to vector<64x128xf32>
    %138 = arith.select %136, %134, %137 : vector<64x128xi1>, vector<64x128xf32>
    %139 = arith.maximumf %133, %138 : vector<64x128xf32>
    %c56_i32_57 = arith.constant 56 : i32
    %140 = tpu.dynamic_rotate %127 by %c56_i32_57 dim 0 : vector<64x128xf32>, i32 -> vector<64x128xf32>
    %c6_i32_58 = arith.constant 6 : i32
    %141 = vector.broadcast %c6_i32_58 : i32 to vector<64x128xi32>
    %142 = arith.cmpi sle, %5, %141 : vector<64x128xi32>
    %cst_59 = arith.constant -3.000000e+38 : f32
    %143 = vector.broadcast %cst_59 : f32 to vector<64x128xf32>
    %144 = arith.select %142, %140, %143 : vector<64x128xi1>, vector<64x128xf32>
    %145 = arith.maximumf %139, %144 : vector<64x128xf32>
    %c48_i32_60 = arith.constant 48 : i32
    %146 = tpu.dynamic_rotate %127 by %c48_i32_60 dim 0 : vector<64x128xf32>, i32 -> vector<64x128xf32>
    %c5_i32_61 = arith.constant 5 : i32
    %147 = vector.broadcast %c5_i32_61 : i32 to vector<64x128xi32>
    %148 = arith.cmpi sle, %5, %147 : vector<64x128xi32>
    %cst_62 = arith.constant -3.000000e+38 : f32
    %149 = vector.broadcast %cst_62 : f32 to vector<64x128xf32>
    %150 = arith.select %148, %146, %149 : vector<64x128xi1>, vector<64x128xf32>
    %151 = arith.maximumf %145, %150 : vector<64x128xf32>
    %152 = tpu.concatenate %2, %55, %103, %151 in 1 : vector<64x128xf32>, vector<64x128xf32>, vector<64x128xf32>, vector<64x128xf32> -> vector<64x512xf32>
    %153 = arith.truncf %152 : vector<64x512xf32> to vector<64x512xbf16>
    %c0_63 = arith.constant 0 : index
    %c0_64 = arith.constant 0 : index
    %154 = vector.load %arg2[%c0_63, %c0_64] : memref<512x128xbf16, #tpu.memory_space<vmem>>, vector<512x128xbf16>
    %cst_65 = arith.constant dense<0.000000e+00> : vector<64x128xf32>
    %155 = tpu.matmul %153, %154, %cst_65 {dimension_numbers = #tpu.dot_dimension_numbers<[1], [0], [0], [1], [0, 0, 1, 1], [], []>} : vector<64x512xbf16>, vector<512x128xbf16>, vector<64x128xf32> -> vector<64x128xf32>
    %c0_66 = arith.constant 0 : index
    %c0_67 = arith.constant 0 : index
    %156 = vector.load %arg3[%c0_66, %c0_67] : memref<1x128xf32, #tpu.memory_space<vmem>>, vector<1x128xf32>
    %157 = vector.broadcast %156 : vector<1x128xf32> to vector<64x128xf32>
    %158 = arith.addf %155, %157 : vector<64x128xf32>
    %cst_68 = arith.constant 0.000000e+00 : f32
    %159 = vector.broadcast %cst_68 : f32 to vector<64x128xf32>
    %160 = arith.cmpf oge, %158, %159 : vector<64x128xf32>
    %cst_69 = arith.constant 1.000000e-01 : f32
    %161 = vector.broadcast %cst_69 : f32 to vector<64x128xf32>
    %162 = arith.mulf %161, %158 : vector<64x128xf32>
    %163 = arith.select %160, %158, %162 : vector<64x128xi1>, vector<64x128xf32>
    %164 = arith.truncf %163 : vector<64x128xf32> to vector<64x128xbf16>
    %c0_70 = arith.constant 0 : index
    %c0_71 = arith.constant 0 : index
    %165 = vector.load %arg4[%c0_70, %c0_71] : memref<128x128xbf16, #tpu.memory_space<vmem>>, vector<128x128xbf16>
    %cst_72 = arith.constant dense<0.000000e+00> : vector<64x128xf32>
    %166 = tpu.matmul %164, %165, %cst_72 {dimension_numbers = #tpu.dot_dimension_numbers<[1], [0], [0], [1], [0, 0, 1, 1], [], []>} : vector<64x128xbf16>, vector<128x128xbf16>, vector<64x128xf32> -> vector<64x128xf32>
    %c0_73 = arith.constant 0 : index
    %c0_74 = arith.constant 0 : index
    %167 = vector.load %arg5[%c0_73, %c0_74] : memref<1x128xf32, #tpu.memory_space<vmem>>, vector<1x128xf32>
    %168 = vector.broadcast %167 : vector<1x128xf32> to vector<64x128xf32>
    %169 = arith.addf %166, %168 : vector<64x128xf32>
    %cst_75 = arith.constant 0.000000e+00 : f32
    %170 = vector.broadcast %cst_75 : f32 to vector<64x128xf32>
    %171 = arith.cmpf oge, %169, %170 : vector<64x128xf32>
    %cst_76 = arith.constant 1.000000e-01 : f32
    %172 = vector.broadcast %cst_76 : f32 to vector<64x128xf32>
    %173 = arith.mulf %172, %169 : vector<64x128xf32>
    %174 = arith.select %171, %169, %173 : vector<64x128xi1>, vector<64x128xf32>
    %c0_77 = arith.constant 0 : index
    %c0_78 = arith.constant 0 : index
    %175 = vector.load %arg6[%c0_77, %c0_78] : memref<512x128xbf16, #tpu.memory_space<vmem>>, vector<512x128xbf16>
    %cst_79 = arith.constant dense<0.000000e+00> : vector<64x128xf32>
    %176 = tpu.matmul %153, %175, %cst_79 {dimension_numbers = #tpu.dot_dimension_numbers<[1], [0], [0], [1], [0, 0, 1, 1], [], []>} : vector<64x512xbf16>, vector<512x128xbf16>, vector<64x128xf32> -> vector<64x128xf32>
    %c0_80 = arith.constant 0 : index
    %c0_81 = arith.constant 0 : index
    %177 = vector.load %arg7[%c0_80, %c0_81] : memref<1x128xf32, #tpu.memory_space<vmem>>, vector<1x128xf32>
    %178 = vector.broadcast %177 : vector<1x128xf32> to vector<64x128xf32>
    %179 = arith.addf %176, %178 : vector<64x128xf32>
    %cst_82 = arith.constant 0.000000e+00 : f32
    %180 = vector.broadcast %cst_82 : f32 to vector<64x128xf32>
    %181 = arith.cmpf oge, %179, %180 : vector<64x128xf32>
    %cst_83 = arith.constant 1.000000e-01 : f32
    %182 = vector.broadcast %cst_83 : f32 to vector<64x128xf32>
    %183 = arith.mulf %182, %179 : vector<64x128xf32>
    %184 = arith.select %181, %179, %183 : vector<64x128xi1>, vector<64x128xf32>
    %185 = arith.truncf %174 : vector<64x128xf32> to vector<64x128xbf16>
    %c0_84 = arith.constant 0 : index
    %c0_85 = arith.constant 0 : index
    %c0_86 = arith.constant 0 : index
    %186 = vector.load %arg8[%c0_84, %c0_85, %c0_86] : memref<1x64x128xbf16, #tpu.memory_space<vmem>>, vector<1x64x128xbf16>
    %187 = vector.shape_cast %186 : vector<1x64x128xbf16> to vector<64x128xbf16>
    %188 = vector.shape_cast %185 : vector<64x128xbf16> to vector<1x64x128xbf16>
    tpu.vector_store %arg8[%c0_84, %c0_85, %c0_86], %188 {strides = array<i32>} : memref<1x64x128xbf16, #tpu.memory_space<vmem>>, vector<1x64x128xbf16>,
    %189 = arith.truncf %184 : vector<64x128xf32> to vector<64x128xbf16>
    %c0_87 = arith.constant 0 : index
    %c0_88 = arith.constant 0 : index
    %c0_89 = arith.constant 0 : index
    %190 = vector.load %arg9[%c0_87, %c0_88, %c0_89] : memref<1x64x128xbf16, #tpu.memory_space<vmem>>, vector<1x64x128xbf16>
    %191 = vector.shape_cast %190 : vector<1x64x128xbf16> to vector<64x128xbf16>
    %192 = vector.shape_cast %189 : vector<64x128xbf16> to vector<1x64x128xbf16>
    tpu.vector_store %arg9[%c0_87, %c0_88, %c0_89], %192 {strides = array<i32>} : memref<1x64x128xbf16, #tpu.memory_space<vmem>>, vector<1x64x128xbf16>,
    return
  }
  func.func @transform_0(%arg0: i32) -> (i32, i32, i32) {
    %c0_i32 = arith.constant 0 : i32
    %c0_i32_0 = arith.constant 0 : i32
    %c0_i32_1 = arith.constant 0 : i32
    return %arg0, %c0_i32, %c0_i32_0 : i32, i32, i32
  }
  func.func @transform_1(%arg0: i32) -> (i32, i32) {
    %c0_i32 = arith.constant 0 : i32
    %c0_i32_0 = arith.constant 0 : i32
    %c0_i32_1 = arith.constant 0 : i32
    return %c0_i32, %c0_i32_0 : i32, i32
  }
  func.func @transform_2(%arg0: i32) -> (i32, i32) {
    %c0_i32 = arith.constant 0 : i32
    %c0_i32_0 = arith.constant 0 : i32
    %c0_i32_1 = arith.constant 0 : i32
    return %c0_i32, %c0_i32_0 : i32, i32
  }
  func.func @transform_3(%arg0: i32) -> (i32, i32) {
    %c0_i32 = arith.constant 0 : i32
    %c0_i32_0 = arith.constant 0 : i32
    %c0_i32_1 = arith.constant 0 : i32
    return %c0_i32, %c0_i32_0 : i32, i32
  }
  func.func @transform_4(%arg0: i32) -> (i32, i32) {
    %c0_i32 = arith.constant 0 : i32
    %c0_i32_0 = arith.constant 0 : i32
    %c0_i32_1 = arith.constant 0 : i32
    return %c0_i32, %c0_i32_0 : i32, i32
  }
  func.func @transform_5(%arg0: i32) -> (i32, i32) {
    %c0_i32 = arith.constant 0 : i32
    %c0_i32_0 = arith.constant 0 : i32
    %c0_i32_1 = arith.constant 0 : i32
    return %c0_i32, %c0_i32_0 : i32, i32
  }
  func.func @transform_6(%arg0: i32) -> (i32, i32) {
    %c0_i32 = arith.constant 0 : i32
    %c0_i32_0 = arith.constant 0 : i32
    %c0_i32_1 = arith.constant 0 : i32
    return %c0_i32, %c0_i32_0 : i32, i32
  }
  func.func @transform_7(%arg0: i32) -> (i32, i32, i32) {
    %c0_i32 = arith.constant 0 : i32
    %c0_i32_0 = arith.constant 0 : i32
    %c0_i32_1 = arith.constant 0 : i32
    return %arg0, %c0_i32, %c0_i32_0 : i32, i32, i32
  }
  func.func @transform_8(%arg0: i32) -> (i32, i32, i32) {
    %c0_i32 = arith.constant 0 : i32
    %c0_i32_0 = arith.constant 0 : i32
    %c0_i32_1 = arith.constant 0 : i32
    return %arg0, %c0_i32, %c0_i32_0 : i32, i32, i32
  }
}

module attributes {stable_mosaic.version = 11 : i64} {
  func.func @_csp_bridge_kernel(%arg0: i32, %arg1: memref<1x64x128xbf16, #tpu.memory_space<vmem>>, %arg2: memref<1x64x128xbf16, #tpu.memory_space<vmem>>, %arg3: memref<1152x128xbf16, #tpu.memory_space<vmem>>, %arg4: memref<1x128xf32, #tpu.memory_space<vmem>>, %arg5: memref<128x128xbf16, #tpu.memory_space<vmem>>, %arg6: memref<1x128xf32, #tpu.memory_space<vmem>>, %arg7: memref<128x128xbf16, #tpu.memory_space<vmem>>, %arg8: memref<128x128xbf16, #tpu.memory_space<vmem>>, %arg9: memref<1x128xf32, #tpu.memory_space<vmem>>, %arg10: memref<128x128xbf16, #tpu.memory_space<vmem>>, %arg11: memref<1x128xf32, #tpu.memory_space<vmem>>, %arg12: memref<128x128xbf16, #tpu.memory_space<vmem>>, %arg13: memref<1x128xf32, #tpu.memory_space<vmem>>, %arg14: memref<128x128xbf16, #tpu.memory_space<vmem>>, %arg15: memref<1x128xf32, #tpu.memory_space<vmem>>, %arg16: memref<128x128xbf16, #tpu.memory_space<vmem>>, %arg17: memref<1x128xf32, #tpu.memory_space<vmem>>, %arg18: memref<1x64x128xbf16, #tpu.memory_space<vmem>>, %arg19: memref<1x64x128xbf16, #tpu.memory_space<vmem>>) attributes {dimension_semantics = [#tpu.dimension_semantics<parallel>], iteration_bounds = array<i64: 2>, scalar_prefetch = 0 : i64, scratch_operands = 0 : i64, tpu.core_type = #tpu.core_type<tc>, window_params = [{transform_indices = @transform_0, window_bounds = array<i64: 1, 64, 128>}, {transform_indices = @transform_1, window_bounds = array<i64: 1, 64, 128>}, {pipeline_mode = #tpu.pipeline_mode<synchronous>, transform_indices = @transform_2, window_bounds = array<i64: 1152, 128>}, {pipeline_mode = #tpu.pipeline_mode<synchronous>, transform_indices = @transform_3, window_bounds = array<i64: 1, 128>}, {pipeline_mode = #tpu.pipeline_mode<synchronous>, transform_indices = @transform_4, window_bounds = array<i64: 128, 128>}, {pipeline_mode = #tpu.pipeline_mode<synchronous>, transform_indices = @transform_5, window_bounds = array<i64: 1, 128>}, {pipeline_mode = #tpu.pipeline_mode<synchronous>, transform_indices = @transform_6, window_bounds = array<i64: 128, 128>}, {pipeline_mode = #tpu.pipeline_mode<synchronous>, transform_indices = @transform_7, window_bounds = array<i64: 128, 128>}, {pipeline_mode = #tpu.pipeline_mode<synchronous>, transform_indices = @transform_8, window_bounds = array<i64: 1, 128>}, {pipeline_mode = #tpu.pipeline_mode<synchronous>, transform_indices = @transform_9, window_bounds = array<i64: 128, 128>}, {pipeline_mode = #tpu.pipeline_mode<synchronous>, transform_indices = @transform_10, window_bounds = array<i64: 1, 128>}, {pipeline_mode = #tpu.pipeline_mode<synchronous>, transform_indices = @transform_11, window_bounds = array<i64: 128, 128>}, {pipeline_mode = #tpu.pipeline_mode<synchronous>, transform_indices = @transform_12, window_bounds = array<i64: 1, 128>}, {pipeline_mode = #tpu.pipeline_mode<synchronous>, transform_indices = @transform_13, window_bounds = array<i64: 128, 128>}, {pipeline_mode = #tpu.pipeline_mode<synchronous>, transform_indices = @transform_14, window_bounds = array<i64: 1, 128>}, {pipeline_mode = #tpu.pipeline_mode<synchronous>, transform_indices = @transform_15, window_bounds = array<i64: 128, 128>}, {pipeline_mode = #tpu.pipeline_mode<synchronous>, transform_indices = @transform_16, window_bounds = array<i64: 1, 128>}, {transform_indices = @transform_17, window_bounds = array<i64: 1, 64, 128>}, {transform_indices = @transform_18, window_bounds = array<i64: 1, 64, 128>}]} {
    %c0 = arith.constant 0 : index
    %c0_0 = arith.constant 0 : index
    %c0_1 = arith.constant 0 : index
    %0 = vector.load %arg1[%c0, %c0_0, %c0_1] : memref<1x64x128xbf16, #tpu.memory_space<vmem>>, vector<1x64x128xbf16>
    %1 = vector.shape_cast %0 : vector<1x64x128xbf16> to vector<64x128xbf16>
    %2 = arith.extf %1 : vector<64x128xbf16> to vector<64x128xf32>
    %3 = tpu.iota {dimensions = array<i32: 0>} : vector<64x128xi32>
    %c3_i32 = arith.constant 3 : i32
    %4 = vector.broadcast %c3_i32 : i32 to vector<64x128xi32>
    %5 = arith.shrsi %3, %4 : vector<64x128xi32>
    %c7_i32 = arith.constant 7 : i32
    %6 = vector.broadcast %c7_i32 : i32 to vector<64x128xi32>
    %7 = arith.andi %3, %6 : vector<64x128xi32>
    %c1_i32 = arith.constant 1 : i32
    %8 = vector.broadcast %c1_i32 : i32 to vector<64x128xi32>
    %9 = arith.cmpi sge, %5, %8 : vector<64x128xi32>
    %c1_i32_2 = arith.constant 1 : i32
    %10 = vector.broadcast %c1_i32_2 : i32 to vector<64x128xi32>
    %11 = arith.cmpi sge, %7, %10 : vector<64x128xi32>
    %c9_i32 = arith.constant 9 : i32
    %12 = tpu.dynamic_rotate %2 by %c9_i32 dim 0 : vector<64x128xf32>, i32 -> vector<64x128xf32>
    %13 = arith.andi %9, %11 : vector<64x128xi1>
    %cst = arith.constant 0.000000e+00 : f32
    %14 = vector.broadcast %cst : f32 to vector<64x128xf32>
    %15 = arith.select %13, %12, %14 : vector<64x128xi1>, vector<64x128xf32>
    %16 = arith.truncf %15 : vector<64x128xf32> to vector<64x128xbf16>
    %c8_i32 = arith.constant 8 : i32
    %17 = tpu.dynamic_rotate %2 by %c8_i32 dim 0 : vector<64x128xf32>, i32 -> vector<64x128xf32>
    %cst_3 = arith.constant 0.000000e+00 : f32
    %18 = vector.broadcast %cst_3 : f32 to vector<64x128xf32>
    %19 = arith.select %9, %17, %18 : vector<64x128xi1>, vector<64x128xf32>
    %20 = arith.truncf %19 : vector<64x128xf32> to vector<64x128xbf16>
    %c6_i32 = arith.constant 6 : i32
    %21 = vector.broadcast %c6_i32 : i32 to vector<64x128xi32>
    %22 = arith.cmpi sle, %7, %21 : vector<64x128xi32>
    %c7_i32_4 = arith.constant 7 : i32
    %23 = tpu.dynamic_rotate %2 by %c7_i32_4 dim 0 : vector<64x128xf32>, i32 -> vector<64x128xf32>
    %24 = arith.andi %9, %22 : vector<64x128xi1>
    %cst_5 = arith.constant 0.000000e+00 : f32
    %25 = vector.broadcast %cst_5 : f32 to vector<64x128xf32>
    %26 = arith.select %24, %23, %25 : vector<64x128xi1>, vector<64x128xf32>
    %27 = arith.truncf %26 : vector<64x128xf32> to vector<64x128xbf16>
    %c1_i32_6 = arith.constant 1 : i32
    %28 = vector.broadcast %c1_i32_6 : i32 to vector<64x128xi32>
    %29 = arith.cmpi sge, %7, %28 : vector<64x128xi32>
    %c1_i32_7 = arith.constant 1 : i32
    %30 = tpu.dynamic_rotate %2 by %c1_i32_7 dim 0 : vector<64x128xf32>, i32 -> vector<64x128xf32>
    %cst_8 = arith.constant 0.000000e+00 : f32
    %31 = vector.broadcast %cst_8 : f32 to vector<64x128xf32>
    %32 = arith.select %29, %30, %31 : vector<64x128xi1>, vector<64x128xf32>
    %33 = arith.truncf %32 : vector<64x128xf32> to vector<64x128xbf16>
    %34 = arith.truncf %2 : vector<64x128xf32> to vector<64x128xbf16>
    %c6_i32_9 = arith.constant 6 : i32
    %35 = vector.broadcast %c6_i32_9 : i32 to vector<64x128xi32>
    %36 = arith.cmpi sle, %7, %35 : vector<64x128xi32>
    %c63_i32 = arith.constant 63 : i32
    %37 = tpu.dynamic_rotate %2 by %c63_i32 dim 0 : vector<64x128xf32>, i32 -> vector<64x128xf32>
    %cst_10 = arith.constant 0.000000e+00 : f32
    %38 = vector.broadcast %cst_10 : f32 to vector<64x128xf32>
    %39 = arith.select %36, %37, %38 : vector<64x128xi1>, vector<64x128xf32>
    %40 = arith.truncf %39 : vector<64x128xf32> to vector<64x128xbf16>
    %c6_i32_11 = arith.constant 6 : i32
    %41 = vector.broadcast %c6_i32_11 : i32 to vector<64x128xi32>
    %42 = arith.cmpi sle, %5, %41 : vector<64x128xi32>
    %c1_i32_12 = arith.constant 1 : i32
    %43 = vector.broadcast %c1_i32_12 : i32 to vector<64x128xi32>
    %44 = arith.cmpi sge, %7, %43 : vector<64x128xi32>
    %c57_i32 = arith.constant 57 : i32
    %45 = tpu.dynamic_rotate %2 by %c57_i32 dim 0 : vector<64x128xf32>, i32 -> vector<64x128xf32>
    %46 = arith.andi %42, %44 : vector<64x128xi1>
    %cst_13 = arith.constant 0.000000e+00 : f32
    %47 = vector.broadcast %cst_13 : f32 to vector<64x128xf32>
    %48 = arith.select %46, %45, %47 : vector<64x128xi1>, vector<64x128xf32>
    %49 = arith.truncf %48 : vector<64x128xf32> to vector<64x128xbf16>
    %c56_i32 = arith.constant 56 : i32
    %50 = tpu.dynamic_rotate %2 by %c56_i32 dim 0 : vector<64x128xf32>, i32 -> vector<64x128xf32>
    %cst_14 = arith.constant 0.000000e+00 : f32
    %51 = vector.broadcast %cst_14 : f32 to vector<64x128xf32>
    %52 = arith.select %42, %50, %51 : vector<64x128xi1>, vector<64x128xf32>
    %53 = arith.truncf %52 : vector<64x128xf32> to vector<64x128xbf16>
    %c6_i32_15 = arith.constant 6 : i32
    %54 = vector.broadcast %c6_i32_15 : i32 to vector<64x128xi32>
    %55 = arith.cmpi sle, %7, %54 : vector<64x128xi32>
    %c55_i32 = arith.constant 55 : i32
    %56 = tpu.dynamic_rotate %2 by %c55_i32 dim 0 : vector<64x128xf32>, i32 -> vector<64x128xf32>
    %57 = arith.andi %42, %55 : vector<64x128xi1>
    %cst_16 = arith.constant 0.000000e+00 : f32
    %58 = vector.broadcast %cst_16 : f32 to vector<64x128xf32>
    %59 = arith.select %57, %56, %58 : vector<64x128xi1>, vector<64x128xf32>
    %60 = arith.truncf %59 : vector<64x128xf32> to vector<64x128xbf16>
    %61 = tpu.concatenate %16, %20, %27, %33, %34, %40, %49, %53, %60 in 1 : vector<64x128xbf16>, vector<64x128xbf16>, vector<64x128xbf16>, vector<64x128xbf16>, vector<64x128xbf16>, vector<64x128xbf16>, vector<64x128xbf16>, vector<64x128xbf16>, vector<64x128xbf16> -> vector<64x1152xbf16>
    %c0_17 = arith.constant 0 : index
    %c0_18 = arith.constant 0 : index
    %62 = vector.load %arg3[%c0_17, %c0_18] : memref<1152x128xbf16, #tpu.memory_space<vmem>>, vector<1152x128xbf16>
    %cst_19 = arith.constant dense<0.000000e+00> : vector<64x128xf32>
    %63 = tpu.matmul %61, %62, %cst_19 {dimension_numbers = #tpu.dot_dimension_numbers<[1], [0], [0], [1], [0, 0, 1, 1], [], []>} : vector<64x1152xbf16>, vector<1152x128xbf16>, vector<64x128xf32> -> vector<64x128xf32>
    %c0_20 = arith.constant 0 : index
    %c0_21 = arith.constant 0 : index
    %64 = vector.load %arg4[%c0_20, %c0_21] : memref<1x128xf32, #tpu.memory_space<vmem>>, vector<1x128xf32>
    %65 = vector.broadcast %64 : vector<1x128xf32> to vector<64x128xf32>
    %66 = arith.addf %63, %65 : vector<64x128xf32>
    %cst_22 = arith.constant 0.000000e+00 : f32
    %67 = vector.broadcast %cst_22 : f32 to vector<64x128xf32>
    %68 = arith.cmpf oge, %66, %67 : vector<64x128xf32>
    %cst_23 = arith.constant 1.000000e-01 : f32
    %69 = vector.broadcast %cst_23 : f32 to vector<64x128xf32>
    %70 = arith.mulf %69, %66 : vector<64x128xf32>
    %71 = arith.select %68, %66, %70 : vector<64x128xi1>, vector<64x128xf32>
    %72 = arith.truncf %71 : vector<64x128xf32> to vector<64x128xbf16>
    %c0_24 = arith.constant 0 : index
    %c0_25 = arith.constant 0 : index
    %73 = vector.load %arg5[%c0_24, %c0_25] : memref<128x128xbf16, #tpu.memory_space<vmem>>, vector<128x128xbf16>
    %cst_26 = arith.constant dense<0.000000e+00> : vector<64x128xf32>
    %74 = tpu.matmul %72, %73, %cst_26 {dimension_numbers = #tpu.dot_dimension_numbers<[1], [0], [0], [1], [0, 0, 1, 1], [], []>} : vector<64x128xbf16>, vector<128x128xbf16>, vector<64x128xf32> -> vector<64x128xf32>
    %c0_27 = arith.constant 0 : index
    %c0_28 = arith.constant 0 : index
    %75 = vector.load %arg6[%c0_27, %c0_28] : memref<1x128xf32, #tpu.memory_space<vmem>>, vector<1x128xf32>
    %76 = vector.broadcast %75 : vector<1x128xf32> to vector<64x128xf32>
    %77 = arith.addf %74, %76 : vector<64x128xf32>
    %cst_29 = arith.constant 0.000000e+00 : f32
    %78 = vector.broadcast %cst_29 : f32 to vector<64x128xf32>
    %79 = arith.cmpf oge, %77, %78 : vector<64x128xf32>
    %cst_30 = arith.constant 1.000000e-01 : f32
    %80 = vector.broadcast %cst_30 : f32 to vector<64x128xf32>
    %81 = arith.mulf %80, %77 : vector<64x128xf32>
    %82 = arith.select %79, %77, %81 : vector<64x128xi1>, vector<64x128xf32>
    %83 = arith.truncf %82 : vector<64x128xf32> to vector<64x128xbf16>
    %c0_31 = arith.constant 0 : index
    %c0_32 = arith.constant 0 : index
    %84 = vector.load %arg7[%c0_31, %c0_32] : memref<128x128xbf16, #tpu.memory_space<vmem>>, vector<128x128xbf16>
    %cst_33 = arith.constant dense<0.000000e+00> : vector<64x128xf32>
    %85 = tpu.matmul %83, %84, %cst_33 {dimension_numbers = #tpu.dot_dimension_numbers<[1], [0], [0], [1], [0, 0, 1, 1], [], []>} : vector<64x128xbf16>, vector<128x128xbf16>, vector<64x128xf32> -> vector<64x128xf32>
    %c0_34 = arith.constant 0 : index
    %c0_35 = arith.constant 0 : index
    %c0_36 = arith.constant 0 : index
    %86 = vector.load %arg2[%c0_34, %c0_35, %c0_36] : memref<1x64x128xbf16, #tpu.memory_space<vmem>>, vector<1x64x128xbf16>
    %87 = vector.shape_cast %86 : vector<1x64x128xbf16> to vector<64x128xbf16>
    %c0_37 = arith.constant 0 : index
    %c0_38 = arith.constant 0 : index
    %88 = vector.load %arg8[%c0_37, %c0_38] : memref<128x128xbf16, #tpu.memory_space<vmem>>, vector<128x128xbf16>
    %cst_39 = arith.constant dense<0.000000e+00> : vector<64x128xf32>
    %89 = tpu.matmul %87, %88, %cst_39 {dimension_numbers = #tpu.dot_dimension_numbers<[1], [0], [0], [1], [0, 0, 1, 1], [], []>} : vector<64x128xbf16>, vector<128x128xbf16>, vector<64x128xf32> -> vector<64x128xf32>
    %90 = arith.addf %85, %89 : vector<64x128xf32>
    %c0_40 = arith.constant 0 : index
    %c0_41 = arith.constant 0 : index
    %91 = vector.load %arg9[%c0_40, %c0_41] : memref<1x128xf32, #tpu.memory_space<vmem>>, vector<1x128xf32>
    %92 = vector.broadcast %91 : vector<1x128xf32> to vector<64x128xf32>
    %93 = arith.addf %90, %92 : vector<64x128xf32>
    %cst_42 = arith.constant 0.000000e+00 : f32
    %94 = vector.broadcast %cst_42 : f32 to vector<64x128xf32>
    %95 = arith.cmpf oge, %93, %94 : vector<64x128xf32>
    %cst_43 = arith.constant 1.000000e-01 : f32
    %96 = vector.broadcast %cst_43 : f32 to vector<64x128xf32>
    %97 = arith.mulf %96, %93 : vector<64x128xf32>
    %98 = arith.select %95, %93, %97 : vector<64x128xi1>, vector<64x128xf32>
    %99 = arith.truncf %98 : vector<64x128xf32> to vector<64x128xbf16>
    %c0_44 = arith.constant 0 : index
    %c0_45 = arith.constant 0 : index
    %100 = vector.load %arg10[%c0_44, %c0_45] : memref<128x128xbf16, #tpu.memory_space<vmem>>, vector<128x128xbf16>
    %cst_46 = arith.constant dense<0.000000e+00> : vector<64x128xf32>
    %101 = tpu.matmul %99, %100, %cst_46 {dimension_numbers = #tpu.dot_dimension_numbers<[1], [0], [0], [1], [0, 0, 1, 1], [], []>} : vector<64x128xbf16>, vector<128x128xbf16>, vector<64x128xf32> -> vector<64x128xf32>
    %c0_47 = arith.constant 0 : index
    %c0_48 = arith.constant 0 : index
    %102 = vector.load %arg11[%c0_47, %c0_48] : memref<1x128xf32, #tpu.memory_space<vmem>>, vector<1x128xf32>
    %103 = vector.broadcast %102 : vector<1x128xf32> to vector<64x128xf32>
    %104 = arith.addf %101, %103 : vector<64x128xf32>
    %105 = arith.negf %104 : vector<64x128xf32>
    %106 = math.exp %105 : vector<64x128xf32>
    %cst_49 = arith.constant 1.000000e+00 : f32
    %107 = vector.broadcast %cst_49 : f32 to vector<64x128xf32>
    %108 = arith.addf %107, %106 : vector<64x128xf32>
    %109 = arith.divf %107, %108 : vector<64x128xf32>
    %110 = arith.mulf %98, %109 : vector<64x128xf32>
    %111 = arith.truncf %110 : vector<64x128xf32> to vector<64x128xbf16>
    %c0_50 = arith.constant 0 : index
    %c0_51 = arith.constant 0 : index
    %112 = vector.load %arg12[%c0_50, %c0_51] : memref<128x128xbf16, #tpu.memory_space<vmem>>, vector<128x128xbf16>
    %cst_52 = arith.constant dense<0.000000e+00> : vector<64x128xf32>
    %113 = tpu.matmul %111, %112, %cst_52 {dimension_numbers = #tpu.dot_dimension_numbers<[1], [0], [0], [1], [0, 0, 1, 1], [], []>} : vector<64x128xbf16>, vector<128x128xbf16>, vector<64x128xf32> -> vector<64x128xf32>
    %c0_53 = arith.constant 0 : index
    %c0_54 = arith.constant 0 : index
    %114 = vector.load %arg13[%c0_53, %c0_54] : memref<1x128xf32, #tpu.memory_space<vmem>>, vector<1x128xf32>
    %115 = vector.broadcast %114 : vector<1x128xf32> to vector<64x128xf32>
    %116 = arith.addf %113, %115 : vector<64x128xf32>
    %cst_55 = arith.constant 0.000000e+00 : f32
    %117 = vector.broadcast %cst_55 : f32 to vector<64x128xf32>
    %118 = arith.cmpf oge, %116, %117 : vector<64x128xf32>
    %cst_56 = arith.constant 1.000000e-01 : f32
    %119 = vector.broadcast %cst_56 : f32 to vector<64x128xf32>
    %120 = arith.mulf %119, %116 : vector<64x128xf32>
    %121 = arith.select %118, %116, %120 : vector<64x128xi1>, vector<64x128xf32>
    %122 = arith.truncf %121 : vector<64x128xf32> to vector<64x128xbf16>
    %c0_57 = arith.constant 0 : index
    %c0_58 = arith.constant 0 : index
    %123 = vector.load %arg14[%c0_57, %c0_58] : memref<128x128xbf16, #tpu.memory_space<vmem>>, vector<128x128xbf16>
    %cst_59 = arith.constant dense<0.000000e+00> : vector<64x128xf32>
    %124 = tpu.matmul %122, %123, %cst_59 {dimension_numbers = #tpu.dot_dimension_numbers<[1], [0], [0], [1], [0, 0, 1, 1], [], []>} : vector<64x128xbf16>, vector<128x128xbf16>, vector<64x128xf32> -> vector<64x128xf32>
    %c0_60 = arith.constant 0 : index
    %c0_61 = arith.constant 0 : index
    %125 = vector.load %arg15[%c0_60, %c0_61] : memref<1x128xf32, #tpu.memory_space<vmem>>, vector<1x128xf32>
    %126 = vector.broadcast %125 : vector<1x128xf32> to vector<64x128xf32>
    %127 = arith.addf %124, %126 : vector<64x128xf32>
    %cst_62 = arith.constant 0.000000e+00 : f32
    %128 = vector.broadcast %cst_62 : f32 to vector<64x128xf32>
    %129 = arith.cmpf oge, %127, %128 : vector<64x128xf32>
    %cst_63 = arith.constant 1.000000e-01 : f32
    %130 = vector.broadcast %cst_63 : f32 to vector<64x128xf32>
    %131 = arith.mulf %130, %127 : vector<64x128xf32>
    %132 = arith.select %129, %127, %131 : vector<64x128xi1>, vector<64x128xf32>
    %133 = arith.truncf %110 : vector<64x128xf32> to vector<64x128xbf16>
    %c0_64 = arith.constant 0 : index
    %c0_65 = arith.constant 0 : index
    %134 = vector.load %arg16[%c0_64, %c0_65] : memref<128x128xbf16, #tpu.memory_space<vmem>>, vector<128x128xbf16>
    %cst_66 = arith.constant dense<0.000000e+00> : vector<64x128xf32>
    %135 = tpu.matmul %133, %134, %cst_66 {dimension_numbers = #tpu.dot_dimension_numbers<[1], [0], [0], [1], [0, 0, 1, 1], [], []>} : vector<64x128xbf16>, vector<128x128xbf16>, vector<64x128xf32> -> vector<64x128xf32>
    %c0_67 = arith.constant 0 : index
    %c0_68 = arith.constant 0 : index
    %136 = vector.load %arg17[%c0_67, %c0_68] : memref<1x128xf32, #tpu.memory_space<vmem>>, vector<1x128xf32>
    %137 = vector.broadcast %136 : vector<1x128xf32> to vector<64x128xf32>
    %138 = arith.addf %135, %137 : vector<64x128xf32>
    %cst_69 = arith.constant 0.000000e+00 : f32
    %139 = vector.broadcast %cst_69 : f32 to vector<64x128xf32>
    %140 = arith.cmpf oge, %138, %139 : vector<64x128xf32>
    %cst_70 = arith.constant 1.000000e-01 : f32
    %141 = vector.broadcast %cst_70 : f32 to vector<64x128xf32>
    %142 = arith.mulf %141, %138 : vector<64x128xf32>
    %143 = arith.select %140, %138, %142 : vector<64x128xi1>, vector<64x128xf32>
    %144 = arith.truncf %132 : vector<64x128xf32> to vector<64x128xbf16>
    %c0_71 = arith.constant 0 : index
    %c0_72 = arith.constant 0 : index
    %c0_73 = arith.constant 0 : index
    %145 = vector.load %arg18[%c0_71, %c0_72, %c0_73] : memref<1x64x128xbf16, #tpu.memory_space<vmem>>, vector<1x64x128xbf16>
    %146 = vector.shape_cast %145 : vector<1x64x128xbf16> to vector<64x128xbf16>
    %147 = vector.shape_cast %144 : vector<64x128xbf16> to vector<1x64x128xbf16>
    tpu.vector_store %arg18[%c0_71, %c0_72, %c0_73], %147 {strides = array<i32>} : memref<1x64x128xbf16, #tpu.memory_space<vmem>>, vector<1x64x128xbf16>,
    %148 = arith.truncf %143 : vector<64x128xf32> to vector<64x128xbf16>
    %c0_74 = arith.constant 0 : index
    %c0_75 = arith.constant 0 : index
    %c0_76 = arith.constant 0 : index
    %149 = vector.load %arg19[%c0_74, %c0_75, %c0_76] : memref<1x64x128xbf16, #tpu.memory_space<vmem>>, vector<1x64x128xbf16>
    %150 = vector.shape_cast %149 : vector<1x64x128xbf16> to vector<64x128xbf16>
    %151 = vector.shape_cast %148 : vector<64x128xbf16> to vector<1x64x128xbf16>
    tpu.vector_store %arg19[%c0_74, %c0_75, %c0_76], %151 {strides = array<i32>} : memref<1x64x128xbf16, #tpu.memory_space<vmem>>, vector<1x64x128xbf16>,
    return
  }
  func.func @transform_0(%arg0: i32) -> (i32, i32, i32) {
    %c0_i32 = arith.constant 0 : i32
    %c0_i32_0 = arith.constant 0 : i32
    %c0_i32_1 = arith.constant 0 : i32
    return %arg0, %c0_i32, %c0_i32_0 : i32, i32, i32
  }
  func.func @transform_1(%arg0: i32) -> (i32, i32, i32) {
    %c0_i32 = arith.constant 0 : i32
    %c0_i32_0 = arith.constant 0 : i32
    %c0_i32_1 = arith.constant 0 : i32
    return %arg0, %c0_i32, %c0_i32_0 : i32, i32, i32
  }
  func.func @transform_2(%arg0: i32) -> (i32, i32) {
    %c0_i32 = arith.constant 0 : i32
    %c0_i32_0 = arith.constant 0 : i32
    %c0_i32_1 = arith.constant 0 : i32
    return %c0_i32, %c0_i32_0 : i32, i32
  }
  func.func @transform_3(%arg0: i32) -> (i32, i32) {
    %c0_i32 = arith.constant 0 : i32
    %c0_i32_0 = arith.constant 0 : i32
    %c0_i32_1 = arith.constant 0 : i32
    return %c0_i32, %c0_i32_0 : i32, i32
  }
  func.func @transform_4(%arg0: i32) -> (i32, i32) {
    %c0_i32 = arith.constant 0 : i32
    %c0_i32_0 = arith.constant 0 : i32
    %c0_i32_1 = arith.constant 0 : i32
    return %c0_i32, %c0_i32_0 : i32, i32
  }
  func.func @transform_5(%arg0: i32) -> (i32, i32) {
    %c0_i32 = arith.constant 0 : i32
    %c0_i32_0 = arith.constant 0 : i32
    %c0_i32_1 = arith.constant 0 : i32
    return %c0_i32, %c0_i32_0 : i32, i32
  }
  func.func @transform_6(%arg0: i32) -> (i32, i32) {
    %c0_i32 = arith.constant 0 : i32
    %c0_i32_0 = arith.constant 0 : i32
    %c0_i32_1 = arith.constant 0 : i32
    return %c0_i32, %c0_i32_0 : i32, i32
  }
  func.func @transform_7(%arg0: i32) -> (i32, i32) {
    %c0_i32 = arith.constant 0 : i32
    %c0_i32_0 = arith.constant 0 : i32
    %c0_i32_1 = arith.constant 0 : i32
    return %c0_i32, %c0_i32_0 : i32, i32
  }
  func.func @transform_8(%arg0: i32) -> (i32, i32) {
    %c0_i32 = arith.constant 0 : i32
    %c0_i32_0 = arith.constant 0 : i32
    %c0_i32_1 = arith.constant 0 : i32
    return %c0_i32, %c0_i32_0 : i32, i32
  }
  func.func @transform_9(%arg0: i32) -> (i32, i32) {
    %c0_i32 = arith.constant 0 : i32
    %c0_i32_0 = arith.constant 0 : i32
    %c0_i32_1 = arith.constant 0 : i32
    return %c0_i32, %c0_i32_0 : i32, i32
  }
  func.func @transform_10(%arg0: i32) -> (i32, i32) {
    %c0_i32 = arith.constant 0 : i32
    %c0_i32_0 = arith.constant 0 : i32
    %c0_i32_1 = arith.constant 0 : i32
    return %c0_i32, %c0_i32_0 : i32, i32
  }
  func.func @transform_11(%arg0: i32) -> (i32, i32) {
    %c0_i32 = arith.constant 0 : i32
    %c0_i32_0 = arith.constant 0 : i32
    %c0_i32_1 = arith.constant 0 : i32
    return %c0_i32, %c0_i32_0 : i32, i32
  }
  func.func @transform_12(%arg0: i32) -> (i32, i32) {
    %c0_i32 = arith.constant 0 : i32
    %c0_i32_0 = arith.constant 0 : i32
    %c0_i32_1 = arith.constant 0 : i32
    return %c0_i32, %c0_i32_0 : i32, i32
  }
  func.func @transform_13(%arg0: i32) -> (i32, i32) {
    %c0_i32 = arith.constant 0 : i32
    %c0_i32_0 = arith.constant 0 : i32
    %c0_i32_1 = arith.constant 0 : i32
    return %c0_i32, %c0_i32_0 : i32, i32
  }
  func.func @transform_14(%arg0: i32) -> (i32, i32) {
    %c0_i32 = arith.constant 0 : i32
    %c0_i32_0 = arith.constant 0 : i32
    %c0_i32_1 = arith.constant 0 : i32
    return %c0_i32, %c0_i32_0 : i32, i32
  }
  func.func @transform_15(%arg0: i32) -> (i32, i32) {
    %c0_i32 = arith.constant 0 : i32
    %c0_i32_0 = arith.constant 0 : i32
    %c0_i32_1 = arith.constant 0 : i32
    return %c0_i32, %c0_i32_0 : i32, i32
  }
  func.func @transform_16(%arg0: i32) -> (i32, i32) {
    %c0_i32 = arith.constant 0 : i32
    %c0_i32_0 = arith.constant 0 : i32
    %c0_i32_1 = arith.constant 0 : i32
    return %c0_i32, %c0_i32_0 : i32, i32
  }
  func.func @transform_17(%arg0: i32) -> (i32, i32, i32) {
    %c0_i32 = arith.constant 0 : i32
    %c0_i32_0 = arith.constant 0 : i32
    %c0_i32_1 = arith.constant 0 : i32
    return %arg0, %c0_i32, %c0_i32_0 : i32, i32, i32
  }
  func.func @transform_18(%arg0: i32) -> (i32, i32, i32) {
    %c0_i32 = arith.constant 0 : i32
    %c0_i32_0 = arith.constant 0 : i32
    %c0_i32_1 = arith.constant 0 : i32
    return %arg0, %c0_i32, %c0_i32_0 : i32, i32, i32
  }
}

module attributes {stable_mosaic.version = 11 : i64} {
  func.func @_bottleneck_kernel(%arg0: i32, %arg1: memref<1x64x128xbf16, #tpu.memory_space<vmem>>, %arg2: memref<1152x128xbf16, #tpu.memory_space<vmem>>, %arg3: memref<1x128xf32, #tpu.memory_space<vmem>>, %arg4: memref<128x128xbf16, #tpu.memory_space<vmem>>, %arg5: memref<1x128xf32, #tpu.memory_space<vmem>>, %arg6: memref<1x64x128xbf16, #tpu.memory_space<vmem>>) attributes {dimension_semantics = [#tpu.dimension_semantics<parallel>], iteration_bounds = array<i64: 2>, scalar_prefetch = 0 : i64, scratch_operands = 0 : i64, tpu.core_type = #tpu.core_type<tc>, window_params = [{transform_indices = @transform_0, window_bounds = array<i64: 1, 64, 128>}, {pipeline_mode = #tpu.pipeline_mode<synchronous>, transform_indices = @transform_1, window_bounds = array<i64: 1152, 128>}, {pipeline_mode = #tpu.pipeline_mode<synchronous>, transform_indices = @transform_2, window_bounds = array<i64: 1, 128>}, {pipeline_mode = #tpu.pipeline_mode<synchronous>, transform_indices = @transform_3, window_bounds = array<i64: 128, 128>}, {pipeline_mode = #tpu.pipeline_mode<synchronous>, transform_indices = @transform_4, window_bounds = array<i64: 1, 128>}, {transform_indices = @transform_5, window_bounds = array<i64: 1, 64, 128>}]} {
    %c0 = arith.constant 0 : index
    %c0_0 = arith.constant 0 : index
    %c0_1 = arith.constant 0 : index
    %0 = vector.load %arg1[%c0, %c0_0, %c0_1] : memref<1x64x128xbf16, #tpu.memory_space<vmem>>, vector<1x64x128xbf16>
    %1 = vector.shape_cast %0 : vector<1x64x128xbf16> to vector<64x128xbf16>
    %2 = arith.extf %1 : vector<64x128xbf16> to vector<64x128xf32>
    %3 = tpu.iota {dimensions = array<i32: 0>} : vector<64x128xi32>
    %c3_i32 = arith.constant 3 : i32
    %4 = vector.broadcast %c3_i32 : i32 to vector<64x128xi32>
    %5 = arith.shrsi %3, %4 : vector<64x128xi32>
    %c7_i32 = arith.constant 7 : i32
    %6 = vector.broadcast %c7_i32 : i32 to vector<64x128xi32>
    %7 = arith.andi %3, %6 : vector<64x128xi32>
    %c1_i32 = arith.constant 1 : i32
    %8 = vector.broadcast %c1_i32 : i32 to vector<64x128xi32>
    %9 = arith.cmpi sge, %5, %8 : vector<64x128xi32>
    %c1_i32_2 = arith.constant 1 : i32
    %10 = vector.broadcast %c1_i32_2 : i32 to vector<64x128xi32>
    %11 = arith.cmpi sge, %7, %10 : vector<64x128xi32>
    %c9_i32 = arith.constant 9 : i32
    %12 = tpu.dynamic_rotate %2 by %c9_i32 dim 0 : vector<64x128xf32>, i32 -> vector<64x128xf32>
    %13 = arith.andi %9, %11 : vector<64x128xi1>
    %cst = arith.constant 0.000000e+00 : f32
    %14 = vector.broadcast %cst : f32 to vector<64x128xf32>
    %15 = arith.select %13, %12, %14 : vector<64x128xi1>, vector<64x128xf32>
    %16 = arith.truncf %15 : vector<64x128xf32> to vector<64x128xbf16>
    %c8_i32 = arith.constant 8 : i32
    %17 = tpu.dynamic_rotate %2 by %c8_i32 dim 0 : vector<64x128xf32>, i32 -> vector<64x128xf32>
    %cst_3 = arith.constant 0.000000e+00 : f32
    %18 = vector.broadcast %cst_3 : f32 to vector<64x128xf32>
    %19 = arith.select %9, %17, %18 : vector<64x128xi1>, vector<64x128xf32>
    %20 = arith.truncf %19 : vector<64x128xf32> to vector<64x128xbf16>
    %c6_i32 = arith.constant 6 : i32
    %21 = vector.broadcast %c6_i32 : i32 to vector<64x128xi32>
    %22 = arith.cmpi sle, %7, %21 : vector<64x128xi32>
    %c7_i32_4 = arith.constant 7 : i32
    %23 = tpu.dynamic_rotate %2 by %c7_i32_4 dim 0 : vector<64x128xf32>, i32 -> vector<64x128xf32>
    %24 = arith.andi %9, %22 : vector<64x128xi1>
    %cst_5 = arith.constant 0.000000e+00 : f32
    %25 = vector.broadcast %cst_5 : f32 to vector<64x128xf32>
    %26 = arith.select %24, %23, %25 : vector<64x128xi1>, vector<64x128xf32>
    %27 = arith.truncf %26 : vector<64x128xf32> to vector<64x128xbf16>
    %c1_i32_6 = arith.constant 1 : i32
    %28 = vector.broadcast %c1_i32_6 : i32 to vector<64x128xi32>
    %29 = arith.cmpi sge, %7, %28 : vector<64x128xi32>
    %c1_i32_7 = arith.constant 1 : i32
    %30 = tpu.dynamic_rotate %2 by %c1_i32_7 dim 0 : vector<64x128xf32>, i32 -> vector<64x128xf32>
    %cst_8 = arith.constant 0.000000e+00 : f32
    %31 = vector.broadcast %cst_8 : f32 to vector<64x128xf32>
    %32 = arith.select %29, %30, %31 : vector<64x128xi1>, vector<64x128xf32>
    %33 = arith.truncf %32 : vector<64x128xf32> to vector<64x128xbf16>
    %34 = arith.truncf %2 : vector<64x128xf32> to vector<64x128xbf16>
    %c6_i32_9 = arith.constant 6 : i32
    %35 = vector.broadcast %c6_i32_9 : i32 to vector<64x128xi32>
    %36 = arith.cmpi sle, %7, %35 : vector<64x128xi32>
    %c63_i32 = arith.constant 63 : i32
    %37 = tpu.dynamic_rotate %2 by %c63_i32 dim 0 : vector<64x128xf32>, i32 -> vector<64x128xf32>
    %cst_10 = arith.constant 0.000000e+00 : f32
    %38 = vector.broadcast %cst_10 : f32 to vector<64x128xf32>
    %39 = arith.select %36, %37, %38 : vector<64x128xi1>, vector<64x128xf32>
    %40 = arith.truncf %39 : vector<64x128xf32> to vector<64x128xbf16>
    %c6_i32_11 = arith.constant 6 : i32
    %41 = vector.broadcast %c6_i32_11 : i32 to vector<64x128xi32>
    %42 = arith.cmpi sle, %5, %41 : vector<64x128xi32>
    %c1_i32_12 = arith.constant 1 : i32
    %43 = vector.broadcast %c1_i32_12 : i32 to vector<64x128xi32>
    %44 = arith.cmpi sge, %7, %43 : vector<64x128xi32>
    %c57_i32 = arith.constant 57 : i32
    %45 = tpu.dynamic_rotate %2 by %c57_i32 dim 0 : vector<64x128xf32>, i32 -> vector<64x128xf32>
    %46 = arith.andi %42, %44 : vector<64x128xi1>
    %cst_13 = arith.constant 0.000000e+00 : f32
    %47 = vector.broadcast %cst_13 : f32 to vector<64x128xf32>
    %48 = arith.select %46, %45, %47 : vector<64x128xi1>, vector<64x128xf32>
    %49 = arith.truncf %48 : vector<64x128xf32> to vector<64x128xbf16>
    %c56_i32 = arith.constant 56 : i32
    %50 = tpu.dynamic_rotate %2 by %c56_i32 dim 0 : vector<64x128xf32>, i32 -> vector<64x128xf32>
    %cst_14 = arith.constant 0.000000e+00 : f32
    %51 = vector.broadcast %cst_14 : f32 to vector<64x128xf32>
    %52 = arith.select %42, %50, %51 : vector<64x128xi1>, vector<64x128xf32>
    %53 = arith.truncf %52 : vector<64x128xf32> to vector<64x128xbf16>
    %c6_i32_15 = arith.constant 6 : i32
    %54 = vector.broadcast %c6_i32_15 : i32 to vector<64x128xi32>
    %55 = arith.cmpi sle, %7, %54 : vector<64x128xi32>
    %c55_i32 = arith.constant 55 : i32
    %56 = tpu.dynamic_rotate %2 by %c55_i32 dim 0 : vector<64x128xf32>, i32 -> vector<64x128xf32>
    %57 = arith.andi %42, %55 : vector<64x128xi1>
    %cst_16 = arith.constant 0.000000e+00 : f32
    %58 = vector.broadcast %cst_16 : f32 to vector<64x128xf32>
    %59 = arith.select %57, %56, %58 : vector<64x128xi1>, vector<64x128xf32>
    %60 = arith.truncf %59 : vector<64x128xf32> to vector<64x128xbf16>
    %61 = tpu.concatenate %16, %20, %27, %33, %34, %40, %49, %53, %60 in 1 : vector<64x128xbf16>, vector<64x128xbf16>, vector<64x128xbf16>, vector<64x128xbf16>, vector<64x128xbf16>, vector<64x128xbf16>, vector<64x128xbf16>, vector<64x128xbf16>, vector<64x128xbf16> -> vector<64x1152xbf16>
    %c0_17 = arith.constant 0 : index
    %c0_18 = arith.constant 0 : index
    %62 = vector.load %arg2[%c0_17, %c0_18] : memref<1152x128xbf16, #tpu.memory_space<vmem>>, vector<1152x128xbf16>
    %cst_19 = arith.constant dense<0.000000e+00> : vector<64x128xf32>
    %63 = tpu.matmul %61, %62, %cst_19 {dimension_numbers = #tpu.dot_dimension_numbers<[1], [0], [0], [1], [0, 0, 1, 1], [], []>} : vector<64x1152xbf16>, vector<1152x128xbf16>, vector<64x128xf32> -> vector<64x128xf32>
    %c0_20 = arith.constant 0 : index
    %c0_21 = arith.constant 0 : index
    %64 = vector.load %arg3[%c0_20, %c0_21] : memref<1x128xf32, #tpu.memory_space<vmem>>, vector<1x128xf32>
    %65 = vector.broadcast %64 : vector<1x128xf32> to vector<64x128xf32>
    %66 = arith.addf %63, %65 : vector<64x128xf32>
    %cst_22 = arith.constant 0.000000e+00 : f32
    %67 = vector.broadcast %cst_22 : f32 to vector<64x128xf32>
    %68 = arith.cmpf oge, %66, %67 : vector<64x128xf32>
    %cst_23 = arith.constant 1.000000e-01 : f32
    %69 = vector.broadcast %cst_23 : f32 to vector<64x128xf32>
    %70 = arith.mulf %69, %66 : vector<64x128xf32>
    %71 = arith.select %68, %66, %70 : vector<64x128xi1>, vector<64x128xf32>
    %72 = arith.truncf %71 : vector<64x128xf32> to vector<64x128xbf16>
    %c0_24 = arith.constant 0 : index
    %c0_25 = arith.constant 0 : index
    %73 = vector.load %arg4[%c0_24, %c0_25] : memref<128x128xbf16, #tpu.memory_space<vmem>>, vector<128x128xbf16>
    %cst_26 = arith.constant dense<0.000000e+00> : vector<64x128xf32>
    %74 = tpu.matmul %72, %73, %cst_26 {dimension_numbers = #tpu.dot_dimension_numbers<[1], [0], [0], [1], [0, 0, 1, 1], [], []>} : vector<64x128xbf16>, vector<128x128xbf16>, vector<64x128xf32> -> vector<64x128xf32>
    %c0_27 = arith.constant 0 : index
    %c0_28 = arith.constant 0 : index
    %75 = vector.load %arg5[%c0_27, %c0_28] : memref<1x128xf32, #tpu.memory_space<vmem>>, vector<1x128xf32>
    %76 = vector.broadcast %75 : vector<1x128xf32> to vector<64x128xf32>
    %77 = arith.addf %74, %76 : vector<64x128xf32>
    %cst_29 = arith.constant 0.000000e+00 : f32
    %78 = vector.broadcast %cst_29 : f32 to vector<64x128xf32>
    %79 = arith.cmpf oge, %77, %78 : vector<64x128xf32>
    %cst_30 = arith.constant 1.000000e-01 : f32
    %80 = vector.broadcast %cst_30 : f32 to vector<64x128xf32>
    %81 = arith.mulf %80, %77 : vector<64x128xf32>
    %82 = arith.select %79, %77, %81 : vector<64x128xi1>, vector<64x128xf32>
    %83 = arith.truncf %82 : vector<64x128xf32> to vector<64x128xbf16>
    %c0_31 = arith.constant 0 : index
    %c0_32 = arith.constant 0 : index
    %c0_33 = arith.constant 0 : index
    %84 = vector.load %arg6[%c0_31, %c0_32, %c0_33] : memref<1x64x128xbf16, #tpu.memory_space<vmem>>, vector<1x64x128xbf16>
    %85 = vector.shape_cast %84 : vector<1x64x128xbf16> to vector<64x128xbf16>
    %86 = vector.shape_cast %83 : vector<64x128xbf16> to vector<1x64x128xbf16>
    tpu.vector_store %arg6[%c0_31, %c0_32, %c0_33], %86 {strides = array<i32>} : memref<1x64x128xbf16, #tpu.memory_space<vmem>>, vector<1x64x128xbf16>,
    return
  }
  func.func @transform_0(%arg0: i32) -> (i32, i32, i32) {
    %c0_i32 = arith.constant 0 : i32
    %c0_i32_0 = arith.constant 0 : i32
    %c0_i32_1 = arith.constant 0 : i32
    return %arg0, %c0_i32, %c0_i32_0 : i32, i32, i32
  }
  func.func @transform_1(%arg0: i32) -> (i32, i32) {
    %c0_i32 = arith.constant 0 : i32
    %c0_i32_0 = arith.constant 0 : i32
    %c0_i32_1 = arith.constant 0 : i32
    return %c0_i32, %c0_i32_0 : i32, i32
  }
  func.func @transform_2(%arg0: i32) -> (i32, i32) {
    %c0_i32 = arith.constant 0 : i32
    %c0_i32_0 = arith.constant 0 : i32
    %c0_i32_1 = arith.constant 0 : i32
    return %c0_i32, %c0_i32_0 : i32, i32
  }
  func.func @transform_3(%arg0: i32) -> (i32, i32) {
    %c0_i32 = arith.constant 0 : i32
    %c0_i32_0 = arith.constant 0 : i32
    %c0_i32_1 = arith.constant 0 : i32
    return %c0_i32, %c0_i32_0 : i32, i32
  }
  func.func @transform_4(%arg0: i32) -> (i32, i32) {
    %c0_i32 = arith.constant 0 : i32
    %c0_i32_0 = arith.constant 0 : i32
    %c0_i32_1 = arith.constant 0 : i32
    return %c0_i32, %c0_i32_0 : i32, i32
  }
  func.func @transform_5(%arg0: i32) -> (i32, i32, i32) {
    %c0_i32 = arith.constant 0 : i32
    %c0_i32_0 = arith.constant 0 : i32
    %c0_i32_1 = arith.constant 0 : i32
    return %arg0, %c0_i32, %c0_i32_0 : i32, i32, i32
  }
}

module attributes {stable_mosaic.version = 11 : i64} {
  func.func @_csp_head_kernel(%arg0: i32, %arg1: memref<1x64x128xbf16, #tpu.memory_space<vmem>>, %arg2: memref<1x64x128xbf16, #tpu.memory_space<vmem>>, %arg3: memref<1152x128xbf16, #tpu.memory_space<vmem>>, %arg4: memref<1x128xf32, #tpu.memory_space<vmem>>, %arg5: memref<128x128xbf16, #tpu.memory_space<vmem>>, %arg6: memref<1x128xf32, #tpu.memory_space<vmem>>, %arg7: memref<128x128xbf16, #tpu.memory_space<vmem>>, %arg8: memref<128x128xbf16, #tpu.memory_space<vmem>>, %arg9: memref<1x128xf32, #tpu.memory_space<vmem>>, %arg10: memref<128x128xbf16, #tpu.memory_space<vmem>>, %arg11: memref<1x128xf32, #tpu.memory_space<vmem>>, %arg12: memref<1x64x128xf32, #tpu.memory_space<vmem>>) attributes {dimension_semantics = [#tpu.dimension_semantics<parallel>], iteration_bounds = array<i64: 2>, scalar_prefetch = 0 : i64, scratch_operands = 0 : i64, tpu.core_type = #tpu.core_type<tc>, window_params = [{transform_indices = @transform_0, window_bounds = array<i64: 1, 64, 128>}, {transform_indices = @transform_1, window_bounds = array<i64: 1, 64, 128>}, {pipeline_mode = #tpu.pipeline_mode<synchronous>, transform_indices = @transform_2, window_bounds = array<i64: 1152, 128>}, {pipeline_mode = #tpu.pipeline_mode<synchronous>, transform_indices = @transform_3, window_bounds = array<i64: 1, 128>}, {pipeline_mode = #tpu.pipeline_mode<synchronous>, transform_indices = @transform_4, window_bounds = array<i64: 128, 128>}, {pipeline_mode = #tpu.pipeline_mode<synchronous>, transform_indices = @transform_5, window_bounds = array<i64: 1, 128>}, {pipeline_mode = #tpu.pipeline_mode<synchronous>, transform_indices = @transform_6, window_bounds = array<i64: 128, 128>}, {pipeline_mode = #tpu.pipeline_mode<synchronous>, transform_indices = @transform_7, window_bounds = array<i64: 128, 128>}, {pipeline_mode = #tpu.pipeline_mode<synchronous>, transform_indices = @transform_8, window_bounds = array<i64: 1, 128>}, {pipeline_mode = #tpu.pipeline_mode<synchronous>, transform_indices = @transform_9, window_bounds = array<i64: 128, 128>}, {pipeline_mode = #tpu.pipeline_mode<synchronous>, transform_indices = @transform_10, window_bounds = array<i64: 1, 128>}, {transform_indices = @transform_11, window_bounds = array<i64: 1, 64, 128>}]} {
    %c0 = arith.constant 0 : index
    %c0_0 = arith.constant 0 : index
    %c0_1 = arith.constant 0 : index
    %0 = vector.load %arg1[%c0, %c0_0, %c0_1] : memref<1x64x128xbf16, #tpu.memory_space<vmem>>, vector<1x64x128xbf16>
    %1 = vector.shape_cast %0 : vector<1x64x128xbf16> to vector<64x128xbf16>
    %2 = arith.extf %1 : vector<64x128xbf16> to vector<64x128xf32>
    %3 = tpu.iota {dimensions = array<i32: 0>} : vector<64x128xi32>
    %c3_i32 = arith.constant 3 : i32
    %4 = vector.broadcast %c3_i32 : i32 to vector<64x128xi32>
    %5 = arith.shrsi %3, %4 : vector<64x128xi32>
    %c7_i32 = arith.constant 7 : i32
    %6 = vector.broadcast %c7_i32 : i32 to vector<64x128xi32>
    %7 = arith.andi %3, %6 : vector<64x128xi32>
    %c1_i32 = arith.constant 1 : i32
    %8 = vector.broadcast %c1_i32 : i32 to vector<64x128xi32>
    %9 = arith.cmpi sge, %5, %8 : vector<64x128xi32>
    %c1_i32_2 = arith.constant 1 : i32
    %10 = vector.broadcast %c1_i32_2 : i32 to vector<64x128xi32>
    %11 = arith.cmpi sge, %7, %10 : vector<64x128xi32>
    %c9_i32 = arith.constant 9 : i32
    %12 = tpu.dynamic_rotate %2 by %c9_i32 dim 0 : vector<64x128xf32>, i32 -> vector<64x128xf32>
    %13 = arith.andi %9, %11 : vector<64x128xi1>
    %cst = arith.constant 0.000000e+00 : f32
    %14 = vector.broadcast %cst : f32 to vector<64x128xf32>
    %15 = arith.select %13, %12, %14 : vector<64x128xi1>, vector<64x128xf32>
    %16 = arith.truncf %15 : vector<64x128xf32> to vector<64x128xbf16>
    %c8_i32 = arith.constant 8 : i32
    %17 = tpu.dynamic_rotate %2 by %c8_i32 dim 0 : vector<64x128xf32>, i32 -> vector<64x128xf32>
    %cst_3 = arith.constant 0.000000e+00 : f32
    %18 = vector.broadcast %cst_3 : f32 to vector<64x128xf32>
    %19 = arith.select %9, %17, %18 : vector<64x128xi1>, vector<64x128xf32>
    %20 = arith.truncf %19 : vector<64x128xf32> to vector<64x128xbf16>
    %c6_i32 = arith.constant 6 : i32
    %21 = vector.broadcast %c6_i32 : i32 to vector<64x128xi32>
    %22 = arith.cmpi sle, %7, %21 : vector<64x128xi32>
    %c7_i32_4 = arith.constant 7 : i32
    %23 = tpu.dynamic_rotate %2 by %c7_i32_4 dim 0 : vector<64x128xf32>, i32 -> vector<64x128xf32>
    %24 = arith.andi %9, %22 : vector<64x128xi1>
    %cst_5 = arith.constant 0.000000e+00 : f32
    %25 = vector.broadcast %cst_5 : f32 to vector<64x128xf32>
    %26 = arith.select %24, %23, %25 : vector<64x128xi1>, vector<64x128xf32>
    %27 = arith.truncf %26 : vector<64x128xf32> to vector<64x128xbf16>
    %c1_i32_6 = arith.constant 1 : i32
    %28 = vector.broadcast %c1_i32_6 : i32 to vector<64x128xi32>
    %29 = arith.cmpi sge, %7, %28 : vector<64x128xi32>
    %c1_i32_7 = arith.constant 1 : i32
    %30 = tpu.dynamic_rotate %2 by %c1_i32_7 dim 0 : vector<64x128xf32>, i32 -> vector<64x128xf32>
    %cst_8 = arith.constant 0.000000e+00 : f32
    %31 = vector.broadcast %cst_8 : f32 to vector<64x128xf32>
    %32 = arith.select %29, %30, %31 : vector<64x128xi1>, vector<64x128xf32>
    %33 = arith.truncf %32 : vector<64x128xf32> to vector<64x128xbf16>
    %34 = arith.truncf %2 : vector<64x128xf32> to vector<64x128xbf16>
    %c6_i32_9 = arith.constant 6 : i32
    %35 = vector.broadcast %c6_i32_9 : i32 to vector<64x128xi32>
    %36 = arith.cmpi sle, %7, %35 : vector<64x128xi32>
    %c63_i32 = arith.constant 63 : i32
    %37 = tpu.dynamic_rotate %2 by %c63_i32 dim 0 : vector<64x128xf32>, i32 -> vector<64x128xf32>
    %cst_10 = arith.constant 0.000000e+00 : f32
    %38 = vector.broadcast %cst_10 : f32 to vector<64x128xf32>
    %39 = arith.select %36, %37, %38 : vector<64x128xi1>, vector<64x128xf32>
    %40 = arith.truncf %39 : vector<64x128xf32> to vector<64x128xbf16>
    %c6_i32_11 = arith.constant 6 : i32
    %41 = vector.broadcast %c6_i32_11 : i32 to vector<64x128xi32>
    %42 = arith.cmpi sle, %5, %41 : vector<64x128xi32>
    %c1_i32_12 = arith.constant 1 : i32
    %43 = vector.broadcast %c1_i32_12 : i32 to vector<64x128xi32>
    %44 = arith.cmpi sge, %7, %43 : vector<64x128xi32>
    %c57_i32 = arith.constant 57 : i32
    %45 = tpu.dynamic_rotate %2 by %c57_i32 dim 0 : vector<64x128xf32>, i32 -> vector<64x128xf32>
    %46 = arith.andi %42, %44 : vector<64x128xi1>
    %cst_13 = arith.constant 0.000000e+00 : f32
    %47 = vector.broadcast %cst_13 : f32 to vector<64x128xf32>
    %48 = arith.select %46, %45, %47 : vector<64x128xi1>, vector<64x128xf32>
    %49 = arith.truncf %48 : vector<64x128xf32> to vector<64x128xbf16>
    %c56_i32 = arith.constant 56 : i32
    %50 = tpu.dynamic_rotate %2 by %c56_i32 dim 0 : vector<64x128xf32>, i32 -> vector<64x128xf32>
    %cst_14 = arith.constant 0.000000e+00 : f32
    %51 = vector.broadcast %cst_14 : f32 to vector<64x128xf32>
    %52 = arith.select %42, %50, %51 : vector<64x128xi1>, vector<64x128xf32>
    %53 = arith.truncf %52 : vector<64x128xf32> to vector<64x128xbf16>
    %c6_i32_15 = arith.constant 6 : i32
    %54 = vector.broadcast %c6_i32_15 : i32 to vector<64x128xi32>
    %55 = arith.cmpi sle, %7, %54 : vector<64x128xi32>
    %c55_i32 = arith.constant 55 : i32
    %56 = tpu.dynamic_rotate %2 by %c55_i32 dim 0 : vector<64x128xf32>, i32 -> vector<64x128xf32>
    %57 = arith.andi %42, %55 : vector<64x128xi1>
    %cst_16 = arith.constant 0.000000e+00 : f32
    %58 = vector.broadcast %cst_16 : f32 to vector<64x128xf32>
    %59 = arith.select %57, %56, %58 : vector<64x128xi1>, vector<64x128xf32>
    %60 = arith.truncf %59 : vector<64x128xf32> to vector<64x128xbf16>
    %61 = tpu.concatenate %16, %20, %27, %33, %34, %40, %49, %53, %60 in 1 : vector<64x128xbf16>, vector<64x128xbf16>, vector<64x128xbf16>, vector<64x128xbf16>, vector<64x128xbf16>, vector<64x128xbf16>, vector<64x128xbf16>, vector<64x128xbf16>, vector<64x128xbf16> -> vector<64x1152xbf16>
    %c0_17 = arith.constant 0 : index
    %c0_18 = arith.constant 0 : index
    %62 = vector.load %arg3[%c0_17, %c0_18] : memref<1152x128xbf16, #tpu.memory_space<vmem>>, vector<1152x128xbf16>
    %cst_19 = arith.constant dense<0.000000e+00> : vector<64x128xf32>
    %63 = tpu.matmul %61, %62, %cst_19 {dimension_numbers = #tpu.dot_dimension_numbers<[1], [0], [0], [1], [0, 0, 1, 1], [], []>} : vector<64x1152xbf16>, vector<1152x128xbf16>, vector<64x128xf32> -> vector<64x128xf32>
    %c0_20 = arith.constant 0 : index
    %c0_21 = arith.constant 0 : index
    %64 = vector.load %arg4[%c0_20, %c0_21] : memref<1x128xf32, #tpu.memory_space<vmem>>, vector<1x128xf32>
    %65 = vector.broadcast %64 : vector<1x128xf32> to vector<64x128xf32>
    %66 = arith.addf %63, %65 : vector<64x128xf32>
    %cst_22 = arith.constant 0.000000e+00 : f32
    %67 = vector.broadcast %cst_22 : f32 to vector<64x128xf32>
    %68 = arith.cmpf oge, %66, %67 : vector<64x128xf32>
    %cst_23 = arith.constant 1.000000e-01 : f32
    %69 = vector.broadcast %cst_23 : f32 to vector<64x128xf32>
    %70 = arith.mulf %69, %66 : vector<64x128xf32>
    %71 = arith.select %68, %66, %70 : vector<64x128xi1>, vector<64x128xf32>
    %72 = arith.truncf %71 : vector<64x128xf32> to vector<64x128xbf16>
    %c0_24 = arith.constant 0 : index
    %c0_25 = arith.constant 0 : index
    %73 = vector.load %arg5[%c0_24, %c0_25] : memref<128x128xbf16, #tpu.memory_space<vmem>>, vector<128x128xbf16>
    %cst_26 = arith.constant dense<0.000000e+00> : vector<64x128xf32>
    %74 = tpu.matmul %72, %73, %cst_26 {dimension_numbers = #tpu.dot_dimension_numbers<[1], [0], [0], [1], [0, 0, 1, 1], [], []>} : vector<64x128xbf16>, vector<128x128xbf16>, vector<64x128xf32> -> vector<64x128xf32>
    %c0_27 = arith.constant 0 : index
    %c0_28 = arith.constant 0 : index
    %75 = vector.load %arg6[%c0_27, %c0_28] : memref<1x128xf32, #tpu.memory_space<vmem>>, vector<1x128xf32>
    %76 = vector.broadcast %75 : vector<1x128xf32> to vector<64x128xf32>
    %77 = arith.addf %74, %76 : vector<64x128xf32>
    %cst_29 = arith.constant 0.000000e+00 : f32
    %78 = vector.broadcast %cst_29 : f32 to vector<64x128xf32>
    %79 = arith.cmpf oge, %77, %78 : vector<64x128xf32>
    %cst_30 = arith.constant 1.000000e-01 : f32
    %80 = vector.broadcast %cst_30 : f32 to vector<64x128xf32>
    %81 = arith.mulf %80, %77 : vector<64x128xf32>
    %82 = arith.select %79, %77, %81 : vector<64x128xi1>, vector<64x128xf32>
    %83 = arith.truncf %82 : vector<64x128xf32> to vector<64x128xbf16>
    %c0_31 = arith.constant 0 : index
    %c0_32 = arith.constant 0 : index
    %84 = vector.load %arg7[%c0_31, %c0_32] : memref<128x128xbf16, #tpu.memory_space<vmem>>, vector<128x128xbf16>
    %cst_33 = arith.constant dense<0.000000e+00> : vector<64x128xf32>
    %85 = tpu.matmul %83, %84, %cst_33 {dimension_numbers = #tpu.dot_dimension_numbers<[1], [0], [0], [1], [0, 0, 1, 1], [], []>} : vector<64x128xbf16>, vector<128x128xbf16>, vector<64x128xf32> -> vector<64x128xf32>
    %c0_34 = arith.constant 0 : index
    %c0_35 = arith.constant 0 : index
    %c0_36 = arith.constant 0 : index
    %86 = vector.load %arg2[%c0_34, %c0_35, %c0_36] : memref<1x64x128xbf16, #tpu.memory_space<vmem>>, vector<1x64x128xbf16>
    %87 = vector.shape_cast %86 : vector<1x64x128xbf16> to vector<64x128xbf16>
    %c0_37 = arith.constant 0 : index
    %c0_38 = arith.constant 0 : index
    %88 = vector.load %arg8[%c0_37, %c0_38] : memref<128x128xbf16, #tpu.memory_space<vmem>>, vector<128x128xbf16>
    %cst_39 = arith.constant dense<0.000000e+00> : vector<64x128xf32>
    %89 = tpu.matmul %87, %88, %cst_39 {dimension_numbers = #tpu.dot_dimension_numbers<[1], [0], [0], [1], [0, 0, 1, 1], [], []>} : vector<64x128xbf16>, vector<128x128xbf16>, vector<64x128xf32> -> vector<64x128xf32>
    %90 = arith.addf %85, %89 : vector<64x128xf32>
    %c0_40 = arith.constant 0 : index
    %c0_41 = arith.constant 0 : index
    %91 = vector.load %arg9[%c0_40, %c0_41] : memref<1x128xf32, #tpu.memory_space<vmem>>, vector<1x128xf32>
    %92 = vector.broadcast %91 : vector<1x128xf32> to vector<64x128xf32>
    %93 = arith.addf %90, %92 : vector<64x128xf32>
    %cst_42 = arith.constant 0.000000e+00 : f32
    %94 = vector.broadcast %cst_42 : f32 to vector<64x128xf32>
    %95 = arith.cmpf oge, %93, %94 : vector<64x128xf32>
    %cst_43 = arith.constant 1.000000e-01 : f32
    %96 = vector.broadcast %cst_43 : f32 to vector<64x128xf32>
    %97 = arith.mulf %96, %93 : vector<64x128xf32>
    %98 = arith.select %95, %93, %97 : vector<64x128xi1>, vector<64x128xf32>
    %99 = arith.truncf %98 : vector<64x128xf32> to vector<64x128xbf16>
    %c0_44 = arith.constant 0 : index
    %c0_45 = arith.constant 0 : index
    %100 = vector.load %arg10[%c0_44, %c0_45] : memref<128x128xbf16, #tpu.memory_space<vmem>>, vector<128x128xbf16>
    %cst_46 = arith.constant dense<0.000000e+00> : vector<64x128xf32>
    %101 = tpu.matmul %99, %100, %cst_46 {dimension_numbers = #tpu.dot_dimension_numbers<[1], [0], [0], [1], [0, 0, 1, 1], [], []>} : vector<64x128xbf16>, vector<128x128xbf16>, vector<64x128xf32> -> vector<64x128xf32>
    %c0_47 = arith.constant 0 : index
    %c0_48 = arith.constant 0 : index
    %102 = vector.load %arg11[%c0_47, %c0_48] : memref<1x128xf32, #tpu.memory_space<vmem>>, vector<1x128xf32>
    %103 = vector.broadcast %102 : vector<1x128xf32> to vector<64x128xf32>
    %104 = arith.addf %101, %103 : vector<64x128xf32>
    %c0_49 = arith.constant 0 : index
    %c0_50 = arith.constant 0 : index
    %c0_51 = arith.constant 0 : index
    %105 = vector.load %arg12[%c0_49, %c0_50, %c0_51] : memref<1x64x128xf32, #tpu.memory_space<vmem>>, vector<1x64x128xf32>
    %106 = vector.shape_cast %105 : vector<1x64x128xf32> to vector<64x128xf32>
    %107 = vector.shape_cast %104 : vector<64x128xf32> to vector<1x64x128xf32>
    tpu.vector_store %arg12[%c0_49, %c0_50, %c0_51], %107 {strides = array<i32>} : memref<1x64x128xf32, #tpu.memory_space<vmem>>, vector<1x64x128xf32>,
    return
  }
  func.func @transform_0(%arg0: i32) -> (i32, i32, i32) {
    %c0_i32 = arith.constant 0 : i32
    %c0_i32_0 = arith.constant 0 : i32
    %c0_i32_1 = arith.constant 0 : i32
    return %arg0, %c0_i32, %c0_i32_0 : i32, i32, i32
  }
  func.func @transform_1(%arg0: i32) -> (i32, i32, i32) {
    %c0_i32 = arith.constant 0 : i32
    %c0_i32_0 = arith.constant 0 : i32
    %c0_i32_1 = arith.constant 0 : i32
    return %arg0, %c0_i32, %c0_i32_0 : i32, i32, i32
  }
  func.func @transform_2(%arg0: i32) -> (i32, i32) {
    %c0_i32 = arith.constant 0 : i32
    %c0_i32_0 = arith.constant 0 : i32
    %c0_i32_1 = arith.constant 0 : i32
    return %c0_i32, %c0_i32_0 : i32, i32
  }
  func.func @transform_3(%arg0: i32) -> (i32, i32) {
    %c0_i32 = arith.constant 0 : i32
    %c0_i32_0 = arith.constant 0 : i32
    %c0_i32_1 = arith.constant 0 : i32
    return %c0_i32, %c0_i32_0 : i32, i32
  }
  func.func @transform_4(%arg0: i32) -> (i32, i32) {
    %c0_i32 = arith.constant 0 : i32
    %c0_i32_0 = arith.constant 0 : i32
    %c0_i32_1 = arith.constant 0 : i32
    return %c0_i32, %c0_i32_0 : i32, i32
  }
  func.func @transform_5(%arg0: i32) -> (i32, i32) {
    %c0_i32 = arith.constant 0 : i32
    %c0_i32_0 = arith.constant 0 : i32
    %c0_i32_1 = arith.constant 0 : i32
    return %c0_i32, %c0_i32_0 : i32, i32
  }
  func.func @transform_6(%arg0: i32) -> (i32, i32) {
    %c0_i32 = arith.constant 0 : i32
    %c0_i32_0 = arith.constant 0 : i32
    %c0_i32_1 = arith.constant 0 : i32
    return %c0_i32, %c0_i32_0 : i32, i32
  }
  func.func @transform_7(%arg0: i32) -> (i32, i32) {
    %c0_i32 = arith.constant 0 : i32
    %c0_i32_0 = arith.constant 0 : i32
    %c0_i32_1 = arith.constant 0 : i32
    return %c0_i32, %c0_i32_0 : i32, i32
  }
  func.func @transform_8(%arg0: i32) -> (i32, i32) {
    %c0_i32 = arith.constant 0 : i32
    %c0_i32_0 = arith.constant 0 : i32
    %c0_i32_1 = arith.constant 0 : i32
    return %c0_i32, %c0_i32_0 : i32, i32
  }
  func.func @transform_9(%arg0: i32) -> (i32, i32) {
    %c0_i32 = arith.constant 0 : i32
    %c0_i32_0 = arith.constant 0 : i32
    %c0_i32_1 = arith.constant 0 : i32
    return %c0_i32, %c0_i32_0 : i32, i32
  }
  func.func @transform_10(%arg0: i32) -> (i32, i32) {
    %c0_i32 = arith.constant 0 : i32
    %c0_i32_0 = arith.constant 0 : i32
    %c0_i32_1 = arith.constant 0 : i32
    return %c0_i32, %c0_i32_0 : i32, i32
  }
  func.func @transform_11(%arg0: i32) -> (i32, i32, i32) {
    %c0_i32 = arith.constant 0 : i32
    %c0_i32_0 = arith.constant 0 : i32
    %c0_i32_1 = arith.constant 0 : i32
    return %arg0, %c0_i32, %c0_i32_0 : i32, i32, i32
  }
}

</mosaic_0001>

<llo_original>
// kernel: yolov1_forward.6
$region0: #{yolov1_forward.6}
  #allocation0 [shape = 'u32[]', space=smem, size = 0x4, offset = 0x4, fixed_abs, tag = 'smem constant byte address 0x4 - core index']
  #allocation1 [shape = 'u32[72,128]{1,0:T(1,128)}', space=vmem, size = 0x9000, scoped, tag = 'internal scratch']
  %s0 = inlined_call_operand.vmem [shape: bf16[128,128], index: 0, kind: input, shape index: {}]
  %s1 = inlined_call_operand.vmem [shape: bf16[128,128], index: 1, kind: input, shape index: {}]
  %s2 = inlined_call_operand.vmem [shape: f32[1,128], index: 2, kind: input, shape index: {}]
  %s3 = inlined_call_operand.vmem [shape: bf16[128,128], index: 3, kind: input, shape index: {}]
  %s4 = inlined_call_operand.vmem [shape: f32[1,128], index: 4, kind: input, shape index: {}]
  %s5 = inlined_call_operand.vmem [shape: bf16[128,128], index: 5, kind: output, shape index: {}]
  %s6 = sld [smem:[#allocation0]]
  $region53: #{yolov1_forward.6} parent=0
    _
  %s8 = ssub.s32 1, %s6
  %s9 = scalar_select 0, %s8, %s6
  loop: start=0, step=1, limit=4
  $region2: #{yolov1_forward.6} parent=0 // loop_pre_header
    _
  $region3: #{yolov1_forward.6} parent=0 // loop_header
    %s11 = sphi 0, %s15
    %p12 = scmp.ge.s32.totalorder %s11, 4
    %s21 = sphi 0, %s23
    %s24 = sphi 0, %s21
    %s25 = sphi 0, %s24
    %s41 = sphi 0, %s25
    %s45 = sphi 0, %s45
    %s47 = sphi 0, %s45
    %s48 = sphi 0, %s47
    %s62 = sphi 0, %s48
    %s66 = sphi 0, %s66
    %s68 = sphi 0, %s66
    %s69 = sphi 0, %s68
    %s83 = sphi 0, %s69
    %s87 = sphi 0, %s87
    %s89 = sphi 0, %s87
    %s90 = sphi 0, %s89
    %s104 = sphi 0, %s90
    %s108 = sphi 0, %s108
    %s110 = sphi 0, %s108
    %s111 = sphi 0, %s110
    %s125 = sphi 0, %s111
    %s131 = sphi 0, %s133
    %s134 = sphi 0, %s131
    %s135 = sphi 0, %s134
    %s151 = sphi 0, %s135
  $region4: #{yolov1_forward.6} parent=0 // loop_header_branch
    %14 = sbr.rel (%p12) target = $region8
  $region5: #{yolov1_forward.6} parent=0 // loop_body
    %s16 = ssub.s32 %s11, 1
    %s17 = ssub.s32 %s11, 2
    %s18 = sadd.s32 %s11, 1
    %s19 = ssub.s32 %s11, %s18
    %p20 = scmp.eq.s32.totalorder %s19, 0
    %s22 = sadd.s32 %s21, 1
    %s23 = scalar_select %p20, %s21, %s22
    %p26 = pneg %p20
    %p27 = scmp.eq.s32.totalorder %s11, 1
    %p28 = por %p26, %p27
    %p29 = scmp.ne.s32.totalorder %s21, %s24
    %p30 = scmp.eq.s32.totalorder %s11, 0
    %p31 = por %p29, %p30
    %p32 = scmp.ne.s32.totalorder %s21, %s24
    %p33 = scmp.eq.s32.totalorder %s16, 1
    %p34 = por %p32, %p33
    %p35 = scmp.ne.s32.totalorder %s24, %s25
    %p36 = scmp.eq.s32.totalorder %s16, 0
    %p37 = por %p35, %p36
    %p38 = scmp.ne.s32.totalorder %s24, %s25
    %p39 = scmp.eq.s32.totalorder %s17, 1
    %p40 = por %p38, %p39
    %p42 = scmp.ne.s32.totalorder %s25, %s41
    %p43 = scmp.eq.s32.totalorder %s17, 0
    %p44 = por %p42, %p43
    %s46 = sadd.s32 %s45, 1
    %p49 = scmp.eq.s32.totalorder %s11, 1
    %p50 = scmp.ne.s32.totalorder %s45, %s47
    %p51 = scmp.eq.s32.totalorder %s11, 0
    %p52 = por %p50, %p51
    %p53 = scmp.ne.s32.totalorder %s45, %s47
    %p54 = scmp.eq.s32.totalorder %s16, 1
    %p55 = por %p53, %p54
    %p56 = scmp.ne.s32.totalorder %s47, %s48
    %p57 = scmp.eq.s32.totalorder %s16, 0
    %p58 = por %p56, %p57
    %p59 = scmp.ne.s32.totalorder %s47, %s48
    %p60 = scmp.eq.s32.totalorder %s17, 1
    %p61 = por %p59, %p60
    %p63 = scmp.ne.s32.totalorder %s48, %s62
    %p64 = scmp.eq.s32.totalorder %s17, 0
    %p65 = por %p63, %p64
    %s67 = sadd.s32 %s66, 1
    %p70 = scmp.eq.s32.totalorder %s11, 1
    %p71 = scmp.ne.s32.totalorder %s66, %s68
    %p72 = scmp.eq.s32.totalorder %s11, 0
    %p73 = por %p71, %p72
    %p74 = scmp.ne.s32.totalorder %s66, %s68
    %p75 = scmp.eq.s32.totalorder %s16, 1
    %p76 = por %p74, %p75
    %p77 = scmp.ne.s32.totalorder %s68, %s69
    %p78 = scmp.eq.s32.totalorder %s16, 0
    %p79 = por %p77, %p78
    %p80 = scmp.ne.s32.totalorder %s68, %s69
    %p81 = scmp.eq.s32.totalorder %s17, 1
    %p82 = por %p80, %p81
    %p84 = scmp.ne.s32.totalorder %s69, %s83
    %p85 = scmp.eq.s32.totalorder %s17, 0
    %p86 = por %p84, %p85
    %s88 = sadd.s32 %s87, 1
    %p91 = scmp.eq.s32.totalorder %s11, 1
    %p92 = scmp.ne.s32.totalorder %s87, %s89
    %p93 = scmp.eq.s32.totalorder %s11, 0
    %p94 = por %p92, %p93
    %p95 = scmp.ne.s32.totalorder %s87, %s89
    %p96 = scmp.eq.s32.totalorder %s16, 1
    %p97 = por %p95, %p96
    %p98 = scmp.ne.s32.totalorder %s89, %s90
    %p99 = scmp.eq.s32.totalorder %s16, 0
    %p100 = por %p98, %p99
    %p101 = scmp.ne.s32.totalorder %s89, %s90
    %p102 = scmp.eq.s32.totalorder %s17, 1
    %p103 = por %p101, %p102
    %p105 = scmp.ne.s32.totalorder %s90, %s104
    %p106 = scmp.eq.s32.totalorder %s17, 0
    %p107 = por %p105, %p106
    %s109 = sadd.s32 %s108, 1
    %p112 = scmp.eq.s32.totalorder %s11, 1
    %p113 = scmp.ne.s32.totalorder %s108, %s110
    %p114 = scmp.eq.s32.totalorder %s11, 0
    %p115 = por %p113, %p114
    %p116 = scmp.ne.s32.totalorder %s108, %s110
    %p117 = scmp.eq.s32.totalorder %s16, 1
    %p118 = por %p116, %p117
    %p119 = scmp.ne.s32.totalorder %s110, %s111
    %p120 = scmp.eq.s32.totalorder %s16, 0
    %p121 = por %p119, %p120
    %p122 = scmp.ne.s32.totalorder %s110, %s111
    %p123 = scmp.eq.s32.totalorder %s17, 1
    %p124 = por %p122, %p123
    %p126 = scmp.ne.s32.totalorder %s111, %s125
    %p127 = scmp.eq.s32.totalorder %s17, 0
    %p128 = por %p126, %p127
    %s129 = ssub.s32 %s11, %s18
    %p130 = scmp.eq.s32.totalorder %s129, 0
    %s132 = sadd.s32 %s131, 1
    %s133 = scalar_select %p130, %s131, %s132
    %p136 = pneg %p130
    %p137 = scmp.eq.s32.totalorder %s11, 1
    %p138 = por %p136, %p137
    %p139 = scmp.ne.s32.totalorder %s131, %s134
    %p140 = scmp.eq.s32.totalorder %s11, 0
    %p141 = por %p139, %p140
    %p142 = scmp.ne.s32.totalorder %s131, %s134
    %p143 = scmp.eq.s32.totalorder %s16, 1
    %p144 = por %p142, %p143
    %p145 = scmp.ne.s32.totalorder %s134, %s135
    %p146 = scmp.eq.s32.totalorder %s16, 0
    %p147 = por %p145, %p146
    %p148 = scmp.ne.s32.totalorder %s134, %s135
    %p149 = scmp.eq.s32.totalorder %s17, 1
    %p150 = por %p148, %p149
    %p152 = scmp.ne.s32.totalorder %s135, %s151
    %p153 = scmp.eq.s32.totalorder %s17, 0
    %p154 = por %p152, %p153
    %p155 = scmp.le.s32.totalorder 1, %s11
    %p156 = scmp.lt.s32.totalorder %s11, 3
    %p157 = pnand %p155, %p156
    %p158 = pneg %p157
    // Predicated region
    $region9: #{yolov1_forward.6} parent=5 // pred_check
      _
    $region10: #{yolov1_forward.6} parent=5 // pred_check_branch
      %160 = sbr.rel (%p157) target = $region12
    $region11: #{yolov1_forward.6} parent=5 // pred_region
      %s161 = ssub.s32 %s11, 1
      // Predicated region
      $region13: #{yolov1_forward.6} parent=11 // pred_check
        %p162 = pneg %p58
      $region14: #{yolov1_forward.6} parent=11 // pred_check_branch
        %164 = sbr.rel (%p162) target = $region16
      $region15: #{yolov1_forward.6} parent=11 // pred_region
        _
      $region16: #{yolov1_forward.6} parent=11 // pred_fallthru
        _
      // Predicated region
      $region17: #{yolov1_forward.6} parent=11 // pred_check
        %p165 = pneg %p79
      $region18: #{yolov1_forward.6} parent=11 // pred_check_branch
        %167 = sbr.rel (%p165) target = $region20
      $region19: #{yolov1_forward.6} parent=11 // pred_region
        _
      $region20: #{yolov1_forward.6} parent=11 // pred_fallthru
        _
      // Predicated region
      $region21: #{yolov1_forward.6} parent=11 // pred_check
        %p168 = pneg %p100
      $region22: #{yolov1_forward.6} parent=11 // pred_check_branch
        %170 = sbr.rel (%p168) target = $region24
      $region23: #{yolov1_forward.6} parent=11 // pred_region
        _
      $region24: #{yolov1_forward.6} parent=11 // pred_fallthru
        _
      // Predicated region
      $region25: #{yolov1_forward.6} parent=11 // pred_check
        %p171 = pneg %p121
      $region26: #{yolov1_forward.6} parent=11 // pred_check_branch
        %173 = sbr.rel (%p171) target = $region28
      $region27: #{yolov1_forward.6} parent=11 // pred_region
        _
      $region28: #{yolov1_forward.6} parent=11 // pred_fallthru
        _
    $region12: #{yolov1_forward.6} parent=5 // pred_fallthru
      _
    %p174 = scmp.lt.s32.totalorder %s11, 2
    // Predicated region
    $region29: #{yolov1_forward.6} parent=5 // pred_check
      %p175 = pneg %p174
    $region30: #{yolov1_forward.6} parent=5 // pred_check_branch
      %177 = sbr.rel (%p175) target = $region32
    $region31: #{yolov1_forward.6} parent=5 // pred_region
      // Predicated region
      $region33: #{yolov1_forward.6} parent=31 // pred_check
        %p178 = pneg %p31
      $region34: #{yolov1_forward.6} parent=31 // pred_check_branch
        %180 = sbr.rel (%p178) target = $region36
      $region35: #{yolov1_forward.6} parent=31 // pred_region
        %s181 = smul.u32 8, %s11
        %p182 = scmp.lt.s32.totalorder %s181, 15
        %s183 = scalar_select %p182, %s181, 15
        %s184 = smul.addr %s183, 4
        %s185 = scalar_lea.vmem %s0, %s184
        %s186 = smul.u32 8, %s11
      $region36: #{yolov1_forward.6} parent=31 // pred_fallthru
        _
    $region32: #{yolov1_forward.6} parent=5 // pred_fallthru
      _
    %p187 = scmp.le.s32.totalorder 1, %s11
    %p188 = scmp.lt.s32.totalorder %s11, 3
    %p189 = pnand %p187, %p188
    %p190 = pneg %p189
    // Predicated region
    $region37: #{yolov1_forward.6} parent=5 // pred_check
      _
    $region38: #{yolov1_forward.6} parent=5 // pred_check_branch
      %192 = sbr.rel (%p189) target = $region40
    $region39: #{yolov1_forward.6} parent=5 // pred_region
      %s193 = ssub.s32 %s11, 1
      %s194 = smul.u32 8, %s16
      %p195 = scmp.lt.s32.totalorder %s194, 15
      %s196 = scalar_select %p195, %s194, 15
      %s197 = smul.addr %s196, 4
      %s198 = scalar_lea.vmem %s0, %s197
      %p199 = pneg %p37
      %p200 = pneg %p34
      %p201 = pneg %p58
      %p202 = pneg %p55
      %p203 = pneg %p79
      %p204 = pneg %p76
      %p205 = pneg %p100
      %p206 = pneg %p97
      %p207 = pneg %p121
      %p208 = pneg %p118
      %p209 = pneg %p147
      %p210 = pneg %p144
      %s211 = smul.u32 8, %s16
      %p212 = scmp.lt.s32.totalorder %s211, 15
      %s213 = scalar_select %p212, %s211, 15
      %s214 = smul.addr %s213, 4
      %s215 = scalar_lea.vmem %s5, %s214
      %s216 = smul.u32 8, %s16
      %p217 = scmp.lt.s32.totalorder %s216, 15
      %s218 = scalar_select %p217, %s216, 15
      %s219 = smul.addr %s218, 4
      %s220 = scalar_lea.vmem %s0, %s219
      %s221 = smul.u32 8, %s16
      %s222 = smul.u32 8, %s16
      %p223 = scmp.lt.s32.totalorder %s222, 15
      %s224 = scalar_select %p223, %s222, 15
      %s225 = smul.addr %s224, 4
      %s226 = scalar_lea.vmem %s5, %s225
      %s227 = smul.u32 8, %s16
      %v228 = vld [vmem:[%s220] sm:$0xf]
      %v229 = vld [vmem:[%s220 + $0x4] sm:$0xf]
      %v230 = vld [vmem:[%s220 + $0x8] sm:$0xf]
      %v231 = vld [vmem:[%s220 + $0xc] sm:$0xf]
      %v232 = vld [vmem:[%s220 + $0x10] sm:$0xf]
      %v233 = vld [vmem:[%s220 + $0x14] sm:$0xf]
      %v234 = vld [vmem:[%s220 + $0x18] sm:$0xf]
      %v235 = vld [vmem:[%s220 + $0x1c] sm:$0xf]
      %v236 = vld [vmem:[%s1] sm:$0xf]
      %v237 = vld [vmem:[%s1 + $0x4] sm:$0xf]
      %v238 = vld [vmem:[%s1 + $0x8] sm:$0xf]
      %v239 = vld [vmem:[%s1 + $0xc] sm:$0xf]
      %v240 = vld [vmem:[%s1 + $0x10] sm:$0xf]
      %v241 = vld [vmem:[%s1 + $0x14] sm:$0xf]
      %v242 = vld [vmem:[%s1 + $0x18] sm:$0xf]
      %v243 = vld [vmem:[%s1 + $0x1c] sm:$0xf]
      %v244 = vld [vmem:[%s1 + $0x20] sm:$0xf]
      %v245 = vld [vmem:[%s1 + $0x24] sm:$0xf]
      %v246 = vld [vmem:[%s1 + $0x28] sm:$0xf]
      %v247 = vld [vmem:[%s1 + $0x2c] sm:$0xf]
      %v248 = vld [vmem:[%s1 + $0x30] sm:$0xf]
      %v249 = vld [vmem:[%s1 + $0x34] sm:$0xf]
      %v250 = vld [vmem:[%s1 + $0x38] sm:$0xf]
      %v251 = vld [vmem:[%s1 + $0x3c] sm:$0xf]
      %v252 = vld [vmem:[%s2] sm:$0x1]
      %v254 = vperm.slane %v252, 0
      %v264 = vunpack.c.l.b16 %v228
      %v265 = vunpack.c.l.b16 %v229
      %v266 = vunpack.c.l.b16 %v230
      %v267 = vunpack.c.l.b16 %v231
      %v268 = vunpack.c.l.b16 %v232
      %v269 = vunpack.c.l.b16 %v233
      %v270 = vunpack.c.l.b16 %v234
      %v271 = vunpack.c.l.b16 %v235
      %v272 = vpack.c.b16 %v265, %v264
      %v273 = vpack.c.b16 %v267, %v266
      %v274 = vpack.c.b16 %v269, %v268
      %v275 = vpack.c.b16 %v271, %v270
      %v296 = vunpack.c.l.b16 %v236
      %v297 = vunpack.c.l.b16 %v237
      %v298 = vunpack.c.l.b16 %v238
      %v299 = vunpack.c.l.b16 %v239
      %v300 = vunpack.c.l.b16 %v240
      %v301 = vunpack.c.l.b16 %v241
      %v302 = vunpack.c.l.b16 %v242
      %v303 = vunpack.c.l.b16 %v243
      %v304 = vunpack.c.l.b16 %v244
      %v305 = vunpack.c.l.b16 %v245
      %v306 = vunpack.c.l.b16 %v246
      %v307 = vunpack.c.l.b16 %v247
      %v308 = vunpack.c.l.b16 %v248
      %v309 = vunpack.c.l.b16 %v249
      %v310 = vunpack.c.l.b16 %v250
      %v311 = vunpack.c.l.b16 %v251
      %v312 = vpack.c.b16 %v297, %v296
      %v313 = vpack.c.b16 %v299, %v298
      %v314 = vpack.c.b16 %v301, %v300
      %v315 = vpack.c.b16 %v303, %v302
      %v316 = vpack.c.b16 %v305, %v304
      %v317 = vpack.c.b16 %v307, %v306
      %v318 = vpack.c.b16 %v309, %v308
      %v319 = vpack.c.b16 %v311, %v310
      %328 = vmatpush.bf16.msra.mxu0 %v319
      %329 = vmatpush.bf16.msra.mxu0 %v318
      %330 = vmatpush.bf16.msra.mxu0 %v317
      %331 = vmatpush.bf16.msra.mxu0 %v316
      %332 = vmatpush.bf16.msra.mxu0 %v315
      %333 = vmatpush.bf16.msra.mxu0 %v314
      %334 = vmatpush.bf16.msra.mxu0 %v313
      %335 = vmatpush.bf16.msra.mxu0 %v312
      %336 = vmatmul.bf16.gmra.mxu0 %v272
      %v337 = vpop.f32.mrf.mxu0
      %v338 = vadd.f32 %v254, %v337
      %v339 = vpop.f32.mrf.mxu0
      %v340 = vadd.f32 %v254, %v339
      %341 = vmatmul.bf16.gmra.mxu0 %v273
      %v342 = vpop.f32.mrf.mxu0
      %v343 = vadd.f32 %v254, %v342
      %v344 = vpop.f32.mrf.mxu0
      %v345 = vadd.f32 %v254, %v344
      %346 = vmatmul.bf16.gmra.mxu0 %v274
      %v347 = vpop.f32.mrf.mxu0
      %v348 = vadd.f32 %v254, %v347
      %v349 = vpop.f32.mrf.mxu0
      %v350 = vadd.f32 %v254, %v349
      %351 = vmatmul.bf16.gmra.mxu0 %v275
      %v352 = vpop.f32.mrf.mxu0
      %v353 = vadd.f32 %v254, %v352
      %v354 = vpop.f32.mrf.mxu0
      %v355 = vadd.f32 %v254, %v354
      %356 = vdwg.mxu0
      %vm357 = vcmp.ge.f32.partialorder %v338, 0.0
      %vm358 = vcmp.ge.f32.partialorder %v340, 0.0
      %vm359 = vcmp.ge.f32.partialorder %v343, 0.0
      %vm360 = vcmp.ge.f32.partialorder %v345, 0.0
      %vm361 = vcmp.ge.f32.partialorder %v348, 0.0
      %vm362 = vcmp.ge.f32.partialorder %v350, 0.0
      %vm363 = vcmp.ge.f32.partialorder %v353, 0.0
      %vm364 = vcmp.ge.f32.partialorder %v355, 0.0
      %v365 = vmul.f32 %v338, 0.1
      %v366 = vmul.f32 %v340, 0.1
      %v367 = vmul.f32 %v343, 0.1
      %v368 = vmul.f32 %v345, 0.1
      %v369 = vmul.f32 %v348, 0.1
      %v370 = vmul.f32 %v350, 0.1
      %v371 = vmul.f32 %v353, 0.1
      %v372 = vmul.f32 %v355, 0.1
      %v373 = vsel %vm357, %v338, %v365
      %v374 = vsel %vm358, %v340, %v366
      %v375 = vsel %vm359, %v343, %v367
      %v376 = vsel %vm360, %v345, %v368
      %v377 = vsel %vm361, %v348, %v369
      %v378 = vsel %vm362, %v350, %v370
      %v379 = vsel %vm363, %v353, %v371
      %v380 = vsel %vm364, %v355, %v372
      %v381 = vpack.c.bf16 %v374, %v373
      %v382 = vpack.c.bf16 %v376, %v375
      %v383 = vpack.c.bf16 %v378, %v377
      %v384 = vpack.c.bf16 %v380, %v379
      %v385 = vld [vmem:[%s3] sm:$0xf]
      %v386 = vld [vmem:[%s3 + $0x4] sm:$0xf]
      %v387 = vld [vmem:[%s3 + $0x8] sm:$0xf]
      %v388 = vld [vmem:[%s3 + $0xc] sm:$0xf]
      %v389 = vld [vmem:[%s3 + $0x10] sm:$0xf]
      %v390 = vld [vmem:[%s3 + $0x14] sm:$0xf]
      %v391 = vld [vmem:[%s3 + $0x18] sm:$0xf]
      %v392 = vld [vmem:[%s3 + $0x1c] sm:$0xf]
      %v393 = vld [vmem:[%s3 + $0x20] sm:$0xf]
      %v394 = vld [vmem:[%s3 + $0x24] sm:$0xf]
      %v395 = vld [vmem:[%s3 + $0x28] sm:$0xf]
      %v396 = vld [vmem:[%s3 + $0x2c] sm:$0xf]
      %v397 = vld [vmem:[%s3 + $0x30] sm:$0xf]
      %v398 = vld [vmem:[%s3 + $0x34] sm:$0xf]
      %v399 = vld [vmem:[%s3 + $0x38] sm:$0xf]
      %v400 = vld [vmem:[%s3 + $0x3c] sm:$0xf]
      %v401 = vld [vmem:[%s4] sm:$0x1]
      %v403 = vperm.slane %v401, 0
      %v421 = vunpack.c.l.b16 %v385
      %v422 = vunpack.c.l.b16 %v386
      %v423 = vunpack.c.l.b16 %v387
      %v424 = vunpack.c.l.b16 %v388
      %v425 = vunpack.c.l.b16 %v389
      %v426 = vunpack.c.l.b16 %v390
      %v427 = vunpack.c.l.b16 %v391
      %v428 = vunpack.c.l.b16 %v392
      %v429 = vunpack.c.l.b16 %v393
      %v430 = vunpack.c.l.b16 %v394
      %v431 = vunpack.c.l.b16 %v395
      %v432 = vunpack.c.l.b16 %v396
      %v433 = vunpack.c.l.b16 %v397
      %v434 = vunpack.c.l.b16 %v398
      %v435 = vunpack.c.l.b16 %v399
      %v436 = vunpack.c.l.b16 %v400
      %v437 = vpack.c.b16 %v422, %v421
      %v438 = vpack.c.b16 %v424, %v423
      %v439 = vpack.c.b16 %v426, %v425
      %v440 = vpack.c.b16 %v428, %v427
      %v441 = vpack.c.b16 %v430, %v429
      %v442 = vpack.c.b16 %v432, %v431
      %v443 = vpack.c.b16 %v434, %v433
      %v444 = vpack.c.b16 %v436, %v435
      %453 = vmatpush.bf16.msra.mxu0 %v444
      %454 = vmatpush.bf16.msra.mxu0 %v443
      %455 = vmatpush.bf16.msra.mxu0 %v442
      %456 = vmatpush.bf16.msra.mxu0 %v441
      %457 = vmatpush.bf16.msra.mxu0 %v440
      %458 = vmatpush.bf16.msra.mxu0 %v439
      %459 = vmatpush.bf16.msra.mxu0 %v438
      %460 = vmatpush.bf16.msra.mxu0 %v437
      %461 = vmatmul.bf16.gmra.mxu0 %v381
      %v462 = vpop.f32.mrf.mxu0
      %v463 = vadd.f32 %v403, %v462
      %v464 = vpop.f32.mrf.mxu0
      %v465 = vadd.f32 %v403, %v464
      %466 = vmatmul.bf16.gmra.mxu0 %v382
      %v467 = vpop.f32.mrf.mxu0
      %v468 = vadd.f32 %v403, %v467
      %v469 = vpop.f32.mrf.mxu0
      %v470 = vadd.f32 %v403, %v469
      %471 = vmatmul.bf16.gmra.mxu0 %v383
      %v472 = vpop.f32.mrf.mxu0
      %v473 = vadd.f32 %v403, %v472
      %v474 = vpop.f32.mrf.mxu0
      %v475 = vadd.f32 %v403, %v474
      %476 = vmatmul.bf16.gmra.mxu0 %v384
      %v477 = vpop.f32.mrf.mxu0
      %v478 = vadd.f32 %v403, %v477
      %v479 = vpop.f32.mrf.mxu0
      %v480 = vadd.f32 %v403, %v479
      %481 = vdwg.mxu0
      %vm482 = vcmp.ge.f32.partialorder %v463, 0.0
      %vm483 = vcmp.ge.f32.partialorder %v465, 0.0
      %vm484 = vcmp.ge.f32.partialorder %v468, 0.0
      %vm485 = vcmp.ge.f32.partialorder %v470, 0.0
      %vm486 = vcmp.ge.f32.partialorder %v473, 0.0
      %vm487 = vcmp.ge.f32.partialorder %v475, 0.0
      %vm488 = vcmp.ge.f32.partialorder %v478, 0.0
      %vm489 = vcmp.ge.f32.partialorder %v480, 0.0
      %v490 = vmul.f32 %v463, 0.1
      %v491 = vmul.f32 %v465, 0.1
      %v492 = vmul.f32 %v468, 0.1
      %v493 = vmul.f32 %v470, 0.1
      %v494 = vmul.f32 %v473, 0.1
      %v495 = vmul.f32 %v475, 0.1
      %v496 = vmul.f32 %v478, 0.1
      %v497 = vmul.f32 %v480, 0.1
      %v498 = vsel %vm482, %v463, %v490
      %v499 = vsel %vm483, %v465, %v491
      %v500 = vsel %vm484, %v468, %v492
      %v501 = vsel %vm485, %v470, %v493
      %v502 = vsel %vm486, %v473, %v494
      %v503 = vsel %vm487, %v475, %v495
      %v504 = vsel %vm488, %v478, %v496
      %v505 = vsel %vm489, %v480, %v497
      %v506 = vpack.c.bf16 %v498, %v498
      %v507 = vpack.c.bf16 %v499, %v499
      %v508 = vpack.c.bf16 %v500, %v500
      %v509 = vpack.c.bf16 %v501, %v501
      %v510 = vpack.c.bf16 %v502, %v502
      %v511 = vpack.c.bf16 %v503, %v503
      %v512 = vpack.c.bf16 %v504, %v504
      %v513 = vpack.c.bf16 %v505, %v505
      %514 = vst [vmem:[%s226] sm:$0xf] %v506
      %515 = vst [vmem:[%s226 + $0x4] sm:$0xf] %v507
      %516 = vst [vmem:[%s226 + $0x8] sm:$0xf] %v508
      %517 = vst [vmem:[%s226 + $0xc] sm:$0xf] %v509
      %518 = vst [vmem:[%s226 + $0x10] sm:$0xf] %v510
      %519 = vst [vmem:[%s226 + $0x14] sm:$0xf] %v511
      %520 = vst [vmem:[%s226 + $0x18] sm:$0xf] %v512
      %521 = vst [vmem:[%s226 + $0x1c] sm:$0xf] %v513
      %s522 = smul.u32 8, %s16
      %p523 = scmp.lt.s32.totalorder %s522, 15
      %s524 = scalar_select %p523, %s522, 15
      %s525 = smul.addr %s524, 4
      %s526 = scalar_lea.vmem %s5, %s525
      // Predicated region
      $region41: #{yolov1_forward.6} parent=39 // pred_check
        %p527 = pneg %p144
      $region42: #{yolov1_forward.6} parent=39 // pred_check_branch
        %529 = sbr.rel (%p527) target = $region44
      $region43: #{yolov1_forward.6} parent=39 // pred_region
        %s530 = smul.u32 8, %s16
      $region44: #{yolov1_forward.6} parent=39 // pred_fallthru
        _
    $region40: #{yolov1_forward.6} parent=5 // pred_fallthru
      _
    %p531 = scmp.le.s32.totalorder 2, %s11
    // Predicated region
    $region45: #{yolov1_forward.6} parent=5 // pred_check
      %p532 = pneg %p531
    $region46: #{yolov1_forward.6} parent=5 // pred_check_branch
      %534 = sbr.rel (%p532) target = $region48
    $region47: #{yolov1_forward.6} parent=5 // pred_region
      %s535 = ssub.s32 %s11, 2
      // Predicated region
      $region49: #{yolov1_forward.6} parent=47 // pred_check
        %p536 = pneg %p150
      $region50: #{yolov1_forward.6} parent=47 // pred_check_branch
        %538 = sbr.rel (%p536) target = $region52
      $region51: #{yolov1_forward.6} parent=47 // pred_region
        %s539 = smul.u32 8, %s17
        %p540 = scmp.lt.s32.totalorder %s539, 15
        %s541 = scalar_select %p540, %s539, 15
        %s542 = smul.addr %s541, 4
        %s543 = scalar_lea.vmem %s5, %s542
      $region52: #{yolov1_forward.6} parent=47 // pred_fallthru
        _
    $region48: #{yolov1_forward.6} parent=5 // pred_fallthru
      _
  $region6: #{yolov1_forward.6} parent=0 // loop_footer
    %s15 = sadd.s32 1, %s11
  $region7: #{yolov1_forward.6} parent=0 // loop_footer_branch
    %10 = sbr.rel target = $region3
  $region8: #{yolov1_forward.6} parent=0 // loop_exit
    _

// kernel: yolov1_forward.7
$region0: #{yolov1_forward.7}
  #allocation0 [shape = 'u32[]', space=smem, size = 0x4, offset = 0x4, fixed_abs, tag = 'smem constant byte address 0x4 - core index']
  #allocation1 [shape = 'u32[72,128]{1,0:T(1,128)}', space=vmem, size = 0x9000, scoped, tag = 'internal scratch']
  %s0 = inlined_call_operand.vmem [shape: bf16[2,64,128], index: 0, kind: input, shape index: {}]
  %s1 = inlined_call_operand.vmem [shape: bf16[512,128], index: 1, kind: input, shape index: {}]
  %s2 = inlined_call_operand.vmem [shape: f32[1,128], index: 2, kind: input, shape index: {}]
  %s3 = inlined_call_operand.vmem [shape: bf16[128,128], index: 3, kind: input, shape index: {}]
  %s4 = inlined_call_operand.vmem [shape: f32[1,128], index: 4, kind: input, shape index: {}]
  %s5 = inlined_call_operand.vmem [shape: bf16[512,128], index: 5, kind: input, shape index: {}]
  %s6 = inlined_call_operand.vmem [shape: f32[1,128], index: 6, kind: input, shape index: {}]
  %s7 = inlined_call_operand.vmem [shape: bf16[2,64,128], index: 7, kind: output, shape index: {0}]
  %s8 = inlined_call_operand.vmem [shape: bf16[2,64,128], index: 8, kind: output, shape index: {1}]
  %9 = xla_tuple %s7, %s8
  %s10 = sld [smem:[#allocation0]]
  $region69: #{yolov1_forward.7} parent=0
    _
  %s12 = ssub.s32 1, %s10
  %s13 = scalar_select 0, %s12, %s10
  loop: start=0, step=1, limit=4
  $region2: #{yolov1_forward.7} parent=0 // loop_pre_header
    _
  $region3: #{yolov1_forward.7} parent=0 // loop_header
    %s15 = sphi 0, %s19
    %p16 = scmp.ge.s32.totalorder %s15, 4
    %s25 = sphi 0, %s27
    %s28 = sphi 0, %s25
    %s29 = sphi 0, %s28
    %s45 = sphi 0, %s29
    %s49 = sphi 0, %s49
    %s51 = sphi 0, %s49
    %s52 = sphi 0, %s51
    %s66 = sphi 0, %s52
    %s70 = sphi 0, %s70
    %s72 = sphi 0, %s70
    %s73 = sphi 0, %s72
    %s87 = sphi 0, %s73
    %s91 = sphi 0, %s91
    %s93 = sphi 0, %s91
    %s94 = sphi 0, %s93
    %s108 = sphi 0, %s94
    %s112 = sphi 0, %s112
    %s114 = sphi 0, %s112
    %s115 = sphi 0, %s114
    %s129 = sphi 0, %s115
    %s133 = sphi 0, %s133
    %s135 = sphi 0, %s133
    %s136 = sphi 0, %s135
    %s150 = sphi 0, %s136
    %s154 = sphi 0, %s154
    %s156 = sphi 0, %s154
    %s157 = sphi 0, %s156
    %s171 = sphi 0, %s157
    %s177 = sphi 0, %s179
    %s180 = sphi 0, %s177
    %s181 = sphi 0, %s180
    %s197 = sphi 0, %s181
    %s203 = sphi 0, %s205
    %s206 = sphi 0, %s203
    %s207 = sphi 0, %s206
    %s223 = sphi 0, %s207
  $region4: #{yolov1_forward.7} parent=0 // loop_header_branch
    %18 = sbr.rel (%p16) target = $region8
  $region5: #{yolov1_forward.7} parent=0 // loop_body
    %s20 = ssub.s32 %s15, 1
    %s21 = ssub.s32 %s15, 2
    %s22 = sadd.s32 %s15, 1
    %s23 = ssub.s32 %s15, %s22
    %p24 = scmp.eq.s32.totalorder %s23, 0
    %s26 = sadd.s32 %s25, 1
    %s27 = scalar_select %p24, %s25, %s26
    %p30 = pneg %p24
    %p31 = scmp.eq.s32.totalorder %s15, 1
    %p32 = por %p30, %p31
    %p33 = scmp.ne.s32.totalorder %s25, %s28
    %p34 = scmp.eq.s32.totalorder %s15, 0
    %p35 = por %p33, %p34
    %p36 = scmp.ne.s32.totalorder %s25, %s28
    %p37 = scmp.eq.s32.totalorder %s20, 1
    %p38 = por %p36, %p37
    %p39 = scmp.ne.s32.totalorder %s28, %s29
    %p40 = scmp.eq.s32.totalorder %s20, 0
    %p41 = por %p39, %p40
    %p42 = scmp.ne.s32.totalorder %s28, %s29
    %p43 = scmp.eq.s32.totalorder %s21, 1
    %p44 = por %p42, %p43
    %p46 = scmp.ne.s32.totalorder %s29, %s45
    %p47 = scmp.eq.s32.totalorder %s21, 0
    %p48 = por %p46, %p47
    %s50 = sadd.s32 %s49, 1
    %p53 = scmp.eq.s32.totalorder %s15, 1
    %p54 = scmp.ne.s32.totalorder %s49, %s51
    %p55 = scmp.eq.s32.totalorder %s15, 0
    %p56 = por %p54, %p55
    %p57 = scmp.ne.s32.totalorder %s49, %s51
    %p58 = scmp.eq.s32.totalorder %s20, 1
    %p59 = por %p57, %p58
    %p60 = scmp.ne.s32.totalorder %s51, %s52
    %p61 = scmp.eq.s32.totalorder %s20, 0
    %p62 = por %p60, %p61
    %p63 = scmp.ne.s32.totalorder %s51, %s52
    %p64 = scmp.eq.s32.totalorder %s21, 1
    %p65 = por %p63, %p64
    %p67 = scmp.ne.s32.totalorder %s52, %s66
    %p68 = scmp.eq.s32.totalorder %s21, 0
    %p69 = por %p67, %p68
    %s71 = sadd.s32 %s70, 1
    %p74 = scmp.eq.s32.totalorder %s15, 1
    %p75 = scmp.ne.s32.totalorder %s70, %s72
    %p76 = scmp.eq.s32.totalorder %s15, 0
    %p77 = por %p75, %p76
    %p78 = scmp.ne.s32.totalorder %s70, %s72
    %p79 = scmp.eq.s32.totalorder %s20, 1
    %p80 = por %p78, %p79
    %p81 = scmp.ne.s32.totalorder %s72, %s73
    %p82 = scmp.eq.s32.totalorder %s20, 0
    %p83 = por %p81, %p82
    %p84 = scmp.ne.s32.totalorder %s72, %s73
    %p85 = scmp.eq.s32.totalorder %s21, 1
    %p86 = por %p84, %p85
    %p88 = scmp.ne.s32.totalorder %s73, %s87
    %p89 = scmp.eq.s32.totalorder %s21, 0
    %p90 = por %p88, %p89
    %s92 = sadd.s32 %s91, 1
    %p95 = scmp.eq.s32.totalorder %s15, 1
    %p96 = scmp.ne.s32.totalorder %s91, %s93
    %p97 = scmp.eq.s32.totalorder %s15, 0
    %p98 = por %p96, %p97
    %p99 = scmp.ne.s32.totalorder %s91, %s93
    %p100 = scmp.eq.s32.totalorder %s20, 1
    %p101 = por %p99, %p100
    %p102 = scmp.ne.s32.totalorder %s93, %s94
    %p103 = scmp.eq.s32.totalorder %s20, 0
    %p104 = por %p102, %p103
    %p105 = scmp.ne.s32.totalorder %s93, %s94
    %p106 = scmp.eq.s32.totalorder %s21, 1
    %p107 = por %p105, %p106
    %p109 = scmp.ne.s32.totalorder %s94, %s108
    %p110 = scmp.eq.s32.totalorder %s21, 0
    %p111 = por %p109, %p110
    %s113 = sadd.s32 %s112, 1
    %p116 = scmp.eq.s32.totalorder %s15, 1
    %p117 = scmp.ne.s32.totalorder %s112, %s114
    %p118 = scmp.eq.s32.totalorder %s15, 0
    %p119 = por %p117, %p118
    %p120 = scmp.ne.s32.totalorder %s112, %s114
    %p121 = scmp.eq.s32.totalorder %s20, 1
    %p122 = por %p120, %p121
    %p123 = scmp.ne.s32.totalorder %s114, %s115
    %p124 = scmp.eq.s32.totalorder %s20, 0
    %p125 = por %p123, %p124
    %p126 = scmp.ne.s32.totalorder %s114, %s115
    %p127 = scmp.eq.s32.totalorder %s21, 1
    %p128 = por %p126, %p127
    %p130 = scmp.ne.s32.totalorder %s115, %s129
    %p131 = scmp.eq.s32.totalorder %s21, 0
    %p132 = por %p130, %p131
    %s134 = sadd.s32 %s133, 1
    %p137 = scmp.eq.s32.totalorder %s15, 1
    %p138 = scmp.ne.s32.totalorder %s133, %s135
    %p139 = scmp.eq.s32.totalorder %s15, 0
    %p140 = por %p138, %p139
    %p141 = scmp.ne.s32.totalorder %s133, %s135
    %p142 = scmp.eq.s32.totalorder %s20, 1
    %p143 = por %p141, %p142
    %p144 = scmp.ne.s32.totalorder %s135, %s136
    %p145 = scmp.eq.s32.totalorder %s20, 0
    %p146 = por %p144, %p145
    %p147 = scmp.ne.s32.totalorder %s135, %s136
    %p148 = scmp.eq.s32.totalorder %s21, 1
    %p149 = por %p147, %p148
    %p151 = scmp.ne.s32.totalorder %s136, %s150
    %p152 = scmp.eq.s32.totalorder %s21, 0
    %p153 = por %p151, %p152
    %s155 = sadd.s32 %s154, 1
    %p158 = scmp.eq.s32.totalorder %s15, 1
    %p159 = scmp.ne.s32.totalorder %s154, %s156
    %p160 = scmp.eq.s32.totalorder %s15, 0
    %p161 = por %p159, %p160
    %p162 = scmp.ne.s32.totalorder %s154, %s156
    %p163 = scmp.eq.s32.totalorder %s20, 1
    %p164 = por %p162, %p163
    %p165 = scmp.ne.s32.totalorder %s156, %s157
    %p166 = scmp.eq.s32.totalorder %s20, 0
    %p167 = por %p165, %p166
    %p168 = scmp.ne.s32.totalorder %s156, %s157
    %p169 = scmp.eq.s32.totalorder %s21, 1
    %p170 = por %p168, %p169
    %p172 = scmp.ne.s32.totalorder %s157, %s171
    %p173 = scmp.eq.s32.totalorder %s21, 0
    %p174 = por %p172, %p173
    %s175 = ssub.s32 %s15, %s22
    %p176 = scmp.eq.s32.totalorder %s175, 0
    %s178 = sadd.s32 %s177, 1
    %s179 = scalar_select %p176, %s177, %s178
    %p182 = pneg %p176
    %p183 = scmp.eq.s32.totalorder %s15, 1
    %p184 = por %p182, %p183
    %p185 = scmp.ne.s32.totalorder %s177, %s180
    %p186 = scmp.eq.s32.totalorder %s15, 0
    %p187 = por %p185, %p186
    %p188 = scmp.ne.s32.totalorder %s177, %s180
    %p189 = scmp.eq.s32.totalorder %s20, 1
    %p190 = por %p188, %p189
    %p191 = scmp.ne.s32.totalorder %s180, %s181
    %p192 = scmp.eq.s32.totalorder %s20, 0
    %p193 = por %p191, %p192
    %p194 = scmp.ne.s32.totalorder %s180, %s181
    %p195 = scmp.eq.s32.totalorder %s21, 1
    %p196 = por %p194, %p195
    %p198 = scmp.ne.s32.totalorder %s181, %s197
    %p199 = scmp.eq.s32.totalorder %s21, 0
    %p200 = por %p198, %p199
    %s201 = ssub.s32 %s15, %s22
    %p202 = scmp.eq.s32.totalorder %s201, 0
    %s204 = sadd.s32 %s203, 1
    %s205 = scalar_select %p202, %s203, %s204
    %p208 = pneg %p202
    %p209 = scmp.eq.s32.totalorder %s15, 1
    %p210 = por %p208, %p209
    %p211 = scmp.ne.s32.totalorder %s203, %s206
    %p212 = scmp.eq.s32.totalorder %s15, 0
    %p213 = por %p211, %p212
    %p214 = scmp.ne.s32.totalorder %s203, %s206
    %p215 = scmp.eq.s32.totalorder %s20, 1
    %p216 = por %p214, %p215
    %p217 = scmp.ne.s32.totalorder %s206, %s207
    %p218 = scmp.eq.s32.totalorder %s20, 0
    %p219 = por %p217, %p218
    %p220 = scmp.ne.s32.totalorder %s206, %s207
    %p221 = scmp.eq.s32.totalorder %s21, 1
    %p222 = por %p220, %p221
    %p224 = scmp.ne.s32.totalorder %s207, %s223
    %p225 = scmp.eq.s32.totalorder %s21, 0
    %p226 = por %p224, %p225
    %p227 = scmp.le.s32.totalorder 1, %s15
    %p228 = scmp.lt.s32.totalorder %s15, 3
    %p229 = pnand %p227, %p228
    %p230 = pneg %p229
    // Predicated region
    $region9: #{yolov1_forward.7} parent=5 // pred_check
      _
    $region10: #{yolov1_forward.7} parent=5 // pred_check_branch
      %232 = sbr.rel (%p229) target = $region12
    $region11: #{yolov1_forward.7} parent=5 // pred_region
      %s233 = ssub.s32 %s15, 1
      // Predicated region
      $region13: #{yolov1_forward.7} parent=11 // pred_check
        %p234 = pneg %p62
      $region14: #{yolov1_forward.7} parent=11 // pred_check_branch
        %236 = sbr.rel (%p234) target = $region16
      $region15: #{yolov1_forward.7} parent=11 // pred_region
        _
      $region16: #{yolov1_forward.7} parent=11 // pred_fallthru
        _
      // Predicated region
      $region17: #{yolov1_forward.7} parent=11 // pred_check
        %p237 = pneg %p83
      $region18: #{yolov1_forward.7} parent=11 // pred_check_branch
        %239 = sbr.rel (%p237) target = $region20
      $region19: #{yolov1_forward.7} parent=11 // pred_region
        _
      $region20: #{yolov1_forward.7} parent=11 // pred_fallthru
        _
      // Predicated region
      $region21: #{yolov1_forward.7} parent=11 // pred_check
        %p240 = pneg %p104
      $region22: #{yolov1_forward.7} parent=11 // pred_check_branch
        %242 = sbr.rel (%p240) target = $region24
      $region23: #{yolov1_forward.7} parent=11 // pred_region
        _
      $region24: #{yolov1_forward.7} parent=11 // pred_fallthru
        _
      // Predicated region
      $region25: #{yolov1_forward.7} parent=11 // pred_check
        %p243 = pneg %p125
      $region26: #{yolov1_forward.7} parent=11 // pred_check_branch
        %245 = sbr.rel (%p243) target = $region28
      $region27: #{yolov1_forward.7} parent=11 // pred_region
        _
      $region28: #{yolov1_forward.7} parent=11 // pred_fallthru
        _
      // Predicated region
      $region29: #{yolov1_forward.7} parent=11 // pred_check
        %p246 = pneg %p146
      $region30: #{yolov1_forward.7} parent=11 // pred_check_branch
        %248 = sbr.rel (%p246) target = $region32
      $region31: #{yolov1_forward.7} parent=11 // pred_region
        _
      $region32: #{yolov1_forward.7} parent=11 // pred_fallthru
        _
      // Predicated region
      $region33: #{yolov1_forward.7} parent=11 // pred_check
        %p249 = pneg %p167
      $region34: #{yolov1_forward.7} parent=11 // pred_check_branch
        %251 = sbr.rel (%p249) target = $region36
      $region35: #{yolov1_forward.7} parent=11 // pred_region
        _
      $region36: #{yolov1_forward.7} parent=11 // pred_fallthru
        _
    $region12: #{yolov1_forward.7} parent=5 // pred_fallthru
      _
    %p252 = scmp.lt.s32.totalorder %s15, 2
    // Predicated region
    $region37: #{yolov1_forward.7} parent=5 // pred_check
      %p253 = pneg %p252
    $region38: #{yolov1_forward.7} parent=5 // pred_check_branch
      %255 = sbr.rel (%p253) target = $region40
    $region39: #{yolov1_forward.7} parent=5 // pred_region
      // Predicated region
      $region41: #{yolov1_forward.7} parent=39 // pred_check
        %p256 = pneg %p35
      $region42: #{yolov1_forward.7} parent=39 // pred_check_branch
        %258 = sbr.rel (%p256) target = $region44
      $region43: #{yolov1_forward.7} parent=39 // pred_region
        %p259 = scmp.lt.s32.totalorder %s15, 1
        %s260 = scalar_select %p259, %s15, 1
        %s261 = smul.addr %s260, 8
        %s262 = smul.addr %s261, 4
        %s263 = scalar_lea.vmem %s0, %s262
      $region44: #{yolov1_forward.7} parent=39 // pred_fallthru
        _
    $region40: #{yolov1_forward.7} parent=5 // pred_fallthru
      _
    %p264 = scmp.le.s32.totalorder 1, %s15
    %p265 = scmp.lt.s32.totalorder %s15, 3
    %p266 = pnand %p264, %p265
    %p267 = pneg %p266
    // Predicated region
    $region45: #{yolov1_forward.7} parent=5 // pred_check
      _
    $region46: #{yolov1_forward.7} parent=5 // pred_check_branch
      %269 = sbr.rel (%p266) target = $region48
    $region47: #{yolov1_forward.7} parent=5 // pred_region
      %s270 = ssub.s32 %s15, 1
      %p271 = scmp.lt.s32.totalorder %s20, 1
      %s272 = scalar_select %p271, %s20, 1
      %s273 = smul.addr %s272, 8
      %s274 = smul.addr %s273, 4
      %s275 = scalar_lea.vmem %s0, %s274
      %p276 = pneg %p41
      %p277 = pneg %p38
      %p278 = pneg %p62
      %p279 = pneg %p59
      %p280 = pneg %p83
      %p281 = pneg %p80
      %p282 = pneg %p104
      %p283 = pneg %p101
      %p284 = pneg %p125
      %p285 = pneg %p122
      %p286 = pneg %p146
      %p287 = pneg %p143
      %p288 = pneg %p167
      %p289 = pneg %p164
      %p290 = pneg %p193
      %p291 = pneg %p190
      %p292 = scmp.lt.s32.totalorder %s20, 1
      %s293 = scalar_select %p292, %s20, 1
      %s294 = smul.addr %s293, 8
      %s295 = smul.addr %s294, 4
      %s296 = scalar_lea.vmem %s7, %s295
      %p297 = pneg %p219
      %p298 = pneg %p216
      %p299 = scmp.lt.s32.totalorder %s20, 1
      %s300 = scalar_select %p299, %s20, 1
      %s301 = smul.addr %s300, 8
      %s302 = smul.addr %s301, 4
      %s303 = scalar_lea.vmem %s8, %s302
      %p304 = scmp.lt.s32.totalorder %s20, 1
      %s305 = scalar_select %p304, %s20, 1
      %s306 = smul.addr %s305, 8
      %s307 = smul.addr %s306, 4
      %s308 = scalar_lea.vmem %s0, %s307
      %p309 = scmp.lt.s32.totalorder %s20, 1
      %s310 = scalar_select %p309, %s20, 1
      %s311 = smul.addr %s310, 8
      %s312 = smul.addr %s311, 4
      %s313 = scalar_lea.vmem %s7, %s312
      %p314 = scmp.lt.s32.totalorder %s20, 1
      %s315 = scalar_select %p314, %s20, 1
      %s316 = smul.addr %s315, 8
      %s317 = smul.addr %s316, 4
      %s318 = scalar_lea.vmem %s8, %s317
      %v319 = vld [vmem:[%s308] sm:$0xf]
      %v320 = vld [vmem:[%s308 + $0x4] sm:$0xf]
      %v321 = vld [vmem:[%s308 + $0x8] sm:$0xf]
      %v322 = vld [vmem:[%s308 + $0xc] sm:$0xf]
      %v323 = vld [vmem:[%s308 + $0x10] sm:$0xf]
      %v324 = vld [vmem:[%s308 + $0x14] sm:$0xf]
      %v325 = vld [vmem:[%s308 + $0x18] sm:$0xf]
      %v326 = vld [vmem:[%s308 + $0x1c] sm:$0xf]
      %v327 = vunpack.c.l.bf16 %v319
      %v328 = vunpack.c.l.bf16 %v320
      %v329 = vunpack.c.l.bf16 %v321
      %v330 = vunpack.c.l.bf16 %v322
      %v331 = vunpack.c.l.bf16 %v323
      %v332 = vunpack.c.l.bf16 %v324
      %v333 = vunpack.c.l.bf16 %v325
      %v334 = vunpack.c.l.bf16 %v326
      %v335 = vlaneseq
      %v336 = vshrl.u32 %v335, 7
      %v337 = vadd.s32 %v336, 8
      %v338 = vadd.s32 %v336, 16
      %v339 = vadd.s32 %v336, 24
      %v340 = vadd.s32 %v336, 32
      %v341 = vadd.s32 %v336, 40
      %v342 = vadd.s32 %v336, 48
      %v343 = vadd.s32 %v336, 56
      %v344 = vshra.s32 %v336, 3
      %v345 = vshra.s32 %v337, 3
      %v346 = vshra.s32 %v338, 3
      %v347 = vshra.s32 %v339, 3
      %v348 = vshra.s32 %v340, 3
      %v349 = vshra.s32 %v341, 3
      %v350 = vshra.s32 %v342, 3
      %v351 = vshra.s32 %v343, 3
      %v352 = vand.u32 %v336, 7
      %v353 = vand.u32 %v337, 7
      %v354 = vand.u32 %v338, 7
      %v355 = vand.u32 %v339, 7
      %v356 = vand.u32 %v340, 7
      %v357 = vand.u32 %v341, 7
      %v358 = vand.u32 %v342, 7
      %v359 = vand.u32 %v343, 7
      %v360 = vrot.slane %v327, 6
      %v361 = vrot.slane %v328, 6
      %v362 = vrot.slane %v329, 6
      %v363 = vrot.slane %v330, 6
      %v364 = vrot.slane %v331, 6
      %v365 = vrot.slane %v332, 6
      %v366 = vrot.slane %v333, 6
      %v367 = vrot.slane %v334, 6
      %vm368 = vcmp.lt.s32.totalorder %v336, 2
      %v369 = vsel %vm368, %v366, %v367
      %v370 = vsel %vm368, %v365, %v366
      %v371 = vsel %vm368, %v364, %v365
      %v372 = vsel %vm368, %v363, %v364
      %v373 = vsel %vm368, %v362, %v363
      %v374 = vsel %vm368, %v361, %v362
      %v375 = vsel %vm368, %v360, %v361
      %v376 = vsel %vm368, %v367, %v360
      %vm377 = vcmp.ge.s32.totalorder %v352, 2
      %vm378 = vcmp.ge.s32.totalorder %v353, 2
      %vm379 = vcmp.ge.s32.totalorder %v354, 2
      %vm380 = vcmp.ge.s32.totalorder %v355, 2
      %vm381 = vcmp.ge.s32.totalorder %v356, 2
      %vm382 = vcmp.ge.s32.totalorder %v357, 2
      %vm383 = vcmp.ge.s32.totalorder %v358, 2
      %vm384 = vcmp.ge.s32.totalorder %v359, 2
      %v385 = vsel %vm377, %v376, -3e+38
      %v386 = vsel %vm378, %v375, -3e+38
      %v387 = vsel %vm379, %v374, -3e+38
      %v388 = vsel %vm380, %v373, -3e+38
      %v389 = vsel %vm381, %v372, -3e+38
      %v390 = vsel %vm382, %v371, -3e+38
      %v391 = vsel %vm383, %v370, -3e+38
      %v392 = vsel %vm384, %v369, -3e+38
      %v393 = vmax.f32 %v327, %v385
      %v394 = vmax.f32 %v328, %v386
      %v395 = vmax.f32 %v329, %v387
      %v396 = vmax.f32 %v330, %v388
      %v397 = vmax.f32 %v331, %v389
      %v398 = vmax.f32 %v332, %v390
      %v399 = vmax.f32 %v333, %v391
      %v400 = vmax.f32 %v334, %v392
      %v401 = vrot.slane %v327, 7
      %v402 = vrot.slane %v328, 7
      %v403 = vrot.slane %v329, 7
      %v404 = vrot.slane %v330, 7
      %v405 = vrot.slane %v331, 7
      %v406 = vrot.slane %v332, 7
      %v407 = vrot.slane %v333, 7
      %v408 = vrot.slane %v334, 7
      %vm409 = vcmp.lt.s32.totalorder %v336, 1
      %v410 = vsel %vm409, %v407, %v408
      %v411 = vsel %vm409, %v406, %v407
      %v412 = vsel %vm409, %v405, %v406
      %v413 = vsel %vm409, %v404, %v405
      %v414 = vsel %vm409, %v403, %v404
      %v415 = vsel %vm409, %v402, %v403
      %v416 = vsel %vm409, %v401, %v402
      %v417 = vsel %vm409, %v408, %v401
      %vm418 = vcmp.ge.s32.totalorder %v352, 1
      %vm419 = vcmp.ge.s32.totalorder %v353, 1
      %vm420 = vcmp.ge.s32.totalorder %v354, 1
      %vm421 = vcmp.ge.s32.totalorder %v355, 1
      %vm422 = vcmp.ge.s32.totalorder %v356, 1
      %vm423 = vcmp.ge.s32.totalorder %v357, 1
      %vm424 = vcmp.ge.s32.totalorder %v358, 1
      %vm425 = vcmp.ge.s32.totalorder %v359, 1
      %v426 = vsel %vm418, %v417, -3e+38
      %v427 = vsel %vm419, %v416, -3e+38
      %v428 = vsel %vm420, %v415, -3e+38
      %v429 = vsel %vm421, %v414, -3e+38
      %v430 = vsel %vm422, %v413, -3e+38
      %v431 = vsel %vm423, %v412, -3e+38
      %v432 = vsel %vm424, %v411, -3e+38
      %v433 = vsel %vm425, %v410, -3e+38
      %v434 = vmax.f32 %v393, %v426
      %v435 = vmax.f32 %v394, %v427
      %v436 = vmax.f32 %v395, %v428
      %v437 = vmax.f32 %v396, %v429
      %v438 = vmax.f32 %v397, %v430
      %v439 = vmax.f32 %v398, %v431
      %v440 = vmax.f32 %v399, %v432
      %v441 = vmax.f32 %v400, %v433
      %v442 = vrot.slane %v327, 1
      %v443 = vrot.slane %v328, 1
      %v444 = vrot.slane %v329, 1
      %v445 = vrot.slane %v330, 1
      %v446 = vrot.slane %v331, 1
      %v447 = vrot.slane %v332, 1
      %v448 = vrot.slane %v333, 1
      %v449 = vrot.slane %v334, 1
      %vm450 = vcmp.lt.s32.totalorder %v336, 7
      %v451 = vsel %vm450, %v448, %v449
      %v452 = vsel %vm450, %v447, %v448
      %v453 = vsel %vm450, %v446, %v447
      %v454 = vsel %vm450, %v445, %v446
      %v455 = vsel %vm450, %v444, %v445
      %v456 = vsel %vm450, %v443, %v444
      %v457 = vsel %vm450, %v442, %v443
      %v458 = vsel %vm450, %v449, %v442
      %vm459 = vcmp.le.s32.totalorder %v352, 6
      %vm460 = vcmp.le.s32.totalorder %v353, 6
      %vm461 = vcmp.le.s32.totalorder %v354, 6
      %vm462 = vcmp.le.s32.totalorder %v355, 6
      %vm463 = vcmp.le.s32.totalorder %v356, 6
      %vm464 = vcmp.le.s32.totalorder %v357, 6
      %vm465 = vcmp.le.s32.totalorder %v358, 6
      %vm466 = vcmp.le.s32.totalorder %v359, 6
      %v467 = vsel %vm459, %v457, -3e+38
      %v468 = vsel %vm460, %v456, -3e+38
      %v469 = vsel %vm461, %v455, -3e+38
      %v470 = vsel %vm462, %v454, -3e+38
      %v471 = vsel %vm463, %v453, -3e+38
      %v472 = vsel %vm464, %v452, -3e+38
      %v473 = vsel %vm465, %v451, -3e+38
      %v474 = vsel %vm466, %v458, -3e+38
      %v475 = vmax.f32 %v434, %v467
      %v476 = vmax.f32 %v435, %v468
      %v477 = vmax.f32 %v436, %v469
      %v478 = vmax.f32 %v437, %v470
      %v479 = vmax.f32 %v438, %v471
      %v480 = vmax.f32 %v439, %v472
      %v481 = vmax.f32 %v440, %v473
      %v482 = vmax.f32 %v441, %v474
      %v483 = vrot.slane %v327, 2
      %v484 = vrot.slane %v328, 2
      %v485 = vrot.slane %v329, 2
      %v486 = vrot.slane %v330, 2
      %v487 = vrot.slane %v331, 2
      %v488 = vrot.slane %v332, 2
      %v489 = vrot.slane %v333, 2
      %v490 = vrot.slane %v334, 2
      %vm491 = vcmp.lt.s32.totalorder %v336, 6
      %v492 = vsel %vm491, %v489, %v490
      %v493 = vsel %vm491, %v488, %v489
      %v494 = vsel %vm491, %v487, %v488
      %v495 = vsel %vm491, %v486, %v487
      %v496 = vsel %vm491, %v485, %v486
      %v497 = vsel %vm491, %v484, %v485
      %v498 = vsel %vm491, %v483, %v484
      %v499 = vsel %vm491, %v490, %v483
      %vm500 = vcmp.le.s32.totalorder %v352, 5
      %vm501 = vcmp.le.s32.totalorder %v353, 5
      %vm502 = vcmp.le.s32.totalorder %v354, 5
      %vm503 = vcmp.le.s32.totalorder %v355, 5
      %vm504 = vcmp.le.s32.totalorder %v356, 5
      %vm505 = vcmp.le.s32.totalorder %v357, 5
      %vm506 = vcmp.le.s32.totalorder %v358, 5
      %vm507 = vcmp.le.s32.totalorder %v359, 5
      %v508 = vsel %vm500, %v498, -3e+38
      %v509 = vsel %vm501, %v497, -3e+38
      %v510 = vsel %vm502, %v496, -3e+38
      %v511 = vsel %vm503, %v495, -3e+38
      %v512 = vsel %vm504, %v494, -3e+38
      %v513 = vsel %vm505, %v493, -3e+38
      %v514 = vsel %vm506, %v492, -3e+38
      %v515 = vsel %vm507, %v499, -3e+38
      %v516 = vmax.f32 %v475, %v508
      %v517 = vmax.f32 %v476, %v509
      %v518 = vmax.f32 %v477, %v510
      %v519 = vmax.f32 %v478, %v511
      %v520 = vmax.f32 %v479, %v512
      %v521 = vmax.f32 %v480, %v513
      %v522 = vmax.f32 %v481, %v514
      %v523 = vmax.f32 %v482, %v515
      %vm524 = vcmp.ge.s32.totalorder %v344, 2
      %vm525 = vcmp.ge.s32.totalorder %v345, 2
      %vm526 = vcmp.ge.s32.totalorder %v346, 2
      %vm527 = vcmp.ge.s32.totalorder %v347, 2
      %vm528 = vcmp.ge.s32.totalorder %v348, 2
      %vm529 = vcmp.ge.s32.totalorder %v349, 2
      %vm530 = vcmp.ge.s32.totalorder %v350, 2
      %vm531 = vcmp.ge.s32.totalorder %v351, 2
      %v532 = vsel %vm524, %v522, -3e+38
      %v533 = vsel %vm525, %v523, -3e+38
      %v534 = vsel %vm526, %v516, -3e+38
      %v535 = vsel %vm527, %v517, -3e+38
      %v536 = vsel %vm528, %v518, -3e+38
      %v537 = vsel %vm529, %v519, -3e+38
      %v538 = vsel %vm530, %v520, -3e+38
      %v539 = vsel %vm531, %v521, -3e+38
      %v540 = vmax.f32 %v516, %v532
      %v541 = vmax.f32 %v517, %v533
      %v542 = vmax.f32 %v518, %v534
      %v543 = vmax.f32 %v519, %v535
      %v544 = vmax.f32 %v520, %v536
      %v545 = vmax.f32 %v521, %v537
      %v546 = vmax.f32 %v522, %v538
      %v547 = vmax.f32 %v523, %v539
      %vm548 = vcmp.ge.s32.totalorder %v344, 1
      %vm549 = vcmp.ge.s32.totalorder %v345, 1
      %vm550 = vcmp.ge.s32.totalorder %v346, 1
      %vm551 = vcmp.ge.s32.totalorder %v347, 1
      %vm552 = vcmp.ge.s32.totalorder %v348, 1
      %vm553 = vcmp.ge.s32.totalorder %v349, 1
      %vm554 = vcmp.ge.s32.totalorder %v350, 1
      %vm555 = vcmp.ge.s32.totalorder %v351, 1
      %v556 = vsel %vm548, %v523, -3e+38
      %v557 = vsel %vm549, %v516, -3e+38
      %v558 = vsel %vm550, %v517, -3e+38
      %v559 = vsel %vm551, %v518, -3e+38
      %v560 = vsel %vm552, %v519, -3e+38
      %v561 = vsel %vm553, %v520, -3e+38
      %v562 = vsel %vm554, %v521, -3e+38
      %v563 = vsel %vm555, %v522, -3e+38
      %v564 = vmax.f32 %v540, %v556
      %v565 = vmax.f32 %v541, %v557
      %v566 = vmax.f32 %v542, %v558
      %v567 = vmax.f32 %v543, %v559
      %v568 = vmax.f32 %v544, %v560
      %v569 = vmax.f32 %v545, %v561
      %v570 = vmax.f32 %v546, %v562
      %v571 = vmax.f32 %v547, %v563
      %vm572 = vcmp.le.s32.totalorder %v344, 6
      %vm573 = vcmp.le.s32.totalorder %v345, 6
      %vm574 = vcmp.le.s32.totalorder %v346, 6
      %vm575 = vcmp.le.s32.totalorder %v347, 6
      %vm576 = vcmp.le.s32.totalorder %v348, 6
      %vm577 = vcmp.le.s32.totalorder %v349, 6
      %vm578 = vcmp.le.s32.totalorder %v350, 6
      %vm579 = vcmp.le.s32.totalorder %v351, 6
      %v580 = vsel %vm572, %v517, -3e+38
      %v581 = vsel %vm573, %v518, -3e+38
      %v582 = vsel %vm574, %v519, -3e+38
      %v583 = vsel %vm575, %v520, -3e+38
      %v584 = vsel %vm576, %v521, -3e+38
      %v585 = vsel %vm577, %v522, -3e+38
      %v586 = vsel %vm578, %v523, -3e+38
      %v587 = vsel %vm579, %v516, -3e+38
      %v588 = vmax.f32 %v564, %v580
      %v589 = vmax.f32 %v565, %v581
      %v590 = vmax.f32 %v566, %v582
      %v591 = vmax.f32 %v567, %v583
      %v592 = vmax.f32 %v568, %v584
      %v593 = vmax.f32 %v569, %v585
      %v594 = vmax.f32 %v570, %v586
      %v595 = vmax.f32 %v571, %v587
      %vm596 = vcmp.le.s32.totalorder %v344, 5
      %vm597 = vcmp.le.s32.totalorder %v345, 5
      %vm598 = vcmp.le.s32.totalorder %v346, 5
      %vm599 = vcmp.le.s32.totalorder %v347, 5
      %vm600 = vcmp.le.s32.totalorder %v348, 5
      %vm601 = vcmp.le.s32.totalorder %v349, 5
      %vm602 = vcmp.le.s32.totalorder %v350, 5
      %vm603 = vcmp.le.s32.totalorder %v351, 5
      %v604 = vsel %vm596, %v518, -3e+38
      %v605 = vsel %vm597, %v519, -3e+38
      %v606 = vsel %vm598, %v520, -3e+38
      %v607 = vsel %vm599, %v521, -3e+38
      %v608 = vsel %vm600, %v522, -3e+38
      %v609 = vsel %vm601, %v523, -3e+38
      %v610 = vsel %vm602, %v516, -3e+38
      %v611 = vsel %vm603, %v517, -3e+38
      %v612 = vmax.f32 %v588, %v604
      %v613 = vmax.f32 %v589, %v605
      %v614 = vmax.f32 %v590, %v606
      %v615 = vmax.f32 %v591, %v607
      %v616 = vmax.f32 %v592, %v608
      %v617 = vmax.f32 %v593, %v609
      %v618 = vmax.f32 %v594, %v610
      %v619 = vmax.f32 %v595, %v611
      %v620 = vrot.slane %v612, 6
      %v621 = vrot.slane %v613, 6
      %v622 = vrot.slane %v614, 6
      %v623 = vrot.slane %v615, 6
      %v624 = vrot.slane %v616, 6
      %v625 = vrot.slane %v617, 6
      %v626 = vrot.slane %v618, 6
      %v627 = vrot.slane %v619, 6
      %v628 = vsel %vm368, %v626, %v627
      %v629 = vsel %vm368, %v625, %v626
      %v630 = vsel %vm368, %v624, %v625
      %v631 = vsel %vm368, %v623, %v624
      %v632 = vsel %vm368, %v622, %v623
      %v633 = vsel %vm368, %v621, %v622
      %v634 = vsel %vm368, %v620, %v621
      %v635 = vsel %vm368, %v627, %v620
      %v636 = vsel %vm377, %v635, -3e+38
      %v637 = vsel %vm378, %v634, -3e+38
      %v638 = vsel %vm379, %v633, -3e+38
      %v639 = vsel %vm380, %v632, -3e+38
      %v640 = vsel %vm381, %v631, -3e+38
      %v641 = vsel %vm382, %v630, -3e+38
      %v642 = vsel %vm383, %v629, -3e+38
      %v643 = vsel %vm384, %v628, -3e+38
      %v644 = vmax.f32 %v612, %v636
      %v645 = vmax.f32 %v613, %v637
      %v646 = vmax.f32 %v614, %v638
      %v647 = vmax.f32 %v615, %v639
      %v648 = vmax.f32 %v616, %v640
      %v649 = vmax.f32 %v617, %v641
      %v650 = vmax.f32 %v618, %v642
      %v651 = vmax.f32 %v619, %v643
      %v652 = vrot.slane %v612, 7
      %v653 = vrot.slane %v613, 7
      %v654 = vrot.slane %v614, 7
      %v655 = vrot.slane %v615, 7
      %v656 = vrot.slane %v616, 7
      %v657 = vrot.slane %v617, 7
      %v658 = vrot.slane %v618, 7
      %v659 = vrot.slane %v619, 7
      %v660 = vsel %vm409, %v658, %v659
      %v661 = vsel %vm409, %v657, %v658
      %v662 = vsel %vm409, %v656, %v657
      %v663 = vsel %vm409, %v655, %v656
      %v664 = vsel %vm409, %v654, %v655
      %v665 = vsel %vm409, %v653, %v654
      %v666 = vsel %vm409, %v652, %v653
      %v667 = vsel %vm409, %v659, %v652
      %v668 = vsel %vm418, %v667, -3e+38
      %v669 = vsel %vm419, %v666, -3e+38
      %v670 = vsel %vm420, %v665, -3e+38
      %v671 = vsel %vm421, %v664, -3e+38
      %v672 = vsel %vm422, %v663, -3e+38
      %v673 = vsel %vm423, %v662, -3e+38
      %v674 = vsel %vm424, %v661, -3e+38
      %v675 = vsel %vm425, %v660, -3e+38
      %v676 = vmax.f32 %v644, %v668
      %v677 = vmax.f32 %v645, %v669
      %v678 = vmax.f32 %v646, %v670
      %v679 = vmax.f32 %v647, %v671
      %v680 = vmax.f32 %v648, %v672
      %v681 = vmax.f32 %v649, %v673
      %v682 = vmax.f32 %v650, %v674
      %v683 = vmax.f32 %v651, %v675
      %v684 = vrot.slane %v612, 1
      %v685 = vrot.slane %v613, 1
      %v686 = vrot.slane %v614, 1
      %v687 = vrot.slane %v615, 1
      %v688 = vrot.slane %v616, 1
      %v689 = vrot.slane %v617, 1
      %v690 = vrot.slane %v618, 1
      %v691 = vrot.slane %v619, 1
      %v692 = vsel %vm450, %v690, %v691
      %v693 = vsel %vm450, %v689, %v690
      %v694 = vsel %vm450, %v688, %v689
      %v695 = vsel %vm450, %v687, %v688
      %v696 = vsel %vm450, %v686, %v687
      %v697 = vsel %vm450, %v685, %v686
      %v698 = vsel %vm450, %v684, %v685
      %v699 = vsel %vm450, %v691, %v684
      %v700 = vsel %vm459, %v698, -3e+38
      %v701 = vsel %vm460, %v697, -3e+38
      %v702 = vsel %vm461, %v696, -3e+38
      %v703 = vsel %vm462, %v695, -3e+38
      %v704 = vsel %vm463, %v694, -3e+38
      %v705 = vsel %vm464, %v693, -3e+38
      %v706 = vsel %vm465, %v692, -3e+38
      %v707 = vsel %vm466, %v699, -3e+38
      %v708 = vmax.f32 %v676, %v700
      %v709 = vmax.f32 %v677, %v701
      %v710 = vmax.f32 %v678, %v702
      %v711 = vmax.f32 %v679, %v703
      %v712 = vmax.f32 %v680, %v704
      %v713 = vmax.f32 %v681, %v705
      %v714 = vmax.f32 %v682, %v706
      %v715 = vmax.f32 %v683, %v707
      %v716 = vrot.slane %v612, 2
      %v717 = vrot.slane %v613, 2
      %v718 = vrot.slane %v614, 2
      %v719 = vrot.slane %v615, 2
      %v720 = vrot.slane %v616, 2
      %v721 = vrot.slane %v617, 2
      %v722 = vrot.slane %v618, 2
      %v723 = vrot.slane %v619, 2
      %v724 = vsel %vm491, %v722, %v723
      %v725 = vsel %vm491, %v721, %v722
      %v726 = vsel %vm491, %v720, %v721
      %v727 = vsel %vm491, %v719, %v720
      %v728 = vsel %vm491, %v718, %v719
      %v729 = vsel %vm491, %v717, %v718
      %v730 = vsel %vm491, %v716, %v717
      %v731 = vsel %vm491, %v723, %v716
      %v732 = vsel %vm500, %v730, -3e+38
      %v733 = vsel %vm501, %v729, -3e+38
      %v734 = vsel %vm502, %v728, -3e+38
      %v735 = vsel %vm503, %v727, -3e+38
      %v736 = vsel %vm504, %v726, -3e+38
      %v737 = vsel %vm505, %v725, -3e+38
      %v738 = vsel %vm506, %v724, -3e+38
      %v739 = vsel %vm507, %v731, -3e+38
      %v740 = vmax.f32 %v708, %v732
      %v741 = vmax.f32 %v709, %v733
      %v742 = vmax.f32 %v710, %v734
      %v743 = vmax.f32 %v711, %v735
      %v744 = vmax.f32 %v712, %v736
      %v745 = vmax.f32 %v713, %v737
      %v746 = vmax.f32 %v714, %v738
      %v747 = vmax.f32 %v715, %v739
      %v748 = vsel %vm524, %v746, -3e+38
      %v749 = vsel %vm525, %v747, -3e+38
      %v750 = vsel %vm526, %v740, -3e+38
      %v751 = vsel %vm527, %v741, -3e+38
      %v752 = vsel %vm528, %v742, -3e+38
      %v753 = vsel %vm529, %v743, -3e+38
      %v754 = vsel %vm530, %v744, -3e+38
      %v755 = vsel %vm531, %v745, -3e+38
      %v756 = vmax.f32 %v740, %v748
      %v757 = vmax.f32 %v741, %v749
      %v758 = vmax.f32 %v742, %v750
      %v759 = vmax.f32 %v743, %v751
      %v760 = vmax.f32 %v744, %v752
      %v761 = vmax.f32 %v745, %v753
      %v762 = vmax.f32 %v746, %v754
      %v763 = vmax.f32 %v747, %v755
      %v764 = vsel %vm548, %v747, -3e+38
      %v765 = vsel %vm549, %v740, -3e+38
      %v766 = vsel %vm550, %v741, -3e+38
      %v767 = vsel %vm551, %v742, -3e+38
      %v768 = vsel %vm552, %v743, -3e+38
      %v769 = vsel %vm553, %v744, -3e+38
      %v770 = vsel %vm554, %v745, -3e+38
      %v771 = vsel %vm555, %v746, -3e+38
      %v772 = vmax.f32 %v756, %v764
      %v773 = vmax.f32 %v757, %v765
      %v774 = vmax.f32 %v758, %v766
      %v775 = vmax.f32 %v759, %v767
      %v776 = vmax.f32 %v760, %v768
      %v777 = vmax.f32 %v761, %v769
      %v778 = vmax.f32 %v762, %v770
      %v779 = vmax.f32 %v763, %v771
      %v780 = vsel %vm572, %v741, -3e+38
      %v781 = vsel %vm573, %v742, -3e+38
      %v782 = vsel %vm574, %v743, -3e+38
      %v783 = vsel %vm575, %v744, -3e+38
      %v784 = vsel %vm576, %v745, -3e+38
      %v785 = vsel %vm577, %v746, -3e+38
      %v786 = vsel %vm578, %v747, -3e+38
      %v787 = vsel %vm579, %v740, -3e+38
      %v788 = vmax.f32 %v772, %v780
      %v789 = vmax.f32 %v773, %v781
      %v790 = vmax.f32 %v774, %v782
      %v791 = vmax.f32 %v775, %v783
      %v792 = vmax.f32 %v776, %v784
      %v793 = vmax.f32 %v777, %v785
      %v794 = vmax.f32 %v778, %v786
      %v795 = vmax.f32 %v779, %v787
      %v796 = vsel %vm596, %v742, -3e+38
      %v797 = vsel %vm597, %v743, -3e+38
      %v798 = vsel %vm598, %v744, -3e+38
      %v799 = vsel %vm599, %v745, -3e+38
      %v800 = vsel %vm600, %v746, -3e+38
      %v801 = vsel %vm601, %v747, -3e+38
      %v802 = vsel %vm602, %v740, -3e+38
      %v803 = vsel %vm603, %v741, -3e+38
      %v804 = vmax.f32 %v788, %v796
      %v805 = vmax.f32 %v789, %v797
      %v806 = vmax.f32 %v790, %v798
      %v807 = vmax.f32 %v791, %v799
      %v808 = vmax.f32 %v792, %v800
      %v809 = vmax.f32 %v793, %v801
      %v810 = vmax.f32 %v794, %v802
      %v811 = vmax.f32 %v795, %v803
      %v812 = vrot.slane %v804, 6
      %v813 = vrot.slane %v805, 6
      %v814 = vrot.slane %v806, 6
      %v815 = vrot.slane %v807, 6
      %v816 = vrot.slane %v808, 6
      %v817 = vrot.slane %v809, 6
      %v818 = vrot.slane %v810, 6
      %v819 = vrot.slane %v811, 6
      %v820 = vsel %vm368, %v818, %v819
      %v821 = vsel %vm368, %v817, %v818
      %v822 = vsel %vm368, %v816, %v817
      %v823 = vsel %vm368, %v815, %v816
      %v824 = vsel %vm368, %v814, %v815
      %v825 = vsel %vm368, %v813, %v814
      %v826 = vsel %vm368, %v812, %v813
      %v827 = vsel %vm368, %v819, %v812
      %v828 = vsel %vm377, %v827, -3e+38
      %v829 = vsel %vm378, %v826, -3e+38
      %v830 = vsel %vm379, %v825, -3e+38
      %v831 = vsel %vm380, %v824, -3e+38
      %v832 = vsel %vm381, %v823, -3e+38
      %v833 = vsel %vm382, %v822, -3e+38
      %v834 = vsel %vm383, %v821, -3e+38
      %v835 = vsel %vm384, %v820, -3e+38
      %v836 = vmax.f32 %v804, %v828
      %v837 = vmax.f32 %v805, %v829
      %v838 = vmax.f32 %v806, %v830
      %v839 = vmax.f32 %v807, %v831
      %v840 = vmax.f32 %v808, %v832
      %v841 = vmax.f32 %v809, %v833
      %v842 = vmax.f32 %v810, %v834
      %v843 = vmax.f32 %v811, %v835
      %v844 = vrot.slane %v804, 7
      %v845 = vrot.slane %v805, 7
      %v846 = vrot.slane %v806, 7
      %v847 = vrot.slane %v807, 7
      %v848 = vrot.slane %v808, 7
      %v849 = vrot.slane %v809, 7
      %v850 = vrot.slane %v810, 7
      %v851 = vrot.slane %v811, 7
      %v852 = vsel %vm409, %v850, %v851
      %v853 = vsel %vm409, %v849, %v850
      %v854 = vsel %vm409, %v848, %v849
      %v855 = vsel %vm409, %v847, %v848
      %v856 = vsel %vm409, %v846, %v847
      %v857 = vsel %vm409, %v845, %v846
      %v858 = vsel %vm409, %v844, %v845
      %v859 = vsel %vm409, %v851, %v844
      %v860 = vsel %vm418, %v859, -3e+38
      %v861 = vsel %vm419, %v858, -3e+38
      %v862 = vsel %vm420, %v857, -3e+38
      %v863 = vsel %vm421, %v856, -3e+38
      %v864 = vsel %vm422, %v855, -3e+38
      %v865 = vsel %vm423, %v854, -3e+38
      %v866 = vsel %vm424, %v853, -3e+38
      %v867 = vsel %vm425, %v852, -3e+38
      %v868 = vmax.f32 %v836, %v860
      %v869 = vmax.f32 %v837, %v861
      %v870 = vmax.f32 %v838, %v862
      %v871 = vmax.f32 %v839, %v863
      %v872 = vmax.f32 %v840, %v864
      %v873 = vmax.f32 %v841, %v865
      %v874 = vmax.f32 %v842, %v866
      %v875 = vmax.f32 %v843, %v867
      %v876 = vrot.slane %v804, 1
      %v877 = vrot.slane %v805, 1
      %v878 = vrot.slane %v806, 1
      %v879 = vrot.slane %v807, 1
      %v880 = vrot.slane %v808, 1
      %v881 = vrot.slane %v809, 1
      %v882 = vrot.slane %v810, 1
      %v883 = vrot.slane %v811, 1
      %v884 = vsel %vm450, %v882, %v883
      %v885 = vsel %vm450, %v881, %v882
      %v886 = vsel %vm450, %v880, %v881
      %v887 = vsel %vm450, %v879, %v880
      %v888 = vsel %vm450, %v878, %v879
      %v889 = vsel %vm450, %v877, %v878
      %v890 = vsel %vm450, %v876, %v877
      %v891 = vsel %vm450, %v883, %v876
      %v892 = vsel %vm459, %v890, -3e+38
      %v893 = vsel %vm460, %v889, -3e+38
      %v894 = vsel %vm461, %v888, -3e+38
      %v895 = vsel %vm462, %v887, -3e+38
      %v896 = vsel %vm463, %v886, -3e+38
      %v897 = vsel %vm464, %v885, -3e+38
      %v898 = vsel %vm465, %v884, -3e+38
      %v899 = vsel %vm466, %v891, -3e+38
      %v900 = vmax.f32 %v868, %v892
      %v901 = vmax.f32 %v869, %v893
      %v902 = vmax.f32 %v870, %v894
      %v903 = vmax.f32 %v871, %v895
      %v904 = vmax.f32 %v872, %v896
      %v905 = vmax.f32 %v873, %v897
      %v906 = vmax.f32 %v874, %v898
      %v907 = vmax.f32 %v875, %v899
      %v908 = vrot.slane %v804, 2
      %v909 = vrot.slane %v805, 2
      %v910 = vrot.slane %v806, 2
      %v911 = vrot.slane %v807, 2
      %v912 = vrot.slane %v808, 2
      %v913 = vrot.slane %v809, 2
      %v914 = vrot.slane %v810, 2
      %v915 = vrot.slane %v811, 2
      %v916 = vsel %vm491, %v914, %v915
      %v917 = vsel %vm491, %v913, %v914
      %v918 = vsel %vm491, %v912, %v913
      %v919 = vsel %vm491, %v911, %v912
      %v920 = vsel %vm491, %v910, %v911
      %v921 = vsel %vm491, %v909, %v910
      %v922 = vsel %vm491, %v908, %v909
      %v923 = vsel %vm491, %v915, %v908
      %v924 = vsel %vm500, %v922, -3e+38
      %v925 = vsel %vm501, %v921, -3e+38
      %v926 = vsel %vm502, %v920, -3e+38
      %v927 = vsel %vm503, %v919, -3e+38
      %v928 = vsel %vm504, %v918, -3e+38
      %v929 = vsel %vm505, %v917, -3e+38
      %v930 = vsel %vm506, %v916, -3e+38
      %v931 = vsel %vm507, %v923, -3e+38
      %v932 = vmax.f32 %v900, %v924
      %v933 = vmax.f32 %v901, %v925
      %v934 = vmax.f32 %v902, %v926
      %v935 = vmax.f32 %v903, %v927
      %v936 = vmax.f32 %v904, %v928
      %v937 = vmax.f32 %v905, %v929
      %v938 = vmax.f32 %v906, %v930
      %v939 = vmax.f32 %v907, %v931
      %v940 = vsel %vm524, %v938, -3e+38
      %v941 = vsel %vm525, %v939, -3e+38
      %v942 = vsel %vm526, %v932, -3e+38
      %v943 = vsel %vm527, %v933, -3e+38
      %v944 = vsel %vm528, %v934, -3e+38
      %v945 = vsel %vm529, %v935, -3e+38
      %v946 = vsel %vm530, %v936, -3e+38
      %v947 = vsel %vm531, %v937, -3e+38
      %v948 = vmax.f32 %v932, %v940
      %v949 = vmax.f32 %v933, %v941
      %v950 = vmax.f32 %v934, %v942
      %v951 = vmax.f32 %v935, %v943
      %v952 = vmax.f32 %v936, %v944
      %v953 = vmax.f32 %v937, %v945
      %v954 = vmax.f32 %v938, %v946
      %v955 = vmax.f32 %v939, %v947
      %v956 = vsel %vm548, %v939, -3e+38
      %v957 = vsel %vm549, %v932, -3e+38
      %v958 = vsel %vm550, %v933, -3e+38
      %v959 = vsel %vm551, %v934, -3e+38
      %v960 = vsel %vm552, %v935, -3e+38
      %v961 = vsel %vm553, %v936, -3e+38
      %v962 = vsel %vm554, %v937, -3e+38
      %v963 = vsel %vm555, %v938, -3e+38
      %v964 = vmax.f32 %v948, %v956
      %v965 = vmax.f32 %v949, %v957
      %v966 = vmax.f32 %v950, %v958
      %v967 = vmax.f32 %v951, %v959
      %v968 = vmax.f32 %v952, %v960
      %v969 = vmax.f32 %v953, %v961
      %v970 = vmax.f32 %v954, %v962
      %v971 = vmax.f32 %v955, %v963
      %v972 = vsel %vm572, %v933, -3e+38
      %v973 = vsel %vm573, %v934, -3e+38
      %v974 = vsel %vm574, %v935, -3e+38
      %v975 = vsel %vm575, %v936, -3e+38
      %v976 = vsel %vm576, %v937, -3e+38
      %v977 = vsel %vm577, %v938, -3e+38
      %v978 = vsel %vm578, %v939, -3e+38
      %v979 = vsel %vm579, %v932, -3e+38
      %v980 = vmax.f32 %v964, %v972
      %v981 = vmax.f32 %v965, %v973
      %v982 = vmax.f32 %v966, %v974
      %v983 = vmax.f32 %v967, %v975
      %v984 = vmax.f32 %v968, %v976
      %v985 = vmax.f32 %v969, %v977
      %v986 = vmax.f32 %v970, %v978
      %v987 = vmax.f32 %v971, %v979
      %v988 = vsel %vm596, %v934, -3e+38
      %v989 = vsel %vm597, %v935, -3e+38
      %v990 = vsel %vm598, %v936, -3e+38
      %v991 = vsel %vm599, %v937, -3e+38
      %v992 = vsel %vm600, %v938, -3e+38
      %v993 = vsel %vm601, %v939, -3e+38
      %v994 = vsel %vm602, %v932, -3e+38
      %v995 = vsel %vm603, %v933, -3e+38
      %v996 = vmax.f32 %v980, %v988
      %v997 = vmax.f32 %v981, %v989
      %v998 = vmax.f32 %v982, %v990
      %v999 = vmax.f32 %v983, %v991
      %v1000 = vmax.f32 %v984, %v992
      %v1001 = vmax.f32 %v985, %v993
      %v1002 = vmax.f32 %v986, %v994
      %v1003 = vmax.f32 %v987, %v995
      %v1004 = vpack.c.bf16 %v328, %v327
      %v1005 = vpack.c.bf16 %v613, %v612
      %v1006 = vpack.c.bf16 %v805, %v804
      %v1007 = vpack.c.bf16 %v997, %v996
      %v1008 = vpack.c.bf16 %v330, %v329
      %v1009 = vpack.c.bf16 %v615, %v614
      %v1010 = vpack.c.bf16 %v807, %v806
      %v1011 = vpack.c.bf16 %v999, %v998
      %v1012 = vpack.c.bf16 %v332, %v331
      %v1013 = vpack.c.bf16 %v617, %v616
      %v1014 = vpack.c.bf16 %v809, %v808
      %v1015 = vpack.c.bf16 %v1001, %v1000
      %v1016 = vpack.c.bf16 %v334, %v333
      %v1017 = vpack.c.bf16 %v619, %v618
      %v1018 = vpack.c.bf16 %v811, %v810
      %v1019 = vpack.c.bf16 %v1003, %v1002
      %v1020 = vld [vmem:[%s1] sm:$0xf]
      %v1021 = vld [vmem:[%s1 + $0x4] sm:$0xf]
      %v1022 = vld [vmem:[%s1 + $0x8] sm:$0xf]
      %v1023 = vld [vmem:[%s1 + $0xc] sm:$0xf]
      %v1024 = vld [vmem:[%s1 + $0x10] sm:$0xf]
      %v1025 = vld [vmem:[%s1 + $0x14] sm:$0xf]
      %v1026 = vld [vmem:[%s1 + $0x18] sm:$0xf]
      %v1027 = vld [vmem:[%s1 + $0x1c] sm:$0xf]
      %v1028 = vld [vmem:[%s1 + $0x20] sm:$0xf]
      %v1029 = vld [vmem:[%s1 + $0x24] sm:$0xf]
      %v1030 = vld [vmem:[%s1 + $0x28] sm:$0xf]
      %v1031 = vld [vmem:[%s1 + $0x2c] sm:$0xf]
      %v1032 = vld [vmem:[%s1 + $0x30] sm:$0xf]
      %v1033 = vld [vmem:[%s1 + $0x34] sm:$0xf]
      %v1034 = vld [vmem:[%s1 + $0x38] sm:$0xf]
      %v1035 = vld [vmem:[%s1 + $0x3c] sm:$0xf]
      %v1036 = vld [vmem:[%s1 + $0x40] sm:$0xf]
      %v1037 = vld [vmem:[%s1 + $0x44] sm:$0xf]
      %v1038 = vld [vmem:[%s1 + $0x48] sm:$0xf]
      %v1039 = vld [vmem:[%s1 + $0x4c] sm:$0xf]
      %v1040 = vld [vmem:[%s1 + $0x50] sm:$0xf]
      %v1041 = vld [vmem:[%s1 + $0x54] sm:$0xf]
      %v1042 = vld [vmem:[%s1 + $0x58] sm:$0xf]
      %v1043 = vld [vmem:[%s1 + $0x5c] sm:$0xf]
      %v1044 = vld [vmem:[%s1 + $0x60] sm:$0xf]
      %v1045 = vld [vmem:[%s1 + $0x64] sm:$0xf]
      %v1046 = vld [vmem:[%s1 + $0x68] sm:$0xf]
      %v1047 = vld [vmem:[%s1 + $0x6c] sm:$0xf]
      %v1048 = vld [vmem:[%s1 + $0x70] sm:$0xf]
      %v1049 = vld [vmem:[%s1 + $0x74] sm:$0xf]
      %v1050 = vld [vmem:[%s1 + $0x78] sm:$0xf]
      %v1051 = vld [vmem:[%s1 + $0x7c] sm:$0xf]
      %v1052 = vld [vmem:[%s1 + $0x80] sm:$0xf]
      %v1053 = vld [vmem:[%s1 + $0x84] sm:$0xf]
      %v1054 = vld [vmem:[%s1 + $0x88] sm:$0xf]
      %v1055 = vld [vmem:[%s1 + $0x8c] sm:$0xf]
      %v1056 = vld [vmem:[%s1 + $0x90] sm:$0xf]
      %v1057 = vld [vmem:[%s1 + $0x94] sm:$0xf]
      %v1058 = vld [vmem:[%s1 + $0x98] sm:$0xf]
      %v1059 = vld [vmem:[%s1 + $0x9c] sm:$0xf]
      %v1060 = vld [vmem:[%s1 + $0xa0] sm:$0xf]
      %v1061 = vld [vmem:[%s1 + $0xa4] sm:$0xf]
      %v1062 = vld [vmem:[%s1 + $0xa8] sm:$0xf]
      %v1063 = vld [vmem:[%s1 + $0xac] sm:$0xf]
      %v1064 = vld [vmem:[%s1 + $0xb0] sm:$0xf]
      %v1065 = vld [vmem:[%s1 + $0xb4] sm:$0xf]
      %v1066 = vld [vmem:[%s1 + $0xb8] sm:$0xf]
      %v1067 = vld [vmem:[%s1 + $0xbc] sm:$0xf]
      %v1068 = vld [vmem:[%s1 + $0xc0] sm:$0xf]
      %v1069 = vld [vmem:[%s1 + $0xc4] sm:$0xf]
      %v1070 = vld [vmem:[%s1 + $0xc8] sm:$0xf]
      %v1071 = vld [vmem:[%s1 + $0xcc] sm:$0xf]
      %v1072 = vld [vmem:[%s1 + $0xd0] sm:$0xf]
      %v1073 = vld [vmem:[%s1 + $0xd4] sm:$0xf]
      %v1074 = vld [vmem:[%s1 + $0xd8] sm:$0xf]
      %v1075 = vld [vmem:[%s1 + $0xdc] sm:$0xf]
      %v1076 = vld [vmem:[%s1 + $0xe0] sm:$0xf]
      %v1077 = vld [vmem:[%s1 + $0xe4] sm:$0xf]
      %v1078 = vld [vmem:[%s1 + $0xe8] sm:$0xf]
      %v1079 = vld [vmem:[%s1 + $0xec] sm:$0xf]
      %v1080 = vld [vmem:[%s1 + $0xf0] sm:$0xf]
      %v1081 = vld [vmem:[%s1 + $0xf4] sm:$0xf]
      %v1082 = vld [vmem:[%s1 + $0xf8] sm:$0xf]
      %v1083 = vld [vmem:[%s1 + $0xfc] sm:$0xf]
      %v1084 = vld [vmem:[%s2] sm:$0x1]
      %v1086 = vperm.slane %v1084, 0
      %v1152 = vunpack.c.l.b16 %v1020
      %v1153 = vunpack.c.l.b16 %v1021
      %v1154 = vunpack.c.l.b16 %v1022
      %v1155 = vunpack.c.l.b16 %v1023
      %v1156 = vunpack.c.l.b16 %v1024
      %v1157 = vunpack.c.l.b16 %v1025
      %v1158 = vunpack.c.l.b16 %v1026
      %v1159 = vunpack.c.l.b16 %v1027
      %v1160 = vunpack.c.l.b16 %v1028
      %v1161 = vunpack.c.l.b16 %v1029
      %v1162 = vunpack.c.l.b16 %v1030
      %v1163 = vunpack.c.l.b16 %v1031
      %v1164 = vunpack.c.l.b16 %v1032
      %v1165 = vunpack.c.l.b16 %v1033
      %v1166 = vunpack.c.l.b16 %v1034
      %v1167 = vunpack.c.l.b16 %v1035
      %v1168 = vunpack.c.l.b16 %v1036
      %v1169 = vunpack.c.l.b16 %v1037
      %v1170 = vunpack.c.l.b16 %v1038
      %v1171 = vunpack.c.l.b16 %v1039
      %v1172 = vunpack.c.l.b16 %v1040
      %v1173 = vunpack.c.l.b16 %v1041
      %v1174 = vunpack.c.l.b16 %v1042
      %v1175 = vunpack.c.l.b16 %v1043
      %v1176 = vunpack.c.l.b16 %v1044
      %v1177 = vunpack.c.l.b16 %v1045
      %v1178 = vunpack.c.l.b16 %v1046
      %v1179 = vunpack.c.l.b16 %v1047
      %v1180 = vunpack.c.l.b16 %v1048
      %v1181 = vunpack.c.l.b16 %v1049
      %v1182 = vunpack.c.l.b16 %v1050
      %v1183 = vunpack.c.l.b16 %v1051
      %v1184 = vunpack.c.l.b16 %v1052
      %v1185 = vunpack.c.l.b16 %v1053
      %v1186 = vunpack.c.l.b16 %v1054
      %v1187 = vunpack.c.l.b16 %v1055
      %v1188 = vunpack.c.l.b16 %v1056
      %v1189 = vunpack.c.l.b16 %v1057
      %v1190 = vunpack.c.l.b16 %v1058
      %v1191 = vunpack.c.l.b16 %v1059
      %v1192 = vunpack.c.l.b16 %v1060
      %v1193 = vunpack.c.l.b16 %v1061
      %v1194 = vunpack.c.l.b16 %v1062
      %v1195 = vunpack.c.l.b16 %v1063
      %v1196 = vunpack.c.l.b16 %v1064
      %v1197 = vunpack.c.l.b16 %v1065
      %v1198 = vunpack.c.l.b16 %v1066
      %v1199 = vunpack.c.l.b16 %v1067
      %v1200 = vunpack.c.l.b16 %v1068
      %v1201 = vunpack.c.l.b16 %v1069
      %v1202 = vunpack.c.l.b16 %v1070
      %v1203 = vunpack.c.l.b16 %v1071
      %v1204 = vunpack.c.l.b16 %v1072
      %v1205 = vunpack.c.l.b16 %v1073
      %v1206 = vunpack.c.l.b16 %v1074
      %v1207 = vunpack.c.l.b16 %v1075
      %v1208 = vunpack.c.l.b16 %v1076
      %v1209 = vunpack.c.l.b16 %v1077
      %v1210 = vunpack.c.l.b16 %v1078
      %v1211 = vunpack.c.l.b16 %v1079
      %v1212 = vunpack.c.l.b16 %v1080
      %v1213 = vunpack.c.l.b16 %v1081
      %v1214 = vunpack.c.l.b16 %v1082
      %v1215 = vunpack.c.l.b16 %v1083
      %v1216 = vpack.c.b16 %v1153, %v1152
      %v1217 = vpack.c.b16 %v1155, %v1154
      %v1218 = vpack.c.b16 %v1157, %v1156
      %v1219 = vpack.c.b16 %v1159, %v1158
      %v1220 = vpack.c.b16 %v1161, %v1160
      %v1221 = vpack.c.b16 %v1163, %v1162
      %v1222 = vpack.c.b16 %v1165, %v1164
      %v1223 = vpack.c.b16 %v1167, %v1166
      %v1224 = vpack.c.b16 %v1169, %v1168
      %v1225 = vpack.c.b16 %v1171, %v1170
      %v1226 = vpack.c.b16 %v1173, %v1172
      %v1227 = vpack.c.b16 %v1175, %v1174
      %v1228 = vpack.c.b16 %v1177, %v1176
      %v1229 = vpack.c.b16 %v1179, %v1178
      %v1230 = vpack.c.b16 %v1181, %v1180
      %v1231 = vpack.c.b16 %v1183, %v1182
      %v1232 = vpack.c.b16 %v1185, %v1184
      %v1233 = vpack.c.b16 %v1187, %v1186
      %v1234 = vpack.c.b16 %v1189, %v1188
      %v1235 = vpack.c.b16 %v1191, %v1190
      %v1236 = vpack.c.b16 %v1193, %v1192
      %v1237 = vpack.c.b16 %v1195, %v1194
      %v1238 = vpack.c.b16 %v1197, %v1196
      %v1239 = vpack.c.b16 %v1199, %v1198
      %v1240 = vpack.c.b16 %v1201, %v1200
      %v1241 = vpack.c.b16 %v1203, %v1202
      %v1242 = vpack.c.b16 %v1205, %v1204
      %v1243 = vpack.c.b16 %v1207, %v1206
      %v1244 = vpack.c.b16 %v1209, %v1208
      %v1245 = vpack.c.b16 %v1211, %v1210
      %v1246 = vpack.c.b16 %v1213, %v1212
      %v1247 = vpack.c.b16 %v1215, %v1214
      %1280 = vmatpush.bf16.msra.mxu0 %v1223
      %1281 = vmatpush.bf16.msra.mxu0 %v1222
      %1282 = vmatpush.bf16.msra.mxu0 %v1221
      %1283 = vmatpush.bf16.msra.mxu0 %v1220
      %1284 = vmatpush.bf16.msra.mxu0 %v1219
      %1285 = vmatpush.bf16.msra.mxu0 %v1218
      %1286 = vmatpush.bf16.msra.mxu0 %v1217
      %1287 = vmatpush.bf16.msra.mxu0 %v1216
      %1288 = vmatmul.bf16.gmra.mxu0 %v1004
      %v1289 = vpop.f32.mrf.mxu0
      %v1290 = vadd.f32 %v1086, %v1289
      %v1291 = vpop.f32.mrf.mxu0
      %v1292 = vadd.f32 %v1086, %v1291
      %1293 = vmatmul.bf16.gmra.mxu0 %v1008
      %v1294 = vpop.f32.mrf.mxu0
      %v1295 = vadd.f32 %v1086, %v1294
      %v1296 = vpop.f32.mrf.mxu0
      %v1297 = vadd.f32 %v1086, %v1296
      %1298 = vmatmul.bf16.gmra.mxu0 %v1012
      %v1299 = vpop.f32.mrf.mxu0
      %v1300 = vadd.f32 %v1086, %v1299
      %v1301 = vpop.f32.mrf.mxu0
      %v1302 = vadd.f32 %v1086, %v1301
      %1303 = vmatmul.bf16.gmra.mxu0 %v1016
      %v1304 = vpop.f32.mrf.mxu0
      %v1305 = vadd.f32 %v1086, %v1304
      %v1306 = vpop.f32.mrf.mxu0
      %v1307 = vadd.f32 %v1086, %v1306
      %1308 = vdwg.mxu0
      %1309 = vmatpush.bf16.msra.mxu0 %v1231
      %1310 = vmatpush.bf16.msra.mxu0 %v1230
      %1311 = vmatpush.bf16.msra.mxu0 %v1229
      %1312 = vmatpush.bf16.msra.mxu0 %v1228
      %1313 = vmatpush.bf16.msra.mxu0 %v1227
      %1314 = vmatpush.bf16.msra.mxu0 %v1226
      %1315 = vmatpush.bf16.msra.mxu0 %v1225
      %1316 = vmatpush.bf16.msra.mxu0 %v1224
      %1317 = vmatmul.bf16.gmra.mxu0 %v1005
      %v1318 = vpop.f32.mrf.mxu0
      %v1319 = vadd.f32 %v1290, %v1318
      %v1320 = vpop.f32.mrf.mxu0
      %v1321 = vadd.f32 %v1292, %v1320
      %1322 = vmatmul.bf16.gmra.mxu0 %v1009
      %v1323 = vpop.f32.mrf.mxu0
      %v1324 = vadd.f32 %v1295, %v1323
      %v1325 = vpop.f32.mrf.mxu0
      %v1326 = vadd.f32 %v1297, %v1325
      %1327 = vmatmul.bf16.gmra.mxu0 %v1013
      %v1328 = vpop.f32.mrf.mxu0
      %v1329 = vadd.f32 %v1300, %v1328
      %v1330 = vpop.f32.mrf.mxu0
      %v1331 = vadd.f32 %v1302, %v1330
      %1332 = vmatmul.bf16.gmra.mxu0 %v1017
      %v1333 = vpop.f32.mrf.mxu0
      %v1334 = vadd.f32 %v1305, %v1333
      %v1335 = vpop.f32.mrf.mxu0
      %v1336 = vadd.f32 %v1307, %v1335
      %1337 = vdwg.mxu0
      %1338 = vmatpush.bf16.msra.mxu0 %v1239
      %1339 = vmatpush.bf16.msra.mxu0 %v1238
      %1340 = vmatpush.bf16.msra.mxu0 %v1237
      %1341 = vmatpush.bf16.msra.mxu0 %v1236
      %1342 = vmatpush.bf16.msra.mxu0 %v1235
      %1343 = vmatpush.bf16.msra.mxu0 %v1234
      %1344 = vmatpush.bf16.msra.mxu0 %v1233
      %1345 = vmatpush.bf16.msra.mxu0 %v1232
      %1346 = vmatmul.bf16.gmra.mxu0 %v1006
      %v1347 = vpop.f32.mrf.mxu0
      %v1348 = vadd.f32 %v1319, %v1347
      %v1349 = vpop.f32.mrf.mxu0
      %v1350 = vadd.f32 %v1321, %v1349
      %1351 = vmatmul.bf16.gmra.mxu0 %v1010
      %v1352 = vpop.f32.mrf.mxu0
      %v1353 = vadd.f32 %v1324, %v1352
      %v1354 = vpop.f32.mrf.mxu0
      %v1355 = vadd.f32 %v1326, %v1354
      %1356 = vmatmul.bf16.gmra.mxu0 %v1014
      %v1357 = vpop.f32.mrf.mxu0
      %v1358 = vadd.f32 %v1329, %v1357
      %v1359 = vpop.f32.mrf.mxu0
      %v1360 = vadd.f32 %v1331, %v1359
      %1361 = vmatmul.bf16.gmra.mxu0 %v1018
      %v1362 = vpop.f32.mrf.mxu0
      %v1363 = vadd.f32 %v1334, %v1362
      %v1364 = vpop.f32.mrf.mxu0
      %v1365 = vadd.f32 %v1336, %v1364
      %1366 = vdwg.mxu0
      %1367 = vmatpush.bf16.msra.mxu0 %v1247
      %1368 = vmatpush.bf16.msra.mxu0 %v1246
      %1369 = vmatpush.bf16.msra.mxu0 %v1245
      %1370 = vmatpush.bf16.msra.mxu0 %v1244
      %1371 = vmatpush.bf16.msra.mxu0 %v1243
      %1372 = vmatpush.bf16.msra.mxu0 %v1242
      %1373 = vmatpush.bf16.msra.mxu0 %v1241
      %1374 = vmatpush.bf16.msra.mxu0 %v1240
      %1375 = vmatmul.bf16.gmra.mxu0 %v1007
      %v1376 = vpop.f32.mrf.mxu0
      %v1377 = vadd.f32 %v1348, %v1376
      %v1378 = vpop.f32.mrf.mxu0
      %v1379 = vadd.f32 %v1350, %v1378
      %1380 = vmatmul.bf16.gmra.mxu0 %v1011
      %v1381 = vpop.f32.mrf.mxu0
      %v1382 = vadd.f32 %v1353, %v1381
      %v1383 = vpop.f32.mrf.mxu0
      %v1384 = vadd.f32 %v1355, %v1383
      %1385 = vmatmul.bf16.gmra.mxu0 %v1015
      %v1386 = vpop.f32.mrf.mxu0
      %v1387 = vadd.f32 %v1358, %v1386
      %v1388 = vpop.f32.mrf.mxu0
      %v1389 = vadd.f32 %v1360, %v1388
      %1390 = vmatmul.bf16.gmra.mxu0 %v1019
      %v1391 = vpop.f32.mrf.mxu0
      %v1392 = vadd.f32 %v1363, %v1391
      %v1393 = vpop.f32.mrf.mxu0
      %v1394 = vadd.f32 %v1365, %v1393
      %1395 = vdwg.mxu0
      %vm1396 = vcmp.ge.f32.partialorder %v1377, 0.0
      %vm1397 = vcmp.ge.f32.partialorder %v1379, 0.0
      %vm1398 = vcmp.ge.f32.partialorder %v1382, 0.0
      %vm1399 = vcmp.ge.f32.partialorder %v1384, 0.0
      %vm1400 = vcmp.ge.f32.partialorder %v1387, 0.0
      %vm1401 = vcmp.ge.f32.partialorder %v1389, 0.0
      %vm1402 = vcmp.ge.f32.partialorder %v1392, 0.0
      %vm1403 = vcmp.ge.f32.partialorder %v1394, 0.0
      %v1404 = vmul.f32 %v1377, 0.1
      %v1405 = vmul.f32 %v1379, 0.1
      %v1406 = vmul.f32 %v1382, 0.1
      %v1407 = vmul.f32 %v1384, 0.1
      %v1408 = vmul.f32 %v1387, 0.1
      %v1409 = vmul.f32 %v1389, 0.1
      %v1410 = vmul.f32 %v1392, 0.1
      %v1411 = vmul.f32 %v1394, 0.1
      %v1412 = vsel %vm1396, %v1377, %v1404
      %v1413 = vsel %vm1397, %v1379, %v1405
      %v1414 = vsel %vm1398, %v1382, %v1406
      %v1415 = vsel %vm1399, %v1384, %v1407
      %v1416 = vsel %vm1400, %v1387, %v1408
      %v1417 = vsel %vm1401, %v1389, %v1409
      %v1418 = vsel %vm1402, %v1392, %v1410
      %v1419 = vsel %vm1403, %v1394, %v1411
      %v1420 = vpack.c.bf16 %v1413, %v1412
      %v1421 = vpack.c.bf16 %v1415, %v1414
      %v1422 = vpack.c.bf16 %v1417, %v1416
      %v1423 = vpack.c.bf16 %v1419, %v1418
      %v1424 = vld [vmem:[%s3] sm:$0xf]
      %v1425 = vld [vmem:[%s3 + $0x4] sm:$0xf]
      %v1426 = vld [vmem:[%s3 + $0x8] sm:$0xf]
      %v1427 = vld [vmem:[%s3 + $0xc] sm:$0xf]
      %v1428 = vld [vmem:[%s3 + $0x10] sm:$0xf]
      %v1429 = vld [vmem:[%s3 + $0x14] sm:$0xf]
      %v1430 = vld [vmem:[%s3 + $0x18] sm:$0xf]
      %v1431 = vld [vmem:[%s3 + $0x1c] sm:$0xf]
      %v1432 = vld [vmem:[%s3 + $0x20] sm:$0xf]
      %v1433 = vld [vmem:[%s3 + $0x24] sm:$0xf]
      %v1434 = vld [vmem:[%s3 + $0x28] sm:$0xf]
      %v1435 = vld [vmem:[%s3 + $0x2c] sm:$0xf]
      %v1436 = vld [vmem:[%s3 + $0x30] sm:$0xf]
      %v1437 = vld [vmem:[%s3 + $0x34] sm:$0xf]
      %v1438 = vld [vmem:[%s3 + $0x38] sm:$0xf]
      %v1439 = vld [vmem:[%s3 + $0x3c] sm:$0xf]
      %v1440 = vld [vmem:[%s4] sm:$0x1]
      %v1442 = vperm.slane %v1440, 0
      %v1460 = vunpack.c.l.b16 %v1424
      %v1461 = vunpack.c.l.b16 %v1425
      %v1462 = vunpack.c.l.b16 %v1426
      %v1463 = vunpack.c.l.b16 %v1427
      %v1464 = vunpack.c.l.b16 %v1428
      %v1465 = vunpack.c.l.b16 %v1429
      %v1466 = vunpack.c.l.b16 %v1430
      %v1467 = vunpack.c.l.b16 %v1431
      %v1468 = vunpack.c.l.b16 %v1432
      %v1469 = vunpack.c.l.b16 %v1433
      %v1470 = vunpack.c.l.b16 %v1434
      %v1471 = vunpack.c.l.b16 %v1435
      %v1472 = vunpack.c.l.b16 %v1436
      %v1473 = vunpack.c.l.b16 %v1437
      %v1474 = vunpack.c.l.b16 %v1438
      %v1475 = vunpack.c.l.b16 %v1439
      %v1476 = vpack.c.b16 %v1461, %v1460
      %v1477 = vpack.c.b16 %v1463, %v1462
      %v1478 = vpack.c.b16 %v1465, %v1464
      %v1479 = vpack.c.b16 %v1467, %v1466
      %v1480 = vpack.c.b16 %v1469, %v1468
      %v1481 = vpack.c.b16 %v1471, %v1470
      %v1482 = vpack.c.b16 %v1473, %v1472
      %v1483 = vpack.c.b16 %v1475, %v1474
      %1492 = vmatpush.bf16.msra.mxu0 %v1483
      %1493 = vmatpush.bf16.msra.mxu0 %v1482
      %1494 = vmatpush.bf16.msra.mxu0 %v1481
      %1495 = vmatpush.bf16.msra.mxu0 %v1480
      %1496 = vmatpush.bf16.msra.mxu0 %v1479
      %1497 = vmatpush.bf16.msra.mxu0 %v1478
      %1498 = vmatpush.bf16.msra.mxu0 %v1477
      %1499 = vmatpush.bf16.msra.mxu0 %v1476
      %1500 = vmatmul.bf16.gmra.mxu0 %v1420
      %v1501 = vpop.f32.mrf.mxu0
      %v1502 = vadd.f32 %v1442, %v1501
      %v1503 = vpop.f32.mrf.mxu0
      %v1504 = vadd.f32 %v1442, %v1503
      %1505 = vmatmul.bf16.gmra.mxu0 %v1421
      %v1506 = vpop.f32.mrf.mxu0
      %v1507 = vadd.f32 %v1442, %v1506
      %v1508 = vpop.f32.mrf.mxu0
      %v1509 = vadd.f32 %v1442, %v1508
      %1510 = vmatmul.bf16.gmra.mxu0 %v1422
      %v1511 = vpop.f32.mrf.mxu0
      %v1512 = vadd.f32 %v1442, %v1511
      %v1513 = vpop.f32.mrf.mxu0
      %v1514 = vadd.f32 %v1442, %v1513
      %1515 = vmatmul.bf16.gmra.mxu0 %v1423
      %v1516 = vpop.f32.mrf.mxu0
      %v1517 = vadd.f32 %v1442, %v1516
      %v1518 = vpop.f32.mrf.mxu0
      %v1519 = vadd.f32 %v1442, %v1518
      %1520 = vdwg.mxu0
      %vm1521 = vcmp.ge.f32.partialorder %v1502, 0.0
      %vm1522 = vcmp.ge.f32.partialorder %v1504, 0.0
      %vm1523 = vcmp.ge.f32.partialorder %v1507, 0.0
      %vm1524 = vcmp.ge.f32.partialorder %v1509, 0.0
      %vm1525 = vcmp.ge.f32.partialorder %v1512, 0.0
      %vm1526 = vcmp.ge.f32.partialorder %v1514, 0.0
      %vm1527 = vcmp.ge.f32.partialorder %v1517, 0.0
      %vm1528 = vcmp.ge.f32.partialorder %v1519, 0.0
      %v1529 = vmul.f32 %v1502, 0.1
      %v1530 = vmul.f32 %v1504, 0.1
      %v1531 = vmul.f32 %v1507, 0.1
      %v1532 = vmul.f32 %v1509, 0.1
      %v1533 = vmul.f32 %v1512, 0.1
      %v1534 = vmul.f32 %v1514, 0.1
      %v1535 = vmul.f32 %v1517, 0.1
      %v1536 = vmul.f32 %v1519, 0.1
      %v1537 = vsel %vm1521, %v1502, %v1529
      %v1538 = vsel %vm1522, %v1504, %v1530
      %v1539 = vsel %vm1523, %v1507, %v1531
      %v1540 = vsel %vm1524, %v1509, %v1532
      %v1541 = vsel %vm1525, %v1512, %v1533
      %v1542 = vsel %vm1526, %v1514, %v1534
      %v1543 = vsel %vm1527, %v1517, %v1535
      %v1544 = vsel %vm1528, %v1519, %v1536
      %v1545 = vld [vmem:[%s5] sm:$0xf]
      %v1546 = vld [vmem:[%s5 + $0x4] sm:$0xf]
      %v1547 = vld [vmem:[%s5 + $0x8] sm:$0xf]
      %v1548 = vld [vmem:[%s5 + $0xc] sm:$0xf]
      %v1549 = vld [vmem:[%s5 + $0x10] sm:$0xf]
      %v1550 = vld [vmem:[%s5 + $0x14] sm:$0xf]
      %v1551 = vld [vmem:[%s5 + $0x18] sm:$0xf]
      %v1552 = vld [vmem:[%s5 + $0x1c] sm:$0xf]
      %v1553 = vld [vmem:[%s5 + $0x20] sm:$0xf]
      %v1554 = vld [vmem:[%s5 + $0x24] sm:$0xf]
      %v1555 = vld [vmem:[%s5 + $0x28] sm:$0xf]
      %v1556 = vld [vmem:[%s5 + $0x2c] sm:$0xf]
      %v1557 = vld [vmem:[%s5 + $0x30] sm:$0xf]
      %v1558 = vld [vmem:[%s5 + $0x34] sm:$0xf]
      %v1559 = vld [vmem:[%s5 + $0x38] sm:$0xf]
      %v1560 = vld [vmem:[%s5 + $0x3c] sm:$0xf]
      %v1561 = vld [vmem:[%s5 + $0x40] sm:$0xf]
      %v1562 = vld [vmem:[%s5 + $0x44] sm:$0xf]
      %v1563 = vld [vmem:[%s5 + $0x48] sm:$0xf]
      %v1564 = vld [vmem:[%s5 + $0x4c] sm:$0xf]
      %v1565 = vld [vmem:[%s5 + $0x50] sm:$0xf]
      %v1566 = vld [vmem:[%s5 + $0x54] sm:$0xf]
      %v1567 = vld [vmem:[%s5 + $0x58] sm:$0xf]
      %v1568 = vld [vmem:[%s5 + $0x5c] sm:$0xf]
      %v1569 = vld [vmem:[%s5 + $0x60] sm:$0xf]
      %v1570 = vld [vmem:[%s5 + $0x64] sm:$0xf]
      %v1571 = vld [vmem:[%s5 + $0x68] sm:$0xf]
      %v1572 = vld [vmem:[%s5 + $0x6c] sm:$0xf]
      %v1573 = vld [vmem:[%s5 + $0x70] sm:$0xf]
      %v1574 = vld [vmem:[%s5 + $0x74] sm:$0xf]
      %v1575 = vld [vmem:[%s5 + $0x78] sm:$0xf]
      %v1576 = vld [vmem:[%s5 + $0x7c] sm:$0xf]
      %v1577 = vld [vmem:[%s5 + $0x80] sm:$0xf]
      %v1578 = vld [vmem:[%s5 + $0x84] sm:$0xf]
      %v1579 = vld [vmem:[%s5 + $0x88] sm:$0xf]
      %v1580 = vld [vmem:[%s5 + $0x8c] sm:$0xf]
      %v1581 = vld [vmem:[%s5 + $0x90] sm:$0xf]
      %v1582 = vld [vmem:[%s5 + $0x94] sm:$0xf]
      %v1583 = vld [vmem:[%s5 + $0x98] sm:$0xf]
      %v1584 = vld [vmem:[%s5 + $0x9c] sm:$0xf]
      %v1585 = vld [vmem:[%s5 + $0xa0] sm:$0xf]
      %v1586 = vld [vmem:[%s5 + $0xa4] sm:$0xf]
      %v1587 = vld [vmem:[%s5 + $0xa8] sm:$0xf]
      %v1588 = vld [vmem:[%s5 + $0xac] sm:$0xf]
      %v1589 = vld [vmem:[%s5 + $0xb0] sm:$0xf]
      %v1590 = vld [vmem:[%s5 + $0xb4] sm:$0xf]
      %v1591 = vld [vmem:[%s5 + $0xb8] sm:$0xf]
      %v1592 = vld [vmem:[%s5 + $0xbc] sm:$0xf]
      %v1593 = vld [vmem:[%s5 + $0xc0] sm:$0xf]
      %v1594 = vld [vmem:[%s5 + $0xc4] sm:$0xf]
      %v1595 = vld [vmem:[%s5 + $0xc8] sm:$0xf]
      %v1596 = vld [vmem:[%s5 + $0xcc] sm:$0xf]
      %v1597 = vld [vmem:[%s5 + $0xd0] sm:$0xf]
      %v1598 = vld [vmem:[%s5 + $0xd4] sm:$0xf]
      %v1599 = vld [vmem:[%s5 + $0xd8] sm:$0xf]
      %v1600 = vld [vmem:[%s5 + $0xdc] sm:$0xf]
      %v1601 = vld [vmem:[%s5 + $0xe0] sm:$0xf]
      %v1602 = vld [vmem:[%s5 + $0xe4] sm:$0xf]
      %v1603 = vld [vmem:[%s5 + $0xe8] sm:$0xf]
      %v1604 = vld [vmem:[%s5 + $0xec] sm:$0xf]
      %v1605 = vld [vmem:[%s5 + $0xf0] sm:$0xf]
      %v1606 = vld [vmem:[%s5 + $0xf4] sm:$0xf]
      %v1607 = vld [vmem:[%s5 + $0xf8] sm:$0xf]
      %v1608 = vld [vmem:[%s5 + $0xfc] sm:$0xf]
      %v1609 = vld [vmem:[%s6] sm:$0x1]
      %v1611 = vperm.slane %v1609, 0
      %v1677 = vunpack.c.l.b16 %v1545
      %v1678 = vunpack.c.l.b16 %v1546
      %v1679 = vunpack.c.l.b16 %v1547
      %v1680 = vunpack.c.l.b16 %v1548
      %v1681 = vunpack.c.l.b16 %v1549
      %v1682 = vunpack.c.l.b16 %v1550
      %v1683 = vunpack.c.l.b16 %v1551
      %v1684 = vunpack.c.l.b16 %v1552
      %v1685 = vunpack.c.l.b16 %v1553
      %v1686 = vunpack.c.l.b16 %v1554
      %v1687 = vunpack.c.l.b16 %v1555
      %v1688 = vunpack.c.l.b16 %v1556
      %v1689 = vunpack.c.l.b16 %v1557
      %v1690 = vunpack.c.l.b16 %v1558
      %v1691 = vunpack.c.l.b16 %v1559
      %v1692 = vunpack.c.l.b16 %v1560
      %v1693 = vunpack.c.l.b16 %v1561
      %v1694 = vunpack.c.l.b16 %v1562
      %v1695 = vunpack.c.l.b16 %v1563
      %v1696 = vunpack.c.l.b16 %v1564
      %v1697 = vunpack.c.l.b16 %v1565
      %v1698 = vunpack.c.l.b16 %v1566
      %v1699 = vunpack.c.l.b16 %v1567
      %v1700 = vunpack.c.l.b16 %v1568
      %v1701 = vunpack.c.l.b16 %v1569
      %v1702 = vunpack.c.l.b16 %v1570
      %v1703 = vunpack.c.l.b16 %v1571
      %v1704 = vunpack.c.l.b16 %v1572
      %v1705 = vunpack.c.l.b16 %v1573
      %v1706 = vunpack.c.l.b16 %v1574
      %v1707 = vunpack.c.l.b16 %v1575
      %v1708 = vunpack.c.l.b16 %v1576
      %v1709 = vunpack.c.l.b16 %v1577
      %v1710 = vunpack.c.l.b16 %v1578
      %v1711 = vunpack.c.l.b16 %v1579
      %v1712 = vunpack.c.l.b16 %v1580
      %v1713 = vunpack.c.l.b16 %v1581
      %v1714 = vunpack.c.l.b16 %v1582
      %v1715 = vunpack.c.l.b16 %v1583
      %v1716 = vunpack.c.l.b16 %v1584
      %v1717 = vunpack.c.l.b16 %v1585
      %v1718 = vunpack.c.l.b16 %v1586
      %v1719 = vunpack.c.l.b16 %v1587
      %v1720 = vunpack.c.l.b16 %v1588
      %v1721 = vunpack.c.l.b16 %v1589
      %v1722 = vunpack.c.l.b16 %v1590
      %v1723 = vunpack.c.l.b16 %v1591
      %v1724 = vunpack.c.l.b16 %v1592
      %v1725 = vunpack.c.l.b16 %v1593
      %v1726 = vunpack.c.l.b16 %v1594
      %v1727 = vunpack.c.l.b16 %v1595
      %v1728 = vunpack.c.l.b16 %v1596
      %v1729 = vunpack.c.l.b16 %v1597
      %v1730 = vunpack.c.l.b16 %v1598
      %v1731 = vunpack.c.l.b16 %v1599
      %v1732 = vunpack.c.l.b16 %v1600
      %v1733 = vunpack.c.l.b16 %v1601
      %v1734 = vunpack.c.l.b16 %v1602
      %v1735 = vunpack.c.l.b16 %v1603
      %v1736 = vunpack.c.l.b16 %v1604
      %v1737 = vunpack.c.l.b16 %v1605
      %v1738 = vunpack.c.l.b16 %v1606
      %v1739 = vunpack.c.l.b16 %v1607
      %v1740 = vunpack.c.l.b16 %v1608
      %v1741 = vpack.c.b16 %v1678, %v1677
      %v1742 = vpack.c.b16 %v1680, %v1679
      %v1743 = vpack.c.b16 %v1682, %v1681
      %v1744 = vpack.c.b16 %v1684, %v1683
      %v1745 = vpack.c.b16 %v1686, %v1685
      %v1746 = vpack.c.b16 %v1688, %v1687
      %v1747 = vpack.c.b16 %v1690, %v1689
      %v1748 = vpack.c.b16 %v1692, %v1691
      %v1749 = vpack.c.b16 %v1694, %v1693
      %v1750 = vpack.c.b16 %v1696, %v1695
      %v1751 = vpack.c.b16 %v1698, %v1697
      %v1752 = vpack.c.b16 %v1700, %v1699
      %v1753 = vpack.c.b16 %v1702, %v1701
      %v1754 = vpack.c.b16 %v1704, %v1703
      %v1755 = vpack.c.b16 %v1706, %v1705
      %v1756 = vpack.c.b16 %v1708, %v1707
      %v1757 = vpack.c.b16 %v1710, %v1709
      %v1758 = vpack.c.b16 %v1712, %v1711
      %v1759 = vpack.c.b16 %v1714, %v1713
      %v1760 = vpack.c.b16 %v1716, %v1715
      %v1761 = vpack.c.b16 %v1718, %v1717
      %v1762 = vpack.c.b16 %v1720, %v1719
      %v1763 = vpack.c.b16 %v1722, %v1721
      %v1764 = vpack.c.b16 %v1724, %v1723
      %v1765 = vpack.c.b16 %v1726, %v1725
      %v1766 = vpack.c.b16 %v1728, %v1727
      %v1767 = vpack.c.b16 %v1730, %v1729
      %v1768 = vpack.c.b16 %v1732, %v1731
      %v1769 = vpack.c.b16 %v1734, %v1733
      %v1770 = vpack.c.b16 %v1736, %v1735
      %v1771 = vpack.c.b16 %v1738, %v1737
      %v1772 = vpack.c.b16 %v1740, %v1739
      %1805 = vmatpush.bf16.msra.mxu0 %v1748
      %1806 = vmatpush.bf16.msra.mxu0 %v1747
      %1807 = vmatpush.bf16.msra.mxu0 %v1746
      %1808 = vmatpush.bf16.msra.mxu0 %v1745
      %1809 = vmatpush.bf16.msra.mxu0 %v1744
      %1810 = vmatpush.bf16.msra.mxu0 %v1743
      %1811 = vmatpush.bf16.msra.mxu0 %v1742
      %1812 = vmatpush.bf16.msra.mxu0 %v1741
      %1813 = vmatmul.bf16.gmra.mxu0 %v1004
      %v1814 = vpop.f32.mrf.mxu0
      %v1815 = vadd.f32 %v1611, %v1814
      %v1816 = vpop.f32.mrf.mxu0
      %v1817 = vadd.f32 %v1611, %v1816
      %1818 = vmatmul.bf16.gmra.mxu0 %v1008
      %v1819 = vpop.f32.mrf.mxu0
      %v1820 = vadd.f32 %v1611, %v1819
      %v1821 = vpop.f32.mrf.mxu0
      %v1822 = vadd.f32 %v1611, %v1821
      %1823 = vmatmul.bf16.gmra.mxu0 %v1012
      %v1824 = vpop.f32.mrf.mxu0
      %v1825 = vadd.f32 %v1611, %v1824
      %v1826 = vpop.f32.mrf.mxu0
      %v1827 = vadd.f32 %v1611, %v1826
      %1828 = vmatmul.bf16.gmra.mxu0 %v1016
      %v1829 = vpop.f32.mrf.mxu0
      %v1830 = vadd.f32 %v1611, %v1829
      %v1831 = vpop.f32.mrf.mxu0
      %v1832 = vadd.f32 %v1611, %v1831
      %1833 = vdwg.mxu0
      %1834 = vmatpush.bf16.msra.mxu0 %v1756
      %1835 = vmatpush.bf16.msra.mxu0 %v1755
      %1836 = vmatpush.bf16.msra.mxu0 %v1754
      %1837 = vmatpush.bf16.msra.mxu0 %v1753
      %1838 = vmatpush.bf16.msra.mxu0 %v1752
      %1839 = vmatpush.bf16.msra.mxu0 %v1751
      %1840 = vmatpush.bf16.msra.mxu0 %v1750
      %1841 = vmatpush.bf16.msra.mxu0 %v1749
      %1842 = vmatmul.bf16.gmra.mxu0 %v1005
      %v1843 = vpop.f32.mrf.mxu0
      %v1844 = vadd.f32 %v1815, %v1843
      %v1845 = vpop.f32.mrf.mxu0
      %v1846 = vadd.f32 %v1817, %v1845
      %1847 = vmatmul.bf16.gmra.mxu0 %v1009
      %v1848 = vpop.f32.mrf.mxu0
      %v1849 = vadd.f32 %v1820, %v1848
      %v1850 = vpop.f32.mrf.mxu0
      %v1851 = vadd.f32 %v1822, %v1850
      %1852 = vmatmul.bf16.gmra.mxu0 %v1013
      %v1853 = vpop.f32.mrf.mxu0
      %v1854 = vadd.f32 %v1825, %v1853
      %v1855 = vpop.f32.mrf.mxu0
      %v1856 = vadd.f32 %v1827, %v1855
      %1857 = vmatmul.bf16.gmra.mxu0 %v1017
      %v1858 = vpop.f32.mrf.mxu0
      %v1859 = vadd.f32 %v1830, %v1858
      %v1860 = vpop.f32.mrf.mxu0
      %v1861 = vadd.f32 %v1832, %v1860
      %1862 = vdwg.mxu0
      %1863 = vmatpush.bf16.msra.mxu0 %v1764
      %1864 = vmatpush.bf16.msra.mxu0 %v1763
      %1865 = vmatpush.bf16.msra.mxu0 %v1762
      %1866 = vmatpush.bf16.msra.mxu0 %v1761
      %1867 = vmatpush.bf16.msra.mxu0 %v1760
      %1868 = vmatpush.bf16.msra.mxu0 %v1759
      %1869 = vmatpush.bf16.msra.mxu0 %v1758
      %1870 = vmatpush.bf16.msra.mxu0 %v1757
      %1871 = vmatmul.bf16.gmra.mxu0 %v1006
      %v1872 = vpop.f32.mrf.mxu0
      %v1873 = vadd.f32 %v1844, %v1872
      %v1874 = vpop.f32.mrf.mxu0
      %v1875 = vadd.f32 %v1846, %v1874
      %1876 = vmatmul.bf16.gmra.mxu0 %v1010
      %v1877 = vpop.f32.mrf.mxu0
      %v1878 = vadd.f32 %v1849, %v1877
      %v1879 = vpop.f32.mrf.mxu0
      %v1880 = vadd.f32 %v1851, %v1879
      %1881 = vmatmul.bf16.gmra.mxu0 %v1014
      %v1882 = vpop.f32.mrf.mxu0
      %v1883 = vadd.f32 %v1854, %v1882
      %v1884 = vpop.f32.mrf.mxu0
      %v1885 = vadd.f32 %v1856, %v1884
      %1886 = vmatmul.bf16.gmra.mxu0 %v1018
      %v1887 = vpop.f32.mrf.mxu0
      %v1888 = vadd.f32 %v1859, %v1887
      %v1889 = vpop.f32.mrf.mxu0
      %v1890 = vadd.f32 %v1861, %v1889
      %1891 = vdwg.mxu0
      %1892 = vmatpush.bf16.msra.mxu0 %v1772
      %1893 = vmatpush.bf16.msra.mxu0 %v1771
      %1894 = vmatpush.bf16.msra.mxu0 %v1770
      %1895 = vmatpush.bf16.msra.mxu0 %v1769
      %1896 = vmatpush.bf16.msra.mxu0 %v1768
      %1897 = vmatpush.bf16.msra.mxu0 %v1767
      %1898 = vmatpush.bf16.msra.mxu0 %v1766
      %1899 = vmatpush.bf16.msra.mxu0 %v1765
      %1900 = vmatmul.bf16.gmra.mxu0 %v1007
      %v1901 = vpop.f32.mrf.mxu0
      %v1902 = vadd.f32 %v1873, %v1901
      %v1903 = vpop.f32.mrf.mxu0
      %v1904 = vadd.f32 %v1875, %v1903
      %1905 = vmatmul.bf16.gmra.mxu0 %v1011
      %v1906 = vpop.f32.mrf.mxu0
      %v1907 = vadd.f32 %v1878, %v1906
      %v1908 = vpop.f32.mrf.mxu0
      %v1909 = vadd.f32 %v1880, %v1908
      %1910 = vmatmul.bf16.gmra.mxu0 %v1015
      %v1911 = vpop.f32.mrf.mxu0
      %v1912 = vadd.f32 %v1883, %v1911
      %v1913 = vpop.f32.mrf.mxu0
      %v1914 = vadd.f32 %v1885, %v1913
      %1915 = vmatmul.bf16.gmra.mxu0 %v1019
      %v1916 = vpop.f32.mrf.mxu0
      %v1917 = vadd.f32 %v1888, %v1916
      %v1918 = vpop.f32.mrf.mxu0
      %v1919 = vadd.f32 %v1890, %v1918
      %1920 = vdwg.mxu0
      %vm1921 = vcmp.ge.f32.partialorder %v1902, 0.0
      %vm1922 = vcmp.ge.f32.partialorder %v1904, 0.0
      %vm1923 = vcmp.ge.f32.partialorder %v1907, 0.0
      %vm1924 = vcmp.ge.f32.partialorder %v1909, 0.0
      %vm1925 = vcmp.ge.f32.partialorder %v1912, 0.0
      %vm1926 = vcmp.ge.f32.partialorder %v1914, 0.0
      %vm1927 = vcmp.ge.f32.partialorder %v1917, 0.0
      %vm1928 = vcmp.ge.f32.partialorder %v1919, 0.0
      %v1929 = vmul.f32 %v1902, 0.1
      %v1930 = vmul.f32 %v1904, 0.1
      %v1931 = vmul.f32 %v1907, 0.1
      %v1932 = vmul.f32 %v1909, 0.1
      %v1933 = vmul.f32 %v1912, 0.1
      %v1934 = vmul.f32 %v1914, 0.1
      %v1935 = vmul.f32 %v1917, 0.1
      %v1936 = vmul.f32 %v1919, 0.1
      %v1937 = vsel %vm1921, %v1902, %v1929
      %v1938 = vsel %vm1922, %v1904, %v1930
      %v1939 = vsel %vm1923, %v1907, %v1931
      %v1940 = vsel %vm1924, %v1909, %v1932
      %v1941 = vsel %vm1925, %v1912, %v1933
      %v1942 = vsel %vm1926, %v1914, %v1934
      %v1943 = vsel %vm1927, %v1917, %v1935
      %v1944 = vsel %vm1928, %v1919, %v1936
      %v1945 = vpack.c.bf16 %v1537, %v1537
      %v1946 = vpack.c.bf16 %v1538, %v1538
      %v1947 = vpack.c.bf16 %v1539, %v1539
      %v1948 = vpack.c.bf16 %v1540, %v1540
      %v1949 = vpack.c.bf16 %v1541, %v1541
      %v1950 = vpack.c.bf16 %v1542, %v1542
      %v1951 = vpack.c.bf16 %v1543, %v1543
      %v1952 = vpack.c.bf16 %v1544, %v1544
      %1953 = vst [vmem:[%s313] sm:$0xf] %v1945
      %1954 = vst [vmem:[%s313 + $0x4] sm:$0xf] %v1946
      %1955 = vst [vmem:[%s313 + $0x8] sm:$0xf] %v1947
      %1956 = vst [vmem:[%s313 + $0xc] sm:$0xf] %v1948
      %1957 = vst [vmem:[%s313 + $0x10] sm:$0xf] %v1949
      %1958 = vst [vmem:[%s313 + $0x14] sm:$0xf] %v1950
      %1959 = vst [vmem:[%s313 + $0x18] sm:$0xf] %v1951
      %1960 = vst [vmem:[%s313 + $0x1c] sm:$0xf] %v1952
      %v1961 = vpack.c.bf16 %v1937, %v1937
      %v1962 = vpack.c.bf16 %v1938, %v1938
      %v1963 = vpack.c.bf16 %v1939, %v1939
      %v1964 = vpack.c.bf16 %v1940, %v1940
      %v1965 = vpack.c.bf16 %v1941, %v1941
      %v1966 = vpack.c.bf16 %v1942, %v1942
      %v1967 = vpack.c.bf16 %v1943, %v1943
      %v1968 = vpack.c.bf16 %v1944, %v1944
      %1969 = vst [vmem:[%s318] sm:$0xf] %v1961
      %1970 = vst [vmem:[%s318 + $0x4] sm:$0xf] %v1962
      %1971 = vst [vmem:[%s318 + $0x8] sm:$0xf] %v1963
      %1972 = vst [vmem:[%s318 + $0xc] sm:$0xf] %v1964
      %1973 = vst [vmem:[%s318 + $0x10] sm:$0xf] %v1965
      %1974 = vst [vmem:[%s318 + $0x14] sm:$0xf] %v1966
      %1975 = vst [vmem:[%s318 + $0x18] sm:$0xf] %v1967
      %1976 = vst [vmem:[%s318 + $0x1c] sm:$0xf] %v1968
      %p1977 = scmp.lt.s32.totalorder %s20, 1
      %s1978 = scalar_select %p1977, %s20, 1
      %s1979 = smul.addr %s1978, 8
      %s1980 = smul.addr %s1979, 4
      %s1981 = scalar_lea.vmem %s7, %s1980
      %p1982 = scmp.lt.s32.totalorder %s20, 1
      %s1983 = scalar_select %p1982, %s20, 1
      %s1984 = smul.addr %s1983, 8
      %s1985 = smul.addr %s1984, 4
      %s1986 = scalar_lea.vmem %s8, %s1985
      // Predicated region
      $region49: #{yolov1_forward.7} parent=47 // pred_check
        %p1987 = pneg %p190
      $region50: #{yolov1_forward.7} parent=47 // pred_check_branch
        %1989 = sbr.rel (%p1987) target = $region52
      $region51: #{yolov1_forward.7} parent=47 // pred_region
        _
      $region52: #{yolov1_forward.7} parent=47 // pred_fallthru
        _
      // Predicated region
      $region53: #{yolov1_forward.7} parent=47 // pred_check
        %p1990 = pneg %p216
      $region54: #{yolov1_forward.7} parent=47 // pred_check_branch
        %1992 = sbr.rel (%p1990) target = $region56
      $region55: #{yolov1_forward.7} parent=47 // pred_region
        _
      $region56: #{yolov1_forward.7} parent=47 // pred_fallthru
        _
    $region48: #{yolov1_forward.7} parent=5 // pred_fallthru
      _
    %p1993 = scmp.le.s32.totalorder 2, %s15
    // Predicated region
    $region57: #{yolov1_forward.7} parent=5 // pred_check
      %p1994 = pneg %p1993
    $region58: #{yolov1_forward.7} parent=5 // pred_check_branch
      %1996 = sbr.rel (%p1994) target = $region60
    $region59: #{yolov1_forward.7} parent=5 // pred_region
      %s1997 = ssub.s32 %s15, 2
      // Predicated region
      $region61: #{yolov1_forward.7} parent=59 // pred_check
        %p1998 = pneg %p196
      $region62: #{yolov1_forward.7} parent=59 // pred_check_branch
        %2000 = sbr.rel (%p1998) target = $region64
      $region63: #{yolov1_forward.7} parent=59 // pred_region
        %p2001 = scmp.lt.s32.totalorder %s21, 1
        %s2002 = scalar_select %p2001, %s21, 1
        %s2003 = smul.addr %s2002, 8
        %s2004 = smul.addr %s2003, 4
        %s2005 = scalar_lea.vmem %s7, %s2004
      $region64: #{yolov1_forward.7} parent=59 // pred_fallthru
        _
      // Predicated region
      $region65: #{yolov1_forward.7} parent=59 // pred_check
        %p2006 = pneg %p222
      $region66: #{yolov1_forward.7} parent=59 // pred_check_branch
        %2008 = sbr.rel (%p2006) target = $region68
      $region67: #{yolov1_forward.7} parent=59 // pred_region
        %p2009 = scmp.lt.s32.totalorder %s21, 1
        %s2010 = scalar_select %p2009, %s21, 1
        %s2011 = smul.addr %s2010, 8
        %s2012 = smul.addr %s2011, 4
        %s2013 = scalar_lea.vmem %s8, %s2012
      $region68: #{yolov1_forward.7} parent=59 // pred_fallthru
        _
    $region60: #{yolov1_forward.7} parent=5 // pred_fallthru
      _
  $region6: #{yolov1_forward.7} parent=0 // loop_footer
    %s19 = sadd.s32 1, %s15
  $region7: #{yolov1_forward.7} parent=0 // loop_footer_branch
    %14 = sbr.rel target = $region3
  $region8: #{yolov1_forward.7} parent=0 // loop_exit
    _

// kernel: yolov1_forward.8
$region0: #{yolov1_forward.8}
  #allocation0 [shape = 'u32[]', space=smem, size = 0x4, offset = 0x4, fixed_abs, tag = 'smem constant byte address 0x4 - core index']
  #allocation1 [shape = 'u32[72,128]{1,0:T(1,128)}', space=vmem, size = 0x9000, scoped, tag = 'internal scratch']
  %s0 = inlined_call_operand.vmem [shape: bf16[2,64,128], index: 0, kind: input, shape index: {}]
  %s1 = inlined_call_operand.vmem [shape: bf16[2,64,128], index: 1, kind: input, shape index: {}]
  %s2 = inlined_call_operand.vmem [shape: bf16[1152,128], index: 2, kind: input, shape index: {}]
  %s3 = inlined_call_operand.vmem [shape: f32[1,128], index: 3, kind: input, shape index: {}]
  %s4 = inlined_call_operand.vmem [shape: bf16[128,128], index: 4, kind: input, shape index: {}]
  %s5 = inlined_call_operand.vmem [shape: f32[1,128], index: 5, kind: input, shape index: {}]
  %s6 = inlined_call_operand.vmem [shape: bf16[128,128], index: 6, kind: input, shape index: {}]
  %s7 = inlined_call_operand.vmem [shape: bf16[128,128], index: 7, kind: input, shape index: {}]
  %s8 = inlined_call_operand.vmem [shape: f32[1,128], index: 8, kind: input, shape index: {}]
  %s9 = inlined_call_operand.vmem [shape: bf16[128,128], index: 9, kind: input, shape index: {}]
  %s10 = inlined_call_operand.vmem [shape: f32[1,128], index: 10, kind: input, shape index: {}]
  %s11 = inlined_call_operand.vmem [shape: bf16[128,128], index: 11, kind: input, shape index: {}]
  %s12 = inlined_call_operand.vmem [shape: f32[1,128], index: 12, kind: input, shape index: {}]
  %s13 = inlined_call_operand.vmem [shape: bf16[128,128], index: 13, kind: input, shape index: {}]
  %s14 = inlined_call_operand.vmem [shape: f32[1,128], index: 14, kind: input, shape index: {}]
  %s15 = inlined_call_operand.vmem [shape: bf16[128,128], index: 15, kind: input, shape index: {}]
  %s16 = inlined_call_operand.vmem [shape: f32[1,128], index: 16, kind: input, shape index: {}]
  %s17 = inlined_call_operand.vmem [shape: bf16[2,64,128], index: 17, kind: output, shape index: {0}]
  %s18 = inlined_call_operand.vmem [shape: bf16[2,64,128], index: 18, kind: output, shape index: {1}]
  %19 = xla_tuple %s17, %s18
  %s20 = sld [smem:[#allocation0]]
  $region109: #{yolov1_forward.8} parent=0
    _
  %s22 = ssub.s32 1, %s20
  %s23 = scalar_select 0, %s22, %s20
  loop: start=0, step=1, limit=4
  $region2: #{yolov1_forward.8} parent=0 // loop_pre_header
    _
  $region3: #{yolov1_forward.8} parent=0 // loop_header
    %s25 = sphi 0, %s29
    %p26 = scmp.ge.s32.totalorder %s25, 4
    %s35 = sphi 0, %s37
    %s38 = sphi 0, %s35
    %s39 = sphi 0, %s38
    %s55 = sphi 0, %s39
    %s61 = sphi 0, %s63
    %s64 = sphi 0, %s61
    %s65 = sphi 0, %s64
    %s81 = sphi 0, %s65
    %s85 = sphi 0, %s85
    %s87 = sphi 0, %s85
    %s88 = sphi 0, %s87
    %s102 = sphi 0, %s88
    %s106 = sphi 0, %s106
    %s108 = sphi 0, %s106
    %s109 = sphi 0, %s108
    %s123 = sphi 0, %s109
    %s127 = sphi 0, %s127
    %s129 = sphi 0, %s127
    %s130 = sphi 0, %s129
    %s144 = sphi 0, %s130
    %s148 = sphi 0, %s148
    %s150 = sphi 0, %s148
    %s151 = sphi 0, %s150
    %s165 = sphi 0, %s151
    %s169 = sphi 0, %s169
    %s171 = sphi 0, %s169
    %s172 = sphi 0, %s171
    %s186 = sphi 0, %s172
    %s190 = sphi 0, %s190
    %s192 = sphi 0, %s190
    %s193 = sphi 0, %s192
    %s207 = sphi 0, %s193
    %s211 = sphi 0, %s211
    %s213 = sphi 0, %s211
    %s214 = sphi 0, %s213
    %s228 = sphi 0, %s214
    %s232 = sphi 0, %s232
    %s234 = sphi 0, %s232
    %s235 = sphi 0, %s234
    %s249 = sphi 0, %s235
    %s253 = sphi 0, %s253
    %s255 = sphi 0, %s253
    %s256 = sphi 0, %s255
    %s270 = sphi 0, %s256
    %s274 = sphi 0, %s274
    %s276 = sphi 0, %s274
    %s277 = sphi 0, %s276
    %s291 = sphi 0, %s277
    %s295 = sphi 0, %s295
    %s297 = sphi 0, %s295
    %s298 = sphi 0, %s297
    %s312 = sphi 0, %s298
    %s316 = sphi 0, %s316
    %s318 = sphi 0, %s316
    %s319 = sphi 0, %s318
    %s333 = sphi 0, %s319
    %s337 = sphi 0, %s337
    %s339 = sphi 0, %s337
    %s340 = sphi 0, %s339
    %s354 = sphi 0, %s340
    %s358 = sphi 0, %s358
    %s360 = sphi 0, %s358
    %s361 = sphi 0, %s360
    %s375 = sphi 0, %s361
    %s379 = sphi 0, %s379
    %s381 = sphi 0, %s379
    %s382 = sphi 0, %s381
    %s396 = sphi 0, %s382
    %s402 = sphi 0, %s404
    %s405 = sphi 0, %s402
    %s406 = sphi 0, %s405
    %s422 = sphi 0, %s406
    %s428 = sphi 0, %s430
    %s431 = sphi 0, %s428
    %s432 = sphi 0, %s431
    %s448 = sphi 0, %s432
  $region4: #{yolov1_forward.8} parent=0 // loop_header_branch
    %28 = sbr.rel (%p26) target = $region8
  $region5: #{yolov1_forward.8} parent=0 // loop_body
    %s30 = ssub.s32 %s25, 1
    %s31 = ssub.s32 %s25, 2
    %s32 = sadd.s32 %s25, 1
    %s33 = ssub.s32 %s25, %s32
    %p34 = scmp.eq.s32.totalorder %s33, 0
    %s36 = sadd.s32 %s35, 1
    %s37 = scalar_select %p34, %s35, %s36
    %p40 = pneg %p34
    %p41 = scmp.eq.s32.totalorder %s25, 1
    %p42 = por %p40, %p41
    %p43 = scmp.ne.s32.totalorder %s35, %s38
    %p44 = scmp.eq.s32.totalorder %s25, 0
    %p45 = por %p43, %p44
    %p46 = scmp.ne.s32.totalorder %s35, %s38
    %p47 = scmp.eq.s32.totalorder %s30, 1
    %p48 = por %p46, %p47
    %p49 = scmp.ne.s32.totalorder %s38, %s39
    %p50 = scmp.eq.s32.totalorder %s30, 0
    %p51 = por %p49, %p50
    %p52 = scmp.ne.s32.totalorder %s38, %s39
    %p53 = scmp.eq.s32.totalorder %s31, 1
    %p54 = por %p52, %p53
    %p56 = scmp.ne.s32.totalorder %s39, %s55
    %p57 = scmp.eq.s32.totalorder %s31, 0
    %p58 = por %p56, %p57
    %s59 = ssub.s32 %s25, %s32
    %p60 = scmp.eq.s32.totalorder %s59, 0
    %s62 = sadd.s32 %s61, 1
    %s63 = scalar_select %p60, %s61, %s62
    %p66 = pneg %p60
    %p67 = scmp.eq.s32.totalorder %s25, 1
    %p68 = por %p66, %p67
    %p69 = scmp.ne.s32.totalorder %s61, %s64
    %p70 = scmp.eq.s32.totalorder %s25, 0
    %p71 = por %p69, %p70
    %p72 = scmp.ne.s32.totalorder %s61, %s64
    %p73 = scmp.eq.s32.totalorder %s30, 1
    %p74 = por %p72, %p73
    %p75 = scmp.ne.s32.totalorder %s64, %s65
    %p76 = scmp.eq.s32.totalorder %s30, 0
    %p77 = por %p75, %p76
    %p78 = scmp.ne.s32.totalorder %s64, %s65
    %p79 = scmp.eq.s32.totalorder %s31, 1
    %p80 = por %p78, %p79
    %p82 = scmp.ne.s32.totalorder %s65, %s81
    %p83 = scmp.eq.s32.totalorder %s31, 0
    %p84 = por %p82, %p83
    %s86 = sadd.s32 %s85, 1
    %p89 = scmp.eq.s32.totalorder %s25, 1
    %p90 = scmp.ne.s32.totalorder %s85, %s87
    %p91 = scmp.eq.s32.totalorder %s25, 0
    %p92 = por %p90, %p91
    %p93 = scmp.ne.s32.totalorder %s85, %s87
    %p94 = scmp.eq.s32.totalorder %s30, 1
    %p95 = por %p93, %p94
    %p96 = scmp.ne.s32.totalorder %s87, %s88
    %p97 = scmp.eq.s32.totalorder %s30, 0
    %p98 = por %p96, %p97
    %p99 = scmp.ne.s32.totalorder %s87, %s88
    %p100 = scmp.eq.s32.totalorder %s31, 1
    %p101 = por %p99, %p100
    %p103 = scmp.ne.s32.totalorder %s88, %s102
    %p104 = scmp.eq.s32.totalorder %s31, 0
    %p105 = por %p103, %p104
    %s107 = sadd.s32 %s106, 1
    %p110 = scmp.eq.s32.totalorder %s25, 1
    %p111 = scmp.ne.s32.totalorder %s106, %s108
    %p112 = scmp.eq.s32.totalorder %s25, 0
    %p113 = por %p111, %p112
    %p114 = scmp.ne.s32.totalorder %s106, %s108
    %p115 = scmp.eq.s32.totalorder %s30, 1
    %p116 = por %p114, %p115
    %p117 = scmp.ne.s32.totalorder %s108, %s109
    %p118 = scmp.eq.s32.totalorder %s30, 0
    %p119 = por %p117, %p118
    %p120 = scmp.ne.s32.totalorder %s108, %s109
    %p121 = scmp.eq.s32.totalorder %s31, 1
    %p122 = por %p120, %p121
    %p124 = scmp.ne.s32.totalorder %s109, %s123
    %p125 = scmp.eq.s32.totalorder %s31, 0
    %p126 = por %p124, %p125
    %s128 = sadd.s32 %s127, 1
    %p131 = scmp.eq.s32.totalorder %s25, 1
    %p132 = scmp.ne.s32.totalorder %s127, %s129
    %p133 = scmp.eq.s32.totalorder %s25, 0
    %p134 = por %p132, %p133
    %p135 = scmp.ne.s32.totalorder %s127, %s129
    %p136 = scmp.eq.s32.totalorder %s30, 1
    %p137 = por %p135, %p136
    %p138 = scmp.ne.s32.totalorder %s129, %s130
    %p139 = scmp.eq.s32.totalorder %s30, 0
    %p140 = por %p138, %p139
    %p141 = scmp.ne.s32.totalorder %s129, %s130
    %p142 = scmp.eq.s32.totalorder %s31, 1
    %p143 = por %p141, %p142
    %p145 = scmp.ne.s32.totalorder %s130, %s144
    %p146 = scmp.eq.s32.totalorder %s31, 0
    %p147 = por %p145, %p146
    %s149 = sadd.s32 %s148, 1
    %p152 = scmp.eq.s32.totalorder %s25, 1
    %p153 = scmp.ne.s32.totalorder %s148, %s150
    %p154 = scmp.eq.s32.totalorder %s25, 0
    %p155 = por %p153, %p154
    %p156 = scmp.ne.s32.totalorder %s148, %s150
    %p157 = scmp.eq.s32.totalorder %s30, 1
    %p158 = por %p156, %p157
    %p159 = scmp.ne.s32.totalorder %s150, %s151
    %p160 = scmp.eq.s32.totalorder %s30, 0
    %p161 = por %p159, %p160
    %p162 = scmp.ne.s32.totalorder %s150, %s151
    %p163 = scmp.eq.s32.totalorder %s31, 1
    %p164 = por %p162, %p163
    %p166 = scmp.ne.s32.totalorder %s151, %s165
    %p167 = scmp.eq.s32.totalorder %s31, 0
    %p168 = por %p166, %p167
    %s170 = sadd.s32 %s169, 1
    %p173 = scmp.eq.s32.totalorder %s25, 1
    %p174 = scmp.ne.s32.totalorder %s169, %s171
    %p175 = scmp.eq.s32.totalorder %s25, 0
    %p176 = por %p174, %p175
    %p177 = scmp.ne.s32.totalorder %s169, %s171
    %p178 = scmp.eq.s32.totalorder %s30, 1
    %p179 = por %p177, %p178
    %p180 = scmp.ne.s32.totalorder %s171, %s172
    %p181 = scmp.eq.s32.totalorder %s30, 0
    %p182 = por %p180, %p181
    %p183 = scmp.ne.s32.totalorder %s171, %s172
    %p184 = scmp.eq.s32.totalorder %s31, 1
    %p185 = por %p183, %p184
    %p187 = scmp.ne.s32.totalorder %s172, %s186
    %p188 = scmp.eq.s32.totalorder %s31, 0
    %p189 = por %p187, %p188
    %s191 = sadd.s32 %s190, 1
    %p194 = scmp.eq.s32.totalorder %s25, 1
    %p195 = scmp.ne.s32.totalorder %s190, %s192
    %p196 = scmp.eq.s32.totalorder %s25, 0
    %p197 = por %p195, %p196
    %p198 = scmp.ne.s32.totalorder %s190, %s192
    %p199 = scmp.eq.s32.totalorder %s30, 1
    %p200 = por %p198, %p199
    %p201 = scmp.ne.s32.totalorder %s192, %s193
    %p202 = scmp.eq.s32.totalorder %s30, 0
    %p203 = por %p201, %p202
    %p204 = scmp.ne.s32.totalorder %s192, %s193
    %p205 = scmp.eq.s32.totalorder %s31, 1
    %p206 = por %p204, %p205
    %p208 = scmp.ne.s32.totalorder %s193, %s207
    %p209 = scmp.eq.s32.totalorder %s31, 0
    %p210 = por %p208, %p209
    %s212 = sadd.s32 %s211, 1
    %p215 = scmp.eq.s32.totalorder %s25, 1
    %p216 = scmp.ne.s32.totalorder %s211, %s213
    %p217 = scmp.eq.s32.totalorder %s25, 0
    %p218 = por %p216, %p217
    %p219 = scmp.ne.s32.totalorder %s211, %s213
    %p220 = scmp.eq.s32.totalorder %s30, 1
    %p221 = por %p219, %p220
    %p222 = scmp.ne.s32.totalorder %s213, %s214
    %p223 = scmp.eq.s32.totalorder %s30, 0
    %p224 = por %p222, %p223
    %p225 = scmp.ne.s32.totalorder %s213, %s214
    %p226 = scmp.eq.s32.totalorder %s31, 1
    %p227 = por %p225, %p226
    %p229 = scmp.ne.s32.totalorder %s214, %s228
    %p230 = scmp.eq.s32.totalorder %s31, 0
    %p231 = por %p229, %p230
    %s233 = sadd.s32 %s232, 1
    %p236 = scmp.eq.s32.totalorder %s25, 1
    %p237 = scmp.ne.s32.totalorder %s232, %s234
    %p238 = scmp.eq.s32.totalorder %s25, 0
    %p239 = por %p237, %p238
    %p240 = scmp.ne.s32.totalorder %s232, %s234
    %p241 = scmp.eq.s32.totalorder %s30, 1
    %p242 = por %p240, %p241
    %p243 = scmp.ne.s32.totalorder %s234, %s235
    %p244 = scmp.eq.s32.totalorder %s30, 0
    %p245 = por %p243, %p244
    %p246 = scmp.ne.s32.totalorder %s234, %s235
    %p247 = scmp.eq.s32.totalorder %s31, 1
    %p248 = por %p246, %p247
    %p250 = scmp.ne.s32.totalorder %s235, %s249
    %p251 = scmp.eq.s32.totalorder %s31, 0
    %p252 = por %p250, %p251
    %s254 = sadd.s32 %s253, 1
    %p257 = scmp.eq.s32.totalorder %s25, 1
    %p258 = scmp.ne.s32.totalorder %s253, %s255
    %p259 = scmp.eq.s32.totalorder %s25, 0
    %p260 = por %p258, %p259
    %p261 = scmp.ne.s32.totalorder %s253, %s255
    %p262 = scmp.eq.s32.totalorder %s30, 1
    %p263 = por %p261, %p262
    %p264 = scmp.ne.s32.totalorder %s255, %s256
    %p265 = scmp.eq.s32.totalorder %s30, 0
    %p266 = por %p264, %p265
    %p267 = scmp.ne.s32.totalorder %s255, %s256
    %p268 = scmp.eq.s32.totalorder %s31, 1
    %p269 = por %p267, %p268
    %p271 = scmp.ne.s32.totalorder %s256, %s270
    %p272 = scmp.eq.s32.totalorder %s31, 0
    %p273 = por %p271, %p272
    %s275 = sadd.s32 %s274, 1
    %p278 = scmp.eq.s32.totalorder %s25, 1
    %p279 = scmp.ne.s32.totalorder %s274, %s276
    %p280 = scmp.eq.s32.totalorder %s25, 0
    %p281 = por %p279, %p280
    %p282 = scmp.ne.s32.totalorder %s274, %s276
    %p283 = scmp.eq.s32.totalorder %s30, 1
    %p284 = por %p282, %p283
    %p285 = scmp.ne.s32.totalorder %s276, %s277
    %p286 = scmp.eq.s32.totalorder %s30, 0
    %p287 = por %p285, %p286
    %p288 = scmp.ne.s32.totalorder %s276, %s277
    %p289 = scmp.eq.s32.totalorder %s31, 1
    %p290 = por %p288, %p289
    %p292 = scmp.ne.s32.totalorder %s277, %s291
    %p293 = scmp.eq.s32.totalorder %s31, 0
    %p294 = por %p292, %p293
    %s296 = sadd.s32 %s295, 1
    %p299 = scmp.eq.s32.totalorder %s25, 1
    %p300 = scmp.ne.s32.totalorder %s295, %s297
    %p301 = scmp.eq.s32.totalorder %s25, 0
    %p302 = por %p300, %p301
    %p303 = scmp.ne.s32.totalorder %s295, %s297
    %p304 = scmp.eq.s32.totalorder %s30, 1
    %p305 = por %p303, %p304
    %p306 = scmp.ne.s32.totalorder %s297, %s298
    %p307 = scmp.eq.s32.totalorder %s30, 0
    %p308 = por %p306, %p307
    %p309 = scmp.ne.s32.totalorder %s297, %s298
    %p310 = scmp.eq.s32.totalorder %s31, 1
    %p311 = por %p309, %p310
    %p313 = scmp.ne.s32.totalorder %s298, %s312
    %p314 = scmp.eq.s32.totalorder %s31, 0
    %p315 = por %p313, %p314
    %s317 = sadd.s32 %s316, 1
    %p320 = scmp.eq.s32.totalorder %s25, 1
    %p321 = scmp.ne.s32.totalorder %s316, %s318
    %p322 = scmp.eq.s32.totalorder %s25, 0
    %p323 = por %p321, %p322
    %p324 = scmp.ne.s32.totalorder %s316, %s318
    %p325 = scmp.eq.s32.totalorder %s30, 1
    %p326 = por %p324, %p325
    %p327 = scmp.ne.s32.totalorder %s318, %s319
    %p328 = scmp.eq.s32.totalorder %s30, 0
    %p329 = por %p327, %p328
    %p330 = scmp.ne.s32.totalorder %s318, %s319
    %p331 = scmp.eq.s32.totalorder %s31, 1
    %p332 = por %p330, %p331
    %p334 = scmp.ne.s32.totalorder %s319, %s333
    %p335 = scmp.eq.s32.totalorder %s31, 0
    %p336 = por %p334, %p335
    %s338 = sadd.s32 %s337, 1
    %p341 = scmp.eq.s32.totalorder %s25, 1
    %p342 = scmp.ne.s32.totalorder %s337, %s339
    %p343 = scmp.eq.s32.totalorder %s25, 0
    %p344 = por %p342, %p343
    %p345 = scmp.ne.s32.totalorder %s337, %s339
    %p346 = scmp.eq.s32.totalorder %s30, 1
    %p347 = por %p345, %p346
    %p348 = scmp.ne.s32.totalorder %s339, %s340
    %p349 = scmp.eq.s32.totalorder %s30, 0
    %p350 = por %p348, %p349
    %p351 = scmp.ne.s32.totalorder %s339, %s340
    %p352 = scmp.eq.s32.totalorder %s31, 1
    %p353 = por %p351, %p352
    %p355 = scmp.ne.s32.totalorder %s340, %s354
    %p356 = scmp.eq.s32.totalorder %s31, 0
    %p357 = por %p355, %p356
    %s359 = sadd.s32 %s358, 1
    %p362 = scmp.eq.s32.totalorder %s25, 1
    %p363 = scmp.ne.s32.totalorder %s358, %s360
    %p364 = scmp.eq.s32.totalorder %s25, 0
    %p365 = por %p363, %p364
    %p366 = scmp.ne.s32.totalorder %s358, %s360
    %p367 = scmp.eq.s32.totalorder %s30, 1
    %p368 = por %p366, %p367
    %p369 = scmp.ne.s32.totalorder %s360, %s361
    %p370 = scmp.eq.s32.totalorder %s30, 0
    %p371 = por %p369, %p370
    %p372 = scmp.ne.s32.totalorder %s360, %s361
    %p373 = scmp.eq.s32.totalorder %s31, 1
    %p374 = por %p372, %p373
    %p376 = scmp.ne.s32.totalorder %s361, %s375
    %p377 = scmp.eq.s32.totalorder %s31, 0
    %p378 = por %p376, %p377
    %s380 = sadd.s32 %s379, 1
    %p383 = scmp.eq.s32.totalorder %s25, 1
    %p384 = scmp.ne.s32.totalorder %s379, %s381
    %p385 = scmp.eq.s32.totalorder %s25, 0
    %p386 = por %p384, %p385
    %p387 = scmp.ne.s32.totalorder %s379, %s381
    %p388 = scmp.eq.s32.totalorder %s30, 1
    %p389 = por %p387, %p388
    %p390 = scmp.ne.s32.totalorder %s381, %s382
    %p391 = scmp.eq.s32.totalorder %s30, 0
    %p392 = por %p390, %p391
    %p393 = scmp.ne.s32.totalorder %s381, %s382
    %p394 = scmp.eq.s32.totalorder %s31, 1
    %p395 = por %p393, %p394
    %p397 = scmp.ne.s32.totalorder %s382, %s396
    %p398 = scmp.eq.s32.totalorder %s31, 0
    %p399 = por %p397, %p398
    %s400 = ssub.s32 %s25, %s32
    %p401 = scmp.eq.s32.totalorder %s400, 0
    %s403 = sadd.s32 %s402, 1
    %s404 = scalar_select %p401, %s402, %s403
    %p407 = pneg %p401
    %p408 = scmp.eq.s32.totalorder %s25, 1
    %p409 = por %p407, %p408
    %p410 = scmp.ne.s32.totalorder %s402, %s405
    %p411 = scmp.eq.s32.totalorder %s25, 0
    %p412 = por %p410, %p411
    %p413 = scmp.ne.s32.totalorder %s402, %s405
    %p414 = scmp.eq.s32.totalorder %s30, 1
    %p415 = por %p413, %p414
    %p416 = scmp.ne.s32.totalorder %s405, %s406
    %p417 = scmp.eq.s32.totalorder %s30, 0
    %p418 = por %p416, %p417
    %p419 = scmp.ne.s32.totalorder %s405, %s406
    %p420 = scmp.eq.s32.totalorder %s31, 1
    %p421 = por %p419, %p420
    %p423 = scmp.ne.s32.totalorder %s406, %s422
    %p424 = scmp.eq.s32.totalorder %s31, 0
    %p425 = por %p423, %p424
    %s426 = ssub.s32 %s25, %s32
    %p427 = scmp.eq.s32.totalorder %s426, 0
    %s429 = sadd.s32 %s428, 1
    %s430 = scalar_select %p427, %s428, %s429
    %p433 = pneg %p427
    %p434 = scmp.eq.s32.totalorder %s25, 1
    %p435 = por %p433, %p434
    %p436 = scmp.ne.s32.totalorder %s428, %s431
    %p437 = scmp.eq.s32.totalorder %s25, 0
    %p438 = por %p436, %p437
    %p439 = scmp.ne.s32.totalorder %s428, %s431
    %p440 = scmp.eq.s32.totalorder %s30, 1
    %p441 = por %p439, %p440
    %p442 = scmp.ne.s32.totalorder %s431, %s432
    %p443 = scmp.eq.s32.totalorder %s30, 0
    %p444 = por %p442, %p443
    %p445 = scmp.ne.s32.totalorder %s431, %s432
    %p446 = scmp.eq.s32.totalorder %s31, 1
    %p447 = por %p445, %p446
    %p449 = scmp.ne.s32.totalorder %s432, %s448
    %p450 = scmp.eq.s32.totalorder %s31, 0
    %p451 = por %p449, %p450
    %p452 = scmp.le.s32.totalorder 1, %s25
    %p453 = scmp.lt.s32.totalorder %s25, 3
    %p454 = pnand %p452, %p453
    %p455 = pneg %p454
    // Predicated region
    $region9: #{yolov1_forward.8} parent=5 // pred_check
      _
    $region10: #{yolov1_forward.8} parent=5 // pred_check_branch
      %457 = sbr.rel (%p454) target = $region12
    $region11: #{yolov1_forward.8} parent=5 // pred_region
      %s458 = ssub.s32 %s25, 1
      // Predicated region
      $region13: #{yolov1_forward.8} parent=11 // pred_check
        %p459 = pneg %p98
      $region14: #{yolov1_forward.8} parent=11 // pred_check_branch
        %461 = sbr.rel (%p459) target = $region16
      $region15: #{yolov1_forward.8} parent=11 // pred_region
        _
      $region16: #{yolov1_forward.8} parent=11 // pred_fallthru
        _
      // Predicated region
      $region17: #{yolov1_forward.8} parent=11 // pred_check
        %p462 = pneg %p119
      $region18: #{yolov1_forward.8} parent=11 // pred_check_branch
        %464 = sbr.rel (%p462) target = $region20
      $region19: #{yolov1_forward.8} parent=11 // pred_region
        _
      $region20: #{yolov1_forward.8} parent=11 // pred_fallthru
        _
      // Predicated region
      $region21: #{yolov1_forward.8} parent=11 // pred_check
        %p465 = pneg %p140
      $region22: #{yolov1_forward.8} parent=11 // pred_check_branch
        %467 = sbr.rel (%p465) target = $region24
      $region23: #{yolov1_forward.8} parent=11 // pred_region
        _
      $region24: #{yolov1_forward.8} parent=11 // pred_fallthru
        _
      // Predicated region
      $region25: #{yolov1_forward.8} parent=11 // pred_check
        %p468 = pneg %p161
      $region26: #{yolov1_forward.8} parent=11 // pred_check_branch
        %470 = sbr.rel (%p468) target = $region28
      $region27: #{yolov1_forward.8} parent=11 // pred_region
        _
      $region28: #{yolov1_forward.8} parent=11 // pred_fallthru
        _
      // Predicated region
      $region29: #{yolov1_forward.8} parent=11 // pred_check
        %p471 = pneg %p182
      $region30: #{yolov1_forward.8} parent=11 // pred_check_branch
        %473 = sbr.rel (%p471) target = $region32
      $region31: #{yolov1_forward.8} parent=11 // pred_region
        _
      $region32: #{yolov1_forward.8} parent=11 // pred_fallthru
        _
      // Predicated region
      $region33: #{yolov1_forward.8} parent=11 // pred_check
        %p474 = pneg %p203
      $region34: #{yolov1_forward.8} parent=11 // pred_check_branch
        %476 = sbr.rel (%p474) target = $region36
      $region35: #{yolov1_forward.8} parent=11 // pred_region
        _
      $region36: #{yolov1_forward.8} parent=11 // pred_fallthru
        _
      // Predicated region
      $region37: #{yolov1_forward.8} parent=11 // pred_check
        %p477 = pneg %p224
      $region38: #{yolov1_forward.8} parent=11 // pred_check_branch
        %479 = sbr.rel (%p477) target = $region40
      $region39: #{yolov1_forward.8} parent=11 // pred_region
        _
      $region40: #{yolov1_forward.8} parent=11 // pred_fallthru
        _
      // Predicated region
      $region41: #{yolov1_forward.8} parent=11 // pred_check
        %p480 = pneg %p245
      $region42: #{yolov1_forward.8} parent=11 // pred_check_branch
        %482 = sbr.rel (%p480) target = $region44
      $region43: #{yolov1_forward.8} parent=11 // pred_region
        _
      $region44: #{yolov1_forward.8} parent=11 // pred_fallthru
        _
      // Predicated region
      $region45: #{yolov1_forward.8} parent=11 // pred_check
        %p483 = pneg %p266
      $region46: #{yolov1_forward.8} parent=11 // pred_check_branch
        %485 = sbr.rel (%p483) target = $region48
      $region47: #{yolov1_forward.8} parent=11 // pred_region
        _
      $region48: #{yolov1_forward.8} parent=11 // pred_fallthru
        _
      // Predicated region
      $region49: #{yolov1_forward.8} parent=11 // pred_check
        %p486 = pneg %p287
      $region50: #{yolov1_forward.8} parent=11 // pred_check_branch
        %488 = sbr.rel (%p486) target = $region52
      $region51: #{yolov1_forward.8} parent=11 // pred_region
        _
      $region52: #{yolov1_forward.8} parent=11 // pred_fallthru
        _
      // Predicated region
      $region53: #{yolov1_forward.8} parent=11 // pred_check
        %p489 = pneg %p308
      $region54: #{yolov1_forward.8} parent=11 // pred_check_branch
        %491 = sbr.rel (%p489) target = $region56
      $region55: #{yolov1_forward.8} parent=11 // pred_region
        _
      $region56: #{yolov1_forward.8} parent=11 // pred_fallthru
        _
      // Predicated region
      $region57: #{yolov1_forward.8} parent=11 // pred_check
        %p492 = pneg %p329
      $region58: #{yolov1_forward.8} parent=11 // pred_check_branch
        %494 = sbr.rel (%p492) target = $region60
      $region59: #{yolov1_forward.8} parent=11 // pred_region
        _
      $region60: #{yolov1_forward.8} parent=11 // pred_fallthru
        _
      // Predicated region
      $region61: #{yolov1_forward.8} parent=11 // pred_check
        %p495 = pneg %p350
      $region62: #{yolov1_forward.8} parent=11 // pred_check_branch
        %497 = sbr.rel (%p495) target = $region64
      $region63: #{yolov1_forward.8} parent=11 // pred_region
        _
      $region64: #{yolov1_forward.8} parent=11 // pred_fallthru
        _
      // Predicated region
      $region65: #{yolov1_forward.8} parent=11 // pred_check
        %p498 = pneg %p371
      $region66: #{yolov1_forward.8} parent=11 // pred_check_branch
        %500 = sbr.rel (%p498) target = $region68
      $region67: #{yolov1_forward.8} parent=11 // pred_region
        _
      $region68: #{yolov1_forward.8} parent=11 // pred_fallthru
        _
      // Predicated region
      $region69: #{yolov1_forward.8} parent=11 // pred_check
        %p501 = pneg %p392
      $region70: #{yolov1_forward.8} parent=11 // pred_check_branch
        %503 = sbr.rel (%p501) target = $region72
      $region71: #{yolov1_forward.8} parent=11 // pred_region
        _
      $region72: #{yolov1_forward.8} parent=11 // pred_fallthru
        _
    $region12: #{yolov1_forward.8} parent=5 // pred_fallthru
      _
    %p504 = scmp.lt.s32.totalorder %s25, 2
    // Predicated region
    $region73: #{yolov1_forward.8} parent=5 // pred_check
      %p505 = pneg %p504
    $region74: #{yolov1_forward.8} parent=5 // pred_check_branch
      %507 = sbr.rel (%p505) target = $region76
    $region75: #{yolov1_forward.8} parent=5 // pred_region
      // Predicated region
      $region77: #{yolov1_forward.8} parent=75 // pred_check
        %p508 = pneg %p45
      $region78: #{yolov1_forward.8} parent=75 // pred_check_branch
        %510 = sbr.rel (%p508) target = $region80
      $region79: #{yolov1_forward.8} parent=75 // pred_region
        %p511 = scmp.lt.s32.totalorder %s25, 1
        %s512 = scalar_select %p511, %s25, 1
        %s513 = smul.addr %s512, 8
        %s514 = smul.addr %s513, 4
        %s515 = scalar_lea.vmem %s0, %s514
      $region80: #{yolov1_forward.8} parent=75 // pred_fallthru
        _
      // Predicated region
      $region81: #{yolov1_forward.8} parent=75 // pred_check
        %p516 = pneg %p71
      $region82: #{yolov1_forward.8} parent=75 // pred_check_branch
        %518 = sbr.rel (%p516) target = $region84
      $region83: #{yolov1_forward.8} parent=75 // pred_region
        %p519 = scmp.lt.s32.totalorder %s25, 1
        %s520 = scalar_select %p519, %s25, 1
        %s521 = smul.addr %s520, 8
        %s522 = smul.addr %s521, 4
        %s523 = scalar_lea.vmem %s1, %s522
      $region84: #{yolov1_forward.8} parent=75 // pred_fallthru
        _
    $region76: #{yolov1_forward.8} parent=5 // pred_fallthru
      _
    %p524 = scmp.le.s32.totalorder 1, %s25
    %p525 = scmp.lt.s32.totalorder %s25, 3
    %p526 = pnand %p524, %p525
    %p527 = pneg %p526
    // Predicated region
    $region85: #{yolov1_forward.8} parent=5 // pred_check
      _
    $region86: #{yolov1_forward.8} parent=5 // pred_check_branch
      %529 = sbr.rel (%p526) target = $region88
    $region87: #{yolov1_forward.8} parent=5 // pred_region
      %s530 = ssub.s32 %s25, 1
      %p531 = scmp.lt.s32.totalorder %s30, 1
      %s532 = scalar_select %p531, %s30, 1
      %s533 = smul.addr %s532, 8
      %s534 = smul.addr %s533, 4
      %s535 = scalar_lea.vmem %s0, %s534
      %p536 = pneg %p51
      %p537 = pneg %p48
      %p538 = scmp.lt.s32.totalorder %s30, 1
      %s539 = scalar_select %p538, %s30, 1
      %s540 = smul.addr %s539, 8
      %s541 = smul.addr %s540, 4
      %s542 = scalar_lea.vmem %s1, %s541
      %p543 = pneg %p77
      %p544 = pneg %p74
      %p545 = pneg %p98
      %p546 = pneg %p95
      %p547 = pneg %p119
      %p548 = pneg %p116
      %p549 = pneg %p140
      %p550 = pneg %p137
      %p551 = pneg %p161
      %p552 = pneg %p158
      %p553 = pneg %p182
      %p554 = pneg %p179
      %p555 = pneg %p203
      %p556 = pneg %p200
      %p557 = pneg %p224
      %p558 = pneg %p221
      %p559 = pneg %p245
      %p560 = pneg %p242
      %p561 = pneg %p266
      %p562 = pneg %p263
      %p563 = pneg %p287
      %p564 = pneg %p284
      %p565 = pneg %p308
      %p566 = pneg %p305
      %p567 = pneg %p329
      %p568 = pneg %p326
      %p569 = pneg %p350
      %p570 = pneg %p347
      %p571 = pneg %p371
      %p572 = pneg %p368
      %p573 = pneg %p392
      %p574 = pneg %p389
      %p575 = pneg %p418
      %p576 = pneg %p415
      %p577 = scmp.lt.s32.totalorder %s30, 1
      %s578 = scalar_select %p577, %s30, 1
      %s579 = smul.addr %s578, 8
      %s580 = smul.addr %s579, 4
      %s581 = scalar_lea.vmem %s17, %s580
      %p582 = pneg %p444
      %p583 = pneg %p441
      %p584 = scmp.lt.s32.totalorder %s30, 1
      %s585 = scalar_select %p584, %s30, 1
      %s586 = smul.addr %s585, 8
      %s587 = smul.addr %s586, 4
      %s588 = scalar_lea.vmem %s18, %s587
      %p589 = scmp.lt.s32.totalorder %s30, 1
      %s590 = scalar_select %p589, %s30, 1
      %s591 = smul.addr %s590, 8
      %s592 = smul.addr %s591, 4
      %s593 = scalar_lea.vmem %s0, %s592
      %p594 = scmp.lt.s32.totalorder %s30, 1
      %s595 = scalar_select %p594, %s30, 1
      %s596 = smul.addr %s595, 8
      %s597 = smul.addr %s596, 4
      %s598 = scalar_lea.vmem %s1, %s597
      %p599 = scmp.lt.s32.totalorder %s30, 1
      %s600 = scalar_select %p599, %s30, 1
      %s601 = smul.addr %s600, 8
      %s602 = smul.addr %s601, 4
      %s603 = scalar_lea.vmem %s17, %s602
      %p604 = scmp.lt.s32.totalorder %s30, 1
      %s605 = scalar_select %p604, %s30, 1
      %s606 = smul.addr %s605, 8
      %s607 = smul.addr %s606, 4
      %s608 = scalar_lea.vmem %s18, %s607
      %v609 = vld [vmem:[%s593] sm:$0xf]
      %v610 = vld [vmem:[%s593 + $0x4] sm:$0xf]
      %v611 = vld [vmem:[%s593 + $0x8] sm:$0xf]
      %v612 = vld [vmem:[%s593 + $0xc] sm:$0xf]
      %v613 = vld [vmem:[%s593 + $0x10] sm:$0xf]
      %v614 = vld [vmem:[%s593 + $0x14] sm:$0xf]
      %v615 = vld [vmem:[%s593 + $0x18] sm:$0xf]
      %v616 = vld [vmem:[%s593 + $0x1c] sm:$0xf]
      %v617 = vunpack.c.l.bf16 %v609
      %v618 = vunpack.c.l.bf16 %v610
      %v619 = vunpack.c.l.bf16 %v611
      %v620 = vunpack.c.l.bf16 %v612
      %v621 = vunpack.c.l.bf16 %v613
      %v622 = vunpack.c.l.bf16 %v614
      %v623 = vunpack.c.l.bf16 %v615
      %v624 = vunpack.c.l.bf16 %v616
      %v625 = vlaneseq
      %v626 = vshrl.u32 %v625, 7
      %v627 = vadd.s32 %v626, 8
      %v628 = vadd.s32 %v626, 16
      %v629 = vadd.s32 %v626, 24
      %v630 = vadd.s32 %v626, 32
      %v631 = vadd.s32 %v626, 40
      %v632 = vadd.s32 %v626, 48
      %v633 = vadd.s32 %v626, 56
      %v634 = vshra.s32 %v626, 3
      %v635 = vshra.s32 %v627, 3
      %v636 = vshra.s32 %v628, 3
      %v637 = vshra.s32 %v629, 3
      %v638 = vshra.s32 %v630, 3
      %v639 = vshra.s32 %v631, 3
      %v640 = vshra.s32 %v632, 3
      %v641 = vshra.s32 %v633, 3
      %v642 = vand.u32 %v626, 7
      %v643 = vand.u32 %v627, 7
      %v644 = vand.u32 %v628, 7
      %v645 = vand.u32 %v629, 7
      %v646 = vand.u32 %v630, 7
      %v647 = vand.u32 %v631, 7
      %v648 = vand.u32 %v632, 7
      %v649 = vand.u32 %v633, 7
      %vm650 = vcmp.ge.s32.totalorder %v634, 1
      %vm651 = vcmp.ge.s32.totalorder %v635, 1
      %vm652 = vcmp.ge.s32.totalorder %v636, 1
      %vm653 = vcmp.ge.s32.totalorder %v637, 1
      %vm654 = vcmp.ge.s32.totalorder %v638, 1
      %vm655 = vcmp.ge.s32.totalorder %v639, 1
      %vm656 = vcmp.ge.s32.totalorder %v640, 1
      %vm657 = vcmp.ge.s32.totalorder %v641, 1
      %vm658 = vcmp.ge.s32.totalorder %v642, 1
      %vm659 = vcmp.ge.s32.totalorder %v643, 1
      %vm660 = vcmp.ge.s32.totalorder %v644, 1
      %vm661 = vcmp.ge.s32.totalorder %v645, 1
      %vm662 = vcmp.ge.s32.totalorder %v646, 1
      %vm663 = vcmp.ge.s32.totalorder %v647, 1
      %vm664 = vcmp.ge.s32.totalorder %v648, 1
      %vm665 = vcmp.ge.s32.totalorder %v649, 1
      %v666 = vrot.slane %v617, 7
      %v667 = vrot.slane %v618, 7
      %v668 = vrot.slane %v619, 7
      %v669 = vrot.slane %v620, 7
      %v670 = vrot.slane %v621, 7
      %v671 = vrot.slane %v622, 7
      %v672 = vrot.slane %v623, 7
      %v673 = vrot.slane %v624, 7
      %vm674 = vcmp.lt.s32.totalorder %v626, 1
      %v675 = vsel %vm674, %v672, %v673
      %v676 = vsel %vm674, %v671, %v672
      %v677 = vsel %vm674, %v670, %v671
      %v678 = vsel %vm674, %v669, %v670
      %v679 = vsel %vm674, %v668, %v669
      %v680 = vsel %vm674, %v667, %v668
      %v681 = vsel %vm674, %v666, %v667
      %v682 = vsel %vm674, %v673, %v666
      %vm683 = vmand %vm650, %vm658
      %vm684 = vmand %vm651, %vm659
      %vm685 = vmand %vm652, %vm660
      %vm686 = vmand %vm653, %vm661
      %vm687 = vmand %vm654, %vm662
      %vm688 = vmand %vm655, %vm663
      %vm689 = vmand %vm656, %vm664
      %vm690 = vmand %vm657, %vm665
      %v691 = vsel %vm683, %v675, 0.0
      %v692 = vsel %vm684, %v682, 0.0
      %v693 = vsel %vm685, %v681, 0.0
      %v694 = vsel %vm686, %v680, 0.0
      %v695 = vsel %vm687, %v679, 0.0
      %v696 = vsel %vm688, %v678, 0.0
      %v697 = vsel %vm689, %v677, 0.0
      %v698 = vsel %vm690, %v676, 0.0
      %v699 = vpack.c.bf16 %v691, %v691
      %v700 = vpack.c.bf16 %v692, %v692
      %v701 = vpack.c.bf16 %v693, %v693
      %v702 = vpack.c.bf16 %v694, %v694
      %v703 = vpack.c.bf16 %v695, %v695
      %v704 = vpack.c.bf16 %v696, %v696
      %v705 = vpack.c.bf16 %v697, %v697
      %v706 = vpack.c.bf16 %v698, %v698
      %v707 = vsel %vm650, %v624, 0.0
      %v708 = vsel %vm651, %v617, 0.0
      %v709 = vsel %vm652, %v618, 0.0
      %v710 = vsel %vm653, %v619, 0.0
      %v711 = vsel %vm654, %v620, 0.0
      %v712 = vsel %vm655, %v621, 0.0
      %v713 = vsel %vm656, %v622, 0.0
      %v714 = vsel %vm657, %v623, 0.0
      %v715 = vpack.c.bf16 %v707, %v707
      %v716 = vpack.c.bf16 %v708, %v708
      %v717 = vpack.c.bf16 %v709, %v709
      %v718 = vpack.c.bf16 %v710, %v710
      %v719 = vpack.c.bf16 %v711, %v711
      %v720 = vpack.c.bf16 %v712, %v712
      %v721 = vpack.c.bf16 %v713, %v713
      %v722 = vpack.c.bf16 %v714, %v714
      %vm723 = vcmp.le.s32.totalorder %v642, 6
      %vm724 = vcmp.le.s32.totalorder %v643, 6
      %vm725 = vcmp.le.s32.totalorder %v644, 6
      %vm726 = vcmp.le.s32.totalorder %v645, 6
      %vm727 = vcmp.le.s32.totalorder %v646, 6
      %vm728 = vcmp.le.s32.totalorder %v647, 6
      %vm729 = vcmp.le.s32.totalorder %v648, 6
      %vm730 = vcmp.le.s32.totalorder %v649, 6
      %v731 = vrot.slane %v617, 1
      %v732 = vrot.slane %v618, 1
      %v733 = vrot.slane %v619, 1
      %v734 = vrot.slane %v620, 1
      %v735 = vrot.slane %v621, 1
      %v736 = vrot.slane %v622, 1
      %v737 = vrot.slane %v623, 1
      %v738 = vrot.slane %v624, 1
      %vm739 = vcmp.lt.s32.totalorder %v626, 7
      %v740 = vsel %vm739, %v737, %v738
      %v741 = vsel %vm739, %v736, %v737
      %v742 = vsel %vm739, %v735, %v736
      %v743 = vsel %vm739, %v734, %v735
      %v744 = vsel %vm739, %v733, %v734
      %v745 = vsel %vm739, %v732, %v733
      %v746 = vsel %vm739, %v731, %v732
      %v747 = vsel %vm739, %v738, %v731
      %vm748 = vmand %vm650, %vm723
      %vm749 = vmand %vm651, %vm724
      %vm750 = vmand %vm652, %vm725
      %vm751 = vmand %vm653, %vm726
      %vm752 = vmand %vm654, %vm727
      %vm753 = vmand %vm655, %vm728
      %vm754 = vmand %vm656, %vm729
      %vm755 = vmand %vm657, %vm730
      %v756 = vsel %vm748, %v747, 0.0
      %v757 = vsel %vm749, %v746, 0.0
      %v758 = vsel %vm750, %v745, 0.0
      %v759 = vsel %vm751, %v744, 0.0
      %v760 = vsel %vm752, %v743, 0.0
      %v761 = vsel %vm753, %v742, 0.0
      %v762 = vsel %vm754, %v741, 0.0
      %v763 = vsel %vm755, %v740, 0.0
      %v764 = vpack.c.bf16 %v756, %v756
      %v765 = vpack.c.bf16 %v757, %v757
      %v766 = vpack.c.bf16 %v758, %v758
      %v767 = vpack.c.bf16 %v759, %v759
      %v768 = vpack.c.bf16 %v760, %v760
      %v769 = vpack.c.bf16 %v761, %v761
      %v770 = vpack.c.bf16 %v762, %v762
      %v771 = vpack.c.bf16 %v763, %v763
      %v772 = vsel %vm658, %v682, 0.0
      %v773 = vsel %vm659, %v681, 0.0
      %v774 = vsel %vm660, %v680, 0.0
      %v775 = vsel %vm661, %v679, 0.0
      %v776 = vsel %vm662, %v678, 0.0
      %v777 = vsel %vm663, %v677, 0.0
      %v778 = vsel %vm664, %v676, 0.0
      %v779 = vsel %vm665, %v675, 0.0
      %v780 = vpack.c.bf16 %v772, %v772
      %v781 = vpack.c.bf16 %v773, %v773
      %v782 = vpack.c.bf16 %v774, %v774
      %v783 = vpack.c.bf16 %v775, %v775
      %v784 = vpack.c.bf16 %v776, %v776
      %v785 = vpack.c.bf16 %v777, %v777
      %v786 = vpack.c.bf16 %v778, %v778
      %v787 = vpack.c.bf16 %v779, %v779
      %v788 = vsel %vm723, %v746, 0.0
      %v789 = vsel %vm724, %v745, 0.0
      %v790 = vsel %vm725, %v744, 0.0
      %v791 = vsel %vm726, %v743, 0.0
      %v792 = vsel %vm727, %v742, 0.0
      %v793 = vsel %vm728, %v741, 0.0
      %v794 = vsel %vm729, %v740, 0.0
      %v795 = vsel %vm730, %v747, 0.0
      %v796 = vpack.c.bf16 %v788, %v788
      %v797 = vpack.c.bf16 %v789, %v789
      %v798 = vpack.c.bf16 %v790, %v790
      %v799 = vpack.c.bf16 %v791, %v791
      %v800 = vpack.c.bf16 %v792, %v792
      %v801 = vpack.c.bf16 %v793, %v793
      %v802 = vpack.c.bf16 %v794, %v794
      %v803 = vpack.c.bf16 %v795, %v795
      %vm804 = vcmp.le.s32.totalorder %v634, 6
      %vm805 = vcmp.le.s32.totalorder %v635, 6
      %vm806 = vcmp.le.s32.totalorder %v636, 6
      %vm807 = vcmp.le.s32.totalorder %v637, 6
      %vm808 = vcmp.le.s32.totalorder %v638, 6
      %vm809 = vcmp.le.s32.totalorder %v639, 6
      %vm810 = vcmp.le.s32.totalorder %v640, 6
      %vm811 = vcmp.le.s32.totalorder %v641, 6
      %vm812 = vmand %vm804, %vm658
      %vm813 = vmand %vm805, %vm659
      %vm814 = vmand %vm806, %vm660
      %vm815 = vmand %vm807, %vm661
      %vm816 = vmand %vm808, %vm662
      %vm817 = vmand %vm809, %vm663
      %vm818 = vmand %vm810, %vm664
      %vm819 = vmand %vm811, %vm665
      %v820 = vsel %vm812, %v681, 0.0
      %v821 = vsel %vm813, %v680, 0.0
      %v822 = vsel %vm814, %v679, 0.0
      %v823 = vsel %vm815, %v678, 0.0
      %v824 = vsel %vm816, %v677, 0.0
      %v825 = vsel %vm817, %v676, 0.0
      %v826 = vsel %vm818, %v675, 0.0
      %v827 = vsel %vm819, %v682, 0.0
      %v828 = vpack.c.bf16 %v820, %v820
      %v829 = vpack.c.bf16 %v821, %v821
      %v830 = vpack.c.bf16 %v822, %v822
      %v831 = vpack.c.bf16 %v823, %v823
      %v832 = vpack.c.bf16 %v824, %v824
      %v833 = vpack.c.bf16 %v825, %v825
      %v834 = vpack.c.bf16 %v826, %v826
      %v835 = vpack.c.bf16 %v827, %v827
      %v836 = vsel %vm804, %v618, 0.0
      %v837 = vsel %vm805, %v619, 0.0
      %v838 = vsel %vm806, %v620, 0.0
      %v839 = vsel %vm807, %v621, 0.0
      %v840 = vsel %vm808, %v622, 0.0
      %v841 = vsel %vm809, %v623, 0.0
      %v842 = vsel %vm810, %v624, 0.0
      %v843 = vsel %vm811, %v617, 0.0
      %v844 = vpack.c.bf16 %v836, %v836
      %v845 = vpack.c.bf16 %v837, %v837
      %v846 = vpack.c.bf16 %v838, %v838
      %v847 = vpack.c.bf16 %v839, %v839
      %v848 = vpack.c.bf16 %v840, %v840
      %v849 = vpack.c.bf16 %v841, %v841
      %v850 = vpack.c.bf16 %v842, %v842
      %v851 = vpack.c.bf16 %v843, %v843
      %vm852 = vmand %vm804, %vm723
      %vm853 = vmand %vm805, %vm724
      %vm854 = vmand %vm806, %vm725
      %vm855 = vmand %vm807, %vm726
      %vm856 = vmand %vm808, %vm727
      %vm857 = vmand %vm809, %vm728
      %vm858 = vmand %vm810, %vm729
      %vm859 = vmand %vm811, %vm730
      %v860 = vsel %vm852, %v745, 0.0
      %v861 = vsel %vm853, %v744, 0.0
      %v862 = vsel %vm854, %v743, 0.0
      %v863 = vsel %vm855, %v742, 0.0
      %v864 = vsel %vm856, %v741, 0.0
      %v865 = vsel %vm857, %v740, 0.0
      %v866 = vsel %vm858, %v747, 0.0
      %v867 = vsel %vm859, %v746, 0.0
      %v868 = vpack.c.bf16 %v860, %v860
      %v869 = vpack.c.bf16 %v861, %v861
      %v870 = vpack.c.bf16 %v862, %v862
      %v871 = vpack.c.bf16 %v863, %v863
      %v872 = vpack.c.bf16 %v864, %v864
      %v873 = vpack.c.bf16 %v865, %v865
      %v874 = vpack.c.bf16 %v866, %v866
      %v875 = vpack.c.bf16 %v867, %v867
      %v884 = vunpack.c.l.b16 %v699
      %v885 = vunpack.c.l.b16 %v700
      %v886 = vunpack.c.l.b16 %v701
      %v887 = vunpack.c.l.b16 %v702
      %v888 = vunpack.c.l.b16 %v703
      %v889 = vunpack.c.l.b16 %v704
      %v890 = vunpack.c.l.b16 %v705
      %v891 = vunpack.c.l.b16 %v706
      %v892 = vpack.c.b16 %v885, %v884
      %v893 = vpack.c.b16 %v887, %v886
      %v894 = vpack.c.b16 %v889, %v888
      %v895 = vpack.c.b16 %v891, %v890
      %v908 = vunpack.c.l.b16 %v715
      %v909 = vunpack.c.l.b16 %v716
      %v910 = vunpack.c.l.b16 %v717
      %v911 = vunpack.c.l.b16 %v718
      %v912 = vunpack.c.l.b16 %v719
      %v913 = vunpack.c.l.b16 %v720
      %v914 = vunpack.c.l.b16 %v721
      %v915 = vunpack.c.l.b16 %v722
      %v916 = vpack.c.b16 %v909, %v908
      %v917 = vpack.c.b16 %v911, %v910
      %v918 = vpack.c.b16 %v913, %v912
      %v919 = vpack.c.b16 %v915, %v914
      %v932 = vunpack.c.l.b16 %v764
      %v933 = vunpack.c.l.b16 %v765
      %v934 = vunpack.c.l.b16 %v766
      %v935 = vunpack.c.l.b16 %v767
      %v936 = vunpack.c.l.b16 %v768
      %v937 = vunpack.c.l.b16 %v769
      %v938 = vunpack.c.l.b16 %v770
      %v939 = vunpack.c.l.b16 %v771
      %v940 = vpack.c.b16 %v933, %v932
      %v941 = vpack.c.b16 %v935, %v934
      %v942 = vpack.c.b16 %v937, %v936
      %v943 = vpack.c.b16 %v939, %v938
      %v956 = vunpack.c.l.b16 %v780
      %v957 = vunpack.c.l.b16 %v781
      %v958 = vunpack.c.l.b16 %v782
      %v959 = vunpack.c.l.b16 %v783
      %v960 = vunpack.c.l.b16 %v784
      %v961 = vunpack.c.l.b16 %v785
      %v962 = vunpack.c.l.b16 %v786
      %v963 = vunpack.c.l.b16 %v787
      %v964 = vpack.c.b16 %v957, %v956
      %v965 = vpack.c.b16 %v959, %v958
      %v966 = vpack.c.b16 %v961, %v960
      %v967 = vpack.c.b16 %v963, %v962
      %v980 = vunpack.c.l.b16 %v609
      %v981 = vunpack.c.l.b16 %v610
      %v982 = vunpack.c.l.b16 %v611
      %v983 = vunpack.c.l.b16 %v612
      %v984 = vunpack.c.l.b16 %v613
      %v985 = vunpack.c.l.b16 %v614
      %v986 = vunpack.c.l.b16 %v615
      %v987 = vunpack.c.l.b16 %v616
      %v988 = vpack.c.b16 %v981, %v980
      %v989 = vpack.c.b16 %v983, %v982
      %v990 = vpack.c.b16 %v985, %v984
      %v991 = vpack.c.b16 %v987, %v986
      %v1004 = vunpack.c.l.b16 %v796
      %v1005 = vunpack.c.l.b16 %v797
      %v1006 = vunpack.c.l.b16 %v798
      %v1007 = vunpack.c.l.b16 %v799
      %v1008 = vunpack.c.l.b16 %v800
      %v1009 = vunpack.c.l.b16 %v801
      %v1010 = vunpack.c.l.b16 %v802
      %v1011 = vunpack.c.l.b16 %v803
      %v1012 = vpack.c.b16 %v1005, %v1004
      %v1013 = vpack.c.b16 %v1007, %v1006
      %v1014 = vpack.c.b16 %v1009, %v1008
      %v1015 = vpack.c.b16 %v1011, %v1010
      %v1028 = vunpack.c.l.b16 %v828
      %v1029 = vunpack.c.l.b16 %v829
      %v1030 = vunpack.c.l.b16 %v830
      %v1031 = vunpack.c.l.b16 %v831
      %v1032 = vunpack.c.l.b16 %v832
      %v1033 = vunpack.c.l.b16 %v833
      %v1034 = vunpack.c.l.b16 %v834
      %v1035 = vunpack.c.l.b16 %v835
      %v1036 = vpack.c.b16 %v1029, %v1028
      %v1037 = vpack.c.b16 %v1031, %v1030
      %v1038 = vpack.c.b16 %v1033, %v1032
      %v1039 = vpack.c.b16 %v1035, %v1034
      %v1052 = vunpack.c.l.b16 %v844
      %v1053 = vunpack.c.l.b16 %v845
      %v1054 = vunpack.c.l.b16 %v846
      %v1055 = vunpack.c.l.b16 %v847
      %v1056 = vunpack.c.l.b16 %v848
      %v1057 = vunpack.c.l.b16 %v849
      %v1058 = vunpack.c.l.b16 %v850
      %v1059 = vunpack.c.l.b16 %v851
      %v1060 = vpack.c.b16 %v1053, %v1052
      %v1061 = vpack.c.b16 %v1055, %v1054
      %v1062 = vpack.c.b16 %v1057, %v1056
      %v1063 = vpack.c.b16 %v1059, %v1058
      %v1076 = vunpack.c.l.b16 %v868
      %v1077 = vunpack.c.l.b16 %v869
      %v1078 = vunpack.c.l.b16 %v870
      %v1079 = vunpack.c.l.b16 %v871
      %v1080 = vunpack.c.l.b16 %v872
      %v1081 = vunpack.c.l.b16 %v873
      %v1082 = vunpack.c.l.b16 %v874
      %v1083 = vunpack.c.l.b16 %v875
      %v1084 = vpack.c.b16 %v1077, %v1076
      %v1085 = vpack.c.b16 %v1079, %v1078
      %v1086 = vpack.c.b16 %v1081, %v1080
      %v1087 = vpack.c.b16 %v1083, %v1082
      %v1092 = vld [vmem:[%s2] sm:$0xf]
      %v1093 = vld [vmem:[%s2 + $0x4] sm:$0xf]
      %v1094 = vld [vmem:[%s2 + $0x8] sm:$0xf]
      %v1095 = vld [vmem:[%s2 + $0xc] sm:$0xf]
      %v1096 = vld [vmem:[%s2 + $0x10] sm:$0xf]
      %v1097 = vld [vmem:[%s2 + $0x14] sm:$0xf]
      %v1098 = vld [vmem:[%s2 + $0x18] sm:$0xf]
      %v1099 = vld [vmem:[%s2 + $0x1c] sm:$0xf]
      %v1100 = vld [vmem:[%s2 + $0x20] sm:$0xf]
      %v1101 = vld [vmem:[%s2 + $0x24] sm:$0xf]
      %v1102 = vld [vmem:[%s2 + $0x28] sm:$0xf]
      %v1103 = vld [vmem:[%s2 + $0x2c] sm:$0xf]
      %v1104 = vld [vmem:[%s2 + $0x30] sm:$0xf]
      %v1105 = vld [vmem:[%s2 + $0x34] sm:$0xf]
      %v1106 = vld [vmem:[%s2 + $0x38] sm:$0xf]
      %v1107 = vld [vmem:[%s2 + $0x3c] sm:$0xf]
      %v1108 = vld [vmem:[%s2 + $0x40] sm:$0xf]
      %v1109 = vld [vmem:[%s2 + $0x44] sm:$0xf]
      %v1110 = vld [vmem:[%s2 + $0x48] sm:$0xf]
      %v1111 = vld [vmem:[%s2 + $0x4c] sm:$0xf]
      %v1112 = vld [vmem:[%s2 + $0x50] sm:$0xf]
      %v1113 = vld [vmem:[%s2 + $0x54] sm:$0xf]
      %v1114 = vld [vmem:[%s2 + $0x58] sm:$0xf]
      %v1115 = vld [vmem:[%s2 + $0x5c] sm:$0xf]
      %v1116 = vld [vmem:[%s2 + $0x60] sm:$0xf]
      %v1117 = vld [vmem:[%s2 + $0x64] sm:$0xf]
      %v1118 = vld [vmem:[%s2 + $0x68] sm:$0xf]
      %v1119 = vld [vmem:[%s2 + $0x6c] sm:$0xf]
      %v1120 = vld [vmem:[%s2 + $0x70] sm:$0xf]
      %v1121 = vld [vmem:[%s2 + $0x74] sm:$0xf]
      %v1122 = vld [vmem:[%s2 + $0x78] sm:$0xf]
      %v1123 = vld [vmem:[%s2 + $0x7c] sm:$0xf]
      %v1124 = vld [vmem:[%s2 + $0x80] sm:$0xf]
      %v1125 = vld [vmem:[%s2 + $0x84] sm:$0xf]
      %v1126 = vld [vmem:[%s2 + $0x88] sm:$0xf]
      %v1127 = vld [vmem:[%s2 + $0x8c] sm:$0xf]
      %v1128 = vld [vmem:[%s2 + $0x90] sm:$0xf]
      %v1129 = vld [vmem:[%s2 + $0x94] sm:$0xf]
      %v1130 = vld [vmem:[%s2 + $0x98] sm:$0xf]
      %v1131 = vld [vmem:[%s2 + $0x9c] sm:$0xf]
      %v1132 = vld [vmem:[%s2 + $0xa0] sm:$0xf]
      %v1133 = vld [vmem:[%s2 + $0xa4] sm:$0xf]
      %v1134 = vld [vmem:[%s2 + $0xa8] sm:$0xf]
      %v1135 = vld [vmem:[%s2 + $0xac] sm:$0xf]
      %v1136 = vld [vmem:[%s2 + $0xb0] sm:$0xf]
      %v1137 = vld [vmem:[%s2 + $0xb4] sm:$0xf]
      %v1138 = vld [vmem:[%s2 + $0xb8] sm:$0xf]
      %v1139 = vld [vmem:[%s2 + $0xbc] sm:$0xf]
      %v1140 = vld [vmem:[%s2 + $0xc0] sm:$0xf]
      %v1141 = vld [vmem:[%s2 + $0xc4] sm:$0xf]
      %v1142 = vld [vmem:[%s2 + $0xc8] sm:$0xf]
      %v1143 = vld [vmem:[%s2 + $0xcc] sm:$0xf]
      %v1144 = vld [vmem:[%s2 + $0xd0] sm:$0xf]
      %v1145 = vld [vmem:[%s2 + $0xd4] sm:$0xf]
      %v1146 = vld [vmem:[%s2 + $0xd8] sm:$0xf]
      %v1147 = vld [vmem:[%s2 + $0xdc] sm:$0xf]
      %v1148 = vld [vmem:[%s2 + $0xe0] sm:$0xf]
      %v1149 = vld [vmem:[%s2 + $0xe4] sm:$0xf]
      %v1150 = vld [vmem:[%s2 + $0xe8] sm:$0xf]
      %v1151 = vld [vmem:[%s2 + $0xec] sm:$0xf]
      %v1152 = vld [vmem:[%s2 + $0xf0] sm:$0xf]
      %v1153 = vld [vmem:[%s2 + $0xf4] sm:$0xf]
      %v1154 = vld [vmem:[%s2 + $0xf8] sm:$0xf]
      %v1155 = vld [vmem:[%s2 + $0xfc] sm:$0xf]
      %v1156 = vld [vmem:[%s2 + $0x100] sm:$0xf]
      %v1157 = vld [vmem:[%s2 + $0x104] sm:$0xf]
      %v1158 = vld [vmem:[%s2 + $0x108] sm:$0xf]
      %v1159 = vld [vmem:[%s2 + $0x10c] sm:$0xf]
      %v1160 = vld [vmem:[%s2 + $0x110] sm:$0xf]
      %v1161 = vld [vmem:[%s2 + $0x114] sm:$0xf]
      %v1162 = vld [vmem:[%s2 + $0x118] sm:$0xf]
      %v1163 = vld [vmem:[%s2 + $0x11c] sm:$0xf]
      %v1164 = vld [vmem:[%s2 + $0x120] sm:$0xf]
      %v1165 = vld [vmem:[%s2 + $0x124] sm:$0xf]
      %v1166 = vld [vmem:[%s2 + $0x128] sm:$0xf]
      %v1167 = vld [vmem:[%s2 + $0x12c] sm:$0xf]
      %v1168 = vld [vmem:[%s2 + $0x130] sm:$0xf]
      %v1169 = vld [vmem:[%s2 + $0x134] sm:$0xf]
      %v1170 = vld [vmem:[%s2 + $0x138] sm:$0xf]
      %v1171 = vld [vmem:[%s2 + $0x13c] sm:$0xf]
      %v1172 = vld [vmem:[%s2 + $0x140] sm:$0xf]
      %v1173 = vld [vmem:[%s2 + $0x144] sm:$0xf]
      %v1174 = vld [vmem:[%s2 + $0x148] sm:$0xf]
      %v1175 = vld [vmem:[%s2 + $0x14c] sm:$0xf]
      %v1176 = vld [vmem:[%s2 + $0x150] sm:$0xf]
      %v1177 = vld [vmem:[%s2 + $0x154] sm:$0xf]
      %v1178 = vld [vmem:[%s2 + $0x158] sm:$0xf]
      %v1179 = vld [vmem:[%s2 + $0x15c] sm:$0xf]
      %v1180 = vld [vmem:[%s2 + $0x160] sm:$0xf]
      %v1181 = vld [vmem:[%s2 + $0x164] sm:$0xf]
      %v1182 = vld [vmem:[%s2 + $0x168] sm:$0xf]
      %v1183 = vld [vmem:[%s2 + $0x16c] sm:$0xf]
      %v1184 = vld [vmem:[%s2 + $0x170] sm:$0xf]
      %v1185 = vld [vmem:[%s2 + $0x174] sm:$0xf]
      %v1186 = vld [vmem:[%s2 + $0x178] sm:$0xf]
      %v1187 = vld [vmem:[%s2 + $0x17c] sm:$0xf]
      %v1188 = vld [vmem:[%s2 + $0x180] sm:$0xf]
      %v1189 = vld [vmem:[%s2 + $0x184] sm:$0xf]
      %v1190 = vld [vmem:[%s2 + $0x188] sm:$0xf]
      %v1191 = vld [vmem:[%s2 + $0x18c] sm:$0xf]
      %v1192 = vld [vmem:[%s2 + $0x190] sm:$0xf]
      %v1193 = vld [vmem:[%s2 + $0x194] sm:$0xf]
      %v1194 = vld [vmem:[%s2 + $0x198] sm:$0xf]
      %v1195 = vld [vmem:[%s2 + $0x19c] sm:$0xf]
      %v1196 = vld [vmem:[%s2 + $0x1a0] sm:$0xf]
      %v1197 = vld [vmem:[%s2 + $0x1a4] sm:$0xf]
      %v1198 = vld [vmem:[%s2 + $0x1a8] sm:$0xf]
      %v1199 = vld [vmem:[%s2 + $0x1ac] sm:$0xf]
      %v1200 = vld [vmem:[%s2 + $0x1b0] sm:$0xf]
      %v1201 = vld [vmem:[%s2 + $0x1b4] sm:$0xf]
      %v1202 = vld [vmem:[%s2 + $0x1b8] sm:$0xf]
      %v1203 = vld [vmem:[%s2 + $0x1bc] sm:$0xf]
      %v1204 = vld [vmem:[%s2 + $0x1c0] sm:$0xf]
      %v1205 = vld [vmem:[%s2 + $0x1c4] sm:$0xf]
      %v1206 = vld [vmem:[%s2 + $0x1c8] sm:$0xf]
      %v1207 = vld [vmem:[%s2 + $0x1cc] sm:$0xf]
      %v1208 = vld [vmem:[%s2 + $0x1d0] sm:$0xf]
      %v1209 = vld [vmem:[%s2 + $0x1d4] sm:$0xf]
      %v1210 = vld [vmem:[%s2 + $0x1d8] sm:$0xf]
      %v1211 = vld [vmem:[%s2 + $0x1dc] sm:$0xf]
      %v1212 = vld [vmem:[%s2 + $0x1e0] sm:$0xf]
      %v1213 = vld [vmem:[%s2 + $0x1e4] sm:$0xf]
      %v1214 = vld [vmem:[%s2 + $0x1e8] sm:$0xf]
      %v1215 = vld [vmem:[%s2 + $0x1ec] sm:$0xf]
      %v1216 = vld [vmem:[%s2 + $0x1f0] sm:$0xf]
      %v1217 = vld [vmem:[%s2 + $0x1f4] sm:$0xf]
      %v1218 = vld [vmem:[%s2 + $0x1f8] sm:$0xf]
      %v1219 = vld [vmem:[%s2 + $0x1fc] sm:$0xf]
      %v1220 = vld [vmem:[%s2 + $0x200] sm:$0xf]
      %v1221 = vld [vmem:[%s2 + $0x204] sm:$0xf]
      %v1222 = vld [vmem:[%s2 + $0x208] sm:$0xf]
      %v1223 = vld [vmem:[%s2 + $0x20c] sm:$0xf]
      %v1224 = vld [vmem:[%s2 + $0x210] sm:$0xf]
      %v1225 = vld [vmem:[%s2 + $0x214] sm:$0xf]
      %v1226 = vld [vmem:[%s2 + $0x218] sm:$0xf]
      %v1227 = vld [vmem:[%s2 + $0x21c] sm:$0xf]
      %v1228 = vld [vmem:[%s2 + $0x220] sm:$0xf]
      %v1229 = vld [vmem:[%s2 + $0x224] sm:$0xf]
      %v1230 = vld [vmem:[%s2 + $0x228] sm:$0xf]
      %v1231 = vld [vmem:[%s2 + $0x22c] sm:$0xf]
      %v1232 = vld [vmem:[%s2 + $0x230] sm:$0xf]
      %v1233 = vld [vmem:[%s2 + $0x234] sm:$0xf]
      %v1234 = vld [vmem:[%s2 + $0x238] sm:$0xf]
      %v1235 = vld [vmem:[%s2 + $0x23c] sm:$0xf]
      %v1236 = vld [vmem:[%s3] sm:$0x1]
      %v1238 = vperm.slane %v1236, 0
      %v1384 = vunpack.c.l.b16 %v1092
      %v1385 = vunpack.c.l.b16 %v1093
      %v1386 = vunpack.c.l.b16 %v1094
      %v1387 = vunpack.c.l.b16 %v1095
      %v1388 = vunpack.c.l.b16 %v1096
      %v1389 = vunpack.c.l.b16 %v1097
      %v1390 = vunpack.c.l.b16 %v1098
      %v1391 = vunpack.c.l.b16 %v1099
      %v1392 = vunpack.c.l.b16 %v1100
      %v1393 = vunpack.c.l.b16 %v1101
      %v1394 = vunpack.c.l.b16 %v1102
      %v1395 = vunpack.c.l.b16 %v1103
      %v1396 = vunpack.c.l.b16 %v1104
      %v1397 = vunpack.c.l.b16 %v1105
      %v1398 = vunpack.c.l.b16 %v1106
      %v1399 = vunpack.c.l.b16 %v1107
      %v1400 = vunpack.c.l.b16 %v1108
      %v1401 = vunpack.c.l.b16 %v1109
      %v1402 = vunpack.c.l.b16 %v1110
      %v1403 = vunpack.c.l.b16 %v1111
      %v1404 = vunpack.c.l.b16 %v1112
      %v1405 = vunpack.c.l.b16 %v1113
      %v1406 = vunpack.c.l.b16 %v1114
      %v1407 = vunpack.c.l.b16 %v1115
      %v1408 = vunpack.c.l.b16 %v1116
      %v1409 = vunpack.c.l.b16 %v1117
      %v1410 = vunpack.c.l.b16 %v1118
      %v1411 = vunpack.c.l.b16 %v1119
      %v1412 = vunpack.c.l.b16 %v1120
      %v1413 = vunpack.c.l.b16 %v1121
      %v1414 = vunpack.c.l.b16 %v1122
      %v1415 = vunpack.c.l.b16 %v1123
      %v1416 = vunpack.c.l.b16 %v1124
      %v1417 = vunpack.c.l.b16 %v1125
      %v1418 = vunpack.c.l.b16 %v1126
      %v1419 = vunpack.c.l.b16 %v1127
      %v1420 = vunpack.c.l.b16 %v1128
      %v1421 = vunpack.c.l.b16 %v1129
      %v1422 = vunpack.c.l.b16 %v1130
      %v1423 = vunpack.c.l.b16 %v1131
      %v1424 = vunpack.c.l.b16 %v1132
      %v1425 = vunpack.c.l.b16 %v1133
      %v1426 = vunpack.c.l.b16 %v1134
      %v1427 = vunpack.c.l.b16 %v1135
      %v1428 = vunpack.c.l.b16 %v1136
      %v1429 = vunpack.c.l.b16 %v1137
      %v1430 = vunpack.c.l.b16 %v1138
      %v1431 = vunpack.c.l.b16 %v1139
      %v1432 = vunpack.c.l.b16 %v1140
      %v1433 = vunpack.c.l.b16 %v1141
      %v1434 = vunpack.c.l.b16 %v1142
      %v1435 = vunpack.c.l.b16 %v1143
      %v1436 = vunpack.c.l.b16 %v1144
      %v1437 = vunpack.c.l.b16 %v1145
      %v1438 = vunpack.c.l.b16 %v1146
      %v1439 = vunpack.c.l.b16 %v1147
      %v1440 = vunpack.c.l.b16 %v1148
      %v1441 = vunpack.c.l.b16 %v1149
      %v1442 = vunpack.c.l.b16 %v1150
      %v1443 = vunpack.c.l.b16 %v1151
      %v1444 = vunpack.c.l.b16 %v1152
      %v1445 = vunpack.c.l.b16 %v1153
      %v1446 = vunpack.c.l.b16 %v1154
      %v1447 = vunpack.c.l.b16 %v1155
      %v1448 = vunpack.c.l.b16 %v1156
      %v1449 = vunpack.c.l.b16 %v1157
      %v1450 = vunpack.c.l.b16 %v1158
      %v1451 = vunpack.c.l.b16 %v1159
      %v1452 = vunpack.c.l.b16 %v1160
      %v1453 = vunpack.c.l.b16 %v1161
      %v1454 = vunpack.c.l.b16 %v1162
      %v1455 = vunpack.c.l.b16 %v1163
      %v1456 = vunpack.c.l.b16 %v1164
      %v1457 = vunpack.c.l.b16 %v1165
      %v1458 = vunpack.c.l.b16 %v1166
      %v1459 = vunpack.c.l.b16 %v1167
      %v1460 = vunpack.c.l.b16 %v1168
      %v1461 = vunpack.c.l.b16 %v1169
      %v1462 = vunpack.c.l.b16 %v1170
      %v1463 = vunpack.c.l.b16 %v1171
      %v1464 = vunpack.c.l.b16 %v1172
      %v1465 = vunpack.c.l.b16 %v1173
      %v1466 = vunpack.c.l.b16 %v1174
      %v1467 = vunpack.c.l.b16 %v1175
      %v1468 = vunpack.c.l.b16 %v1176
      %v1469 = vunpack.c.l.b16 %v1177
      %v1470 = vunpack.c.l.b16 %v1178
      %v1471 = vunpack.c.l.b16 %v1179
      %v1472 = vunpack.c.l.b16 %v1180
      %v1473 = vunpack.c.l.b16 %v1181
      %v1474 = vunpack.c.l.b16 %v1182
      %v1475 = vunpack.c.l.b16 %v1183
      %v1476 = vunpack.c.l.b16 %v1184
      %v1477 = vunpack.c.l.b16 %v1185
      %v1478 = vunpack.c.l.b16 %v1186
      %v1479 = vunpack.c.l.b16 %v1187
      %v1480 = vunpack.c.l.b16 %v1188
      %v1481 = vunpack.c.l.b16 %v1189
      %v1482 = vunpack.c.l.b16 %v1190
      %v1483 = vunpack.c.l.b16 %v1191
      %v1484 = vunpack.c.l.b16 %v1192
      %v1485 = vunpack.c.l.b16 %v1193
      %v1486 = vunpack.c.l.b16 %v1194
      %v1487 = vunpack.c.l.b16 %v1195
      %v1488 = vunpack.c.l.b16 %v1196
      %v1489 = vunpack.c.l.b16 %v1197
      %v1490 = vunpack.c.l.b16 %v1198
      %v1491 = vunpack.c.l.b16 %v1199
      %v1492 = vunpack.c.l.b16 %v1200
      %v1493 = vunpack.c.l.b16 %v1201
      %v1494 = vunpack.c.l.b16 %v1202
      %v1495 = vunpack.c.l.b16 %v1203
      %v1496 = vunpack.c.l.b16 %v1204
      %v1497 = vunpack.c.l.b16 %v1205
      %v1498 = vunpack.c.l.b16 %v1206
      %v1499 = vunpack.c.l.b16 %v1207
      %v1500 = vunpack.c.l.b16 %v1208
      %v1501 = vunpack.c.l.b16 %v1209
      %v1502 = vunpack.c.l.b16 %v1210
      %v1503 = vunpack.c.l.b16 %v1211
      %v1504 = vunpack.c.l.b16 %v1212
      %v1505 = vunpack.c.l.b16 %v1213
      %v1506 = vunpack.c.l.b16 %v1214
      %v1507 = vunpack.c.l.b16 %v1215
      %v1508 = vunpack.c.l.b16 %v1216
      %v1509 = vunpack.c.l.b16 %v1217
      %v1510 = vunpack.c.l.b16 %v1218
      %v1511 = vunpack.c.l.b16 %v1219
      %v1512 = vunpack.c.l.b16 %v1220
      %v1513 = vunpack.c.l.b16 %v1221
      %v1514 = vunpack.c.l.b16 %v1222
      %v1515 = vunpack.c.l.b16 %v1223
      %v1516 = vunpack.c.l.b16 %v1224
      %v1517 = vunpack.c.l.b16 %v1225
      %v1518 = vunpack.c.l.b16 %v1226
      %v1519 = vunpack.c.l.b16 %v1227
      %v1520 = vunpack.c.l.b16 %v1228
      %v1521 = vunpack.c.l.b16 %v1229
      %v1522 = vunpack.c.l.b16 %v1230
      %v1523 = vunpack.c.l.b16 %v1231
      %v1524 = vunpack.c.l.b16 %v1232
      %v1525 = vunpack.c.l.b16 %v1233
      %v1526 = vunpack.c.l.b16 %v1234
      %v1527 = vunpack.c.l.b16 %v1235
      %v1528 = vpack.c.b16 %v1385, %v1384
      %v1529 = vpack.c.b16 %v1387, %v1386
      %v1530 = vpack.c.b16 %v1389, %v1388
      %v1531 = vpack.c.b16 %v1391, %v1390
      %v1532 = vpack.c.b16 %v1393, %v1392
      %v1533 = vpack.c.b16 %v1395, %v1394
      %v1534 = vpack.c.b16 %v1397, %v1396
      %v1535 = vpack.c.b16 %v1399, %v1398
      %v1536 = vpack.c.b16 %v1401, %v1400
      %v1537 = vpack.c.b16 %v1403, %v1402
      %v1538 = vpack.c.b16 %v1405, %v1404
      %v1539 = vpack.c.b16 %v1407, %v1406
      %v1540 = vpack.c.b16 %v1409, %v1408
      %v1541 = vpack.c.b16 %v1411, %v1410
      %v1542 = vpack.c.b16 %v1413, %v1412
      %v1543 = vpack.c.b16 %v1415, %v1414
      %v1544 = vpack.c.b16 %v1417, %v1416
      %v1545 = vpack.c.b16 %v1419, %v1418
      %v1546 = vpack.c.b16 %v1421, %v1420
      %v1547 = vpack.c.b16 %v1423, %v1422
      %v1548 = vpack.c.b16 %v1425, %v1424
      %v1549 = vpack.c.b16 %v1427, %v1426
      %v1550 = vpack.c.b16 %v1429, %v1428
      %v1551 = vpack.c.b16 %v1431, %v1430
      %v1552 = vpack.c.b16 %v1433, %v1432
      %v1553 = vpack.c.b16 %v1435, %v1434
      %v1554 = vpack.c.b16 %v1437, %v1436
      %v1555 = vpack.c.b16 %v1439, %v1438
      %v1556 = vpack.c.b16 %v1441, %v1440
      %v1557 = vpack.c.b16 %v1443, %v1442
      %v1558 = vpack.c.b16 %v1445, %v1444
      %v1559 = vpack.c.b16 %v1447, %v1446
      %v1560 = vpack.c.b16 %v1449, %v1448
      %v1561 = vpack.c.b16 %v1451, %v1450
      %v1562 = vpack.c.b16 %v1453, %v1452
      %v1563 = vpack.c.b16 %v1455, %v1454
      %v1564 = vpack.c.b16 %v1457, %v1456
      %v1565 = vpack.c.b16 %v1459, %v1458
      %v1566 = vpack.c.b16 %v1461, %v1460
      %v1567 = vpack.c.b16 %v1463, %v1462
      %v1568 = vpack.c.b16 %v1465, %v1464
      %v1569 = vpack.c.b16 %v1467, %v1466
      %v1570 = vpack.c.b16 %v1469, %v1468
      %v1571 = vpack.c.b16 %v1471, %v1470
      %v1572 = vpack.c.b16 %v1473, %v1472
      %v1573 = vpack.c.b16 %v1475, %v1474
      %v1574 = vpack.c.b16 %v1477, %v1476
      %v1575 = vpack.c.b16 %v1479, %v1478
      %v1576 = vpack.c.b16 %v1481, %v1480
      %v1577 = vpack.c.b16 %v1483, %v1482
      %v1578 = vpack.c.b16 %v1485, %v1484
      %v1579 = vpack.c.b16 %v1487, %v1486
      %v1580 = vpack.c.b16 %v1489, %v1488
      %v1581 = vpack.c.b16 %v1491, %v1490
      %v1582 = vpack.c.b16 %v1493, %v1492
      %v1583 = vpack.c.b16 %v1495, %v1494
      %v1584 = vpack.c.b16 %v1497, %v1496
      %v1585 = vpack.c.b16 %v1499, %v1498
      %v1586 = vpack.c.b16 %v1501, %v1500
      %v1587 = vpack.c.b16 %v1503, %v1502
      %v1588 = vpack.c.b16 %v1505, %v1504
      %v1589 = vpack.c.b16 %v1507, %v1506
      %v1590 = vpack.c.b16 %v1509, %v1508
      %v1591 = vpack.c.b16 %v1511, %v1510
      %v1592 = vpack.c.b16 %v1513, %v1512
      %v1593 = vpack.c.b16 %v1515, %v1514
      %v1594 = vpack.c.b16 %v1517, %v1516
      %v1595 = vpack.c.b16 %v1519, %v1518
      %v1596 = vpack.c.b16 %v1521, %v1520
      %v1597 = vpack.c.b16 %v1523, %v1522
      %v1598 = vpack.c.b16 %v1525, %v1524
      %v1599 = vpack.c.b16 %v1527, %v1526
      %1672 = vmatpush.bf16.msra.mxu0 %v1535
      %1673 = vmatpush.bf16.msra.mxu0 %v1534
      %1674 = vmatpush.bf16.msra.mxu0 %v1533
      %1675 = vmatpush.bf16.msra.mxu0 %v1532
      %1676 = vmatpush.bf16.msra.mxu0 %v1531
      %1677 = vmatpush.bf16.msra.mxu0 %v1530
      %1678 = vmatpush.bf16.msra.mxu0 %v1529
      %1679 = vmatpush.bf16.msra.mxu0 %v1528
      %1680 = vmatmul.bf16.gmra.mxu0 %v892
      %v1681 = vpop.f32.mrf.mxu0
      %v1682 = vadd.f32 %v1238, %v1681
      %v1683 = vpop.f32.mrf.mxu0
      %v1684 = vadd.f32 %v1238, %v1683
      %1685 = vmatmul.bf16.gmra.mxu0 %v893
      %v1686 = vpop.f32.mrf.mxu0
      %v1687 = vadd.f32 %v1238, %v1686
      %v1688 = vpop.f32.mrf.mxu0
      %v1689 = vadd.f32 %v1238, %v1688
      %1690 = vmatmul.bf16.gmra.mxu0 %v894
      %v1691 = vpop.f32.mrf.mxu0
      %v1692 = vadd.f32 %v1238, %v1691
      %v1693 = vpop.f32.mrf.mxu0
      %v1694 = vadd.f32 %v1238, %v1693
      %1695 = vmatmul.bf16.gmra.mxu0 %v895
      %v1696 = vpop.f32.mrf.mxu0
      %v1697 = vadd.f32 %v1238, %v1696
      %v1698 = vpop.f32.mrf.mxu0
      %v1699 = vadd.f32 %v1238, %v1698
      %1700 = vdwg.mxu0
      %1701 = vmatpush.bf16.msra.mxu0 %v1543
      %1702 = vmatpush.bf16.msra.mxu0 %v1542
      %1703 = vmatpush.bf16.msra.mxu0 %v1541
      %1704 = vmatpush.bf16.msra.mxu0 %v1540
      %1705 = vmatpush.bf16.msra.mxu0 %v1539
      %1706 = vmatpush.bf16.msra.mxu0 %v1538
      %1707 = vmatpush.bf16.msra.mxu0 %v1537
      %1708 = vmatpush.bf16.msra.mxu0 %v1536
      %1709 = vmatmul.bf16.gmra.mxu0 %v916
      %v1710 = vpop.f32.mrf.mxu0
      %v1711 = vadd.f32 %v1682, %v1710
      %v1712 = vpop.f32.mrf.mxu0
      %v1713 = vadd.f32 %v1684, %v1712
      %1714 = vmatmul.bf16.gmra.mxu0 %v917
      %v1715 = vpop.f32.mrf.mxu0
      %v1716 = vadd.f32 %v1687, %v1715
      %v1717 = vpop.f32.mrf.mxu0
      %v1718 = vadd.f32 %v1689, %v1717
      %1719 = vmatmul.bf16.gmra.mxu0 %v918
      %v1720 = vpop.f32.mrf.mxu0
      %v1721 = vadd.f32 %v1692, %v1720
      %v1722 = vpop.f32.mrf.mxu0
      %v1723 = vadd.f32 %v1694, %v1722
      %1724 = vmatmul.bf16.gmra.mxu0 %v919
      %v1725 = vpop.f32.mrf.mxu0
      %v1726 = vadd.f32 %v1697, %v1725
      %v1727 = vpop.f32.mrf.mxu0
      %v1728 = vadd.f32 %v1699, %v1727
      %1729 = vdwg.mxu0
      %1730 = vmatpush.bf16.msra.mxu0 %v1551
      %1731 = vmatpush.bf16.msra.mxu0 %v1550
      %1732 = vmatpush.bf16.msra.mxu0 %v1549
      %1733 = vmatpush.bf16.msra.mxu0 %v1548
      %1734 = vmatpush.bf16.msra.mxu0 %v1547
      %1735 = vmatpush.bf16.msra.mxu0 %v1546
      %1736 = vmatpush.bf16.msra.mxu0 %v1545
      %1737 = vmatpush.bf16.msra.mxu0 %v1544
      %1738 = vmatmul.bf16.gmra.mxu0 %v940
      %v1739 = vpop.f32.mrf.mxu0
      %v1740 = vadd.f32 %v1711, %v1739
      %v1741 = vpop.f32.mrf.mxu0
      %v1742 = vadd.f32 %v1713, %v1741
      %1743 = vmatmul.bf16.gmra.mxu0 %v941
      %v1744 = vpop.f32.mrf.mxu0
      %v1745 = vadd.f32 %v1716, %v1744
      %v1746 = vpop.f32.mrf.mxu0
      %v1747 = vadd.f32 %v1718, %v1746
      %1748 = vmatmul.bf16.gmra.mxu0 %v942
      %v1749 = vpop.f32.mrf.mxu0
      %v1750 = vadd.f32 %v1721, %v1749
      %v1751 = vpop.f32.mrf.mxu0
      %v1752 = vadd.f32 %v1723, %v1751
      %1753 = vmatmul.bf16.gmra.mxu0 %v943
      %v1754 = vpop.f32.mrf.mxu0
      %v1755 = vadd.f32 %v1726, %v1754
      %v1756 = vpop.f32.mrf.mxu0
      %v1757 = vadd.f32 %v1728, %v1756
      %1758 = vdwg.mxu0
      %1759 = vmatpush.bf16.msra.mxu0 %v1559
      %1760 = vmatpush.bf16.msra.mxu0 %v1558
      %1761 = vmatpush.bf16.msra.mxu0 %v1557
      %1762 = vmatpush.bf16.msra.mxu0 %v1556
      %1763 = vmatpush.bf16.msra.mxu0 %v1555
      %1764 = vmatpush.bf16.msra.mxu0 %v1554
      %1765 = vmatpush.bf16.msra.mxu0 %v1553
      %1766 = vmatpush.bf16.msra.mxu0 %v1552
      %1767 = vmatmul.bf16.gmra.mxu0 %v964
      %v1768 = vpop.f32.mrf.mxu0
      %v1769 = vadd.f32 %v1740, %v1768
      %v1770 = vpop.f32.mrf.mxu0
      %v1771 = vadd.f32 %v1742, %v1770
      %1772 = vmatmul.bf16.gmra.mxu0 %v965
      %v1773 = vpop.f32.mrf.mxu0
      %v1774 = vadd.f32 %v1745, %v1773
      %v1775 = vpop.f32.mrf.mxu0
      %v1776 = vadd.f32 %v1747, %v1775
      %1777 = vmatmul.bf16.gmra.mxu0 %v966
      %v1778 = vpop.f32.mrf.mxu0
      %v1779 = vadd.f32 %v1750, %v1778
      %v1780 = vpop.f32.mrf.mxu0
      %v1781 = vadd.f32 %v1752, %v1780
      %1782 = vmatmul.bf16.gmra.mxu0 %v967
      %v1783 = vpop.f32.mrf.mxu0
      %v1784 = vadd.f32 %v1755, %v1783
      %v1785 = vpop.f32.mrf.mxu0
      %v1786 = vadd.f32 %v1757, %v1785
      %1787 = vdwg.mxu0
      %1788 = vmatpush.bf16.msra.mxu0 %v1567
      %1789 = vmatpush.bf16.msra.mxu0 %v1566
      %1790 = vmatpush.bf16.msra.mxu0 %v1565
      %1791 = vmatpush.bf16.msra.mxu0 %v1564
      %1792 = vmatpush.bf16.msra.mxu0 %v1563
      %1793 = vmatpush.bf16.msra.mxu0 %v1562
      %1794 = vmatpush.bf16.msra.mxu0 %v1561
      %1795 = vmatpush.bf16.msra.mxu0 %v1560
      %1796 = vmatmul.bf16.gmra.mxu0 %v988
      %v1797 = vpop.f32.mrf.mxu0
      %v1798 = vadd.f32 %v1769, %v1797
      %v1799 = vpop.f32.mrf.mxu0
      %v1800 = vadd.f32 %v1771, %v1799
      %1801 = vmatmul.bf16.gmra.mxu0 %v989
      %v1802 = vpop.f32.mrf.mxu0
      %v1803 = vadd.f32 %v1774, %v1802
      %v1804 = vpop.f32.mrf.mxu0
      %v1805 = vadd.f32 %v1776, %v1804
      %1806 = vmatmul.bf16.gmra.mxu0 %v990
      %v1807 = vpop.f32.mrf.mxu0
      %v1808 = vadd.f32 %v1779, %v1807
      %v1809 = vpop.f32.mrf.mxu0
      %v1810 = vadd.f32 %v1781, %v1809
      %1811 = vmatmul.bf16.gmra.mxu0 %v991
      %v1812 = vpop.f32.mrf.mxu0
      %v1813 = vadd.f32 %v1784, %v1812
      %v1814 = vpop.f32.mrf.mxu0
      %v1815 = vadd.f32 %v1786, %v1814
      %1816 = vdwg.mxu0
      %1817 = vmatpush.bf16.msra.mxu0 %v1575
      %1818 = vmatpush.bf16.msra.mxu0 %v1574
      %1819 = vmatpush.bf16.msra.mxu0 %v1573
      %1820 = vmatpush.bf16.msra.mxu0 %v1572
      %1821 = vmatpush.bf16.msra.mxu0 %v1571
      %1822 = vmatpush.bf16.msra.mxu0 %v1570
      %1823 = vmatpush.bf16.msra.mxu0 %v1569
      %1824 = vmatpush.bf16.msra.mxu0 %v1568
      %1825 = vmatmul.bf16.gmra.mxu0 %v1012
      %v1826 = vpop.f32.mrf.mxu0
      %v1827 = vadd.f32 %v1798, %v1826
      %v1828 = vpop.f32.mrf.mxu0
      %v1829 = vadd.f32 %v1800, %v1828
      %1830 = vmatmul.bf16.gmra.mxu0 %v1013
      %v1831 = vpop.f32.mrf.mxu0
      %v1832 = vadd.f32 %v1803, %v1831
      %v1833 = vpop.f32.mrf.mxu0
      %v1834 = vadd.f32 %v1805, %v1833
      %1835 = vmatmul.bf16.gmra.mxu0 %v1014
      %v1836 = vpop.f32.mrf.mxu0
      %v1837 = vadd.f32 %v1808, %v1836
      %v1838 = vpop.f32.mrf.mxu0
      %v1839 = vadd.f32 %v1810, %v1838
      %1840 = vmatmul.bf16.gmra.mxu0 %v1015
      %v1841 = vpop.f32.mrf.mxu0
      %v1842 = vadd.f32 %v1813, %v1841
      %v1843 = vpop.f32.mrf.mxu0
      %v1844 = vadd.f32 %v1815, %v1843
      %1845 = vdwg.mxu0
      %1846 = vmatpush.bf16.msra.mxu0 %v1583
      %1847 = vmatpush.bf16.msra.mxu0 %v1582
      %1848 = vmatpush.bf16.msra.mxu0 %v1581
      %1849 = vmatpush.bf16.msra.mxu0 %v1580
      %1850 = vmatpush.bf16.msra.mxu0 %v1579
      %1851 = vmatpush.bf16.msra.mxu0 %v1578
      %1852 = vmatpush.bf16.msra.mxu0 %v1577
      %1853 = vmatpush.bf16.msra.mxu0 %v1576
      %1854 = vmatmul.bf16.gmra.mxu0 %v1036
      %v1855 = vpop.f32.mrf.mxu0
      %v1856 = vadd.f32 %v1827, %v1855
      %v1857 = vpop.f32.mrf.mxu0
      %v1858 = vadd.f32 %v1829, %v1857
      %1859 = vmatmul.bf16.gmra.mxu0 %v1037
      %v1860 = vpop.f32.mrf.mxu0
      %v1861 = vadd.f32 %v1832, %v1860
      %v1862 = vpop.f32.mrf.mxu0
      %v1863 = vadd.f32 %v1834, %v1862
      %1864 = vmatmul.bf16.gmra.mxu0 %v1038
      %v1865 = vpop.f32.mrf.mxu0
      %v1866 = vadd.f32 %v1837, %v1865
      %v1867 = vpop.f32.mrf.mxu0
      %v1868 = vadd.f32 %v1839, %v1867
      %1869 = vmatmul.bf16.gmra.mxu0 %v1039
      %v1870 = vpop.f32.mrf.mxu0
      %v1871 = vadd.f32 %v1842, %v1870
      %v1872 = vpop.f32.mrf.mxu0
      %v1873 = vadd.f32 %v1844, %v1872
      %1874 = vdwg.mxu0
      %1875 = vmatpush.bf16.msra.mxu0 %v1591
      %1876 = vmatpush.bf16.msra.mxu0 %v1590
      %1877 = vmatpush.bf16.msra.mxu0 %v1589
      %1878 = vmatpush.bf16.msra.mxu0 %v1588
      %1879 = vmatpush.bf16.msra.mxu0 %v1587
      %1880 = vmatpush.bf16.msra.mxu0 %v1586
      %1881 = vmatpush.bf16.msra.mxu0 %v1585
      %1882 = vmatpush.bf16.msra.mxu0 %v1584
      %1883 = vmatmul.bf16.gmra.mxu0 %v1060
      %v1884 = vpop.f32.mrf.mxu0
      %v1885 = vadd.f32 %v1856, %v1884
      %v1886 = vpop.f32.mrf.mxu0
      %v1887 = vadd.f32 %v1858, %v1886
      %1888 = vmatmul.bf16.gmra.mxu0 %v1061
      %v1889 = vpop.f32.mrf.mxu0
      %v1890 = vadd.f32 %v1861, %v1889
      %v1891 = vpop.f32.mrf.mxu0
      %v1892 = vadd.f32 %v1863, %v1891
      %1893 = vmatmul.bf16.gmra.mxu0 %v1062
      %v1894 = vpop.f32.mrf.mxu0
      %v1895 = vadd.f32 %v1866, %v1894
      %v1896 = vpop.f32.mrf.mxu0
      %v1897 = vadd.f32 %v1868, %v1896
      %1898 = vmatmul.bf16.gmra.mxu0 %v1063
      %v1899 = vpop.f32.mrf.mxu0
      %v1900 = vadd.f32 %v1871, %v1899
      %v1901 = vpop.f32.mrf.mxu0
      %v1902 = vadd.f32 %v1873, %v1901
      %1903 = vdwg.mxu0
      %1904 = vmatpush.bf16.msra.mxu0 %v1599
      %1905 = vmatpush.bf16.msra.mxu0 %v1598
      %1906 = vmatpush.bf16.msra.mxu0 %v1597
      %1907 = vmatpush.bf16.msra.mxu0 %v1596
      %1908 = vmatpush.bf16.msra.mxu0 %v1595
      %1909 = vmatpush.bf16.msra.mxu0 %v1594
      %1910 = vmatpush.bf16.msra.mxu0 %v1593
      %1911 = vmatpush.bf16.msra.mxu0 %v1592
      %1912 = vmatmul.bf16.gmra.mxu0 %v1084
      %v1913 = vpop.f32.mrf.mxu0
      %v1914 = vadd.f32 %v1885, %v1913
      %v1915 = vpop.f32.mrf.mxu0
      %v1916 = vadd.f32 %v1887, %v1915
      %1917 = vmatmul.bf16.gmra.mxu0 %v1085
      %v1918 = vpop.f32.mrf.mxu0
      %v1919 = vadd.f32 %v1890, %v1918
      %v1920 = vpop.f32.mrf.mxu0
      %v1921 = vadd.f32 %v1892, %v1920
      %1922 = vmatmul.bf16.gmra.mxu0 %v1086
      %v1923 = vpop.f32.mrf.mxu0
      %v1924 = vadd.f32 %v1895, %v1923
      %v1925 = vpop.f32.mrf.mxu0
      %v1926 = vadd.f32 %v1897, %v1925
      %1927 = vmatmul.bf16.gmra.mxu0 %v1087
      %v1928 = vpop.f32.mrf.mxu0
      %v1929 = vadd.f32 %v1900, %v1928
      %v1930 = vpop.f32.mrf.mxu0
      %v1931 = vadd.f32 %v1902, %v1930
      %1932 = vdwg.mxu0
      %vm1933 = vcmp.ge.f32.partialorder %v1914, 0.0
      %vm1934 = vcmp.ge.f32.partialorder %v1916, 0.0
      %vm1935 = vcmp.ge.f32.partialorder %v1919, 0.0
      %vm1936 = vcmp.ge.f32.partialorder %v1921, 0.0
      %vm1937 = vcmp.ge.f32.partialorder %v1924, 0.0
      %vm1938 = vcmp.ge.f32.partialorder %v1926, 0.0
      %vm1939 = vcmp.ge.f32.partialorder %v1929, 0.0
      %vm1940 = vcmp.ge.f32.partialorder %v1931, 0.0
      %v1941 = vmul.f32 %v1914, 0.1
      %v1942 = vmul.f32 %v1916, 0.1
      %v1943 = vmul.f32 %v1919, 0.1
      %v1944 = vmul.f32 %v1921, 0.1
      %v1945 = vmul.f32 %v1924, 0.1
      %v1946 = vmul.f32 %v1926, 0.1
      %v1947 = vmul.f32 %v1929, 0.1
      %v1948 = vmul.f32 %v1931, 0.1
      %v1949 = vsel %vm1933, %v1914, %v1941
      %v1950 = vsel %vm1934, %v1916, %v1942
      %v1951 = vsel %vm1935, %v1919, %v1943
      %v1952 = vsel %vm1936, %v1921, %v1944
      %v1953 = vsel %vm1937, %v1924, %v1945
      %v1954 = vsel %vm1938, %v1926, %v1946
      %v1955 = vsel %vm1939, %v1929, %v1947
      %v1956 = vsel %vm1940, %v1931, %v1948
      %v1957 = vpack.c.bf16 %v1950, %v1949
      %v1958 = vpack.c.bf16 %v1952, %v1951
      %v1959 = vpack.c.bf16 %v1954, %v1953
      %v1960 = vpack.c.bf16 %v1956, %v1955
      %v1961 = vld [vmem:[%s4] sm:$0xf]
      %v1962 = vld [vmem:[%s4 + $0x4] sm:$0xf]
      %v1963 = vld [vmem:[%s4 + $0x8] sm:$0xf]
      %v1964 = vld [vmem:[%s4 + $0xc] sm:$0xf]
      %v1965 = vld [vmem:[%s4 + $0x10] sm:$0xf]
      %v1966 = vld [vmem:[%s4 + $0x14] sm:$0xf]
      %v1967 = vld [vmem:[%s4 + $0x18] sm:$0xf]
      %v1968 = vld [vmem:[%s4 + $0x1c] sm:$0xf]
      %v1969 = vld [vmem:[%s4 + $0x20] sm:$0xf]
      %v1970 = vld [vmem:[%s4 + $0x24] sm:$0xf]
      %v1971 = vld [vmem:[%s4 + $0x28] sm:$0xf]
      %v1972 = vld [vmem:[%s4 + $0x2c] sm:$0xf]
      %v1973 = vld [vmem:[%s4 + $0x30] sm:$0xf]
      %v1974 = vld [vmem:[%s4 + $0x34] sm:$0xf]
      %v1975 = vld [vmem:[%s4 + $0x38] sm:$0xf]
      %v1976 = vld [vmem:[%s4 + $0x3c] sm:$0xf]
      %v1977 = vld [vmem:[%s5] sm:$0x1]
      %v1979 = vperm.slane %v1977, 0
      %v1997 = vunpack.c.l.b16 %v1961
      %v1998 = vunpack.c.l.b16 %v1962
      %v1999 = vunpack.c.l.b16 %v1963
      %v2000 = vunpack.c.l.b16 %v1964
      %v2001 = vunpack.c.l.b16 %v1965
      %v2002 = vunpack.c.l.b16 %v1966
      %v2003 = vunpack.c.l.b16 %v1967
      %v2004 = vunpack.c.l.b16 %v1968
      %v2005 = vunpack.c.l.b16 %v1969
      %v2006 = vunpack.c.l.b16 %v1970
      %v2007 = vunpack.c.l.b16 %v1971
      %v2008 = vunpack.c.l.b16 %v1972
      %v2009 = vunpack.c.l.b16 %v1973
      %v2010 = vunpack.c.l.b16 %v1974
      %v2011 = vunpack.c.l.b16 %v1975
      %v2012 = vunpack.c.l.b16 %v1976
      %v2013 = vpack.c.b16 %v1998, %v1997
      %v2014 = vpack.c.b16 %v2000, %v1999
      %v2015 = vpack.c.b16 %v2002, %v2001
      %v2016 = vpack.c.b16 %v2004, %v2003
      %v2017 = vpack.c.b16 %v2006, %v2005
      %v2018 = vpack.c.b16 %v2008, %v2007
      %v2019 = vpack.c.b16 %v2010, %v2009
      %v2020 = vpack.c.b16 %v2012, %v2011
      %2029 = vmatpush.bf16.msra.mxu0 %v2020
      %2030 = vmatpush.bf16.msra.mxu0 %v2019
      %2031 = vmatpush.bf16.msra.mxu0 %v2018
      %2032 = vmatpush.bf16.msra.mxu0 %v2017
      %2033 = vmatpush.bf16.msra.mxu0 %v2016
      %2034 = vmatpush.bf16.msra.mxu0 %v2015
      %2035 = vmatpush.bf16.msra.mxu0 %v2014
      %2036 = vmatpush.bf16.msra.mxu0 %v2013
      %2037 = vmatmul.bf16.gmra.mxu0 %v1957
      %v2038 = vpop.f32.mrf.mxu0
      %v2039 = vadd.f32 %v1979, %v2038
      %v2040 = vpop.f32.mrf.mxu0
      %v2041 = vadd.f32 %v1979, %v2040
      %2042 = vmatmul.bf16.gmra.mxu0 %v1958
      %v2043 = vpop.f32.mrf.mxu0
      %v2044 = vadd.f32 %v1979, %v2043
      %v2045 = vpop.f32.mrf.mxu0
      %v2046 = vadd.f32 %v1979, %v2045
      %2047 = vmatmul.bf16.gmra.mxu0 %v1959
      %v2048 = vpop.f32.mrf.mxu0
      %v2049 = vadd.f32 %v1979, %v2048
      %v2050 = vpop.f32.mrf.mxu0
      %v2051 = vadd.f32 %v1979, %v2050
      %2052 = vmatmul.bf16.gmra.mxu0 %v1960
      %v2053 = vpop.f32.mrf.mxu0
      %v2054 = vadd.f32 %v1979, %v2053
      %v2055 = vpop.f32.mrf.mxu0
      %v2056 = vadd.f32 %v1979, %v2055
      %2057 = vdwg.mxu0
      %vm2058 = vcmp.ge.f32.partialorder %v2039, 0.0
      %vm2059 = vcmp.ge.f32.partialorder %v2041, 0.0
      %vm2060 = vcmp.ge.f32.partialorder %v2044, 0.0
      %vm2061 = vcmp.ge.f32.partialorder %v2046, 0.0
      %vm2062 = vcmp.ge.f32.partialorder %v2049, 0.0
      %vm2063 = vcmp.ge.f32.partialorder %v2051, 0.0
      %vm2064 = vcmp.ge.f32.partialorder %v2054, 0.0
      %vm2065 = vcmp.ge.f32.partialorder %v2056, 0.0
      %v2066 = vmul.f32 %v2039, 0.1
      %v2067 = vmul.f32 %v2041, 0.1
      %v2068 = vmul.f32 %v2044, 0.1
      %v2069 = vmul.f32 %v2046, 0.1
      %v2070 = vmul.f32 %v2049, 0.1
      %v2071 = vmul.f32 %v2051, 0.1
      %v2072 = vmul.f32 %v2054, 0.1
      %v2073 = vmul.f32 %v2056, 0.1
      %v2074 = vsel %vm2058, %v2039, %v2066
      %v2075 = vsel %vm2059, %v2041, %v2067
      %v2076 = vsel %vm2060, %v2044, %v2068
      %v2077 = vsel %vm2061, %v2046, %v2069
      %v2078 = vsel %vm2062, %v2049, %v2070
      %v2079 = vsel %vm2063, %v2051, %v2071
      %v2080 = vsel %vm2064, %v2054, %v2072
      %v2081 = vsel %vm2065, %v2056, %v2073
      %v2082 = vpack.c.bf16 %v2075, %v2074
      %v2083 = vpack.c.bf16 %v2077, %v2076
      %v2084 = vpack.c.bf16 %v2079, %v2078
      %v2085 = vpack.c.bf16 %v2081, %v2080
      %v2086 = vld [vmem:[%s6] sm:$0xf]
      %v2087 = vld [vmem:[%s6 + $0x4] sm:$0xf]
      %v2088 = vld [vmem:[%s6 + $0x8] sm:$0xf]
      %v2089 = vld [vmem:[%s6 + $0xc] sm:$0xf]
      %v2090 = vld [vmem:[%s6 + $0x10] sm:$0xf]
      %v2091 = vld [vmem:[%s6 + $0x14] sm:$0xf]
      %v2092 = vld [vmem:[%s6 + $0x18] sm:$0xf]
      %v2093 = vld [vmem:[%s6 + $0x1c] sm:$0xf]
      %v2094 = vld [vmem:[%s6 + $0x20] sm:$0xf]
      %v2095 = vld [vmem:[%s6 + $0x24] sm:$0xf]
      %v2096 = vld [vmem:[%s6 + $0x28] sm:$0xf]
      %v2097 = vld [vmem:[%s6 + $0x2c] sm:$0xf]
      %v2098 = vld [vmem:[%s6 + $0x30] sm:$0xf]
      %v2099 = vld [vmem:[%s6 + $0x34] sm:$0xf]
      %v2100 = vld [vmem:[%s6 + $0x38] sm:$0xf]
      %v2101 = vld [vmem:[%s6 + $0x3c] sm:$0xf]
      %v2102 = vld [vmem:[%s598] sm:$0xf]
      %v2103 = vld [vmem:[%s598 + $0x4] sm:$0xf]
      %v2104 = vld [vmem:[%s598 + $0x8] sm:$0xf]
      %v2105 = vld [vmem:[%s598 + $0xc] sm:$0xf]
      %v2106 = vld [vmem:[%s598 + $0x10] sm:$0xf]
      %v2107 = vld [vmem:[%s598 + $0x14] sm:$0xf]
      %v2108 = vld [vmem:[%s598 + $0x18] sm:$0xf]
      %v2109 = vld [vmem:[%s598 + $0x1c] sm:$0xf]
      %v2110 = vld [vmem:[%s7] sm:$0xf]
      %v2111 = vld [vmem:[%s7 + $0x4] sm:$0xf]
      %v2112 = vld [vmem:[%s7 + $0x8] sm:$0xf]
      %v2113 = vld [vmem:[%s7 + $0xc] sm:$0xf]
      %v2114 = vld [vmem:[%s7 + $0x10] sm:$0xf]
      %v2115 = vld [vmem:[%s7 + $0x14] sm:$0xf]
      %v2116 = vld [vmem:[%s7 + $0x18] sm:$0xf]
      %v2117 = vld [vmem:[%s7 + $0x1c] sm:$0xf]
      %v2118 = vld [vmem:[%s7 + $0x20] sm:$0xf]
      %v2119 = vld [vmem:[%s7 + $0x24] sm:$0xf]
      %v2120 = vld [vmem:[%s7 + $0x28] sm:$0xf]
      %v2121 = vld [vmem:[%s7 + $0x2c] sm:$0xf]
      %v2122 = vld [vmem:[%s7 + $0x30] sm:$0xf]
      %v2123 = vld [vmem:[%s7 + $0x34] sm:$0xf]
      %v2124 = vld [vmem:[%s7 + $0x38] sm:$0xf]
      %v2125 = vld [vmem:[%s7 + $0x3c] sm:$0xf]
      %v2134 = vunpack.c.l.b16 %v2102
      %v2135 = vunpack.c.l.b16 %v2103
      %v2136 = vunpack.c.l.b16 %v2104
      %v2137 = vunpack.c.l.b16 %v2105
      %v2138 = vunpack.c.l.b16 %v2106
      %v2139 = vunpack.c.l.b16 %v2107
      %v2140 = vunpack.c.l.b16 %v2108
      %v2141 = vunpack.c.l.b16 %v2109
      %v2142 = vpack.c.b16 %v2135, %v2134
      %v2143 = vpack.c.b16 %v2137, %v2136
      %v2144 = vpack.c.b16 %v2139, %v2138
      %v2145 = vpack.c.b16 %v2141, %v2140
      %v2166 = vunpack.c.l.b16 %v2110
      %v2167 = vunpack.c.l.b16 %v2111
      %v2168 = vunpack.c.l.b16 %v2112
      %v2169 = vunpack.c.l.b16 %v2113
      %v2170 = vunpack.c.l.b16 %v2114
      %v2171 = vunpack.c.l.b16 %v2115
      %v2172 = vunpack.c.l.b16 %v2116
      %v2173 = vunpack.c.l.b16 %v2117
      %v2174 = vunpack.c.l.b16 %v2118
      %v2175 = vunpack.c.l.b16 %v2119
      %v2176 = vunpack.c.l.b16 %v2120
      %v2177 = vunpack.c.l.b16 %v2121
      %v2178 = vunpack.c.l.b16 %v2122
      %v2179 = vunpack.c.l.b16 %v2123
      %v2180 = vunpack.c.l.b16 %v2124
      %v2181 = vunpack.c.l.b16 %v2125
      %v2182 = vpack.c.b16 %v2167, %v2166
      %v2183 = vpack.c.b16 %v2169, %v2168
      %v2184 = vpack.c.b16 %v2171, %v2170
      %v2185 = vpack.c.b16 %v2173, %v2172
      %v2186 = vpack.c.b16 %v2175, %v2174
      %v2187 = vpack.c.b16 %v2177, %v2176
      %v2188 = vpack.c.b16 %v2179, %v2178
      %v2189 = vpack.c.b16 %v2181, %v2180
      %2198 = vmatpush.bf16.msra.mxu0 %v2189
      %2199 = vmatpush.bf16.msra.mxu0 %v2188
      %2200 = vmatpush.bf16.msra.mxu0 %v2187
      %2201 = vmatpush.bf16.msra.mxu0 %v2186
      %2202 = vmatpush.bf16.msra.mxu0 %v2185
      %2203 = vmatpush.bf16.msra.mxu0 %v2184
      %2204 = vmatpush.bf16.msra.mxu0 %v2183
      %2205 = vmatpush.bf16.msra.mxu0 %v2182
      %2206 = vmatmul.bf16.gmra.mxu0 %v2142
      %v2207 = vpop.f32.mrf.mxu0
      %v2208 = vadd.f32 0.0, %v2207
      %v2209 = vpop.f32.mrf.mxu0
      %v2210 = vadd.f32 0.0, %v2209
      %2211 = vmatmul.bf16.gmra.mxu0 %v2143
      %v2212 = vpop.f32.mrf.mxu0
      %v2213 = vadd.f32 0.0, %v2212
      %v2214 = vpop.f32.mrf.mxu0
      %v2215 = vadd.f32 0.0, %v2214
      %2216 = vmatmul.bf16.gmra.mxu0 %v2144
      %v2217 = vpop.f32.mrf.mxu0
      %v2218 = vadd.f32 0.0, %v2217
      %v2219 = vpop.f32.mrf.mxu0
      %v2220 = vadd.f32 0.0, %v2219
      %2221 = vmatmul.bf16.gmra.mxu0 %v2145
      %v2222 = vpop.f32.mrf.mxu0
      %v2223 = vadd.f32 0.0, %v2222
      %v2224 = vpop.f32.mrf.mxu0
      %v2225 = vadd.f32 0.0, %v2224
      %2226 = vdwg.mxu0
      %v2243 = vunpack.c.l.b16 %v2086
      %v2244 = vunpack.c.l.b16 %v2087
      %v2245 = vunpack.c.l.b16 %v2088
      %v2246 = vunpack.c.l.b16 %v2089
      %v2247 = vunpack.c.l.b16 %v2090
      %v2248 = vunpack.c.l.b16 %v2091
      %v2249 = vunpack.c.l.b16 %v2092
      %v2250 = vunpack.c.l.b16 %v2093
      %v2251 = vunpack.c.l.b16 %v2094
      %v2252 = vunpack.c.l.b16 %v2095
      %v2253 = vunpack.c.l.b16 %v2096
      %v2254 = vunpack.c.l.b16 %v2097
      %v2255 = vunpack.c.l.b16 %v2098
      %v2256 = vunpack.c.l.b16 %v2099
      %v2257 = vunpack.c.l.b16 %v2100
      %v2258 = vunpack.c.l.b16 %v2101
      %v2259 = vpack.c.b16 %v2244, %v2243
      %v2260 = vpack.c.b16 %v2246, %v2245
      %v2261 = vpack.c.b16 %v2248, %v2247
      %v2262 = vpack.c.b16 %v2250, %v2249
      %v2263 = vpack.c.b16 %v2252, %v2251
      %v2264 = vpack.c.b16 %v2254, %v2253
      %v2265 = vpack.c.b16 %v2256, %v2255
      %v2266 = vpack.c.b16 %v2258, %v2257
      %2275 = vmatpush.bf16.msra.mxu0 %v2266
      %2276 = vmatpush.bf16.msra.mxu0 %v2265
      %2277 = vmatpush.bf16.msra.mxu0 %v2264
      %2278 = vmatpush.bf16.msra.mxu0 %v2263
      %2279 = vmatpush.bf16.msra.mxu0 %v2262
      %2280 = vmatpush.bf16.msra.mxu0 %v2261
      %2281 = vmatpush.bf16.msra.mxu0 %v2260
      %2282 = vmatpush.bf16.msra.mxu0 %v2259
      %2283 = vmatmul.bf16.gmra.mxu0 %v2082
      %v2284 = vpop.f32.mrf.mxu0
      %v2285 = vadd.f32 %v2208, %v2284
      %v2286 = vpop.f32.mrf.mxu0
      %v2287 = vadd.f32 %v2210, %v2286
      %2288 = vmatmul.bf16.gmra.mxu0 %v2083
      %v2289 = vpop.f32.mrf.mxu0
      %v2290 = vadd.f32 %v2213, %v2289
      %v2291 = vpop.f32.mrf.mxu0
      %v2292 = vadd.f32 %v2215, %v2291
      %2293 = vmatmul.bf16.gmra.mxu0 %v2084
      %v2294 = vpop.f32.mrf.mxu0
      %v2295 = vadd.f32 %v2218, %v2294
      %v2296 = vpop.f32.mrf.mxu0
      %v2297 = vadd.f32 %v2220, %v2296
      %2298 = vmatmul.bf16.gmra.mxu0 %v2085
      %v2299 = vpop.f32.mrf.mxu0
      %v2300 = vadd.f32 %v2223, %v2299
      %v2301 = vpop.f32.mrf.mxu0
      %v2302 = vadd.f32 %v2225, %v2301
      %2303 = vdwg.mxu0
      %v2304 = vld [vmem:[%s8] sm:$0x1]
      %v2306 = vperm.slane %v2304, 0
      %v2308 = vadd.f32 %v2285, %v2306
      %v2309 = vadd.f32 %v2287, %v2306
      %v2310 = vadd.f32 %v2290, %v2306
      %v2311 = vadd.f32 %v2292, %v2306
      %v2312 = vadd.f32 %v2295, %v2306
      %v2313 = vadd.f32 %v2297, %v2306
      %v2314 = vadd.f32 %v2300, %v2306
      %v2315 = vadd.f32 %v2302, %v2306
      %vm2316 = vcmp.ge.f32.partialorder %v2308, 0.0
      %vm2317 = vcmp.ge.f32.partialorder %v2309, 0.0
      %vm2318 = vcmp.ge.f32.partialorder %v2310, 0.0
      %vm2319 = vcmp.ge.f32.partialorder %v2311, 0.0
      %vm2320 = vcmp.ge.f32.partialorder %v2312, 0.0
      %vm2321 = vcmp.ge.f32.partialorder %v2313, 0.0
      %vm2322 = vcmp.ge.f32.partialorder %v2314, 0.0
      %vm2323 = vcmp.ge.f32.partialorder %v2315, 0.0
      %v2324 = vmul.f32 %v2308, 0.1
      %v2325 = vmul.f32 %v2309, 0.1
      %v2326 = vmul.f32 %v2310, 0.1
      %v2327 = vmul.f32 %v2311, 0.1
      %v2328 = vmul.f32 %v2312, 0.1
      %v2329 = vmul.f32 %v2313, 0.1
      %v2330 = vmul.f32 %v2314, 0.1
      %v2331 = vmul.f32 %v2315, 0.1
      %v2332 = vsel %vm2316, %v2308, %v2324
      %v2333 = vsel %vm2317, %v2309, %v2325
      %v2334 = vsel %vm2318, %v2310, %v2326
      %v2335 = vsel %vm2319, %v2311, %v2327
      %v2336 = vsel %vm2320, %v2312, %v2328
      %v2337 = vsel %vm2321, %v2313, %v2329
      %v2338 = vsel %vm2322, %v2314, %v2330
      %v2339 = vsel %vm2323, %v2315, %v2331
      %v2340 = vpack.c.bf16 %v2333, %v2332
      %v2341 = vpack.c.bf16 %v2335, %v2334
      %v2342 = vpack.c.bf16 %v2337, %v2336
      %v2343 = vpack.c.bf16 %v2339, %v2338
      %v2344 = vld [vmem:[%s9] sm:$0xf]
      %v2345 = vld [vmem:[%s9 + $0x4] sm:$0xf]
      %v2346 = vld [vmem:[%s9 + $0x8] sm:$0xf]
      %v2347 = vld [vmem:[%s9 + $0xc] sm:$0xf]
      %v2348 = vld [vmem:[%s9 + $0x10] sm:$0xf]
      %v2349 = vld [vmem:[%s9 + $0x14] sm:$0xf]
      %v2350 = vld [vmem:[%s9 + $0x18] sm:$0xf]
      %v2351 = vld [vmem:[%s9 + $0x1c] sm:$0xf]
      %v2352 = vld [vmem:[%s9 + $0x20] sm:$0xf]
      %v2353 = vld [vmem:[%s9 + $0x24] sm:$0xf]
      %v2354 = vld [vmem:[%s9 + $0x28] sm:$0xf]
      %v2355 = vld [vmem:[%s9 + $0x2c] sm:$0xf]
      %v2356 = vld [vmem:[%s9 + $0x30] sm:$0xf]
      %v2357 = vld [vmem:[%s9 + $0x34] sm:$0xf]
      %v2358 = vld [vmem:[%s9 + $0x38] sm:$0xf]
      %v2359 = vld [vmem:[%s9 + $0x3c] sm:$0xf]
      %v2360 = vld [vmem:[%s10] sm:$0x1]
      %v2362 = vperm.slane %v2360, 0
      %v2380 = vunpack.c.l.b16 %v2344
      %v2381 = vunpack.c.l.b16 %v2345
      %v2382 = vunpack.c.l.b16 %v2346
      %v2383 = vunpack.c.l.b16 %v2347
      %v2384 = vunpack.c.l.b16 %v2348
      %v2385 = vunpack.c.l.b16 %v2349
      %v2386 = vunpack.c.l.b16 %v2350
      %v2387 = vunpack.c.l.b16 %v2351
      %v2388 = vunpack.c.l.b16 %v2352
      %v2389 = vunpack.c.l.b16 %v2353
      %v2390 = vunpack.c.l.b16 %v2354
      %v2391 = vunpack.c.l.b16 %v2355
      %v2392 = vunpack.c.l.b16 %v2356
      %v2393 = vunpack.c.l.b16 %v2357
      %v2394 = vunpack.c.l.b16 %v2358
      %v2395 = vunpack.c.l.b16 %v2359
      %v2396 = vpack.c.b16 %v2381, %v2380
      %v2397 = vpack.c.b16 %v2383, %v2382
      %v2398 = vpack.c.b16 %v2385, %v2384
      %v2399 = vpack.c.b16 %v2387, %v2386
      %v2400 = vpack.c.b16 %v2389, %v2388
      %v2401 = vpack.c.b16 %v2391, %v2390
      %v2402 = vpack.c.b16 %v2393, %v2392
      %v2403 = vpack.c.b16 %v2395, %v2394
      %2412 = vmatpush.bf16.msra.mxu0 %v2403
      %2413 = vmatpush.bf16.msra.mxu0 %v2402
      %2414 = vmatpush.bf16.msra.mxu0 %v2401
      %2415 = vmatpush.bf16.msra.mxu0 %v2400
      %2416 = vmatpush.bf16.msra.mxu0 %v2399
      %2417 = vmatpush.bf16.msra.mxu0 %v2398
      %2418 = vmatpush.bf16.msra.mxu0 %v2397
      %2419 = vmatpush.bf16.msra.mxu0 %v2396
      %2420 = vmatmul.bf16.gmra.mxu0 %v2340
      %v2421 = vpop.f32.mrf.mxu0
      %v2422 = vadd.f32 %v2362, %v2421
      %v2423 = vpop.f32.mrf.mxu0
      %v2424 = vadd.f32 %v2362, %v2423
      %2425 = vmatmul.bf16.gmra.mxu0 %v2341
      %v2426 = vpop.f32.mrf.mxu0
      %v2427 = vadd.f32 %v2362, %v2426
      %v2428 = vpop.f32.mrf.mxu0
      %v2429 = vadd.f32 %v2362, %v2428
      %2430 = vmatmul.bf16.gmra.mxu0 %v2342
      %v2431 = vpop.f32.mrf.mxu0
      %v2432 = vadd.f32 %v2362, %v2431
      %v2433 = vpop.f32.mrf.mxu0
      %v2434 = vadd.f32 %v2362, %v2433
      %2435 = vmatmul.bf16.gmra.mxu0 %v2343
      %v2436 = vpop.f32.mrf.mxu0
      %v2437 = vadd.f32 %v2362, %v2436
      %v2438 = vpop.f32.mrf.mxu0
      %v2439 = vadd.f32 %v2362, %v2438
      %2440 = vdwg.mxu0
      %v2441 = vxor.u32 %v2422, 2147483648
      %v2442 = vxor.u32 %v2424, 2147483648
      %v2443 = vxor.u32 %v2427, 2147483648
      %v2444 = vxor.u32 %v2429, 2147483648
      %v2445 = vxor.u32 %v2432, 2147483648
      %v2446 = vxor.u32 %v2434, 2147483648
      %v2447 = vxor.u32 %v2437, 2147483648
      %v2448 = vxor.u32 %v2439, 2147483648
      %v2449 = vmul.f32 %v2441, 1.442695
      %v2450 = vpow.pop %v2449
      %v2451 = vmul.f32 %v2442, 1.442695
      %v2452 = vpow.pop %v2451
      %v2453 = vmul.f32 %v2443, 1.442695
      %v2454 = vpow.pop %v2453
      %v2455 = vmul.f32 %v2444, 1.442695
      %v2456 = vpow.pop %v2455
      %v2457 = vmul.f32 %v2445, 1.442695
      %v2458 = vpow.pop %v2457
      %v2459 = vmul.f32 %v2446, 1.442695
      %v2460 = vpow.pop %v2459
      %v2461 = vmul.f32 %v2447, 1.442695
      %v2462 = vpow.pop %v2461
      %v2463 = vmul.f32 %v2448, 1.442695
      %v2464 = vpow.pop %v2463
      %v2465 = vadd.f32 %v2450, 1.0
      %v2466 = vadd.f32 %v2452, 1.0
      %v2467 = vadd.f32 %v2454, 1.0
      %v2468 = vadd.f32 %v2456, 1.0
      %v2469 = vadd.f32 %v2458, 1.0
      %v2470 = vadd.f32 %v2460, 1.0
      %v2471 = vadd.f32 %v2462, 1.0
      %v2472 = vadd.f32 %v2464, 1.0
      %v2473 = vrcp.pop %v2465
      %v2474 = vmul.f32 %v2465, %v2473
      %v2475 = vsub.f32 1.0, %v2474
      %v2476 = vmul.f32 %v2473, %v2475
      %v2477 = vadd.f32 %v2473, %v2476
      %vm2478 = vweird.f32 %v2465
      %vm2479 = vweird.f32 %v2473
      %vm2480 = vmor %vm2478, %vm2479
      %v2481 = vsel %vm2480, %v2473, %v2477
      %v2482 = vand.u32 2147483647, %v2465
      %vm2483 = vcmp.eq.f32.partialorder %v2482, 8.507059e+37
      %v2484 = vand.u32 %v2465, 2147483648
      %v2485 = vor.u32 1.1754944e-38, %v2484
      %v2486 = vsel %vm2483, %v2485, %v2481
      %v2487 = vmul.f32 1.0, %v2486
      %v2488 = vrcp.pop %v2466
      %v2489 = vmul.f32 %v2466, %v2488
      %v2490 = vsub.f32 1.0, %v2489
      %v2491 = vmul.f32 %v2488, %v2490
      %v2492 = vadd.f32 %v2488, %v2491
      %vm2493 = vweird.f32 %v2466
      %vm2494 = vweird.f32 %v2488
      %vm2495 = vmor %vm2493, %vm2494
      %v2496 = vsel %vm2495, %v2488, %v2492
      %v2497 = vand.u32 2147483647, %v2466
      %vm2498 = vcmp.eq.f32.partialorder %v2497, 8.507059e+37
      %v2499 = vand.u32 %v2466, 2147483648
      %v2500 = vor.u32 1.1754944e-38, %v2499
      %v2501 = vsel %vm2498, %v2500, %v2496
      %v2502 = vmul.f32 1.0, %v2501
      %v2503 = vrcp.pop %v2467
      %v2504 = vmul.f32 %v2467, %v2503
      %v2505 = vsub.f32 1.0, %v2504
      %v2506 = vmul.f32 %v2503, %v2505
      %v2507 = vadd.f32 %v2503, %v2506
      %vm2508 = vweird.f32 %v2467
      %vm2509 = vweird.f32 %v2503
      %vm2510 = vmor %vm2508, %vm2509
      %v2511 = vsel %vm2510, %v2503, %v2507
      %v2512 = vand.u32 2147483647, %v2467
      %vm2513 = vcmp.eq.f32.partialorder %v2512, 8.507059e+37
      %v2514 = vand.u32 %v2467, 2147483648
      %v2515 = vor.u32 1.1754944e-38, %v2514
      %v2516 = vsel %vm2513, %v2515, %v2511
      %v2517 = vmul.f32 1.0, %v2516
      %v2518 = vrcp.pop %v2468
      %v2519 = vmul.f32 %v2468, %v2518
      %v2520 = vsub.f32 1.0, %v2519
      %v2521 = vmul.f32 %v2518, %v2520
      %v2522 = vadd.f32 %v2518, %v2521
      %vm2523 = vweird.f32 %v2468
      %vm2524 = vweird.f32 %v2518
      %vm2525 = vmor %vm2523, %vm2524
      %v2526 = vsel %vm2525, %v2518, %v2522
      %v2527 = vand.u32 2147483647, %v2468
      %vm2528 = vcmp.eq.f32.partialorder %v2527, 8.507059e+37
      %v2529 = vand.u32 %v2468, 2147483648
      %v2530 = vor.u32 1.1754944e-38, %v2529
      %v2531 = vsel %vm2528, %v2530, %v2526
      %v2532 = vmul.f32 1.0, %v2531
      %v2533 = vrcp.pop %v2469
      %v2534 = vmul.f32 %v2469, %v2533
      %v2535 = vsub.f32 1.0, %v2534
      %v2536 = vmul.f32 %v2533, %v2535
      %v2537 = vadd.f32 %v2533, %v2536
      %vm2538 = vweird.f32 %v2469
      %vm2539 = vweird.f32 %v2533
      %vm2540 = vmor %vm2538, %vm2539
      %v2541 = vsel %vm2540, %v2533, %v2537
      %v2542 = vand.u32 2147483647, %v2469
      %vm2543 = vcmp.eq.f32.partialorder %v2542, 8.507059e+37
      %v2544 = vand.u32 %v2469, 2147483648
      %v2545 = vor.u32 1.1754944e-38, %v2544
      %v2546 = vsel %vm2543, %v2545, %v2541
      %v2547 = vmul.f32 1.0, %v2546
      %v2548 = vrcp.pop %v2470
      %v2549 = vmul.f32 %v2470, %v2548
      %v2550 = vsub.f32 1.0, %v2549
      %v2551 = vmul.f32 %v2548, %v2550
      %v2552 = vadd.f32 %v2548, %v2551
      %vm2553 = vweird.f32 %v2470
      %vm2554 = vweird.f32 %v2548
      %vm2555 = vmor %vm2553, %vm2554
      %v2556 = vsel %vm2555, %v2548, %v2552
      %v2557 = vand.u32 2147483647, %v2470
      %vm2558 = vcmp.eq.f32.partialorder %v2557, 8.507059e+37
      %v2559 = vand.u32 %v2470, 2147483648
      %v2560 = vor.u32 1.1754944e-38, %v2559
      %v2561 = vsel %vm2558, %v2560, %v2556
      %v2562 = vmul.f32 1.0, %v2561
      %v2563 = vrcp.pop %v2471
      %v2564 = vmul.f32 %v2471, %v2563
      %v2565 = vsub.f32 1.0, %v2564
      %v2566 = vmul.f32 %v2563, %v2565
      %v2567 = vadd.f32 %v2563, %v2566
      %vm2568 = vweird.f32 %v2471
      %vm2569 = vweird.f32 %v2563
      %vm2570 = vmor %vm2568, %vm2569
      %v2571 = vsel %vm2570, %v2563, %v2567
      %v2572 = vand.u32 2147483647, %v2471
      %vm2573 = vcmp.eq.f32.partialorder %v2572, 8.507059e+37
      %v2574 = vand.u32 %v2471, 2147483648
      %v2575 = vor.u32 1.1754944e-38, %v2574
      %v2576 = vsel %vm2573, %v2575, %v2571
      %v2577 = vmul.f32 1.0, %v2576
      %v2578 = vrcp.pop %v2472
      %v2579 = vmul.f32 %v2472, %v2578
      %v2580 = vsub.f32 1.0, %v2579
      %v2581 = vmul.f32 %v2578, %v2580
      %v2582 = vadd.f32 %v2578, %v2581
      %vm2583 = vweird.f32 %v2472
      %vm2584 = vweird.f32 %v2578
      %vm2585 = vmor %vm2583, %vm2584
      %v2586 = vsel %vm2585, %v2578, %v2582
      %v2587 = vand.u32 2147483647, %v2472
      %vm2588 = vcmp.eq.f32.partialorder %v2587, 8.507059e+37
      %v2589 = vand.u32 %v2472, 2147483648
      %v2590 = vor.u32 1.1754944e-38, %v2589
      %v2591 = vsel %vm2588, %v2590, %v2586
      %v2592 = vmul.f32 1.0, %v2591
      %v2593 = vmul.f32 %v2332, %v2487
      %v2594 = vmul.f32 %v2333, %v2502
      %v2595 = vmul.f32 %v2334, %v2517
      %v2596 = vmul.f32 %v2335, %v2532
      %v2597 = vmul.f32 %v2336, %v2547
      %v2598 = vmul.f32 %v2337, %v2562
      %v2599 = vmul.f32 %v2338, %v2577
      %v2600 = vmul.f32 %v2339, %v2592
      %v2601 = vpack.c.bf16 %v2594, %v2593
      %v2602 = vpack.c.bf16 %v2596, %v2595
      %v2603 = vpack.c.bf16 %v2598, %v2597
      %v2604 = vpack.c.bf16 %v2600, %v2599
      %v2605 = vld [vmem:[%s11] sm:$0xf]
      %v2606 = vld [vmem:[%s11 + $0x4] sm:$0xf]
      %v2607 = vld [vmem:[%s11 + $0x8] sm:$0xf]
      %v2608 = vld [vmem:[%s11 + $0xc] sm:$0xf]
      %v2609 = vld [vmem:[%s11 + $0x10] sm:$0xf]
      %v2610 = vld [vmem:[%s11 + $0x14] sm:$0xf]
      %v2611 = vld [vmem:[%s11 + $0x18] sm:$0xf]
      %v2612 = vld [vmem:[%s11 + $0x1c] sm:$0xf]
      %v2613 = vld [vmem:[%s11 + $0x20] sm:$0xf]
      %v2614 = vld [vmem:[%s11 + $0x24] sm:$0xf]
      %v2615 = vld [vmem:[%s11 + $0x28] sm:$0xf]
      %v2616 = vld [vmem:[%s11 + $0x2c] sm:$0xf]
      %v2617 = vld [vmem:[%s11 + $0x30] sm:$0xf]
      %v2618 = vld [vmem:[%s11 + $0x34] sm:$0xf]
      %v2619 = vld [vmem:[%s11 + $0x38] sm:$0xf]
      %v2620 = vld [vmem:[%s11 + $0x3c] sm:$0xf]
      %v2621 = vld [vmem:[%s12] sm:$0x1]
      %v2623 = vperm.slane %v2621, 0
      %v2641 = vunpack.c.l.b16 %v2605
      %v2642 = vunpack.c.l.b16 %v2606
      %v2643 = vunpack.c.l.b16 %v2607
      %v2644 = vunpack.c.l.b16 %v2608
      %v2645 = vunpack.c.l.b16 %v2609
      %v2646 = vunpack.c.l.b16 %v2610
      %v2647 = vunpack.c.l.b16 %v2611
      %v2648 = vunpack.c.l.b16 %v2612
      %v2649 = vunpack.c.l.b16 %v2613
      %v2650 = vunpack.c.l.b16 %v2614
      %v2651 = vunpack.c.l.b16 %v2615
      %v2652 = vunpack.c.l.b16 %v2616
      %v2653 = vunpack.c.l.b16 %v2617
      %v2654 = vunpack.c.l.b16 %v2618
      %v2655 = vunpack.c.l.b16 %v2619
      %v2656 = vunpack.c.l.b16 %v2620
      %v2657 = vpack.c.b16 %v2642, %v2641
      %v2658 = vpack.c.b16 %v2644, %v2643
      %v2659 = vpack.c.b16 %v2646, %v2645
      %v2660 = vpack.c.b16 %v2648, %v2647
      %v2661 = vpack.c.b16 %v2650, %v2649
      %v2662 = vpack.c.b16 %v2652, %v2651
      %v2663 = vpack.c.b16 %v2654, %v2653
      %v2664 = vpack.c.b16 %v2656, %v2655
      %2673 = vmatpush.bf16.msra.mxu0 %v2664
      %2674 = vmatpush.bf16.msra.mxu0 %v2663
      %2675 = vmatpush.bf16.msra.mxu0 %v2662
      %2676 = vmatpush.bf16.msra.mxu0 %v2661
      %2677 = vmatpush.bf16.msra.mxu0 %v2660
      %2678 = vmatpush.bf16.msra.mxu0 %v2659
      %2679 = vmatpush.bf16.msra.mxu0 %v2658
      %2680 = vmatpush.bf16.msra.mxu0 %v2657
      %2681 = vmatmul.bf16.gmra.mxu0 %v2601
      %v2682 = vpop.f32.mrf.mxu0
      %v2683 = vadd.f32 %v2623, %v2682
      %v2684 = vpop.f32.mrf.mxu0
      %v2685 = vadd.f32 %v2623, %v2684
      %2686 = vmatmul.bf16.gmra.mxu0 %v2602
      %v2687 = vpop.f32.mrf.mxu0
      %v2688 = vadd.f32 %v2623, %v2687
      %v2689 = vpop.f32.mrf.mxu0
      %v2690 = vadd.f32 %v2623, %v2689
      %2691 = vmatmul.bf16.gmra.mxu0 %v2603
      %v2692 = vpop.f32.mrf.mxu0
      %v2693 = vadd.f32 %v2623, %v2692
      %v2694 = vpop.f32.mrf.mxu0
      %v2695 = vadd.f32 %v2623, %v2694
      %2696 = vmatmul.bf16.gmra.mxu0 %v2604
      %v2697 = vpop.f32.mrf.mxu0
      %v2698 = vadd.f32 %v2623, %v2697
      %v2699 = vpop.f32.mrf.mxu0
      %v2700 = vadd.f32 %v2623, %v2699
      %2701 = vdwg.mxu0
      %vm2702 = vcmp.ge.f32.partialorder %v2683, 0.0
      %vm2703 = vcmp.ge.f32.partialorder %v2685, 0.0
      %vm2704 = vcmp.ge.f32.partialorder %v2688, 0.0
      %vm2705 = vcmp.ge.f32.partialorder %v2690, 0.0
      %vm2706 = vcmp.ge.f32.partialorder %v2693, 0.0
      %vm2707 = vcmp.ge.f32.partialorder %v2695, 0.0
      %vm2708 = vcmp.ge.f32.partialorder %v2698, 0.0
      %vm2709 = vcmp.ge.f32.partialorder %v2700, 0.0
      %v2710 = vmul.f32 %v2683, 0.1
      %v2711 = vmul.f32 %v2685, 0.1
      %v2712 = vmul.f32 %v2688, 0.1
      %v2713 = vmul.f32 %v2690, 0.1
      %v2714 = vmul.f32 %v2693, 0.1
      %v2715 = vmul.f32 %v2695, 0.1
      %v2716 = vmul.f32 %v2698, 0.1
      %v2717 = vmul.f32 %v2700, 0.1
      %v2718 = vsel %vm2702, %v2683, %v2710
      %v2719 = vsel %vm2703, %v2685, %v2711
      %v2720 = vsel %vm2704, %v2688, %v2712
      %v2721 = vsel %vm2705, %v2690, %v2713
      %v2722 = vsel %vm2706, %v2693, %v2714
      %v2723 = vsel %vm2707, %v2695, %v2715
      %v2724 = vsel %vm2708, %v2698, %v2716
      %v2725 = vsel %vm2709, %v2700, %v2717
      %v2726 = vpack.c.bf16 %v2719, %v2718
      %v2727 = vpack.c.bf16 %v2721, %v2720
      %v2728 = vpack.c.bf16 %v2723, %v2722
      %v2729 = vpack.c.bf16 %v2725, %v2724
      %v2730 = vld [vmem:[%s13] sm:$0xf]
      %v2731 = vld [vmem:[%s13 + $0x4] sm:$0xf]
      %v2732 = vld [vmem:[%s13 + $0x8] sm:$0xf]
      %v2733 = vld [vmem:[%s13 + $0xc] sm:$0xf]
      %v2734 = vld [vmem:[%s13 + $0x10] sm:$0xf]
      %v2735 = vld [vmem:[%s13 + $0x14] sm:$0xf]
      %v2736 = vld [vmem:[%s13 + $0x18] sm:$0xf]
      %v2737 = vld [vmem:[%s13 + $0x1c] sm:$0xf]
      %v2738 = vld [vmem:[%s13 + $0x20] sm:$0xf]
      %v2739 = vld [vmem:[%s13 + $0x24] sm:$0xf]
      %v2740 = vld [vmem:[%s13 + $0x28] sm:$0xf]
      %v2741 = vld [vmem:[%s13 + $0x2c] sm:$0xf]
      %v2742 = vld [vmem:[%s13 + $0x30] sm:$0xf]
      %v2743 = vld [vmem:[%s13 + $0x34] sm:$0xf]
      %v2744 = vld [vmem:[%s13 + $0x38] sm:$0xf]
      %v2745 = vld [vmem:[%s13 + $0x3c] sm:$0xf]
      %v2746 = vld [vmem:[%s14] sm:$0x1]
      %v2748 = vperm.slane %v2746, 0
      %v2766 = vunpack.c.l.b16 %v2730
      %v2767 = vunpack.c.l.b16 %v2731
      %v2768 = vunpack.c.l.b16 %v2732
      %v2769 = vunpack.c.l.b16 %v2733
      %v2770 = vunpack.c.l.b16 %v2734
      %v2771 = vunpack.c.l.b16 %v2735
      %v2772 = vunpack.c.l.b16 %v2736
      %v2773 = vunpack.c.l.b16 %v2737
      %v2774 = vunpack.c.l.b16 %v2738
      %v2775 = vunpack.c.l.b16 %v2739
      %v2776 = vunpack.c.l.b16 %v2740
      %v2777 = vunpack.c.l.b16 %v2741
      %v2778 = vunpack.c.l.b16 %v2742
      %v2779 = vunpack.c.l.b16 %v2743
      %v2780 = vunpack.c.l.b16 %v2744
      %v2781 = vunpack.c.l.b16 %v2745
      %v2782 = vpack.c.b16 %v2767, %v2766
      %v2783 = vpack.c.b16 %v2769, %v2768
      %v2784 = vpack.c.b16 %v2771, %v2770
      %v2785 = vpack.c.b16 %v2773, %v2772
      %v2786 = vpack.c.b16 %v2775, %v2774
      %v2787 = vpack.c.b16 %v2777, %v2776
      %v2788 = vpack.c.b16 %v2779, %v2778
      %v2789 = vpack.c.b16 %v2781, %v2780
      %2798 = vmatpush.bf16.msra.mxu0 %v2789
      %2799 = vmatpush.bf16.msra.mxu0 %v2788
      %2800 = vmatpush.bf16.msra.mxu0 %v2787
      %2801 = vmatpush.bf16.msra.mxu0 %v2786
      %2802 = vmatpush.bf16.msra.mxu0 %v2785
      %2803 = vmatpush.bf16.msra.mxu0 %v2784
      %2804 = vmatpush.bf16.msra.mxu0 %v2783
      %2805 = vmatpush.bf16.msra.mxu0 %v2782
      %2806 = vmatmul.bf16.gmra.mxu0 %v2726
      %v2807 = vpop.f32.mrf.mxu0
      %v2808 = vadd.f32 %v2748, %v2807
      %v2809 = vpop.f32.mrf.mxu0
      %v2810 = vadd.f32 %v2748, %v2809
      %2811 = vmatmul.bf16.gmra.mxu0 %v2727
      %v2812 = vpop.f32.mrf.mxu0
      %v2813 = vadd.f32 %v2748, %v2812
      %v2814 = vpop.f32.mrf.mxu0
      %v2815 = vadd.f32 %v2748, %v2814
      %2816 = vmatmul.bf16.gmra.mxu0 %v2728
      %v2817 = vpop.f32.mrf.mxu0
      %v2818 = vadd.f32 %v2748, %v2817
      %v2819 = vpop.f32.mrf.mxu0
      %v2820 = vadd.f32 %v2748, %v2819
      %2821 = vmatmul.bf16.gmra.mxu0 %v2729
      %v2822 = vpop.f32.mrf.mxu0
      %v2823 = vadd.f32 %v2748, %v2822
      %v2824 = vpop.f32.mrf.mxu0
      %v2825 = vadd.f32 %v2748, %v2824
      %2826 = vdwg.mxu0
      %vm2827 = vcmp.ge.f32.partialorder %v2808, 0.0
      %vm2828 = vcmp.ge.f32.partialorder %v2810, 0.0
      %vm2829 = vcmp.ge.f32.partialorder %v2813, 0.0
      %vm2830 = vcmp.ge.f32.partialorder %v2815, 0.0
      %vm2831 = vcmp.ge.f32.partialorder %v2818, 0.0
      %vm2832 = vcmp.ge.f32.partialorder %v2820, 0.0
      %vm2833 = vcmp.ge.f32.partialorder %v2823, 0.0
      %vm2834 = vcmp.ge.f32.partialorder %v2825, 0.0
      %v2835 = vmul.f32 %v2808, 0.1
      %v2836 = vmul.f32 %v2810, 0.1
      %v2837 = vmul.f32 %v2813, 0.1
      %v2838 = vmul.f32 %v2815, 0.1
      %v2839 = vmul.f32 %v2818, 0.1
      %v2840 = vmul.f32 %v2820, 0.1
      %v2841 = vmul.f32 %v2823, 0.1
      %v2842 = vmul.f32 %v2825, 0.1
      %v2843 = vsel %vm2827, %v2808, %v2835
      %v2844 = vsel %vm2828, %v2810, %v2836
      %v2845 = vsel %vm2829, %v2813, %v2837
      %v2846 = vsel %vm2830, %v2815, %v2838
      %v2847 = vsel %vm2831, %v2818, %v2839
      %v2848 = vsel %vm2832, %v2820, %v2840
      %v2849 = vsel %vm2833, %v2823, %v2841
      %v2850 = vsel %vm2834, %v2825, %v2842
      %v2851 = vld [vmem:[%s15] sm:$0xf]
      %v2852 = vld [vmem:[%s15 + $0x4] sm:$0xf]
      %v2853 = vld [vmem:[%s15 + $0x8] sm:$0xf]
      %v2854 = vld [vmem:[%s15 + $0xc] sm:$0xf]
      %v2855 = vld [vmem:[%s15 + $0x10] sm:$0xf]
      %v2856 = vld [vmem:[%s15 + $0x14] sm:$0xf]
      %v2857 = vld [vmem:[%s15 + $0x18] sm:$0xf]
      %v2858 = vld [vmem:[%s15 + $0x1c] sm:$0xf]
      %v2859 = vld [vmem:[%s15 + $0x20] sm:$0xf]
      %v2860 = vld [vmem:[%s15 + $0x24] sm:$0xf]
      %v2861 = vld [vmem:[%s15 + $0x28] sm:$0xf]
      %v2862 = vld [vmem:[%s15 + $0x2c] sm:$0xf]
      %v2863 = vld [vmem:[%s15 + $0x30] sm:$0xf]
      %v2864 = vld [vmem:[%s15 + $0x34] sm:$0xf]
      %v2865 = vld [vmem:[%s15 + $0x38] sm:$0xf]
      %v2866 = vld [vmem:[%s15 + $0x3c] sm:$0xf]
      %v2867 = vld [vmem:[%s16] sm:$0x1]
      %v2869 = vperm.slane %v2867, 0
      %v2887 = vunpack.c.l.b16 %v2851
      %v2888 = vunpack.c.l.b16 %v2852
      %v2889 = vunpack.c.l.b16 %v2853
      %v2890 = vunpack.c.l.b16 %v2854
      %v2891 = vunpack.c.l.b16 %v2855
      %v2892 = vunpack.c.l.b16 %v2856
      %v2893 = vunpack.c.l.b16 %v2857
      %v2894 = vunpack.c.l.b16 %v2858
      %v2895 = vunpack.c.l.b16 %v2859
      %v2896 = vunpack.c.l.b16 %v2860
      %v2897 = vunpack.c.l.b16 %v2861
      %v2898 = vunpack.c.l.b16 %v2862
      %v2899 = vunpack.c.l.b16 %v2863
      %v2900 = vunpack.c.l.b16 %v2864
      %v2901 = vunpack.c.l.b16 %v2865
      %v2902 = vunpack.c.l.b16 %v2866
      %v2903 = vpack.c.b16 %v2888, %v2887
      %v2904 = vpack.c.b16 %v2890, %v2889
      %v2905 = vpack.c.b16 %v2892, %v2891
      %v2906 = vpack.c.b16 %v2894, %v2893
      %v2907 = vpack.c.b16 %v2896, %v2895
      %v2908 = vpack.c.b16 %v2898, %v2897
      %v2909 = vpack.c.b16 %v2900, %v2899
      %v2910 = vpack.c.b16 %v2902, %v2901
      %2919 = vmatpush.bf16.msra.mxu0 %v2910
      %2920 = vmatpush.bf16.msra.mxu0 %v2909
      %2921 = vmatpush.bf16.msra.mxu0 %v2908
      %2922 = vmatpush.bf16.msra.mxu0 %v2907
      %2923 = vmatpush.bf16.msra.mxu0 %v2906
      %2924 = vmatpush.bf16.msra.mxu0 %v2905
      %2925 = vmatpush.bf16.msra.mxu0 %v2904
      %2926 = vmatpush.bf16.msra.mxu0 %v2903
      %2927 = vmatmul.bf16.gmra.mxu0 %v2601
      %v2928 = vpop.f32.mrf.mxu0
      %v2929 = vadd.f32 %v2869, %v2928
      %v2930 = vpop.f32.mrf.mxu0
      %v2931 = vadd.f32 %v2869, %v2930
      %2932 = vmatmul.bf16.gmra.mxu0 %v2602
      %v2933 = vpop.f32.mrf.mxu0
      %v2934 = vadd.f32 %v2869, %v2933
      %v2935 = vpop.f32.mrf.mxu0
      %v2936 = vadd.f32 %v2869, %v2935
      %2937 = vmatmul.bf16.gmra.mxu0 %v2603
      %v2938 = vpop.f32.mrf.mxu0
      %v2939 = vadd.f32 %v2869, %v2938
      %v2940 = vpop.f32.mrf.mxu0
      %v2941 = vadd.f32 %v2869, %v2940
      %2942 = vmatmul.bf16.gmra.mxu0 %v2604
      %v2943 = vpop.f32.mrf.mxu0
      %v2944 = vadd.f32 %v2869, %v2943
      %v2945 = vpop.f32.mrf.mxu0
      %v2946 = vadd.f32 %v2869, %v2945
      %2947 = vdwg.mxu0
      %vm2948 = vcmp.ge.f32.partialorder %v2929, 0.0
      %vm2949 = vcmp.ge.f32.partialorder %v2931, 0.0
      %vm2950 = vcmp.ge.f32.partialorder %v2934, 0.0
      %vm2951 = vcmp.ge.f32.partialorder %v2936, 0.0
      %vm2952 = vcmp.ge.f32.partialorder %v2939, 0.0
      %vm2953 = vcmp.ge.f32.partialorder %v2941, 0.0
      %vm2954 = vcmp.ge.f32.partialorder %v2944, 0.0
      %vm2955 = vcmp.ge.f32.partialorder %v2946, 0.0
      %v2956 = vmul.f32 %v2929, 0.1
      %v2957 = vmul.f32 %v2931, 0.1
      %v2958 = vmul.f32 %v2934, 0.1
      %v2959 = vmul.f32 %v2936, 0.1
      %v2960 = vmul.f32 %v2939, 0.1
      %v2961 = vmul.f32 %v2941, 0.1
      %v2962 = vmul.f32 %v2944, 0.1
      %v2963 = vmul.f32 %v2946, 0.1
      %v2964 = vsel %vm2948, %v2929, %v2956
      %v2965 = vsel %vm2949, %v2931, %v2957
      %v2966 = vsel %vm2950, %v2934, %v2958
      %v2967 = vsel %vm2951, %v2936, %v2959
      %v2968 = vsel %vm2952, %v2939, %v2960
      %v2969 = vsel %vm2953, %v2941, %v2961
      %v2970 = vsel %vm2954, %v2944, %v2962
      %v2971 = vsel %vm2955, %v2946, %v2963
      %v2972 = vpack.c.bf16 %v2843, %v2843
      %v2973 = vpack.c.bf16 %v2844, %v2844
      %v2974 = vpack.c.bf16 %v2845, %v2845
      %v2975 = vpack.c.bf16 %v2846, %v2846
      %v2976 = vpack.c.bf16 %v2847, %v2847
      %v2977 = vpack.c.bf16 %v2848, %v2848
      %v2978 = vpack.c.bf16 %v2849, %v2849
      %v2979 = vpack.c.bf16 %v2850, %v2850
      %2980 = vst [vmem:[%s603] sm:$0xf] %v2972
      %2981 = vst [vmem:[%s603 + $0x4] sm:$0xf] %v2973
      %2982 = vst [vmem:[%s603 + $0x8] sm:$0xf] %v2974
      %2983 = vst [vmem:[%s603 + $0xc] sm:$0xf] %v2975
      %2984 = vst [vmem:[%s603 + $0x10] sm:$0xf] %v2976
      %2985 = vst [vmem:[%s603 + $0x14] sm:$0xf] %v2977
      %2986 = vst [vmem:[%s603 + $0x18] sm:$0xf] %v2978
      %2987 = vst [vmem:[%s603 + $0x1c] sm:$0xf] %v2979
      %v2988 = vpack.c.bf16 %v2964, %v2964
      %v2989 = vpack.c.bf16 %v2965, %v2965
      %v2990 = vpack.c.bf16 %v2966, %v2966
      %v2991 = vpack.c.bf16 %v2967, %v2967
      %v2992 = vpack.c.bf16 %v2968, %v2968
      %v2993 = vpack.c.bf16 %v2969, %v2969
      %v2994 = vpack.c.bf16 %v2970, %v2970
      %v2995 = vpack.c.bf16 %v2971, %v2971
      %2996 = vst [vmem:[%s608] sm:$0xf] %v2988
      %2997 = vst [vmem:[%s608 + $0x4] sm:$0xf] %v2989
      %2998 = vst [vmem:[%s608 + $0x8] sm:$0xf] %v2990
      %2999 = vst [vmem:[%s608 + $0xc] sm:$0xf] %v2991
      %3000 = vst [vmem:[%s608 + $0x10] sm:$0xf] %v2992
      %3001 = vst [vmem:[%s608 + $0x14] sm:$0xf] %v2993
      %3002 = vst [vmem:[%s608 + $0x18] sm:$0xf] %v2994
      %3003 = vst [vmem:[%s608 + $0x1c] sm:$0xf] %v2995
      %p3004 = scmp.lt.s32.totalorder %s30, 1
      %s3005 = scalar_select %p3004, %s30, 1
      %s3006 = smul.addr %s3005, 8
      %s3007 = smul.addr %s3006, 4
      %s3008 = scalar_lea.vmem %s17, %s3007
      %p3009 = scmp.lt.s32.totalorder %s30, 1
      %s3010 = scalar_select %p3009, %s30, 1
      %s3011 = smul.addr %s3010, 8
      %s3012 = smul.addr %s3011, 4
      %s3013 = scalar_lea.vmem %s18, %s3012
      // Predicated region
      $region89: #{yolov1_forward.8} parent=87 // pred_check
        %p3014 = pneg %p415
      $region90: #{yolov1_forward.8} parent=87 // pred_check_branch
        %3016 = sbr.rel (%p3014) target = $region92
      $region91: #{yolov1_forward.8} parent=87 // pred_region
        _
      $region92: #{yolov1_forward.8} parent=87 // pred_fallthru
        _
      // Predicated region
      $region93: #{yolov1_forward.8} parent=87 // pred_check
        %p3017 = pneg %p441
      $region94: #{yolov1_forward.8} parent=87 // pred_check_branch
        %3019 = sbr.rel (%p3017) target = $region96
      $region95: #{yolov1_forward.8} parent=87 // pred_region
        _
      $region96: #{yolov1_forward.8} parent=87 // pred_fallthru
        _
    $region88: #{yolov1_forward.8} parent=5 // pred_fallthru
      _
    %p3020 = scmp.le.s32.totalorder 2, %s25
    // Predicated region
    $region97: #{yolov1_forward.8} parent=5 // pred_check
      %p3021 = pneg %p3020
    $region98: #{yolov1_forward.8} parent=5 // pred_check_branch
      %3023 = sbr.rel (%p3021) target = $region100
    $region99: #{yolov1_forward.8} parent=5 // pred_region
      %s3024 = ssub.s32 %s25, 2
      // Predicated region
      $region101: #{yolov1_forward.8} parent=99 // pred_check
        %p3025 = pneg %p421
      $region102: #{yolov1_forward.8} parent=99 // pred_check_branch
        %3027 = sbr.rel (%p3025) target = $region104
      $region103: #{yolov1_forward.8} parent=99 // pred_region
        %p3028 = scmp.lt.s32.totalorder %s31, 1
        %s3029 = scalar_select %p3028, %s31, 1
        %s3030 = smul.addr %s3029, 8
        %s3031 = smul.addr %s3030, 4
        %s3032 = scalar_lea.vmem %s17, %s3031
      $region104: #{yolov1_forward.8} parent=99 // pred_fallthru
        _
      // Predicated region
      $region105: #{yolov1_forward.8} parent=99 // pred_check
        %p3033 = pneg %p447
      $region106: #{yolov1_forward.8} parent=99 // pred_check_branch
        %3035 = sbr.rel (%p3033) target = $region108
      $region107: #{yolov1_forward.8} parent=99 // pred_region
        %p3036 = scmp.lt.s32.totalorder %s31, 1
        %s3037 = scalar_select %p3036, %s31, 1
        %s3038 = smul.addr %s3037, 8
        %s3039 = smul.addr %s3038, 4
        %s3040 = scalar_lea.vmem %s18, %s3039
      $region108: #{yolov1_forward.8} parent=99 // pred_fallthru
        _
    $region100: #{yolov1_forward.8} parent=5 // pred_fallthru
      _
  $region6: #{yolov1_forward.8} parent=0 // loop_footer
    %s29 = sadd.s32 1, %s25
  $region7: #{yolov1_forward.8} parent=0 // loop_footer_branch
    %24 = sbr.rel target = $region3
  $region8: #{yolov1_forward.8} parent=0 // loop_exit
    _

// kernel: yolov1_forward.9
$region0: #{yolov1_forward.9}
  #allocation0 [shape = 'u32[]', space=smem, size = 0x4, offset = 0x4, fixed_abs, tag = 'smem constant byte address 0x4 - core index']
  #allocation1 [shape = 'u32[72,128]{1,0:T(1,128)}', space=vmem, size = 0x9000, scoped, tag = 'internal scratch']
  %s0 = inlined_call_operand.vmem [shape: bf16[2,64,128], index: 0, kind: input, shape index: {}]
  %s1 = inlined_call_operand.vmem [shape: bf16[1152,128], index: 1, kind: input, shape index: {}]
  %s2 = inlined_call_operand.vmem [shape: f32[1,128], index: 2, kind: input, shape index: {}]
  %s3 = inlined_call_operand.vmem [shape: bf16[128,128], index: 3, kind: input, shape index: {}]
  %s4 = inlined_call_operand.vmem [shape: f32[1,128], index: 4, kind: input, shape index: {}]
  %s5 = inlined_call_operand.vmem [shape: bf16[2,64,128], index: 5, kind: output, shape index: {}]
  %s6 = sld [smem:[#allocation0]]
  $region53: #{yolov1_forward.9} parent=0
    _
  %s8 = ssub.s32 1, %s6
  %s9 = scalar_select 0, %s8, %s6
  loop: start=0, step=1, limit=4
  $region2: #{yolov1_forward.9} parent=0 // loop_pre_header
    _
  $region3: #{yolov1_forward.9} parent=0 // loop_header
    %s11 = sphi 0, %s15
    %p12 = scmp.ge.s32.totalorder %s11, 4
    %s21 = sphi 0, %s23
    %s24 = sphi 0, %s21
    %s25 = sphi 0, %s24
    %s41 = sphi 0, %s25
    %s45 = sphi 0, %s45
    %s47 = sphi 0, %s45
    %s48 = sphi 0, %s47
    %s62 = sphi 0, %s48
    %s66 = sphi 0, %s66
    %s68 = sphi 0, %s66
    %s69 = sphi 0, %s68
    %s83 = sphi 0, %s69
    %s87 = sphi 0, %s87
    %s89 = sphi 0, %s87
    %s90 = sphi 0, %s89
    %s104 = sphi 0, %s90
    %s108 = sphi 0, %s108
    %s110 = sphi 0, %s108
    %s111 = sphi 0, %s110
    %s125 = sphi 0, %s111
    %s131 = sphi 0, %s133
    %s134 = sphi 0, %s131
    %s135 = sphi 0, %s134
    %s151 = sphi 0, %s135
  $region4: #{yolov1_forward.9} parent=0 // loop_header_branch
    %14 = sbr.rel (%p12) target = $region8
  $region5: #{yolov1_forward.9} parent=0 // loop_body
    %s16 = ssub.s32 %s11, 1
    %s17 = ssub.s32 %s11, 2
    %s18 = sadd.s32 %s11, 1
    %s19 = ssub.s32 %s11, %s18
    %p20 = scmp.eq.s32.totalorder %s19, 0
    %s22 = sadd.s32 %s21, 1
    %s23 = scalar_select %p20, %s21, %s22
    %p26 = pneg %p20
    %p27 = scmp.eq.s32.totalorder %s11, 1
    %p28 = por %p26, %p27
    %p29 = scmp.ne.s32.totalorder %s21, %s24
    %p30 = scmp.eq.s32.totalorder %s11, 0
    %p31 = por %p29, %p30
    %p32 = scmp.ne.s32.totalorder %s21, %s24
    %p33 = scmp.eq.s32.totalorder %s16, 1
    %p34 = por %p32, %p33
    %p35 = scmp.ne.s32.totalorder %s24, %s25
    %p36 = scmp.eq.s32.totalorder %s16, 0
    %p37 = por %p35, %p36
    %p38 = scmp.ne.s32.totalorder %s24, %s25
    %p39 = scmp.eq.s32.totalorder %s17, 1
    %p40 = por %p38, %p39
    %p42 = scmp.ne.s32.totalorder %s25, %s41
    %p43 = scmp.eq.s32.totalorder %s17, 0
    %p44 = por %p42, %p43
    %s46 = sadd.s32 %s45, 1
    %p49 = scmp.eq.s32.totalorder %s11, 1
    %p50 = scmp.ne.s32.totalorder %s45, %s47
    %p51 = scmp.eq.s32.totalorder %s11, 0
    %p52 = por %p50, %p51
    %p53 = scmp.ne.s32.totalorder %s45, %s47
    %p54 = scmp.eq.s32.totalorder %s16, 1
    %p55 = por %p53, %p54
    %p56 = scmp.ne.s32.totalorder %s47, %s48
    %p57 = scmp.eq.s32.totalorder %s16, 0
    %p58 = por %p56, %p57
    %p59 = scmp.ne.s32.totalorder %s47, %s48
    %p60 = scmp.eq.s32.totalorder %s17, 1
    %p61 = por %p59, %p60
    %p63 = scmp.ne.s32.totalorder %s48, %s62
    %p64 = scmp.eq.s32.totalorder %s17, 0
    %p65 = por %p63, %p64
    %s67 = sadd.s32 %s66, 1
    %p70 = scmp.eq.s32.totalorder %s11, 1
    %p71 = scmp.ne.s32.totalorder %s66, %s68
    %p72 = scmp.eq.s32.totalorder %s11, 0
    %p73 = por %p71, %p72
    %p74 = scmp.ne.s32.totalorder %s66, %s68
    %p75 = scmp.eq.s32.totalorder %s16, 1
    %p76 = por %p74, %p75
    %p77 = scmp.ne.s32.totalorder %s68, %s69
    %p78 = scmp.eq.s32.totalorder %s16, 0
    %p79 = por %p77, %p78
    %p80 = scmp.ne.s32.totalorder %s68, %s69
    %p81 = scmp.eq.s32.totalorder %s17, 1
    %p82 = por %p80, %p81
    %p84 = scmp.ne.s32.totalorder %s69, %s83
    %p85 = scmp.eq.s32.totalorder %s17, 0
    %p86 = por %p84, %p85
    %s88 = sadd.s32 %s87, 1
    %p91 = scmp.eq.s32.totalorder %s11, 1
    %p92 = scmp.ne.s32.totalorder %s87, %s89
    %p93 = scmp.eq.s32.totalorder %s11, 0
    %p94 = por %p92, %p93
    %p95 = scmp.ne.s32.totalorder %s87, %s89
    %p96 = scmp.eq.s32.totalorder %s16, 1
    %p97 = por %p95, %p96
    %p98 = scmp.ne.s32.totalorder %s89, %s90
    %p99 = scmp.eq.s32.totalorder %s16, 0
    %p100 = por %p98, %p99
    %p101 = scmp.ne.s32.totalorder %s89, %s90
    %p102 = scmp.eq.s32.totalorder %s17, 1
    %p103 = por %p101, %p102
    %p105 = scmp.ne.s32.totalorder %s90, %s104
    %p106 = scmp.eq.s32.totalorder %s17, 0
    %p107 = por %p105, %p106
    %s109 = sadd.s32 %s108, 1
    %p112 = scmp.eq.s32.totalorder %s11, 1
    %p113 = scmp.ne.s32.totalorder %s108, %s110
    %p114 = scmp.eq.s32.totalorder %s11, 0
    %p115 = por %p113, %p114
    %p116 = scmp.ne.s32.totalorder %s108, %s110
    %p117 = scmp.eq.s32.totalorder %s16, 1
    %p118 = por %p116, %p117
    %p119 = scmp.ne.s32.totalorder %s110, %s111
    %p120 = scmp.eq.s32.totalorder %s16, 0
    %p121 = por %p119, %p120
    %p122 = scmp.ne.s32.totalorder %s110, %s111
    %p123 = scmp.eq.s32.totalorder %s17, 1
    %p124 = por %p122, %p123
    %p126 = scmp.ne.s32.totalorder %s111, %s125
    %p127 = scmp.eq.s32.totalorder %s17, 0
    %p128 = por %p126, %p127
    %s129 = ssub.s32 %s11, %s18
    %p130 = scmp.eq.s32.totalorder %s129, 0
    %s132 = sadd.s32 %s131, 1
    %s133 = scalar_select %p130, %s131, %s132
    %p136 = pneg %p130
    %p137 = scmp.eq.s32.totalorder %s11, 1
    %p138 = por %p136, %p137
    %p139 = scmp.ne.s32.totalorder %s131, %s134
    %p140 = scmp.eq.s32.totalorder %s11, 0
    %p141 = por %p139, %p140
    %p142 = scmp.ne.s32.totalorder %s131, %s134
    %p143 = scmp.eq.s32.totalorder %s16, 1
    %p144 = por %p142, %p143
    %p145 = scmp.ne.s32.totalorder %s134, %s135
    %p146 = scmp.eq.s32.totalorder %s16, 0
    %p147 = por %p145, %p146
    %p148 = scmp.ne.s32.totalorder %s134, %s135
    %p149 = scmp.eq.s32.totalorder %s17, 1
    %p150 = por %p148, %p149
    %p152 = scmp.ne.s32.totalorder %s135, %s151
    %p153 = scmp.eq.s32.totalorder %s17, 0
    %p154 = por %p152, %p153
    %p155 = scmp.le.s32.totalorder 1, %s11
    %p156 = scmp.lt.s32.totalorder %s11, 3
    %p157 = pnand %p155, %p156
    %p158 = pneg %p157
    // Predicated region
    $region9: #{yolov1_forward.9} parent=5 // pred_check
      _
    $region10: #{yolov1_forward.9} parent=5 // pred_check_branch
      %160 = sbr.rel (%p157) target = $region12
    $region11: #{yolov1_forward.9} parent=5 // pred_region
      %s161 = ssub.s32 %s11, 1
      // Predicated region
      $region13: #{yolov1_forward.9} parent=11 // pred_check
        %p162 = pneg %p58
      $region14: #{yolov1_forward.9} parent=11 // pred_check_branch
        %164 = sbr.rel (%p162) target = $region16
      $region15: #{yolov1_forward.9} parent=11 // pred_region
        _
      $region16: #{yolov1_forward.9} parent=11 // pred_fallthru
        _
      // Predicated region
      $region17: #{yolov1_forward.9} parent=11 // pred_check
        %p165 = pneg %p79
      $region18: #{yolov1_forward.9} parent=11 // pred_check_branch
        %167 = sbr.rel (%p165) target = $region20
      $region19: #{yolov1_forward.9} parent=11 // pred_region
        _
      $region20: #{yolov1_forward.9} parent=11 // pred_fallthru
        _
      // Predicated region
      $region21: #{yolov1_forward.9} parent=11 // pred_check
        %p168 = pneg %p100
      $region22: #{yolov1_forward.9} parent=11 // pred_check_branch
        %170 = sbr.rel (%p168) target = $region24
      $region23: #{yolov1_forward.9} parent=11 // pred_region
        _
      $region24: #{yolov1_forward.9} parent=11 // pred_fallthru
        _
      // Predicated region
      $region25: #{yolov1_forward.9} parent=11 // pred_check
        %p171 = pneg %p121
      $region26: #{yolov1_forward.9} parent=11 // pred_check_branch
        %173 = sbr.rel (%p171) target = $region28
      $region27: #{yolov1_forward.9} parent=11 // pred_region
        _
      $region28: #{yolov1_forward.9} parent=11 // pred_fallthru
        _
    $region12: #{yolov1_forward.9} parent=5 // pred_fallthru
      _
    %p174 = scmp.lt.s32.totalorder %s11, 2
    // Predicated region
    $region29: #{yolov1_forward.9} parent=5 // pred_check
      %p175 = pneg %p174
    $region30: #{yolov1_forward.9} parent=5 // pred_check_branch
      %177 = sbr.rel (%p175) target = $region32
    $region31: #{yolov1_forward.9} parent=5 // pred_region
      // Predicated region
      $region33: #{yolov1_forward.9} parent=31 // pred_check
        %p178 = pneg %p31
      $region34: #{yolov1_forward.9} parent=31 // pred_check_branch
        %180 = sbr.rel (%p178) target = $region36
      $region35: #{yolov1_forward.9} parent=31 // pred_region
        %p181 = scmp.lt.s32.totalorder %s11, 1
        %s182 = scalar_select %p181, %s11, 1
        %s183 = smul.addr %s182, 8
        %s184 = smul.addr %s183, 4
        %s185 = scalar_lea.vmem %s0, %s184
      $region36: #{yolov1_forward.9} parent=31 // pred_fallthru
        _
    $region32: #{yolov1_forward.9} parent=5 // pred_fallthru
      _
    %p186 = scmp.le.s32.totalorder 1, %s11
    %p187 = scmp.lt.s32.totalorder %s11, 3
    %p188 = pnand %p186, %p187
    %p189 = pneg %p188
    // Predicated region
    $region37: #{yolov1_forward.9} parent=5 // pred_check
      _
    $region38: #{yolov1_forward.9} parent=5 // pred_check_branch
      %191 = sbr.rel (%p188) target = $region40
    $region39: #{yolov1_forward.9} parent=5 // pred_region
      %s192 = ssub.s32 %s11, 1
      %p193 = scmp.lt.s32.totalorder %s16, 1
      %s194 = scalar_select %p193, %s16, 1
      %s195 = smul.addr %s194, 8
      %s196 = smul.addr %s195, 4
      %s197 = scalar_lea.vmem %s0, %s196
      %p198 = pneg %p37
      %p199 = pneg %p34
      %p200 = pneg %p58
      %p201 = pneg %p55
      %p202 = pneg %p79
      %p203 = pneg %p76
      %p204 = pneg %p100
      %p205 = pneg %p97
      %p206 = pneg %p121
      %p207 = pneg %p118
      %p208 = pneg %p147
      %p209 = pneg %p144
      %p210 = scmp.lt.s32.totalorder %s16, 1
      %s211 = scalar_select %p210, %s16, 1
      %s212 = smul.addr %s211, 8
      %s213 = smul.addr %s212, 4
      %s214 = scalar_lea.vmem %s5, %s213
      %p215 = scmp.lt.s32.totalorder %s16, 1
      %s216 = scalar_select %p215, %s16, 1
      %s217 = smul.addr %s216, 8
      %s218 = smul.addr %s217, 4
      %s219 = scalar_lea.vmem %s0, %s218
      %p220 = scmp.lt.s32.totalorder %s16, 1
      %s221 = scalar_select %p220, %s16, 1
      %s222 = smul.addr %s221, 8
      %s223 = smul.addr %s222, 4
      %s224 = scalar_lea.vmem %s5, %s223
      %v225 = vld [vmem:[%s219] sm:$0xf]
      %v226 = vld [vmem:[%s219 + $0x4] sm:$0xf]
      %v227 = vld [vmem:[%s219 + $0x8] sm:$0xf]
      %v228 = vld [vmem:[%s219 + $0xc] sm:$0xf]
      %v229 = vld [vmem:[%s219 + $0x10] sm:$0xf]
      %v230 = vld [vmem:[%s219 + $0x14] sm:$0xf]
      %v231 = vld [vmem:[%s219 + $0x18] sm:$0xf]
      %v232 = vld [vmem:[%s219 + $0x1c] sm:$0xf]
      %v233 = vunpack.c.l.bf16 %v225
      %v234 = vunpack.c.l.bf16 %v226
      %v235 = vunpack.c.l.bf16 %v227
      %v236 = vunpack.c.l.bf16 %v228
      %v237 = vunpack.c.l.bf16 %v229
      %v238 = vunpack.c.l.bf16 %v230
      %v239 = vunpack.c.l.bf16 %v231
      %v240 = vunpack.c.l.bf16 %v232
      %v241 = vlaneseq
      %v242 = vshrl.u32 %v241, 7
      %v243 = vadd.s32 %v242, 8
      %v244 = vadd.s32 %v242, 16
      %v245 = vadd.s32 %v242, 24
      %v246 = vadd.s32 %v242, 32
      %v247 = vadd.s32 %v242, 40
      %v248 = vadd.s32 %v242, 48
      %v249 = vadd.s32 %v242, 56
      %v250 = vshra.s32 %v242, 3
      %v251 = vshra.s32 %v243, 3
      %v252 = vshra.s32 %v244, 3
      %v253 = vshra.s32 %v245, 3
      %v254 = vshra.s32 %v246, 3
      %v255 = vshra.s32 %v247, 3
      %v256 = vshra.s32 %v248, 3
      %v257 = vshra.s32 %v249, 3
      %v258 = vand.u32 %v242, 7
      %v259 = vand.u32 %v243, 7
      %v260 = vand.u32 %v244, 7
      %v261 = vand.u32 %v245, 7
      %v262 = vand.u32 %v246, 7
      %v263 = vand.u32 %v247, 7
      %v264 = vand.u32 %v248, 7
      %v265 = vand.u32 %v249, 7
      %vm266 = vcmp.ge.s32.totalorder %v250, 1
      %vm267 = vcmp.ge.s32.totalorder %v251, 1
      %vm268 = vcmp.ge.s32.totalorder %v252, 1
      %vm269 = vcmp.ge.s32.totalorder %v253, 1
      %vm270 = vcmp.ge.s32.totalorder %v254, 1
      %vm271 = vcmp.ge.s32.totalorder %v255, 1
      %vm272 = vcmp.ge.s32.totalorder %v256, 1
      %vm273 = vcmp.ge.s32.totalorder %v257, 1
      %vm274 = vcmp.ge.s32.totalorder %v258, 1
      %vm275 = vcmp.ge.s32.totalorder %v259, 1
      %vm276 = vcmp.ge.s32.totalorder %v260, 1
      %vm277 = vcmp.ge.s32.totalorder %v261, 1
      %vm278 = vcmp.ge.s32.totalorder %v262, 1
      %vm279 = vcmp.ge.s32.totalorder %v263, 1
      %vm280 = vcmp.ge.s32.totalorder %v264, 1
      %vm281 = vcmp.ge.s32.totalorder %v265, 1
      %v282 = vrot.slane %v233, 7
      %v283 = vrot.slane %v234, 7
      %v284 = vrot.slane %v235, 7
      %v285 = vrot.slane %v236, 7
      %v286 = vrot.slane %v237, 7
      %v287 = vrot.slane %v238, 7
      %v288 = vrot.slane %v239, 7
      %v289 = vrot.slane %v240, 7
      %vm290 = vcmp.lt.s32.totalorder %v242, 1
      %v291 = vsel %vm290, %v288, %v289
      %v292 = vsel %vm290, %v287, %v288
      %v293 = vsel %vm290, %v286, %v287
      %v294 = vsel %vm290, %v285, %v286
      %v295 = vsel %vm290, %v284, %v285
      %v296 = vsel %vm290, %v283, %v284
      %v297 = vsel %vm290, %v282, %v283
      %v298 = vsel %vm290, %v289, %v282
      %vm299 = vmand %vm266, %vm274
      %vm300 = vmand %vm267, %vm275
      %vm301 = vmand %vm268, %vm276
      %vm302 = vmand %vm269, %vm277
      %vm303 = vmand %vm270, %vm278
      %vm304 = vmand %vm271, %vm279
      %vm305 = vmand %vm272, %vm280
      %vm306 = vmand %vm273, %vm281
      %v307 = vsel %vm299, %v291, 0.0
      %v308 = vsel %vm300, %v298, 0.0
      %v309 = vsel %vm301, %v297, 0.0
      %v310 = vsel %vm302, %v296, 0.0
      %v311 = vsel %vm303, %v295, 0.0
      %v312 = vsel %vm304, %v294, 0.0
      %v313 = vsel %vm305, %v293, 0.0
      %v314 = vsel %vm306, %v292, 0.0
      %v315 = vpack.c.bf16 %v307, %v307
      %v316 = vpack.c.bf16 %v308, %v308
      %v317 = vpack.c.bf16 %v309, %v309
      %v318 = vpack.c.bf16 %v310, %v310
      %v319 = vpack.c.bf16 %v311, %v311
      %v320 = vpack.c.bf16 %v312, %v312
      %v321 = vpack.c.bf16 %v313, %v313
      %v322 = vpack.c.bf16 %v314, %v314
      %v323 = vsel %vm266, %v240, 0.0
      %v324 = vsel %vm267, %v233, 0.0
      %v325 = vsel %vm268, %v234, 0.0
      %v326 = vsel %vm269, %v235, 0.0
      %v327 = vsel %vm270, %v236, 0.0
      %v328 = vsel %vm271, %v237, 0.0
      %v329 = vsel %vm272, %v238, 0.0
      %v330 = vsel %vm273, %v239, 0.0
      %v331 = vpack.c.bf16 %v323, %v323
      %v332 = vpack.c.bf16 %v324, %v324
      %v333 = vpack.c.bf16 %v325, %v325
      %v334 = vpack.c.bf16 %v326, %v326
      %v335 = vpack.c.bf16 %v327, %v327
      %v336 = vpack.c.bf16 %v328, %v328
      %v337 = vpack.c.bf16 %v329, %v329
      %v338 = vpack.c.bf16 %v330, %v330
      %vm339 = vcmp.le.s32.totalorder %v258, 6
      %vm340 = vcmp.le.s32.totalorder %v259, 6
      %vm341 = vcmp.le.s32.totalorder %v260, 6
      %vm342 = vcmp.le.s32.totalorder %v261, 6
      %vm343 = vcmp.le.s32.totalorder %v262, 6
      %vm344 = vcmp.le.s32.totalorder %v263, 6
      %vm345 = vcmp.le.s32.totalorder %v264, 6
      %vm346 = vcmp.le.s32.totalorder %v265, 6
      %v347 = vrot.slane %v233, 1
      %v348 = vrot.slane %v234, 1
      %v349 = vrot.slane %v235, 1
      %v350 = vrot.slane %v236, 1
      %v351 = vrot.slane %v237, 1
      %v352 = vrot.slane %v238, 1
      %v353 = vrot.slane %v239, 1
      %v354 = vrot.slane %v240, 1
      %vm355 = vcmp.lt.s32.totalorder %v242, 7
      %v356 = vsel %vm355, %v353, %v354
      %v357 = vsel %vm355, %v352, %v353
      %v358 = vsel %vm355, %v351, %v352
      %v359 = vsel %vm355, %v350, %v351
      %v360 = vsel %vm355, %v349, %v350
      %v361 = vsel %vm355, %v348, %v349
      %v362 = vsel %vm355, %v347, %v348
      %v363 = vsel %vm355, %v354, %v347
      %vm364 = vmand %vm266, %vm339
      %vm365 = vmand %vm267, %vm340
      %vm366 = vmand %vm268, %vm341
      %vm367 = vmand %vm269, %vm342
      %vm368 = vmand %vm270, %vm343
      %vm369 = vmand %vm271, %vm344
      %vm370 = vmand %vm272, %vm345
      %vm371 = vmand %vm273, %vm346
      %v372 = vsel %vm364, %v363, 0.0
      %v373 = vsel %vm365, %v362, 0.0
      %v374 = vsel %vm366, %v361, 0.0
      %v375 = vsel %vm367, %v360, 0.0
      %v376 = vsel %vm368, %v359, 0.0
      %v377 = vsel %vm369, %v358, 0.0
      %v378 = vsel %vm370, %v357, 0.0
      %v379 = vsel %vm371, %v356, 0.0
      %v380 = vpack.c.bf16 %v372, %v372
      %v381 = vpack.c.bf16 %v373, %v373
      %v382 = vpack.c.bf16 %v374, %v374
      %v383 = vpack.c.bf16 %v375, %v375
      %v384 = vpack.c.bf16 %v376, %v376
      %v385 = vpack.c.bf16 %v377, %v377
      %v386 = vpack.c.bf16 %v378, %v378
      %v387 = vpack.c.bf16 %v379, %v379
      %v388 = vsel %vm274, %v298, 0.0
      %v389 = vsel %vm275, %v297, 0.0
      %v390 = vsel %vm276, %v296, 0.0
      %v391 = vsel %vm277, %v295, 0.0
      %v392 = vsel %vm278, %v294, 0.0
      %v393 = vsel %vm279, %v293, 0.0
      %v394 = vsel %vm280, %v292, 0.0
      %v395 = vsel %vm281, %v291, 0.0
      %v396 = vpack.c.bf16 %v388, %v388
      %v397 = vpack.c.bf16 %v389, %v389
      %v398 = vpack.c.bf16 %v390, %v390
      %v399 = vpack.c.bf16 %v391, %v391
      %v400 = vpack.c.bf16 %v392, %v392
      %v401 = vpack.c.bf16 %v393, %v393
      %v402 = vpack.c.bf16 %v394, %v394
      %v403 = vpack.c.bf16 %v395, %v395
      %v404 = vsel %vm339, %v362, 0.0
      %v405 = vsel %vm340, %v361, 0.0
      %v406 = vsel %vm341, %v360, 0.0
      %v407 = vsel %vm342, %v359, 0.0
      %v408 = vsel %vm343, %v358, 0.0
      %v409 = vsel %vm344, %v357, 0.0
      %v410 = vsel %vm345, %v356, 0.0
      %v411 = vsel %vm346, %v363, 0.0
      %v412 = vpack.c.bf16 %v404, %v404
      %v413 = vpack.c.bf16 %v405, %v405
      %v414 = vpack.c.bf16 %v406, %v406
      %v415 = vpack.c.bf16 %v407, %v407
      %v416 = vpack.c.bf16 %v408, %v408
      %v417 = vpack.c.bf16 %v409, %v409
      %v418 = vpack.c.bf16 %v410, %v410
      %v419 = vpack.c.bf16 %v411, %v411
      %vm420 = vcmp.le.s32.totalorder %v250, 6
      %vm421 = vcmp.le.s32.totalorder %v251, 6
      %vm422 = vcmp.le.s32.totalorder %v252, 6
      %vm423 = vcmp.le.s32.totalorder %v253, 6
      %vm424 = vcmp.le.s32.totalorder %v254, 6
      %vm425 = vcmp.le.s32.totalorder %v255, 6
      %vm426 = vcmp.le.s32.totalorder %v256, 6
      %vm427 = vcmp.le.s32.totalorder %v257, 6
      %vm428 = vmand %vm420, %vm274
      %vm429 = vmand %vm421, %vm275
      %vm430 = vmand %vm422, %vm276
      %vm431 = vmand %vm423, %vm277
      %vm432 = vmand %vm424, %vm278
      %vm433 = vmand %vm425, %vm279
      %vm434 = vmand %vm426, %vm280
      %vm435 = vmand %vm427, %vm281
      %v436 = vsel %vm428, %v297, 0.0
      %v437 = vsel %vm429, %v296, 0.0
      %v438 = vsel %vm430, %v295, 0.0
      %v439 = vsel %vm431, %v294, 0.0
      %v440 = vsel %vm432, %v293, 0.0
      %v441 = vsel %vm433, %v292, 0.0
      %v442 = vsel %vm434, %v291, 0.0
      %v443 = vsel %vm435, %v298, 0.0
      %v444 = vpack.c.bf16 %v436, %v436
      %v445 = vpack.c.bf16 %v437, %v437
      %v446 = vpack.c.bf16 %v438, %v438
      %v447 = vpack.c.bf16 %v439, %v439
      %v448 = vpack.c.bf16 %v440, %v440
      %v449 = vpack.c.bf16 %v441, %v441
      %v450 = vpack.c.bf16 %v442, %v442
      %v451 = vpack.c.bf16 %v443, %v443
      %v452 = vsel %vm420, %v234, 0.0
      %v453 = vsel %vm421, %v235, 0.0
      %v454 = vsel %vm422, %v236, 0.0
      %v455 = vsel %vm423, %v237, 0.0
      %v456 = vsel %vm424, %v238, 0.0
      %v457 = vsel %vm425, %v239, 0.0
      %v458 = vsel %vm426, %v240, 0.0
      %v459 = vsel %vm427, %v233, 0.0
      %v460 = vpack.c.bf16 %v452, %v452
      %v461 = vpack.c.bf16 %v453, %v453
      %v462 = vpack.c.bf16 %v454, %v454
      %v463 = vpack.c.bf16 %v455, %v455
      %v464 = vpack.c.bf16 %v456, %v456
      %v465 = vpack.c.bf16 %v457, %v457
      %v466 = vpack.c.bf16 %v458, %v458
      %v467 = vpack.c.bf16 %v459, %v459
      %vm468 = vmand %vm420, %vm339
      %vm469 = vmand %vm421, %vm340
      %vm470 = vmand %vm422, %vm341
      %vm471 = vmand %vm423, %vm342
      %vm472 = vmand %vm424, %vm343
      %vm473 = vmand %vm425, %vm344
      %vm474 = vmand %vm426, %vm345
      %vm475 = vmand %vm427, %vm346
      %v476 = vsel %vm468, %v361, 0.0
      %v477 = vsel %vm469, %v360, 0.0
      %v478 = vsel %vm470, %v359, 0.0
      %v479 = vsel %vm471, %v358, 0.0
      %v480 = vsel %vm472, %v357, 0.0
      %v481 = vsel %vm473, %v356, 0.0
      %v482 = vsel %vm474, %v363, 0.0
      %v483 = vsel %vm475, %v362, 0.0
      %v484 = vpack.c.bf16 %v476, %v476
      %v485 = vpack.c.bf16 %v477, %v477
      %v486 = vpack.c.bf16 %v478, %v478
      %v487 = vpack.c.bf16 %v479, %v479
      %v488 = vpack.c.bf16 %v480, %v480
      %v489 = vpack.c.bf16 %v481, %v481
      %v490 = vpack.c.bf16 %v482, %v482
      %v491 = vpack.c.bf16 %v483, %v483
      %v500 = vunpack.c.l.b16 %v315
      %v501 = vunpack.c.l.b16 %v316
      %v502 = vunpack.c.l.b16 %v317
      %v503 = vunpack.c.l.b16 %v318
      %v504 = vunpack.c.l.b16 %v319
      %v505 = vunpack.c.l.b16 %v320
      %v506 = vunpack.c.l.b16 %v321
      %v507 = vunpack.c.l.b16 %v322
      %v508 = vpack.c.b16 %v501, %v500
      %v509 = vpack.c.b16 %v503, %v502
      %v510 = vpack.c.b16 %v505, %v504
      %v511 = vpack.c.b16 %v507, %v506
      %v524 = vunpack.c.l.b16 %v331
      %v525 = vunpack.c.l.b16 %v332
      %v526 = vunpack.c.l.b16 %v333
      %v527 = vunpack.c.l.b16 %v334
      %v528 = vunpack.c.l.b16 %v335
      %v529 = vunpack.c.l.b16 %v336
      %v530 = vunpack.c.l.b16 %v337
      %v531 = vunpack.c.l.b16 %v338
      %v532 = vpack.c.b16 %v525, %v524
      %v533 = vpack.c.b16 %v527, %v526
      %v534 = vpack.c.b16 %v529, %v528
      %v535 = vpack.c.b16 %v531, %v530
      %v548 = vunpack.c.l.b16 %v380
      %v549 = vunpack.c.l.b16 %v381
      %v550 = vunpack.c.l.b16 %v382
      %v551 = vunpack.c.l.b16 %v383
      %v552 = vunpack.c.l.b16 %v384
      %v553 = vunpack.c.l.b16 %v385
      %v554 = vunpack.c.l.b16 %v386
      %v555 = vunpack.c.l.b16 %v387
      %v556 = vpack.c.b16 %v549, %v548
      %v557 = vpack.c.b16 %v551, %v550
      %v558 = vpack.c.b16 %v553, %v552
      %v559 = vpack.c.b16 %v555, %v554
      %v572 = vunpack.c.l.b16 %v396
      %v573 = vunpack.c.l.b16 %v397
      %v574 = vunpack.c.l.b16 %v398
      %v575 = vunpack.c.l.b16 %v399
      %v576 = vunpack.c.l.b16 %v400
      %v577 = vunpack.c.l.b16 %v401
      %v578 = vunpack.c.l.b16 %v402
      %v579 = vunpack.c.l.b16 %v403
      %v580 = vpack.c.b16 %v573, %v572
      %v581 = vpack.c.b16 %v575, %v574
      %v582 = vpack.c.b16 %v577, %v576
      %v583 = vpack.c.b16 %v579, %v578
      %v596 = vunpack.c.l.b16 %v225
      %v597 = vunpack.c.l.b16 %v226
      %v598 = vunpack.c.l.b16 %v227
      %v599 = vunpack.c.l.b16 %v228
      %v600 = vunpack.c.l.b16 %v229
      %v601 = vunpack.c.l.b16 %v230
      %v602 = vunpack.c.l.b16 %v231
      %v603 = vunpack.c.l.b16 %v232
      %v604 = vpack.c.b16 %v597, %v596
      %v605 = vpack.c.b16 %v599, %v598
      %v606 = vpack.c.b16 %v601, %v600
      %v607 = vpack.c.b16 %v603, %v602
      %v620 = vunpack.c.l.b16 %v412
      %v621 = vunpack.c.l.b16 %v413
      %v622 = vunpack.c.l.b16 %v414
      %v623 = vunpack.c.l.b16 %v415
      %v624 = vunpack.c.l.b16 %v416
      %v625 = vunpack.c.l.b16 %v417
      %v626 = vunpack.c.l.b16 %v418
      %v627 = vunpack.c.l.b16 %v419
      %v628 = vpack.c.b16 %v621, %v620
      %v629 = vpack.c.b16 %v623, %v622
      %v630 = vpack.c.b16 %v625, %v624
      %v631 = vpack.c.b16 %v627, %v626
      %v644 = vunpack.c.l.b16 %v444
      %v645 = vunpack.c.l.b16 %v445
      %v646 = vunpack.c.l.b16 %v446
      %v647 = vunpack.c.l.b16 %v447
      %v648 = vunpack.c.l.b16 %v448
      %v649 = vunpack.c.l.b16 %v449
      %v650 = vunpack.c.l.b16 %v450
      %v651 = vunpack.c.l.b16 %v451
      %v652 = vpack.c.b16 %v645, %v644
      %v653 = vpack.c.b16 %v647, %v646
      %v654 = vpack.c.b16 %v649, %v648
      %v655 = vpack.c.b16 %v651, %v650
      %v668 = vunpack.c.l.b16 %v460
      %v669 = vunpack.c.l.b16 %v461
      %v670 = vunpack.c.l.b16 %v462
      %v671 = vunpack.c.l.b16 %v463
      %v672 = vunpack.c.l.b16 %v464
      %v673 = vunpack.c.l.b16 %v465
      %v674 = vunpack.c.l.b16 %v466
      %v675 = vunpack.c.l.b16 %v467
      %v676 = vpack.c.b16 %v669, %v668
      %v677 = vpack.c.b16 %v671, %v670
      %v678 = vpack.c.b16 %v673, %v672
      %v679 = vpack.c.b16 %v675, %v674
      %v692 = vunpack.c.l.b16 %v484
      %v693 = vunpack.c.l.b16 %v485
      %v694 = vunpack.c.l.b16 %v486
      %v695 = vunpack.c.l.b16 %v487
      %v696 = vunpack.c.l.b16 %v488
      %v697 = vunpack.c.l.b16 %v489
      %v698 = vunpack.c.l.b16 %v490
      %v699 = vunpack.c.l.b16 %v491
      %v700 = vpack.c.b16 %v693, %v692
      %v701 = vpack.c.b16 %v695, %v694
      %v702 = vpack.c.b16 %v697, %v696
      %v703 = vpack.c.b16 %v699, %v698
      %v708 = vld [vmem:[%s1] sm:$0xf]
      %v709 = vld [vmem:[%s1 + $0x4] sm:$0xf]
      %v710 = vld [vmem:[%s1 + $0x8] sm:$0xf]
      %v711 = vld [vmem:[%s1 + $0xc] sm:$0xf]
      %v712 = vld [vmem:[%s1 + $0x10] sm:$0xf]
      %v713 = vld [vmem:[%s1 + $0x14] sm:$0xf]
      %v714 = vld [vmem:[%s1 + $0x18] sm:$0xf]
      %v715 = vld [vmem:[%s1 + $0x1c] sm:$0xf]
      %v716 = vld [vmem:[%s1 + $0x20] sm:$0xf]
      %v717 = vld [vmem:[%s1 + $0x24] sm:$0xf]
      %v718 = vld [vmem:[%s1 + $0x28] sm:$0xf]
      %v719 = vld [vmem:[%s1 + $0x2c] sm:$0xf]
      %v720 = vld [vmem:[%s1 + $0x30] sm:$0xf]
      %v721 = vld [vmem:[%s1 + $0x34] sm:$0xf]
      %v722 = vld [vmem:[%s1 + $0x38] sm:$0xf]
      %v723 = vld [vmem:[%s1 + $0x3c] sm:$0xf]
      %v724 = vld [vmem:[%s1 + $0x40] sm:$0xf]
      %v725 = vld [vmem:[%s1 + $0x44] sm:$0xf]
      %v726 = vld [vmem:[%s1 + $0x48] sm:$0xf]
      %v727 = vld [vmem:[%s1 + $0x4c] sm:$0xf]
      %v728 = vld [vmem:[%s1 + $0x50] sm:$0xf]
      %v729 = vld [vmem:[%s1 + $0x54] sm:$0xf]
      %v730 = vld [vmem:[%s1 + $0x58] sm:$0xf]
      %v731 = vld [vmem:[%s1 + $0x5c] sm:$0xf]
      %v732 = vld [vmem:[%s1 + $0x60] sm:$0xf]
      %v733 = vld [vmem:[%s1 + $0x64] sm:$0xf]
      %v734 = vld [vmem:[%s1 + $0x68] sm:$0xf]
      %v735 = vld [vmem:[%s1 + $0x6c] sm:$0xf]
      %v736 = vld [vmem:[%s1 + $0x70] sm:$0xf]
      %v737 = vld [vmem:[%s1 + $0x74] sm:$0xf]
      %v738 = vld [vmem:[%s1 + $0x78] sm:$0xf]
      %v739 = vld [vmem:[%s1 + $0x7c] sm:$0xf]
      %v740 = vld [vmem:[%s1 + $0x80] sm:$0xf]
      %v741 = vld [vmem:[%s1 + $0x84] sm:$0xf]
      %v742 = vld [vmem:[%s1 + $0x88] sm:$0xf]
      %v743 = vld [vmem:[%s1 + $0x8c] sm:$0xf]
      %v744 = vld [vmem:[%s1 + $0x90] sm:$0xf]
      %v745 = vld [vmem:[%s1 + $0x94] sm:$0xf]
      %v746 = vld [vmem:[%s1 + $0x98] sm:$0xf]
      %v747 = vld [vmem:[%s1 + $0x9c] sm:$0xf]
      %v748 = vld [vmem:[%s1 + $0xa0] sm:$0xf]
      %v749 = vld [vmem:[%s1 + $0xa4] sm:$0xf]
      %v750 = vld [vmem:[%s1 + $0xa8] sm:$0xf]
      %v751 = vld [vmem:[%s1 + $0xac] sm:$0xf]
      %v752 = vld [vmem:[%s1 + $0xb0] sm:$0xf]
      %v753 = vld [vmem:[%s1 + $0xb4] sm:$0xf]
      %v754 = vld [vmem:[%s1 + $0xb8] sm:$0xf]
      %v755 = vld [vmem:[%s1 + $0xbc] sm:$0xf]
      %v756 = vld [vmem:[%s1 + $0xc0] sm:$0xf]
      %v757 = vld [vmem:[%s1 + $0xc4] sm:$0xf]
      %v758 = vld [vmem:[%s1 + $0xc8] sm:$0xf]
      %v759 = vld [vmem:[%s1 + $0xcc] sm:$0xf]
      %v760 = vld [vmem:[%s1 + $0xd0] sm:$0xf]
      %v761 = vld [vmem:[%s1 + $0xd4] sm:$0xf]
      %v762 = vld [vmem:[%s1 + $0xd8] sm:$0xf]
      %v763 = vld [vmem:[%s1 + $0xdc] sm:$0xf]
      %v764 = vld [vmem:[%s1 + $0xe0] sm:$0xf]
      %v765 = vld [vmem:[%s1 + $0xe4] sm:$0xf]
      %v766 = vld [vmem:[%s1 + $0xe8] sm:$0xf]
      %v767 = vld [vmem:[%s1 + $0xec] sm:$0xf]
      %v768 = vld [vmem:[%s1 + $0xf0] sm:$0xf]
      %v769 = vld [vmem:[%s1 + $0xf4] sm:$0xf]
      %v770 = vld [vmem:[%s1 + $0xf8] sm:$0xf]
      %v771 = vld [vmem:[%s1 + $0xfc] sm:$0xf]
      %v772 = vld [vmem:[%s1 + $0x100] sm:$0xf]
      %v773 = vld [vmem:[%s1 + $0x104] sm:$0xf]
      %v774 = vld [vmem:[%s1 + $0x108] sm:$0xf]
      %v775 = vld [vmem:[%s1 + $0x10c] sm:$0xf]
      %v776 = vld [vmem:[%s1 + $0x110] sm:$0xf]
      %v777 = vld [vmem:[%s1 + $0x114] sm:$0xf]
      %v778 = vld [vmem:[%s1 + $0x118] sm:$0xf]
      %v779 = vld [vmem:[%s1 + $0x11c] sm:$0xf]
      %v780 = vld [vmem:[%s1 + $0x120] sm:$0xf]
      %v781 = vld [vmem:[%s1 + $0x124] sm:$0xf]
      %v782 = vld [vmem:[%s1 + $0x128] sm:$0xf]
      %v783 = vld [vmem:[%s1 + $0x12c] sm:$0xf]
      %v784 = vld [vmem:[%s1 + $0x130] sm:$0xf]
      %v785 = vld [vmem:[%s1 + $0x134] sm:$0xf]
      %v786 = vld [vmem:[%s1 + $0x138] sm:$0xf]
      %v787 = vld [vmem:[%s1 + $0x13c] sm:$0xf]
      %v788 = vld [vmem:[%s1 + $0x140] sm:$0xf]
      %v789 = vld [vmem:[%s1 + $0x144] sm:$0xf]
      %v790 = vld [vmem:[%s1 + $0x148] sm:$0xf]
      %v791 = vld [vmem:[%s1 + $0x14c] sm:$0xf]
      %v792 = vld [vmem:[%s1 + $0x150] sm:$0xf]
      %v793 = vld [vmem:[%s1 + $0x154] sm:$0xf]
      %v794 = vld [vmem:[%s1 + $0x158] sm:$0xf]
      %v795 = vld [vmem:[%s1 + $0x15c] sm:$0xf]
      %v796 = vld [vmem:[%s1 + $0x160] sm:$0xf]
      %v797 = vld [vmem:[%s1 + $0x164] sm:$0xf]
      %v798 = vld [vmem:[%s1 + $0x168] sm:$0xf]
      %v799 = vld [vmem:[%s1 + $0x16c] sm:$0xf]
      %v800 = vld [vmem:[%s1 + $0x170] sm:$0xf]
      %v801 = vld [vmem:[%s1 + $0x174] sm:$0xf]
      %v802 = vld [vmem:[%s1 + $0x178] sm:$0xf]
      %v803 = vld [vmem:[%s1 + $0x17c] sm:$0xf]
      %v804 = vld [vmem:[%s1 + $0x180] sm:$0xf]
      %v805 = vld [vmem:[%s1 + $0x184] sm:$0xf]
      %v806 = vld [vmem:[%s1 + $0x188] sm:$0xf]
      %v807 = vld [vmem:[%s1 + $0x18c] sm:$0xf]
      %v808 = vld [vmem:[%s1 + $0x190] sm:$0xf]
      %v809 = vld [vmem:[%s1 + $0x194] sm:$0xf]
      %v810 = vld [vmem:[%s1 + $0x198] sm:$0xf]
      %v811 = vld [vmem:[%s1 + $0x19c] sm:$0xf]
      %v812 = vld [vmem:[%s1 + $0x1a0] sm:$0xf]
      %v813 = vld [vmem:[%s1 + $0x1a4] sm:$0xf]
      %v814 = vld [vmem:[%s1 + $0x1a8] sm:$0xf]
      %v815 = vld [vmem:[%s1 + $0x1ac] sm:$0xf]
      %v816 = vld [vmem:[%s1 + $0x1b0] sm:$0xf]
      %v817 = vld [vmem:[%s1 + $0x1b4] sm:$0xf]
      %v818 = vld [vmem:[%s1 + $0x1b8] sm:$0xf]
      %v819 = vld [vmem:[%s1 + $0x1bc] sm:$0xf]
      %v820 = vld [vmem:[%s1 + $0x1c0] sm:$0xf]
      %v821 = vld [vmem:[%s1 + $0x1c4] sm:$0xf]
      %v822 = vld [vmem:[%s1 + $0x1c8] sm:$0xf]
      %v823 = vld [vmem:[%s1 + $0x1cc] sm:$0xf]
      %v824 = vld [vmem:[%s1 + $0x1d0] sm:$0xf]
      %v825 = vld [vmem:[%s1 + $0x1d4] sm:$0xf]
      %v826 = vld [vmem:[%s1 + $0x1d8] sm:$0xf]
      %v827 = vld [vmem:[%s1 + $0x1dc] sm:$0xf]
      %v828 = vld [vmem:[%s1 + $0x1e0] sm:$0xf]
      %v829 = vld [vmem:[%s1 + $0x1e4] sm:$0xf]
      %v830 = vld [vmem:[%s1 + $0x1e8] sm:$0xf]
      %v831 = vld [vmem:[%s1 + $0x1ec] sm:$0xf]
      %v832 = vld [vmem:[%s1 + $0x1f0] sm:$0xf]
      %v833 = vld [vmem:[%s1 + $0x1f4] sm:$0xf]
      %v834 = vld [vmem:[%s1 + $0x1f8] sm:$0xf]
      %v835 = vld [vmem:[%s1 + $0x1fc] sm:$0xf]
      %v836 = vld [vmem:[%s1 + $0x200] sm:$0xf]
      %v837 = vld [vmem:[%s1 + $0x204] sm:$0xf]
      %v838 = vld [vmem:[%s1 + $0x208] sm:$0xf]
      %v839 = vld [vmem:[%s1 + $0x20c] sm:$0xf]
      %v840 = vld [vmem:[%s1 + $0x210] sm:$0xf]
      %v841 = vld [vmem:[%s1 + $0x214] sm:$0xf]
      %v842 = vld [vmem:[%s1 + $0x218] sm:$0xf]
      %v843 = vld [vmem:[%s1 + $0x21c] sm:$0xf]
      %v844 = vld [vmem:[%s1 + $0x220] sm:$0xf]
      %v845 = vld [vmem:[%s1 + $0x224] sm:$0xf]
      %v846 = vld [vmem:[%s1 + $0x228] sm:$0xf]
      %v847 = vld [vmem:[%s1 + $0x22c] sm:$0xf]
      %v848 = vld [vmem:[%s1 + $0x230] sm:$0xf]
      %v849 = vld [vmem:[%s1 + $0x234] sm:$0xf]
      %v850 = vld [vmem:[%s1 + $0x238] sm:$0xf]
      %v851 = vld [vmem:[%s1 + $0x23c] sm:$0xf]
      %v852 = vld [vmem:[%s2] sm:$0x1]
      %v854 = vperm.slane %v852, 0
      %v1000 = vunpack.c.l.b16 %v708
      %v1001 = vunpack.c.l.b16 %v709
      %v1002 = vunpack.c.l.b16 %v710
      %v1003 = vunpack.c.l.b16 %v711
      %v1004 = vunpack.c.l.b16 %v712
      %v1005 = vunpack.c.l.b16 %v713
      %v1006 = vunpack.c.l.b16 %v714
      %v1007 = vunpack.c.l.b16 %v715
      %v1008 = vunpack.c.l.b16 %v716
      %v1009 = vunpack.c.l.b16 %v717
      %v1010 = vunpack.c.l.b16 %v718
      %v1011 = vunpack.c.l.b16 %v719
      %v1012 = vunpack.c.l.b16 %v720
      %v1013 = vunpack.c.l.b16 %v721
      %v1014 = vunpack.c.l.b16 %v722
      %v1015 = vunpack.c.l.b16 %v723
      %v1016 = vunpack.c.l.b16 %v724
      %v1017 = vunpack.c.l.b16 %v725
      %v1018 = vunpack.c.l.b16 %v726
      %v1019 = vunpack.c.l.b16 %v727
      %v1020 = vunpack.c.l.b16 %v728
      %v1021 = vunpack.c.l.b16 %v729
      %v1022 = vunpack.c.l.b16 %v730
      %v1023 = vunpack.c.l.b16 %v731
      %v1024 = vunpack.c.l.b16 %v732
      %v1025 = vunpack.c.l.b16 %v733
      %v1026 = vunpack.c.l.b16 %v734
      %v1027 = vunpack.c.l.b16 %v735
      %v1028 = vunpack.c.l.b16 %v736
      %v1029 = vunpack.c.l.b16 %v737
      %v1030 = vunpack.c.l.b16 %v738
      %v1031 = vunpack.c.l.b16 %v739
      %v1032 = vunpack.c.l.b16 %v740
      %v1033 = vunpack.c.l.b16 %v741
      %v1034 = vunpack.c.l.b16 %v742
      %v1035 = vunpack.c.l.b16 %v743
      %v1036 = vunpack.c.l.b16 %v744
      %v1037 = vunpack.c.l.b16 %v745
      %v1038 = vunpack.c.l.b16 %v746
      %v1039 = vunpack.c.l.b16 %v747
      %v1040 = vunpack.c.l.b16 %v748
      %v1041 = vunpack.c.l.b16 %v749
      %v1042 = vunpack.c.l.b16 %v750
      %v1043 = vunpack.c.l.b16 %v751
      %v1044 = vunpack.c.l.b16 %v752
      %v1045 = vunpack.c.l.b16 %v753
      %v1046 = vunpack.c.l.b16 %v754
      %v1047 = vunpack.c.l.b16 %v755
      %v1048 = vunpack.c.l.b16 %v756
      %v1049 = vunpack.c.l.b16 %v757
      %v1050 = vunpack.c.l.b16 %v758
      %v1051 = vunpack.c.l.b16 %v759
      %v1052 = vunpack.c.l.b16 %v760
      %v1053 = vunpack.c.l.b16 %v761
      %v1054 = vunpack.c.l.b16 %v762
      %v1055 = vunpack.c.l.b16 %v763
      %v1056 = vunpack.c.l.b16 %v764
      %v1057 = vunpack.c.l.b16 %v765
      %v1058 = vunpack.c.l.b16 %v766
      %v1059 = vunpack.c.l.b16 %v767
      %v1060 = vunpack.c.l.b16 %v768
      %v1061 = vunpack.c.l.b16 %v769
      %v1062 = vunpack.c.l.b16 %v770
      %v1063 = vunpack.c.l.b16 %v771
      %v1064 = vunpack.c.l.b16 %v772
      %v1065 = vunpack.c.l.b16 %v773
      %v1066 = vunpack.c.l.b16 %v774
      %v1067 = vunpack.c.l.b16 %v775
      %v1068 = vunpack.c.l.b16 %v776
      %v1069 = vunpack.c.l.b16 %v777
      %v1070 = vunpack.c.l.b16 %v778
      %v1071 = vunpack.c.l.b16 %v779
      %v1072 = vunpack.c.l.b16 %v780
      %v1073 = vunpack.c.l.b16 %v781
      %v1074 = vunpack.c.l.b16 %v782
      %v1075 = vunpack.c.l.b16 %v783
      %v1076 = vunpack.c.l.b16 %v784
      %v1077 = vunpack.c.l.b16 %v785
      %v1078 = vunpack.c.l.b16 %v786
      %v1079 = vunpack.c.l.b16 %v787
      %v1080 = vunpack.c.l.b16 %v788
      %v1081 = vunpack.c.l.b16 %v789
      %v1082 = vunpack.c.l.b16 %v790
      %v1083 = vunpack.c.l.b16 %v791
      %v1084 = vunpack.c.l.b16 %v792
      %v1085 = vunpack.c.l.b16 %v793
      %v1086 = vunpack.c.l.b16 %v794
      %v1087 = vunpack.c.l.b16 %v795
      %v1088 = vunpack.c.l.b16 %v796
      %v1089 = vunpack.c.l.b16 %v797
      %v1090 = vunpack.c.l.b16 %v798
      %v1091 = vunpack.c.l.b16 %v799
      %v1092 = vunpack.c.l.b16 %v800
      %v1093 = vunpack.c.l.b16 %v801
      %v1094 = vunpack.c.l.b16 %v802
      %v1095 = vunpack.c.l.b16 %v803
      %v1096 = vunpack.c.l.b16 %v804
      %v1097 = vunpack.c.l.b16 %v805
      %v1098 = vunpack.c.l.b16 %v806
      %v1099 = vunpack.c.l.b16 %v807
      %v1100 = vunpack.c.l.b16 %v808
      %v1101 = vunpack.c.l.b16 %v809
      %v1102 = vunpack.c.l.b16 %v810
      %v1103 = vunpack.c.l.b16 %v811
      %v1104 = vunpack.c.l.b16 %v812
      %v1105 = vunpack.c.l.b16 %v813
      %v1106 = vunpack.c.l.b16 %v814
      %v1107 = vunpack.c.l.b16 %v815
      %v1108 = vunpack.c.l.b16 %v816
      %v1109 = vunpack.c.l.b16 %v817
      %v1110 = vunpack.c.l.b16 %v818
      %v1111 = vunpack.c.l.b16 %v819
      %v1112 = vunpack.c.l.b16 %v820
      %v1113 = vunpack.c.l.b16 %v821
      %v1114 = vunpack.c.l.b16 %v822
      %v1115 = vunpack.c.l.b16 %v823
      %v1116 = vunpack.c.l.b16 %v824
      %v1117 = vunpack.c.l.b16 %v825
      %v1118 = vunpack.c.l.b16 %v826
      %v1119 = vunpack.c.l.b16 %v827
      %v1120 = vunpack.c.l.b16 %v828
      %v1121 = vunpack.c.l.b16 %v829
      %v1122 = vunpack.c.l.b16 %v830
      %v1123 = vunpack.c.l.b16 %v831
      %v1124 = vunpack.c.l.b16 %v832
      %v1125 = vunpack.c.l.b16 %v833
      %v1126 = vunpack.c.l.b16 %v834
      %v1127 = vunpack.c.l.b16 %v835
      %v1128 = vunpack.c.l.b16 %v836
      %v1129 = vunpack.c.l.b16 %v837
      %v1130 = vunpack.c.l.b16 %v838
      %v1131 = vunpack.c.l.b16 %v839
      %v1132 = vunpack.c.l.b16 %v840
      %v1133 = vunpack.c.l.b16 %v841
      %v1134 = vunpack.c.l.b16 %v842
      %v1135 = vunpack.c.l.b16 %v843
      %v1136 = vunpack.c.l.b16 %v844
      %v1137 = vunpack.c.l.b16 %v845
      %v1138 = vunpack.c.l.b16 %v846
      %v1139 = vunpack.c.l.b16 %v847
      %v1140 = vunpack.c.l.b16 %v848
      %v1141 = vunpack.c.l.b16 %v849
      %v1142 = vunpack.c.l.b16 %v850
      %v1143 = vunpack.c.l.b16 %v851
      %v1144 = vpack.c.b16 %v1001, %v1000
      %v1145 = vpack.c.b16 %v1003, %v1002
      %v1146 = vpack.c.b16 %v1005, %v1004
      %v1147 = vpack.c.b16 %v1007, %v1006
      %v1148 = vpack.c.b16 %v1009, %v1008
      %v1149 = vpack.c.b16 %v1011, %v1010
      %v1150 = vpack.c.b16 %v1013, %v1012
      %v1151 = vpack.c.b16 %v1015, %v1014
      %v1152 = vpack.c.b16 %v1017, %v1016
      %v1153 = vpack.c.b16 %v1019, %v1018
      %v1154 = vpack.c.b16 %v1021, %v1020
      %v1155 = vpack.c.b16 %v1023, %v1022
      %v1156 = vpack.c.b16 %v1025, %v1024
      %v1157 = vpack.c.b16 %v1027, %v1026
      %v1158 = vpack.c.b16 %v1029, %v1028
      %v1159 = vpack.c.b16 %v1031, %v1030
      %v1160 = vpack.c.b16 %v1033, %v1032
      %v1161 = vpack.c.b16 %v1035, %v1034
      %v1162 = vpack.c.b16 %v1037, %v1036
      %v1163 = vpack.c.b16 %v1039, %v1038
      %v1164 = vpack.c.b16 %v1041, %v1040
      %v1165 = vpack.c.b16 %v1043, %v1042
      %v1166 = vpack.c.b16 %v1045, %v1044
      %v1167 = vpack.c.b16 %v1047, %v1046
      %v1168 = vpack.c.b16 %v1049, %v1048
      %v1169 = vpack.c.b16 %v1051, %v1050
      %v1170 = vpack.c.b16 %v1053, %v1052
      %v1171 = vpack.c.b16 %v1055, %v1054
      %v1172 = vpack.c.b16 %v1057, %v1056
      %v1173 = vpack.c.b16 %v1059, %v1058
      %v1174 = vpack.c.b16 %v1061, %v1060
      %v1175 = vpack.c.b16 %v1063, %v1062
      %v1176 = vpack.c.b16 %v1065, %v1064
      %v1177 = vpack.c.b16 %v1067, %v1066
      %v1178 = vpack.c.b16 %v1069, %v1068
      %v1179 = vpack.c.b16 %v1071, %v1070
      %v1180 = vpack.c.b16 %v1073, %v1072
      %v1181 = vpack.c.b16 %v1075, %v1074
      %v1182 = vpack.c.b16 %v1077, %v1076
      %v1183 = vpack.c.b16 %v1079, %v1078
      %v1184 = vpack.c.b16 %v1081, %v1080
      %v1185 = vpack.c.b16 %v1083, %v1082
      %v1186 = vpack.c.b16 %v1085, %v1084
      %v1187 = vpack.c.b16 %v1087, %v1086
      %v1188 = vpack.c.b16 %v1089, %v1088
      %v1189 = vpack.c.b16 %v1091, %v1090
      %v1190 = vpack.c.b16 %v1093, %v1092
      %v1191 = vpack.c.b16 %v1095, %v1094
      %v1192 = vpack.c.b16 %v1097, %v1096
      %v1193 = vpack.c.b16 %v1099, %v1098
      %v1194 = vpack.c.b16 %v1101, %v1100
      %v1195 = vpack.c.b16 %v1103, %v1102
      %v1196 = vpack.c.b16 %v1105, %v1104
      %v1197 = vpack.c.b16 %v1107, %v1106
      %v1198 = vpack.c.b16 %v1109, %v1108
      %v1199 = vpack.c.b16 %v1111, %v1110
      %v1200 = vpack.c.b16 %v1113, %v1112
      %v1201 = vpack.c.b16 %v1115, %v1114
      %v1202 = vpack.c.b16 %v1117, %v1116
      %v1203 = vpack.c.b16 %v1119, %v1118
      %v1204 = vpack.c.b16 %v1121, %v1120
      %v1205 = vpack.c.b16 %v1123, %v1122
      %v1206 = vpack.c.b16 %v1125, %v1124
      %v1207 = vpack.c.b16 %v1127, %v1126
      %v1208 = vpack.c.b16 %v1129, %v1128
      %v1209 = vpack.c.b16 %v1131, %v1130
      %v1210 = vpack.c.b16 %v1133, %v1132
      %v1211 = vpack.c.b16 %v1135, %v1134
      %v1212 = vpack.c.b16 %v1137, %v1136
      %v1213 = vpack.c.b16 %v1139, %v1138
      %v1214 = vpack.c.b16 %v1141, %v1140
      %v1215 = vpack.c.b16 %v1143, %v1142
      %1288 = vmatpush.bf16.msra.mxu0 %v1151
      %1289 = vmatpush.bf16.msra.mxu0 %v1150
      %1290 = vmatpush.bf16.msra.mxu0 %v1149
      %1291 = vmatpush.bf16.msra.mxu0 %v1148
      %1292 = vmatpush.bf16.msra.mxu0 %v1147
      %1293 = vmatpush.bf16.msra.mxu0 %v1146
      %1294 = vmatpush.bf16.msra.mxu0 %v1145
      %1295 = vmatpush.bf16.msra.mxu0 %v1144
      %1296 = vmatmul.bf16.gmra.mxu0 %v508
      %v1297 = vpop.f32.mrf.mxu0
      %v1298 = vadd.f32 %v854, %v1297
      %v1299 = vpop.f32.mrf.mxu0
      %v1300 = vadd.f32 %v854, %v1299
      %1301 = vmatmul.bf16.gmra.mxu0 %v509
      %v1302 = vpop.f32.mrf.mxu0
      %v1303 = vadd.f32 %v854, %v1302
      %v1304 = vpop.f32.mrf.mxu0
      %v1305 = vadd.f32 %v854, %v1304
      %1306 = vmatmul.bf16.gmra.mxu0 %v510
      %v1307 = vpop.f32.mrf.mxu0
      %v1308 = vadd.f32 %v854, %v1307
      %v1309 = vpop.f32.mrf.mxu0
      %v1310 = vadd.f32 %v854, %v1309
      %1311 = vmatmul.bf16.gmra.mxu0 %v511
      %v1312 = vpop.f32.mrf.mxu0
      %v1313 = vadd.f32 %v854, %v1312
      %v1314 = vpop.f32.mrf.mxu0
      %v1315 = vadd.f32 %v854, %v1314
      %1316 = vdwg.mxu0
      %1317 = vmatpush.bf16.msra.mxu0 %v1159
      %1318 = vmatpush.bf16.msra.mxu0 %v1158
      %1319 = vmatpush.bf16.msra.mxu0 %v1157
      %1320 = vmatpush.bf16.msra.mxu0 %v1156
      %1321 = vmatpush.bf16.msra.mxu0 %v1155
      %1322 = vmatpush.bf16.msra.mxu0 %v1154
      %1323 = vmatpush.bf16.msra.mxu0 %v1153
      %1324 = vmatpush.bf16.msra.mxu0 %v1152
      %1325 = vmatmul.bf16.gmra.mxu0 %v532
      %v1326 = vpop.f32.mrf.mxu0
      %v1327 = vadd.f32 %v1298, %v1326
      %v1328 = vpop.f32.mrf.mxu0
      %v1329 = vadd.f32 %v1300, %v1328
      %1330 = vmatmul.bf16.gmra.mxu0 %v533
      %v1331 = vpop.f32.mrf.mxu0
      %v1332 = vadd.f32 %v1303, %v1331
      %v1333 = vpop.f32.mrf.mxu0
      %v1334 = vadd.f32 %v1305, %v1333
      %1335 = vmatmul.bf16.gmra.mxu0 %v534
      %v1336 = vpop.f32.mrf.mxu0
      %v1337 = vadd.f32 %v1308, %v1336
      %v1338 = vpop.f32.mrf.mxu0
      %v1339 = vadd.f32 %v1310, %v1338
      %1340 = vmatmul.bf16.gmra.mxu0 %v535
      %v1341 = vpop.f32.mrf.mxu0
      %v1342 = vadd.f32 %v1313, %v1341
      %v1343 = vpop.f32.mrf.mxu0
      %v1344 = vadd.f32 %v1315, %v1343
      %1345 = vdwg.mxu0
      %1346 = vmatpush.bf16.msra.mxu0 %v1167
      %1347 = vmatpush.bf16.msra.mxu0 %v1166
      %1348 = vmatpush.bf16.msra.mxu0 %v1165
      %1349 = vmatpush.bf16.msra.mxu0 %v1164
      %1350 = vmatpush.bf16.msra.mxu0 %v1163
      %1351 = vmatpush.bf16.msra.mxu0 %v1162
      %1352 = vmatpush.bf16.msra.mxu0 %v1161
      %1353 = vmatpush.bf16.msra.mxu0 %v1160
      %1354 = vmatmul.bf16.gmra.mxu0 %v556
      %v1355 = vpop.f32.mrf.mxu0
      %v1356 = vadd.f32 %v1327, %v1355
      %v1357 = vpop.f32.mrf.mxu0
      %v1358 = vadd.f32 %v1329, %v1357
      %1359 = vmatmul.bf16.gmra.mxu0 %v557
      %v1360 = vpop.f32.mrf.mxu0
      %v1361 = vadd.f32 %v1332, %v1360
      %v1362 = vpop.f32.mrf.mxu0
      %v1363 = vadd.f32 %v1334, %v1362
      %1364 = vmatmul.bf16.gmra.mxu0 %v558
      %v1365 = vpop.f32.mrf.mxu0
      %v1366 = vadd.f32 %v1337, %v1365
      %v1367 = vpop.f32.mrf.mxu0
      %v1368 = vadd.f32 %v1339, %v1367
      %1369 = vmatmul.bf16.gmra.mxu0 %v559
      %v1370 = vpop.f32.mrf.mxu0
      %v1371 = vadd.f32 %v1342, %v1370
      %v1372 = vpop.f32.mrf.mxu0
      %v1373 = vadd.f32 %v1344, %v1372
      %1374 = vdwg.mxu0
      %1375 = vmatpush.bf16.msra.mxu0 %v1175
      %1376 = vmatpush.bf16.msra.mxu0 %v1174
      %1377 = vmatpush.bf16.msra.mxu0 %v1173
      %1378 = vmatpush.bf16.msra.mxu0 %v1172
      %1379 = vmatpush.bf16.msra.mxu0 %v1171
      %1380 = vmatpush.bf16.msra.mxu0 %v1170
      %1381 = vmatpush.bf16.msra.mxu0 %v1169
      %1382 = vmatpush.bf16.msra.mxu0 %v1168
      %1383 = vmatmul.bf16.gmra.mxu0 %v580
      %v1384 = vpop.f32.mrf.mxu0
      %v1385 = vadd.f32 %v1356, %v1384
      %v1386 = vpop.f32.mrf.mxu0
      %v1387 = vadd.f32 %v1358, %v1386
      %1388 = vmatmul.bf16.gmra.mxu0 %v581
      %v1389 = vpop.f32.mrf.mxu0
      %v1390 = vadd.f32 %v1361, %v1389
      %v1391 = vpop.f32.mrf.mxu0
      %v1392 = vadd.f32 %v1363, %v1391
      %1393 = vmatmul.bf16.gmra.mxu0 %v582
      %v1394 = vpop.f32.mrf.mxu0
      %v1395 = vadd.f32 %v1366, %v1394
      %v1396 = vpop.f32.mrf.mxu0
      %v1397 = vadd.f32 %v1368, %v1396
      %1398 = vmatmul.bf16.gmra.mxu0 %v583
      %v1399 = vpop.f32.mrf.mxu0
      %v1400 = vadd.f32 %v1371, %v1399
      %v1401 = vpop.f32.mrf.mxu0
      %v1402 = vadd.f32 %v1373, %v1401
      %1403 = vdwg.mxu0
      %1404 = vmatpush.bf16.msra.mxu0 %v1183
      %1405 = vmatpush.bf16.msra.mxu0 %v1182
      %1406 = vmatpush.bf16.msra.mxu0 %v1181
      %1407 = vmatpush.bf16.msra.mxu0 %v1180
      %1408 = vmatpush.bf16.msra.mxu0 %v1179
      %1409 = vmatpush.bf16.msra.mxu0 %v1178
      %1410 = vmatpush.bf16.msra.mxu0 %v1177
      %1411 = vmatpush.bf16.msra.mxu0 %v1176
      %1412 = vmatmul.bf16.gmra.mxu0 %v604
      %v1413 = vpop.f32.mrf.mxu0
      %v1414 = vadd.f32 %v1385, %v1413
      %v1415 = vpop.f32.mrf.mxu0
      %v1416 = vadd.f32 %v1387, %v1415
      %1417 = vmatmul.bf16.gmra.mxu0 %v605
      %v1418 = vpop.f32.mrf.mxu0
      %v1419 = vadd.f32 %v1390, %v1418
      %v1420 = vpop.f32.mrf.mxu0
      %v1421 = vadd.f32 %v1392, %v1420
      %1422 = vmatmul.bf16.gmra.mxu0 %v606
      %v1423 = vpop.f32.mrf.mxu0
      %v1424 = vadd.f32 %v1395, %v1423
      %v1425 = vpop.f32.mrf.mxu0
      %v1426 = vadd.f32 %v1397, %v1425
      %1427 = vmatmul.bf16.gmra.mxu0 %v607
      %v1428 = vpop.f32.mrf.mxu0
      %v1429 = vadd.f32 %v1400, %v1428
      %v1430 = vpop.f32.mrf.mxu0
      %v1431 = vadd.f32 %v1402, %v1430
      %1432 = vdwg.mxu0
      %1433 = vmatpush.bf16.msra.mxu0 %v1191
      %1434 = vmatpush.bf16.msra.mxu0 %v1190
      %1435 = vmatpush.bf16.msra.mxu0 %v1189
      %1436 = vmatpush.bf16.msra.mxu0 %v1188
      %1437 = vmatpush.bf16.msra.mxu0 %v1187
      %1438 = vmatpush.bf16.msra.mxu0 %v1186
      %1439 = vmatpush.bf16.msra.mxu0 %v1185
      %1440 = vmatpush.bf16.msra.mxu0 %v1184
      %1441 = vmatmul.bf16.gmra.mxu0 %v628
      %v1442 = vpop.f32.mrf.mxu0
      %v1443 = vadd.f32 %v1414, %v1442
      %v1444 = vpop.f32.mrf.mxu0
      %v1445 = vadd.f32 %v1416, %v1444
      %1446 = vmatmul.bf16.gmra.mxu0 %v629
      %v1447 = vpop.f32.mrf.mxu0
      %v1448 = vadd.f32 %v1419, %v1447
      %v1449 = vpop.f32.mrf.mxu0
      %v1450 = vadd.f32 %v1421, %v1449
      %1451 = vmatmul.bf16.gmra.mxu0 %v630
      %v1452 = vpop.f32.mrf.mxu0
      %v1453 = vadd.f32 %v1424, %v1452
      %v1454 = vpop.f32.mrf.mxu0
      %v1455 = vadd.f32 %v1426, %v1454
      %1456 = vmatmul.bf16.gmra.mxu0 %v631
      %v1457 = vpop.f32.mrf.mxu0
      %v1458 = vadd.f32 %v1429, %v1457
      %v1459 = vpop.f32.mrf.mxu0
      %v1460 = vadd.f32 %v1431, %v1459
      %1461 = vdwg.mxu0
      %1462 = vmatpush.bf16.msra.mxu0 %v1199
      %1463 = vmatpush.bf16.msra.mxu0 %v1198
      %1464 = vmatpush.bf16.msra.mxu0 %v1197
      %1465 = vmatpush.bf16.msra.mxu0 %v1196
      %1466 = vmatpush.bf16.msra.mxu0 %v1195
      %1467 = vmatpush.bf16.msra.mxu0 %v1194
      %1468 = vmatpush.bf16.msra.mxu0 %v1193
      %1469 = vmatpush.bf16.msra.mxu0 %v1192
      %1470 = vmatmul.bf16.gmra.mxu0 %v652
      %v1471 = vpop.f32.mrf.mxu0
      %v1472 = vadd.f32 %v1443, %v1471
      %v1473 = vpop.f32.mrf.mxu0
      %v1474 = vadd.f32 %v1445, %v1473
      %1475 = vmatmul.bf16.gmra.mxu0 %v653
      %v1476 = vpop.f32.mrf.mxu0
      %v1477 = vadd.f32 %v1448, %v1476
      %v1478 = vpop.f32.mrf.mxu0
      %v1479 = vadd.f32 %v1450, %v1478
      %1480 = vmatmul.bf16.gmra.mxu0 %v654
      %v1481 = vpop.f32.mrf.mxu0
      %v1482 = vadd.f32 %v1453, %v1481
      %v1483 = vpop.f32.mrf.mxu0
      %v1484 = vadd.f32 %v1455, %v1483
      %1485 = vmatmul.bf16.gmra.mxu0 %v655
      %v1486 = vpop.f32.mrf.mxu0
      %v1487 = vadd.f32 %v1458, %v1486
      %v1488 = vpop.f32.mrf.mxu0
      %v1489 = vadd.f32 %v1460, %v1488
      %1490 = vdwg.mxu0
      %1491 = vmatpush.bf16.msra.mxu0 %v1207
      %1492 = vmatpush.bf16.msra.mxu0 %v1206
      %1493 = vmatpush.bf16.msra.mxu0 %v1205
      %1494 = vmatpush.bf16.msra.mxu0 %v1204
      %1495 = vmatpush.bf16.msra.mxu0 %v1203
      %1496 = vmatpush.bf16.msra.mxu0 %v1202
      %1497 = vmatpush.bf16.msra.mxu0 %v1201
      %1498 = vmatpush.bf16.msra.mxu0 %v1200
      %1499 = vmatmul.bf16.gmra.mxu0 %v676
      %v1500 = vpop.f32.mrf.mxu0
      %v1501 = vadd.f32 %v1472, %v1500
      %v1502 = vpop.f32.mrf.mxu0
      %v1503 = vadd.f32 %v1474, %v1502
      %1504 = vmatmul.bf16.gmra.mxu0 %v677
      %v1505 = vpop.f32.mrf.mxu0
      %v1506 = vadd.f32 %v1477, %v1505
      %v1507 = vpop.f32.mrf.mxu0
      %v1508 = vadd.f32 %v1479, %v1507
      %1509 = vmatmul.bf16.gmra.mxu0 %v678
      %v1510 = vpop.f32.mrf.mxu0
      %v1511 = vadd.f32 %v1482, %v1510
      %v1512 = vpop.f32.mrf.mxu0
      %v1513 = vadd.f32 %v1484, %v1512
      %1514 = vmatmul.bf16.gmra.mxu0 %v679
      %v1515 = vpop.f32.mrf.mxu0
      %v1516 = vadd.f32 %v1487, %v1515
      %v1517 = vpop.f32.mrf.mxu0
      %v1518 = vadd.f32 %v1489, %v1517
      %1519 = vdwg.mxu0
      %1520 = vmatpush.bf16.msra.mxu0 %v1215
      %1521 = vmatpush.bf16.msra.mxu0 %v1214
      %1522 = vmatpush.bf16.msra.mxu0 %v1213
      %1523 = vmatpush.bf16.msra.mxu0 %v1212
      %1524 = vmatpush.bf16.msra.mxu0 %v1211
      %1525 = vmatpush.bf16.msra.mxu0 %v1210
      %1526 = vmatpush.bf16.msra.mxu0 %v1209
      %1527 = vmatpush.bf16.msra.mxu0 %v1208
      %1528 = vmatmul.bf16.gmra.mxu0 %v700
      %v1529 = vpop.f32.mrf.mxu0
      %v1530 = vadd.f32 %v1501, %v1529
      %v1531 = vpop.f32.mrf.mxu0
      %v1532 = vadd.f32 %v1503, %v1531
      %1533 = vmatmul.bf16.gmra.mxu0 %v701
      %v1534 = vpop.f32.mrf.mxu0
      %v1535 = vadd.f32 %v1506, %v1534
      %v1536 = vpop.f32.mrf.mxu0
      %v1537 = vadd.f32 %v1508, %v1536
      %1538 = vmatmul.bf16.gmra.mxu0 %v702
      %v1539 = vpop.f32.mrf.mxu0
      %v1540 = vadd.f32 %v1511, %v1539
      %v1541 = vpop.f32.mrf.mxu0
      %v1542 = vadd.f32 %v1513, %v1541
      %1543 = vmatmul.bf16.gmra.mxu0 %v703
      %v1544 = vpop.f32.mrf.mxu0
      %v1545 = vadd.f32 %v1516, %v1544
      %v1546 = vpop.f32.mrf.mxu0
      %v1547 = vadd.f32 %v1518, %v1546
      %1548 = vdwg.mxu0
      %vm1549 = vcmp.ge.f32.partialorder %v1530, 0.0
      %vm1550 = vcmp.ge.f32.partialorder %v1532, 0.0
      %vm1551 = vcmp.ge.f32.partialorder %v1535, 0.0
      %vm1552 = vcmp.ge.f32.partialorder %v1537, 0.0
      %vm1553 = vcmp.ge.f32.partialorder %v1540, 0.0
      %vm1554 = vcmp.ge.f32.partialorder %v1542, 0.0
      %vm1555 = vcmp.ge.f32.partialorder %v1545, 0.0
      %vm1556 = vcmp.ge.f32.partialorder %v1547, 0.0
      %v1557 = vmul.f32 %v1530, 0.1
      %v1558 = vmul.f32 %v1532, 0.1
      %v1559 = vmul.f32 %v1535, 0.1
      %v1560 = vmul.f32 %v1537, 0.1
      %v1561 = vmul.f32 %v1540, 0.1
      %v1562 = vmul.f32 %v1542, 0.1
      %v1563 = vmul.f32 %v1545, 0.1
      %v1564 = vmul.f32 %v1547, 0.1
      %v1565 = vsel %vm1549, %v1530, %v1557
      %v1566 = vsel %vm1550, %v1532, %v1558
      %v1567 = vsel %vm1551, %v1535, %v1559
      %v1568 = vsel %vm1552, %v1537, %v1560
      %v1569 = vsel %vm1553, %v1540, %v1561
      %v1570 = vsel %vm1554, %v1542, %v1562
      %v1571 = vsel %vm1555, %v1545, %v1563
      %v1572 = vsel %vm1556, %v1547, %v1564
      %v1573 = vpack.c.bf16 %v1566, %v1565
      %v1574 = vpack.c.bf16 %v1568, %v1567
      %v1575 = vpack.c.bf16 %v1570, %v1569
      %v1576 = vpack.c.bf16 %v1572, %v1571
      %v1577 = vld [vmem:[%s3] sm:$0xf]
      %v1578 = vld [vmem:[%s3 + $0x4] sm:$0xf]
      %v1579 = vld [vmem:[%s3 + $0x8] sm:$0xf]
      %v1580 = vld [vmem:[%s3 + $0xc] sm:$0xf]
      %v1581 = vld [vmem:[%s3 + $0x10] sm:$0xf]
      %v1582 = vld [vmem:[%s3 + $0x14] sm:$0xf]
      %v1583 = vld [vmem:[%s3 + $0x18] sm:$0xf]
      %v1584 = vld [vmem:[%s3 + $0x1c] sm:$0xf]
      %v1585 = vld [vmem:[%s3 + $0x20] sm:$0xf]
      %v1586 = vld [vmem:[%s3 + $0x24] sm:$0xf]
      %v1587 = vld [vmem:[%s3 + $0x28] sm:$0xf]
      %v1588 = vld [vmem:[%s3 + $0x2c] sm:$0xf]
      %v1589 = vld [vmem:[%s3 + $0x30] sm:$0xf]
      %v1590 = vld [vmem:[%s3 + $0x34] sm:$0xf]
      %v1591 = vld [vmem:[%s3 + $0x38] sm:$0xf]
      %v1592 = vld [vmem:[%s3 + $0x3c] sm:$0xf]
      %v1593 = vld [vmem:[%s4] sm:$0x1]
      %v1595 = vperm.slane %v1593, 0
      %v1613 = vunpack.c.l.b16 %v1577
      %v1614 = vunpack.c.l.b16 %v1578
      %v1615 = vunpack.c.l.b16 %v1579
      %v1616 = vunpack.c.l.b16 %v1580
      %v1617 = vunpack.c.l.b16 %v1581
      %v1618 = vunpack.c.l.b16 %v1582
      %v1619 = vunpack.c.l.b16 %v1583
      %v1620 = vunpack.c.l.b16 %v1584
      %v1621 = vunpack.c.l.b16 %v1585
      %v1622 = vunpack.c.l.b16 %v1586
      %v1623 = vunpack.c.l.b16 %v1587
      %v1624 = vunpack.c.l.b16 %v1588
      %v1625 = vunpack.c.l.b16 %v1589
      %v1626 = vunpack.c.l.b16 %v1590
      %v1627 = vunpack.c.l.b16 %v1591
      %v1628 = vunpack.c.l.b16 %v1592
      %v1629 = vpack.c.b16 %v1614, %v1613
      %v1630 = vpack.c.b16 %v1616, %v1615
      %v1631 = vpack.c.b16 %v1618, %v1617
      %v1632 = vpack.c.b16 %v1620, %v1619
      %v1633 = vpack.c.b16 %v1622, %v1621
      %v1634 = vpack.c.b16 %v1624, %v1623
      %v1635 = vpack.c.b16 %v1626, %v1625
      %v1636 = vpack.c.b16 %v1628, %v1627
      %1645 = vmatpush.bf16.msra.mxu0 %v1636
      %1646 = vmatpush.bf16.msra.mxu0 %v1635
      %1647 = vmatpush.bf16.msra.mxu0 %v1634
      %1648 = vmatpush.bf16.msra.mxu0 %v1633
      %1649 = vmatpush.bf16.msra.mxu0 %v1632
      %1650 = vmatpush.bf16.msra.mxu0 %v1631
      %1651 = vmatpush.bf16.msra.mxu0 %v1630
      %1652 = vmatpush.bf16.msra.mxu0 %v1629
      %1653 = vmatmul.bf16.gmra.mxu0 %v1573
      %v1654 = vpop.f32.mrf.mxu0
      %v1655 = vadd.f32 %v1595, %v1654
      %v1656 = vpop.f32.mrf.mxu0
      %v1657 = vadd.f32 %v1595, %v1656
      %1658 = vmatmul.bf16.gmra.mxu0 %v1574
      %v1659 = vpop.f32.mrf.mxu0
      %v1660 = vadd.f32 %v1595, %v1659
      %v1661 = vpop.f32.mrf.mxu0
      %v1662 = vadd.f32 %v1595, %v1661
      %1663 = vmatmul.bf16.gmra.mxu0 %v1575
      %v1664 = vpop.f32.mrf.mxu0
      %v1665 = vadd.f32 %v1595, %v1664
      %v1666 = vpop.f32.mrf.mxu0
      %v1667 = vadd.f32 %v1595, %v1666
      %1668 = vmatmul.bf16.gmra.mxu0 %v1576
      %v1669 = vpop.f32.mrf.mxu0
      %v1670 = vadd.f32 %v1595, %v1669
      %v1671 = vpop.f32.mrf.mxu0
      %v1672 = vadd.f32 %v1595, %v1671
      %1673 = vdwg.mxu0
      %vm1674 = vcmp.ge.f32.partialorder %v1655, 0.0
      %vm1675 = vcmp.ge.f32.partialorder %v1657, 0.0
      %vm1676 = vcmp.ge.f32.partialorder %v1660, 0.0
      %vm1677 = vcmp.ge.f32.partialorder %v1662, 0.0
      %vm1678 = vcmp.ge.f32.partialorder %v1665, 0.0
      %vm1679 = vcmp.ge.f32.partialorder %v1667, 0.0
      %vm1680 = vcmp.ge.f32.partialorder %v1670, 0.0
      %vm1681 = vcmp.ge.f32.partialorder %v1672, 0.0
      %v1682 = vmul.f32 %v1655, 0.1
      %v1683 = vmul.f32 %v1657, 0.1
      %v1684 = vmul.f32 %v1660, 0.1
      %v1685 = vmul.f32 %v1662, 0.1
      %v1686 = vmul.f32 %v1665, 0.1
      %v1687 = vmul.f32 %v1667, 0.1
      %v1688 = vmul.f32 %v1670, 0.1
      %v1689 = vmul.f32 %v1672, 0.1
      %v1690 = vsel %vm1674, %v1655, %v1682
      %v1691 = vsel %vm1675, %v1657, %v1683
      %v1692 = vsel %vm1676, %v1660, %v1684
      %v1693 = vsel %vm1677, %v1662, %v1685
      %v1694 = vsel %vm1678, %v1665, %v1686
      %v1695 = vsel %vm1679, %v1667, %v1687
      %v1696 = vsel %vm1680, %v1670, %v1688
      %v1697 = vsel %vm1681, %v1672, %v1689
      %v1698 = vpack.c.bf16 %v1690, %v1690
      %v1699 = vpack.c.bf16 %v1691, %v1691
      %v1700 = vpack.c.bf16 %v1692, %v1692
      %v1701 = vpack.c.bf16 %v1693, %v1693
      %v1702 = vpack.c.bf16 %v1694, %v1694
      %v1703 = vpack.c.bf16 %v1695, %v1695
      %v1704 = vpack.c.bf16 %v1696, %v1696
      %v1705 = vpack.c.bf16 %v1697, %v1697
      %1706 = vst [vmem:[%s224] sm:$0xf] %v1698
      %1707 = vst [vmem:[%s224 + $0x4] sm:$0xf] %v1699
      %1708 = vst [vmem:[%s224 + $0x8] sm:$0xf] %v1700
      %1709 = vst [vmem:[%s224 + $0xc] sm:$0xf] %v1701
      %1710 = vst [vmem:[%s224 + $0x10] sm:$0xf] %v1702
      %1711 = vst [vmem:[%s224 + $0x14] sm:$0xf] %v1703
      %1712 = vst [vmem:[%s224 + $0x18] sm:$0xf] %v1704
      %1713 = vst [vmem:[%s224 + $0x1c] sm:$0xf] %v1705
      %p1714 = scmp.lt.s32.totalorder %s16, 1
      %s1715 = scalar_select %p1714, %s16, 1
      %s1716 = smul.addr %s1715, 8
      %s1717 = smul.addr %s1716, 4
      %s1718 = scalar_lea.vmem %s5, %s1717
      // Predicated region
      $region41: #{yolov1_forward.9} parent=39 // pred_check
        %p1719 = pneg %p144
      $region42: #{yolov1_forward.9} parent=39 // pred_check_branch
        %1721 = sbr.rel (%p1719) target = $region44
      $region43: #{yolov1_forward.9} parent=39 // pred_region
        _
      $region44: #{yolov1_forward.9} parent=39 // pred_fallthru
        _
    $region40: #{yolov1_forward.9} parent=5 // pred_fallthru
      _
    %p1722 = scmp.le.s32.totalorder 2, %s11
    // Predicated region
    $region45: #{yolov1_forward.9} parent=5 // pred_check
      %p1723 = pneg %p1722
    $region46: #{yolov1_forward.9} parent=5 // pred_check_branch
      %1725 = sbr.rel (%p1723) target = $region48
    $region47: #{yolov1_forward.9} parent=5 // pred_region
      %s1726 = ssub.s32 %s11, 2
      // Predicated region
      $region49: #{yolov1_forward.9} parent=47 // pred_check
        %p1727 = pneg %p150
      $region50: #{yolov1_forward.9} parent=47 // pred_check_branch
        %1729 = sbr.rel (%p1727) target = $region52
      $region51: #{yolov1_forward.9} parent=47 // pred_region
        %p1730 = scmp.lt.s32.totalorder %s17, 1
        %s1731 = scalar_select %p1730, %s17, 1
        %s1732 = smul.addr %s1731, 8
        %s1733 = smul.addr %s1732, 4
        %s1734 = scalar_lea.vmem %s5, %s1733
      $region52: #{yolov1_forward.9} parent=47 // pred_fallthru
        _
    $region48: #{yolov1_forward.9} parent=5 // pred_fallthru
      _
  $region6: #{yolov1_forward.9} parent=0 // loop_footer
    %s15 = sadd.s32 1, %s11
  $region7: #{yolov1_forward.9} parent=0 // loop_footer_branch
    %10 = sbr.rel target = $region3
  $region8: #{yolov1_forward.9} parent=0 // loop_exit
    _

// kernel: yolov1_forward.11
$region0: #{yolov1_forward.11}
  #allocation0 [shape = 'u32[]', space=smem, size = 0x4, offset = 0x4, fixed_abs, tag = 'smem constant byte address 0x4 - core index']
  #allocation1 [shape = 'u32[72,128]{1,0:T(1,128)}', space=vmem, size = 0x9000, scoped, tag = 'internal scratch']
  %s0 = inlined_call_operand.vmem [shape: bf16[2,64,128], index: 0, kind: input, shape index: {}]
  %s1 = inlined_call_operand.vmem [shape: bf16[2,64,128], index: 1, kind: input, shape index: {}]
  %s2 = inlined_call_operand.vmem [shape: bf16[1152,128], index: 2, kind: input, shape index: {}]
  %s3 = inlined_call_operand.vmem [shape: f32[1,128], index: 3, kind: input, shape index: {}]
  %s4 = inlined_call_operand.vmem [shape: bf16[128,128], index: 4, kind: input, shape index: {}]
  %s5 = inlined_call_operand.vmem [shape: f32[1,128], index: 5, kind: input, shape index: {}]
  %s6 = inlined_call_operand.vmem [shape: bf16[128,128], index: 6, kind: input, shape index: {}]
  %s7 = inlined_call_operand.vmem [shape: bf16[128,128], index: 7, kind: input, shape index: {}]
  %s8 = inlined_call_operand.vmem [shape: f32[1,128], index: 8, kind: input, shape index: {}]
  %s9 = inlined_call_operand.vmem [shape: bf16[128,128], index: 9, kind: input, shape index: {}]
  %s10 = inlined_call_operand.vmem [shape: f32[1,128], index: 10, kind: input, shape index: {}]
  %s11 = inlined_call_operand.vmem [shape: f32[2,64,128], index: 11, kind: output, shape index: {}]
  %s12 = sld [smem:[#allocation0]]
  $region77: #{yolov1_forward.11} parent=0
    _
  %s14 = ssub.s32 1, %s12
  %s15 = scalar_select 0, %s14, %s12
  loop: start=0, step=1, limit=4
  $region2: #{yolov1_forward.11} parent=0 // loop_pre_header
    _
  $region3: #{yolov1_forward.11} parent=0 // loop_header
    %s17 = sphi 0, %s21
    %p18 = scmp.ge.s32.totalorder %s17, 4
    %s27 = sphi 0, %s29
    %s30 = sphi 0, %s27
    %s31 = sphi 0, %s30
    %s47 = sphi 0, %s31
    %s53 = sphi 0, %s55
    %s56 = sphi 0, %s53
    %s57 = sphi 0, %s56
    %s73 = sphi 0, %s57
    %s77 = sphi 0, %s77
    %s79 = sphi 0, %s77
    %s80 = sphi 0, %s79
    %s94 = sphi 0, %s80
    %s98 = sphi 0, %s98
    %s100 = sphi 0, %s98
    %s101 = sphi 0, %s100
    %s115 = sphi 0, %s101
    %s119 = sphi 0, %s119
    %s121 = sphi 0, %s119
    %s122 = sphi 0, %s121
    %s136 = sphi 0, %s122
    %s140 = sphi 0, %s140
    %s142 = sphi 0, %s140
    %s143 = sphi 0, %s142
    %s157 = sphi 0, %s143
    %s161 = sphi 0, %s161
    %s163 = sphi 0, %s161
    %s164 = sphi 0, %s163
    %s178 = sphi 0, %s164
    %s182 = sphi 0, %s182
    %s184 = sphi 0, %s182
    %s185 = sphi 0, %s184
    %s199 = sphi 0, %s185
    %s203 = sphi 0, %s203
    %s205 = sphi 0, %s203
    %s206 = sphi 0, %s205
    %s220 = sphi 0, %s206
    %s224 = sphi 0, %s224
    %s226 = sphi 0, %s224
    %s227 = sphi 0, %s226
    %s241 = sphi 0, %s227
    %s245 = sphi 0, %s245
    %s247 = sphi 0, %s245
    %s248 = sphi 0, %s247
    %s262 = sphi 0, %s248
    %s268 = sphi 0, %s270
    %s271 = sphi 0, %s268
    %s272 = sphi 0, %s271
    %s288 = sphi 0, %s272
  $region4: #{yolov1_forward.11} parent=0 // loop_header_branch
    %20 = sbr.rel (%p18) target = $region8
  $region5: #{yolov1_forward.11} parent=0 // loop_body
    %s22 = ssub.s32 %s17, 1
    %s23 = ssub.s32 %s17, 2
    %s24 = sadd.s32 %s17, 1
    %s25 = ssub.s32 %s17, %s24
    %p26 = scmp.eq.s32.totalorder %s25, 0
    %s28 = sadd.s32 %s27, 1
    %s29 = scalar_select %p26, %s27, %s28
    %p32 = pneg %p26
    %p33 = scmp.eq.s32.totalorder %s17, 1
    %p34 = por %p32, %p33
    %p35 = scmp.ne.s32.totalorder %s27, %s30
    %p36 = scmp.eq.s32.totalorder %s17, 0
    %p37 = por %p35, %p36
    %p38 = scmp.ne.s32.totalorder %s27, %s30
    %p39 = scmp.eq.s32.totalorder %s22, 1
    %p40 = por %p38, %p39
    %p41 = scmp.ne.s32.totalorder %s30, %s31
    %p42 = scmp.eq.s32.totalorder %s22, 0
    %p43 = por %p41, %p42
    %p44 = scmp.ne.s32.totalorder %s30, %s31
    %p45 = scmp.eq.s32.totalorder %s23, 1
    %p46 = por %p44, %p45
    %p48 = scmp.ne.s32.totalorder %s31, %s47
    %p49 = scmp.eq.s32.totalorder %s23, 0
    %p50 = por %p48, %p49
    %s51 = ssub.s32 %s17, %s24
    %p52 = scmp.eq.s32.totalorder %s51, 0
    %s54 = sadd.s32 %s53, 1
    %s55 = scalar_select %p52, %s53, %s54
    %p58 = pneg %p52
    %p59 = scmp.eq.s32.totalorder %s17, 1
    %p60 = por %p58, %p59
    %p61 = scmp.ne.s32.totalorder %s53, %s56
    %p62 = scmp.eq.s32.totalorder %s17, 0
    %p63 = por %p61, %p62
    %p64 = scmp.ne.s32.totalorder %s53, %s56
    %p65 = scmp.eq.s32.totalorder %s22, 1
    %p66 = por %p64, %p65
    %p67 = scmp.ne.s32.totalorder %s56, %s57
    %p68 = scmp.eq.s32.totalorder %s22, 0
    %p69 = por %p67, %p68
    %p70 = scmp.ne.s32.totalorder %s56, %s57
    %p71 = scmp.eq.s32.totalorder %s23, 1
    %p72 = por %p70, %p71
    %p74 = scmp.ne.s32.totalorder %s57, %s73
    %p75 = scmp.eq.s32.totalorder %s23, 0
    %p76 = por %p74, %p75
    %s78 = sadd.s32 %s77, 1
    %p81 = scmp.eq.s32.totalorder %s17, 1
    %p82 = scmp.ne.s32.totalorder %s77, %s79
    %p83 = scmp.eq.s32.totalorder %s17, 0
    %p84 = por %p82, %p83
    %p85 = scmp.ne.s32.totalorder %s77, %s79
    %p86 = scmp.eq.s32.totalorder %s22, 1
    %p87 = por %p85, %p86
    %p88 = scmp.ne.s32.totalorder %s79, %s80
    %p89 = scmp.eq.s32.totalorder %s22, 0
    %p90 = por %p88, %p89
    %p91 = scmp.ne.s32.totalorder %s79, %s80
    %p92 = scmp.eq.s32.totalorder %s23, 1
    %p93 = por %p91, %p92
    %p95 = scmp.ne.s32.totalorder %s80, %s94
    %p96 = scmp.eq.s32.totalorder %s23, 0
    %p97 = por %p95, %p96
    %s99 = sadd.s32 %s98, 1
    %p102 = scmp.eq.s32.totalorder %s17, 1
    %p103 = scmp.ne.s32.totalorder %s98, %s100
    %p104 = scmp.eq.s32.totalorder %s17, 0
    %p105 = por %p103, %p104
    %p106 = scmp.ne.s32.totalorder %s98, %s100
    %p107 = scmp.eq.s32.totalorder %s22, 1
    %p108 = por %p106, %p107
    %p109 = scmp.ne.s32.totalorder %s100, %s101
    %p110 = scmp.eq.s32.totalorder %s22, 0
    %p111 = por %p109, %p110
    %p112 = scmp.ne.s32.totalorder %s100, %s101
    %p113 = scmp.eq.s32.totalorder %s23, 1
    %p114 = por %p112, %p113
    %p116 = scmp.ne.s32.totalorder %s101, %s115
    %p117 = scmp.eq.s32.totalorder %s23, 0
    %p118 = por %p116, %p117
    %s120 = sadd.s32 %s119, 1
    %p123 = scmp.eq.s32.totalorder %s17, 1
    %p124 = scmp.ne.s32.totalorder %s119, %s121
    %p125 = scmp.eq.s32.totalorder %s17, 0
    %p126 = por %p124, %p125
    %p127 = scmp.ne.s32.totalorder %s119, %s121
    %p128 = scmp.eq.s32.totalorder %s22, 1
    %p129 = por %p127, %p128
    %p130 = scmp.ne.s32.totalorder %s121, %s122
    %p131 = scmp.eq.s32.totalorder %s22, 0
    %p132 = por %p130, %p131
    %p133 = scmp.ne.s32.totalorder %s121, %s122
    %p134 = scmp.eq.s32.totalorder %s23, 1
    %p135 = por %p133, %p134
    %p137 = scmp.ne.s32.totalorder %s122, %s136
    %p138 = scmp.eq.s32.totalorder %s23, 0
    %p139 = por %p137, %p138
    %s141 = sadd.s32 %s140, 1
    %p144 = scmp.eq.s32.totalorder %s17, 1
    %p145 = scmp.ne.s32.totalorder %s140, %s142
    %p146 = scmp.eq.s32.totalorder %s17, 0
    %p147 = por %p145, %p146
    %p148 = scmp.ne.s32.totalorder %s140, %s142
    %p149 = scmp.eq.s32.totalorder %s22, 1
    %p150 = por %p148, %p149
    %p151 = scmp.ne.s32.totalorder %s142, %s143
    %p152 = scmp.eq.s32.totalorder %s22, 0
    %p153 = por %p151, %p152
    %p154 = scmp.ne.s32.totalorder %s142, %s143
    %p155 = scmp.eq.s32.totalorder %s23, 1
    %p156 = por %p154, %p155
    %p158 = scmp.ne.s32.totalorder %s143, %s157
    %p159 = scmp.eq.s32.totalorder %s23, 0
    %p160 = por %p158, %p159
    %s162 = sadd.s32 %s161, 1
    %p165 = scmp.eq.s32.totalorder %s17, 1
    %p166 = scmp.ne.s32.totalorder %s161, %s163
    %p167 = scmp.eq.s32.totalorder %s17, 0
    %p168 = por %p166, %p167
    %p169 = scmp.ne.s32.totalorder %s161, %s163
    %p170 = scmp.eq.s32.totalorder %s22, 1
    %p171 = por %p169, %p170
    %p172 = scmp.ne.s32.totalorder %s163, %s164
    %p173 = scmp.eq.s32.totalorder %s22, 0
    %p174 = por %p172, %p173
    %p175 = scmp.ne.s32.totalorder %s163, %s164
    %p176 = scmp.eq.s32.totalorder %s23, 1
    %p177 = por %p175, %p176
    %p179 = scmp.ne.s32.totalorder %s164, %s178
    %p180 = scmp.eq.s32.totalorder %s23, 0
    %p181 = por %p179, %p180
    %s183 = sadd.s32 %s182, 1
    %p186 = scmp.eq.s32.totalorder %s17, 1
    %p187 = scmp.ne.s32.totalorder %s182, %s184
    %p188 = scmp.eq.s32.totalorder %s17, 0
    %p189 = por %p187, %p188
    %p190 = scmp.ne.s32.totalorder %s182, %s184
    %p191 = scmp.eq.s32.totalorder %s22, 1
    %p192 = por %p190, %p191
    %p193 = scmp.ne.s32.totalorder %s184, %s185
    %p194 = scmp.eq.s32.totalorder %s22, 0
    %p195 = por %p193, %p194
    %p196 = scmp.ne.s32.totalorder %s184, %s185
    %p197 = scmp.eq.s32.totalorder %s23, 1
    %p198 = por %p196, %p197
    %p200 = scmp.ne.s32.totalorder %s185, %s199
    %p201 = scmp.eq.s32.totalorder %s23, 0
    %p202 = por %p200, %p201
    %s204 = sadd.s32 %s203, 1
    %p207 = scmp.eq.s32.totalorder %s17, 1
    %p208 = scmp.ne.s32.totalorder %s203, %s205
    %p209 = scmp.eq.s32.totalorder %s17, 0
    %p210 = por %p208, %p209
    %p211 = scmp.ne.s32.totalorder %s203, %s205
    %p212 = scmp.eq.s32.totalorder %s22, 1
    %p213 = por %p211, %p212
    %p214 = scmp.ne.s32.totalorder %s205, %s206
    %p215 = scmp.eq.s32.totalorder %s22, 0
    %p216 = por %p214, %p215
    %p217 = scmp.ne.s32.totalorder %s205, %s206
    %p218 = scmp.eq.s32.totalorder %s23, 1
    %p219 = por %p217, %p218
    %p221 = scmp.ne.s32.totalorder %s206, %s220
    %p222 = scmp.eq.s32.totalorder %s23, 0
    %p223 = por %p221, %p222
    %s225 = sadd.s32 %s224, 1
    %p228 = scmp.eq.s32.totalorder %s17, 1
    %p229 = scmp.ne.s32.totalorder %s224, %s226
    %p230 = scmp.eq.s32.totalorder %s17, 0
    %p231 = por %p229, %p230
    %p232 = scmp.ne.s32.totalorder %s224, %s226
    %p233 = scmp.eq.s32.totalorder %s22, 1
    %p234 = por %p232, %p233
    %p235 = scmp.ne.s32.totalorder %s226, %s227
    %p236 = scmp.eq.s32.totalorder %s22, 0
    %p237 = por %p235, %p236
    %p238 = scmp.ne.s32.totalorder %s226, %s227
    %p239 = scmp.eq.s32.totalorder %s23, 1
    %p240 = por %p238, %p239
    %p242 = scmp.ne.s32.totalorder %s227, %s241
    %p243 = scmp.eq.s32.totalorder %s23, 0
    %p244 = por %p242, %p243
    %s246 = sadd.s32 %s245, 1
    %p249 = scmp.eq.s32.totalorder %s17, 1
    %p250 = scmp.ne.s32.totalorder %s245, %s247
    %p251 = scmp.eq.s32.totalorder %s17, 0
    %p252 = por %p250, %p251
    %p253 = scmp.ne.s32.totalorder %s245, %s247
    %p254 = scmp.eq.s32.totalorder %s22, 1
    %p255 = por %p253, %p254
    %p256 = scmp.ne.s32.totalorder %s247, %s248
    %p257 = scmp.eq.s32.totalorder %s22, 0
    %p258 = por %p256, %p257
    %p259 = scmp.ne.s32.totalorder %s247, %s248
    %p260 = scmp.eq.s32.totalorder %s23, 1
    %p261 = por %p259, %p260
    %p263 = scmp.ne.s32.totalorder %s248, %s262
    %p264 = scmp.eq.s32.totalorder %s23, 0
    %p265 = por %p263, %p264
    %s266 = ssub.s32 %s17, %s24
    %p267 = scmp.eq.s32.totalorder %s266, 0
    %s269 = sadd.s32 %s268, 1
    %s270 = scalar_select %p267, %s268, %s269
    %p273 = pneg %p267
    %p274 = scmp.eq.s32.totalorder %s17, 1
    %p275 = por %p273, %p274
    %p276 = scmp.ne.s32.totalorder %s268, %s271
    %p277 = scmp.eq.s32.totalorder %s17, 0
    %p278 = por %p276, %p277
    %p279 = scmp.ne.s32.totalorder %s268, %s271
    %p280 = scmp.eq.s32.totalorder %s22, 1
    %p281 = por %p279, %p280
    %p282 = scmp.ne.s32.totalorder %s271, %s272
    %p283 = scmp.eq.s32.totalorder %s22, 0
    %p284 = por %p282, %p283
    %p285 = scmp.ne.s32.totalorder %s271, %s272
    %p286 = scmp.eq.s32.totalorder %s23, 1
    %p287 = por %p285, %p286
    %p289 = scmp.ne.s32.totalorder %s272, %s288
    %p290 = scmp.eq.s32.totalorder %s23, 0
    %p291 = por %p289, %p290
    %p292 = scmp.le.s32.totalorder 1, %s17
    %p293 = scmp.lt.s32.totalorder %s17, 3
    %p294 = pnand %p292, %p293
    %p295 = pneg %p294
    // Predicated region
    $region9: #{yolov1_forward.11} parent=5 // pred_check
      _
    $region10: #{yolov1_forward.11} parent=5 // pred_check_branch
      %297 = sbr.rel (%p294) target = $region12
    $region11: #{yolov1_forward.11} parent=5 // pred_region
      %s298 = ssub.s32 %s17, 1
      // Predicated region
      $region13: #{yolov1_forward.11} parent=11 // pred_check
        %p299 = pneg %p90
      $region14: #{yolov1_forward.11} parent=11 // pred_check_branch
        %301 = sbr.rel (%p299) target = $region16
      $region15: #{yolov1_forward.11} parent=11 // pred_region
        _
      $region16: #{yolov1_forward.11} parent=11 // pred_fallthru
        _
      // Predicated region
      $region17: #{yolov1_forward.11} parent=11 // pred_check
        %p302 = pneg %p111
      $region18: #{yolov1_forward.11} parent=11 // pred_check_branch
        %304 = sbr.rel (%p302) target = $region20
      $region19: #{yolov1_forward.11} parent=11 // pred_region
        _
      $region20: #{yolov1_forward.11} parent=11 // pred_fallthru
        _
      // Predicated region
      $region21: #{yolov1_forward.11} parent=11 // pred_check
        %p305 = pneg %p132
      $region22: #{yolov1_forward.11} parent=11 // pred_check_branch
        %307 = sbr.rel (%p305) target = $region24
      $region23: #{yolov1_forward.11} parent=11 // pred_region
        _
      $region24: #{yolov1_forward.11} parent=11 // pred_fallthru
        _
      // Predicated region
      $region25: #{yolov1_forward.11} parent=11 // pred_check
        %p308 = pneg %p153
      $region26: #{yolov1_forward.11} parent=11 // pred_check_branch
        %310 = sbr.rel (%p308) target = $region28
      $region27: #{yolov1_forward.11} parent=11 // pred_region
        _
      $region28: #{yolov1_forward.11} parent=11 // pred_fallthru
        _
      // Predicated region
      $region29: #{yolov1_forward.11} parent=11 // pred_check
        %p311 = pneg %p174
      $region30: #{yolov1_forward.11} parent=11 // pred_check_branch
        %313 = sbr.rel (%p311) target = $region32
      $region31: #{yolov1_forward.11} parent=11 // pred_region
        _
      $region32: #{yolov1_forward.11} parent=11 // pred_fallthru
        _
      // Predicated region
      $region33: #{yolov1_forward.11} parent=11 // pred_check
        %p314 = pneg %p195
      $region34: #{yolov1_forward.11} parent=11 // pred_check_branch
        %316 = sbr.rel (%p314) target = $region36
      $region35: #{yolov1_forward.11} parent=11 // pred_region
        _
      $region36: #{yolov1_forward.11} parent=11 // pred_fallthru
        _
      // Predicated region
      $region37: #{yolov1_forward.11} parent=11 // pred_check
        %p317 = pneg %p216
      $region38: #{yolov1_forward.11} parent=11 // pred_check_branch
        %319 = sbr.rel (%p317) target = $region40
      $region39: #{yolov1_forward.11} parent=11 // pred_region
        _
      $region40: #{yolov1_forward.11} parent=11 // pred_fallthru
        _
      // Predicated region
      $region41: #{yolov1_forward.11} parent=11 // pred_check
        %p320 = pneg %p237
      $region42: #{yolov1_forward.11} parent=11 // pred_check_branch
        %322 = sbr.rel (%p320) target = $region44
      $region43: #{yolov1_forward.11} parent=11 // pred_region
        _
      $region44: #{yolov1_forward.11} parent=11 // pred_fallthru
        _
      // Predicated region
      $region45: #{yolov1_forward.11} parent=11 // pred_check
        %p323 = pneg %p258
      $region46: #{yolov1_forward.11} parent=11 // pred_check_branch
        %325 = sbr.rel (%p323) target = $region48
      $region47: #{yolov1_forward.11} parent=11 // pred_region
        _
      $region48: #{yolov1_forward.11} parent=11 // pred_fallthru
        _
    $region12: #{yolov1_forward.11} parent=5 // pred_fallthru
      _
    %p326 = scmp.lt.s32.totalorder %s17, 2
    // Predicated region
    $region49: #{yolov1_forward.11} parent=5 // pred_check
      %p327 = pneg %p326
    $region50: #{yolov1_forward.11} parent=5 // pred_check_branch
      %329 = sbr.rel (%p327) target = $region52
    $region51: #{yolov1_forward.11} parent=5 // pred_region
      // Predicated region
      $region53: #{yolov1_forward.11} parent=51 // pred_check
        %p330 = pneg %p37
      $region54: #{yolov1_forward.11} parent=51 // pred_check_branch
        %332 = sbr.rel (%p330) target = $region56
      $region55: #{yolov1_forward.11} parent=51 // pred_region
        %p333 = scmp.lt.s32.totalorder %s17, 1
        %s334 = scalar_select %p333, %s17, 1
        %s335 = smul.addr %s334, 8
        %s336 = smul.addr %s335, 4
        %s337 = scalar_lea.vmem %s0, %s336
      $region56: #{yolov1_forward.11} parent=51 // pred_fallthru
        _
      // Predicated region
      $region57: #{yolov1_forward.11} parent=51 // pred_check
        %p338 = pneg %p63
      $region58: #{yolov1_forward.11} parent=51 // pred_check_branch
        %340 = sbr.rel (%p338) target = $region60
      $region59: #{yolov1_forward.11} parent=51 // pred_region
        %p341 = scmp.lt.s32.totalorder %s17, 1
        %s342 = scalar_select %p341, %s17, 1
        %s343 = smul.addr %s342, 8
        %s344 = smul.addr %s343, 4
        %s345 = scalar_lea.vmem %s1, %s344
      $region60: #{yolov1_forward.11} parent=51 // pred_fallthru
        _
    $region52: #{yolov1_forward.11} parent=5 // pred_fallthru
      _
    %p346 = scmp.le.s32.totalorder 1, %s17
    %p347 = scmp.lt.s32.totalorder %s17, 3
    %p348 = pnand %p346, %p347
    %p349 = pneg %p348
    // Predicated region
    $region61: #{yolov1_forward.11} parent=5 // pred_check
      _
    $region62: #{yolov1_forward.11} parent=5 // pred_check_branch
      %351 = sbr.rel (%p348) target = $region64
    $region63: #{yolov1_forward.11} parent=5 // pred_region
      %s352 = ssub.s32 %s17, 1
      %p353 = scmp.lt.s32.totalorder %s22, 1
      %s354 = scalar_select %p353, %s22, 1
      %s355 = smul.addr %s354, 8
      %s356 = smul.addr %s355, 4
      %s357 = scalar_lea.vmem %s0, %s356
      %p358 = pneg %p43
      %p359 = pneg %p40
      %p360 = scmp.lt.s32.totalorder %s22, 1
      %s361 = scalar_select %p360, %s22, 1
      %s362 = smul.addr %s361, 8
      %s363 = smul.addr %s362, 4
      %s364 = scalar_lea.vmem %s1, %s363
      %p365 = pneg %p69
      %p366 = pneg %p66
      %p367 = pneg %p90
      %p368 = pneg %p87
      %p369 = pneg %p111
      %p370 = pneg %p108
      %p371 = pneg %p132
      %p372 = pneg %p129
      %p373 = pneg %p153
      %p374 = pneg %p150
      %p375 = pneg %p174
      %p376 = pneg %p171
      %p377 = pneg %p195
      %p378 = pneg %p192
      %p379 = pneg %p216
      %p380 = pneg %p213
      %p381 = pneg %p237
      %p382 = pneg %p234
      %p383 = pneg %p258
      %p384 = pneg %p255
      %p385 = pneg %p284
      %p386 = pneg %p281
      %p387 = scmp.lt.s32.totalorder %s22, 1
      %s388 = scalar_select %p387, %s22, 1
      %s389 = smul.addr %s388, 8
      %s390 = smul.addr %s389, 8
      %s391 = scalar_lea.vmem %s11, %s390
      %p392 = scmp.lt.s32.totalorder %s22, 1
      %s393 = scalar_select %p392, %s22, 1
      %s394 = smul.addr %s393, 8
      %s395 = smul.addr %s394, 4
      %s396 = scalar_lea.vmem %s0, %s395
      %p397 = scmp.lt.s32.totalorder %s22, 1
      %s398 = scalar_select %p397, %s22, 1
      %s399 = smul.addr %s398, 8
      %s400 = smul.addr %s399, 4
      %s401 = scalar_lea.vmem %s1, %s400
      %p402 = scmp.lt.s32.totalorder %s22, 1
      %s403 = scalar_select %p402, %s22, 1
      %s404 = smul.addr %s403, 8
      %s405 = smul.addr %s404, 8
      %s406 = scalar_lea.vmem %s11, %s405
      %v407 = vld [vmem:[%s396] sm:$0xf]
      %v408 = vld [vmem:[%s396 + $0x4] sm:$0xf]
      %v409 = vld [vmem:[%s396 + $0x8] sm:$0xf]
      %v410 = vld [vmem:[%s396 + $0xc] sm:$0xf]
      %v411 = vld [vmem:[%s396 + $0x10] sm:$0xf]
      %v412 = vld [vmem:[%s396 + $0x14] sm:$0xf]
      %v413 = vld [vmem:[%s396 + $0x18] sm:$0xf]
      %v414 = vld [vmem:[%s396 + $0x1c] sm:$0xf]
      %v415 = vunpack.c.l.bf16 %v407
      %v416 = vunpack.c.l.bf16 %v408
      %v417 = vunpack.c.l.bf16 %v409
      %v418 = vunpack.c.l.bf16 %v410
      %v419 = vunpack.c.l.bf16 %v411
      %v420 = vunpack.c.l.bf16 %v412
      %v421 = vunpack.c.l.bf16 %v413
      %v422 = vunpack.c.l.bf16 %v414
      %v423 = vlaneseq
      %v424 = vshrl.u32 %v423, 7
      %v425 = vadd.s32 %v424, 8
      %v426 = vadd.s32 %v424, 16
      %v427 = vadd.s32 %v424, 24
      %v428 = vadd.s32 %v424, 32
      %v429 = vadd.s32 %v424, 40
      %v430 = vadd.s32 %v424, 48
      %v431 = vadd.s32 %v424, 56
      %v432 = vshra.s32 %v424, 3
      %v433 = vshra.s32 %v425, 3
      %v434 = vshra.s32 %v426, 3
      %v435 = vshra.s32 %v427, 3
      %v436 = vshra.s32 %v428, 3
      %v437 = vshra.s32 %v429, 3
      %v438 = vshra.s32 %v430, 3
      %v439 = vshra.s32 %v431, 3
      %v440 = vand.u32 %v424, 7
      %v441 = vand.u32 %v425, 7
      %v442 = vand.u32 %v426, 7
      %v443 = vand.u32 %v427, 7
      %v444 = vand.u32 %v428, 7
      %v445 = vand.u32 %v429, 7
      %v446 = vand.u32 %v430, 7
      %v447 = vand.u32 %v431, 7
      %vm448 = vcmp.ge.s32.totalorder %v432, 1
      %vm449 = vcmp.ge.s32.totalorder %v433, 1
      %vm450 = vcmp.ge.s32.totalorder %v434, 1
      %vm451 = vcmp.ge.s32.totalorder %v435, 1
      %vm452 = vcmp.ge.s32.totalorder %v436, 1
      %vm453 = vcmp.ge.s32.totalorder %v437, 1
      %vm454 = vcmp.ge.s32.totalorder %v438, 1
      %vm455 = vcmp.ge.s32.totalorder %v439, 1
      %vm456 = vcmp.ge.s32.totalorder %v440, 1
      %vm457 = vcmp.ge.s32.totalorder %v441, 1
      %vm458 = vcmp.ge.s32.totalorder %v442, 1
      %vm459 = vcmp.ge.s32.totalorder %v443, 1
      %vm460 = vcmp.ge.s32.totalorder %v444, 1
      %vm461 = vcmp.ge.s32.totalorder %v445, 1
      %vm462 = vcmp.ge.s32.totalorder %v446, 1
      %vm463 = vcmp.ge.s32.totalorder %v447, 1
      %v464 = vrot.slane %v415, 7
      %v465 = vrot.slane %v416, 7
      %v466 = vrot.slane %v417, 7
      %v467 = vrot.slane %v418, 7
      %v468 = vrot.slane %v419, 7
      %v469 = vrot.slane %v420, 7
      %v470 = vrot.slane %v421, 7
      %v471 = vrot.slane %v422, 7
      %vm472 = vcmp.lt.s32.totalorder %v424, 1
      %v473 = vsel %vm472, %v470, %v471
      %v474 = vsel %vm472, %v469, %v470
      %v475 = vsel %vm472, %v468, %v469
      %v476 = vsel %vm472, %v467, %v468
      %v477 = vsel %vm472, %v466, %v467
      %v478 = vsel %vm472, %v465, %v466
      %v479 = vsel %vm472, %v464, %v465
      %v480 = vsel %vm472, %v471, %v464
      %vm481 = vmand %vm448, %vm456
      %vm482 = vmand %vm449, %vm457
      %vm483 = vmand %vm450, %vm458
      %vm484 = vmand %vm451, %vm459
      %vm485 = vmand %vm452, %vm460
      %vm486 = vmand %vm453, %vm461
      %vm487 = vmand %vm454, %vm462
      %vm488 = vmand %vm455, %vm463
      %v489 = vsel %vm481, %v473, 0.0
      %v490 = vsel %vm482, %v480, 0.0
      %v491 = vsel %vm483, %v479, 0.0
      %v492 = vsel %vm484, %v478, 0.0
      %v493 = vsel %vm485, %v477, 0.0
      %v494 = vsel %vm486, %v476, 0.0
      %v495 = vsel %vm487, %v475, 0.0
      %v496 = vsel %vm488, %v474, 0.0
      %v497 = vpack.c.bf16 %v489, %v489
      %v498 = vpack.c.bf16 %v490, %v490
      %v499 = vpack.c.bf16 %v491, %v491
      %v500 = vpack.c.bf16 %v492, %v492
      %v501 = vpack.c.bf16 %v493, %v493
      %v502 = vpack.c.bf16 %v494, %v494
      %v503 = vpack.c.bf16 %v495, %v495
      %v504 = vpack.c.bf16 %v496, %v496
      %v505 = vsel %vm448, %v422, 0.0
      %v506 = vsel %vm449, %v415, 0.0
      %v507 = vsel %vm450, %v416, 0.0
      %v508 = vsel %vm451, %v417, 0.0
      %v509 = vsel %vm452, %v418, 0.0
      %v510 = vsel %vm453, %v419, 0.0
      %v511 = vsel %vm454, %v420, 0.0
      %v512 = vsel %vm455, %v421, 0.0
      %v513 = vpack.c.bf16 %v505, %v505
      %v514 = vpack.c.bf16 %v506, %v506
      %v515 = vpack.c.bf16 %v507, %v507
      %v516 = vpack.c.bf16 %v508, %v508
      %v517 = vpack.c.bf16 %v509, %v509
      %v518 = vpack.c.bf16 %v510, %v510
      %v519 = vpack.c.bf16 %v511, %v511
      %v520 = vpack.c.bf16 %v512, %v512
      %vm521 = vcmp.le.s32.totalorder %v440, 6
      %vm522 = vcmp.le.s32.totalorder %v441, 6
      %vm523 = vcmp.le.s32.totalorder %v442, 6
      %vm524 = vcmp.le.s32.totalorder %v443, 6
      %vm525 = vcmp.le.s32.totalorder %v444, 6
      %vm526 = vcmp.le.s32.totalorder %v445, 6
      %vm527 = vcmp.le.s32.totalorder %v446, 6
      %vm528 = vcmp.le.s32.totalorder %v447, 6
      %v529 = vrot.slane %v415, 1
      %v530 = vrot.slane %v416, 1
      %v531 = vrot.slane %v417, 1
      %v532 = vrot.slane %v418, 1
      %v533 = vrot.slane %v419, 1
      %v534 = vrot.slane %v420, 1
      %v535 = vrot.slane %v421, 1
      %v536 = vrot.slane %v422, 1
      %vm537 = vcmp.lt.s32.totalorder %v424, 7
      %v538 = vsel %vm537, %v535, %v536
      %v539 = vsel %vm537, %v534, %v535
      %v540 = vsel %vm537, %v533, %v534
      %v541 = vsel %vm537, %v532, %v533
      %v542 = vsel %vm537, %v531, %v532
      %v543 = vsel %vm537, %v530, %v531
      %v544 = vsel %vm537, %v529, %v530
      %v545 = vsel %vm537, %v536, %v529
      %vm546 = vmand %vm448, %vm521
      %vm547 = vmand %vm449, %vm522
      %vm548 = vmand %vm450, %vm523
      %vm549 = vmand %vm451, %vm524
      %vm550 = vmand %vm452, %vm525
      %vm551 = vmand %vm453, %vm526
      %vm552 = vmand %vm454, %vm527
      %vm553 = vmand %vm455, %vm528
      %v554 = vsel %vm546, %v545, 0.0
      %v555 = vsel %vm547, %v544, 0.0
      %v556 = vsel %vm548, %v543, 0.0
      %v557 = vsel %vm549, %v542, 0.0
      %v558 = vsel %vm550, %v541, 0.0
      %v559 = vsel %vm551, %v540, 0.0
      %v560 = vsel %vm552, %v539, 0.0
      %v561 = vsel %vm553, %v538, 0.0
      %v562 = vpack.c.bf16 %v554, %v554
      %v563 = vpack.c.bf16 %v555, %v555
      %v564 = vpack.c.bf16 %v556, %v556
      %v565 = vpack.c.bf16 %v557, %v557
      %v566 = vpack.c.bf16 %v558, %v558
      %v567 = vpack.c.bf16 %v559, %v559
      %v568 = vpack.c.bf16 %v560, %v560
      %v569 = vpack.c.bf16 %v561, %v561
      %v570 = vsel %vm456, %v480, 0.0
      %v571 = vsel %vm457, %v479, 0.0
      %v572 = vsel %vm458, %v478, 0.0
      %v573 = vsel %vm459, %v477, 0.0
      %v574 = vsel %vm460, %v476, 0.0
      %v575 = vsel %vm461, %v475, 0.0
      %v576 = vsel %vm462, %v474, 0.0
      %v577 = vsel %vm463, %v473, 0.0
      %v578 = vpack.c.bf16 %v570, %v570
      %v579 = vpack.c.bf16 %v571, %v571
      %v580 = vpack.c.bf16 %v572, %v572
      %v581 = vpack.c.bf16 %v573, %v573
      %v582 = vpack.c.bf16 %v574, %v574
      %v583 = vpack.c.bf16 %v575, %v575
      %v584 = vpack.c.bf16 %v576, %v576
      %v585 = vpack.c.bf16 %v577, %v577
      %v586 = vsel %vm521, %v544, 0.0
      %v587 = vsel %vm522, %v543, 0.0
      %v588 = vsel %vm523, %v542, 0.0
      %v589 = vsel %vm524, %v541, 0.0
      %v590 = vsel %vm525, %v540, 0.0
      %v591 = vsel %vm526, %v539, 0.0
      %v592 = vsel %vm527, %v538, 0.0
      %v593 = vsel %vm528, %v545, 0.0
      %v594 = vpack.c.bf16 %v586, %v586
      %v595 = vpack.c.bf16 %v587, %v587
      %v596 = vpack.c.bf16 %v588, %v588
      %v597 = vpack.c.bf16 %v589, %v589
      %v598 = vpack.c.bf16 %v590, %v590
      %v599 = vpack.c.bf16 %v591, %v591
      %v600 = vpack.c.bf16 %v592, %v592
      %v601 = vpack.c.bf16 %v593, %v593
      %vm602 = vcmp.le.s32.totalorder %v432, 6
      %vm603 = vcmp.le.s32.totalorder %v433, 6
      %vm604 = vcmp.le.s32.totalorder %v434, 6
      %vm605 = vcmp.le.s32.totalorder %v435, 6
      %vm606 = vcmp.le.s32.totalorder %v436, 6
      %vm607 = vcmp.le.s32.totalorder %v437, 6
      %vm608 = vcmp.le.s32.totalorder %v438, 6
      %vm609 = vcmp.le.s32.totalorder %v439, 6
      %vm610 = vmand %vm602, %vm456
      %vm611 = vmand %vm603, %vm457
      %vm612 = vmand %vm604, %vm458
      %vm613 = vmand %vm605, %vm459
      %vm614 = vmand %vm606, %vm460
      %vm615 = vmand %vm607, %vm461
      %vm616 = vmand %vm608, %vm462
      %vm617 = vmand %vm609, %vm463
      %v618 = vsel %vm610, %v479, 0.0
      %v619 = vsel %vm611, %v478, 0.0
      %v620 = vsel %vm612, %v477, 0.0
      %v621 = vsel %vm613, %v476, 0.0
      %v622 = vsel %vm614, %v475, 0.0
      %v623 = vsel %vm615, %v474, 0.0
      %v624 = vsel %vm616, %v473, 0.0
      %v625 = vsel %vm617, %v480, 0.0
      %v626 = vpack.c.bf16 %v618, %v618
      %v627 = vpack.c.bf16 %v619, %v619
      %v628 = vpack.c.bf16 %v620, %v620
      %v629 = vpack.c.bf16 %v621, %v621
      %v630 = vpack.c.bf16 %v622, %v622
      %v631 = vpack.c.bf16 %v623, %v623
      %v632 = vpack.c.bf16 %v624, %v624
      %v633 = vpack.c.bf16 %v625, %v625
      %v634 = vsel %vm602, %v416, 0.0
      %v635 = vsel %vm603, %v417, 0.0
      %v636 = vsel %vm604, %v418, 0.0
      %v637 = vsel %vm605, %v419, 0.0
      %v638 = vsel %vm606, %v420, 0.0
      %v639 = vsel %vm607, %v421, 0.0
      %v640 = vsel %vm608, %v422, 0.0
      %v641 = vsel %vm609, %v415, 0.0
      %v642 = vpack.c.bf16 %v634, %v634
      %v643 = vpack.c.bf16 %v635, %v635
      %v644 = vpack.c.bf16 %v636, %v636
      %v645 = vpack.c.bf16 %v637, %v637
      %v646 = vpack.c.bf16 %v638, %v638
      %v647 = vpack.c.bf16 %v639, %v639
      %v648 = vpack.c.bf16 %v640, %v640
      %v649 = vpack.c.bf16 %v641, %v641
      %vm650 = vmand %vm602, %vm521
      %vm651 = vmand %vm603, %vm522
      %vm652 = vmand %vm604, %vm523
      %vm653 = vmand %vm605, %vm524
      %vm654 = vmand %vm606, %vm525
      %vm655 = vmand %vm607, %vm526
      %vm656 = vmand %vm608, %vm527
      %vm657 = vmand %vm609, %vm528
      %v658 = vsel %vm650, %v543, 0.0
      %v659 = vsel %vm651, %v542, 0.0
      %v660 = vsel %vm652, %v541, 0.0
      %v661 = vsel %vm653, %v540, 0.0
      %v662 = vsel %vm654, %v539, 0.0
      %v663 = vsel %vm655, %v538, 0.0
      %v664 = vsel %vm656, %v545, 0.0
      %v665 = vsel %vm657, %v544, 0.0
      %v666 = vpack.c.bf16 %v658, %v658
      %v667 = vpack.c.bf16 %v659, %v659
      %v668 = vpack.c.bf16 %v660, %v660
      %v669 = vpack.c.bf16 %v661, %v661
      %v670 = vpack.c.bf16 %v662, %v662
      %v671 = vpack.c.bf16 %v663, %v663
      %v672 = vpack.c.bf16 %v664, %v664
      %v673 = vpack.c.bf16 %v665, %v665
      %v682 = vunpack.c.l.b16 %v497
      %v683 = vunpack.c.l.b16 %v498
      %v684 = vunpack.c.l.b16 %v499
      %v685 = vunpack.c.l.b16 %v500
      %v686 = vunpack.c.l.b16 %v501
      %v687 = vunpack.c.l.b16 %v502
      %v688 = vunpack.c.l.b16 %v503
      %v689 = vunpack.c.l.b16 %v504
      %v690 = vpack.c.b16 %v683, %v682
      %v691 = vpack.c.b16 %v685, %v684
      %v692 = vpack.c.b16 %v687, %v686
      %v693 = vpack.c.b16 %v689, %v688
      %v706 = vunpack.c.l.b16 %v513
      %v707 = vunpack.c.l.b16 %v514
      %v708 = vunpack.c.l.b16 %v515
      %v709 = vunpack.c.l.b16 %v516
      %v710 = vunpack.c.l.b16 %v517
      %v711 = vunpack.c.l.b16 %v518
      %v712 = vunpack.c.l.b16 %v519
      %v713 = vunpack.c.l.b16 %v520
      %v714 = vpack.c.b16 %v707, %v706
      %v715 = vpack.c.b16 %v709, %v708
      %v716 = vpack.c.b16 %v711, %v710
      %v717 = vpack.c.b16 %v713, %v712
      %v730 = vunpack.c.l.b16 %v562
      %v731 = vunpack.c.l.b16 %v563
      %v732 = vunpack.c.l.b16 %v564
      %v733 = vunpack.c.l.b16 %v565
      %v734 = vunpack.c.l.b16 %v566
      %v735 = vunpack.c.l.b16 %v567
      %v736 = vunpack.c.l.b16 %v568
      %v737 = vunpack.c.l.b16 %v569
      %v738 = vpack.c.b16 %v731, %v730
      %v739 = vpack.c.b16 %v733, %v732
      %v740 = vpack.c.b16 %v735, %v734
      %v741 = vpack.c.b16 %v737, %v736
      %v754 = vunpack.c.l.b16 %v578
      %v755 = vunpack.c.l.b16 %v579
      %v756 = vunpack.c.l.b16 %v580
      %v757 = vunpack.c.l.b16 %v581
      %v758 = vunpack.c.l.b16 %v582
      %v759 = vunpack.c.l.b16 %v583
      %v760 = vunpack.c.l.b16 %v584
      %v761 = vunpack.c.l.b16 %v585
      %v762 = vpack.c.b16 %v755, %v754
      %v763 = vpack.c.b16 %v757, %v756
      %v764 = vpack.c.b16 %v759, %v758
      %v765 = vpack.c.b16 %v761, %v760
      %v778 = vunpack.c.l.b16 %v407
      %v779 = vunpack.c.l.b16 %v408
      %v780 = vunpack.c.l.b16 %v409
      %v781 = vunpack.c.l.b16 %v410
      %v782 = vunpack.c.l.b16 %v411
      %v783 = vunpack.c.l.b16 %v412
      %v784 = vunpack.c.l.b16 %v413
      %v785 = vunpack.c.l.b16 %v414
      %v786 = vpack.c.b16 %v779, %v778
      %v787 = vpack.c.b16 %v781, %v780
      %v788 = vpack.c.b16 %v783, %v782
      %v789 = vpack.c.b16 %v785, %v784
      %v802 = vunpack.c.l.b16 %v594
      %v803 = vunpack.c.l.b16 %v595
      %v804 = vunpack.c.l.b16 %v596
      %v805 = vunpack.c.l.b16 %v597
      %v806 = vunpack.c.l.b16 %v598
      %v807 = vunpack.c.l.b16 %v599
      %v808 = vunpack.c.l.b16 %v600
      %v809 = vunpack.c.l.b16 %v601
      %v810 = vpack.c.b16 %v803, %v802
      %v811 = vpack.c.b16 %v805, %v804
      %v812 = vpack.c.b16 %v807, %v806
      %v813 = vpack.c.b16 %v809, %v808
      %v826 = vunpack.c.l.b16 %v626
      %v827 = vunpack.c.l.b16 %v627
      %v828 = vunpack.c.l.b16 %v628
      %v829 = vunpack.c.l.b16 %v629
      %v830 = vunpack.c.l.b16 %v630
      %v831 = vunpack.c.l.b16 %v631
      %v832 = vunpack.c.l.b16 %v632
      %v833 = vunpack.c.l.b16 %v633
      %v834 = vpack.c.b16 %v827, %v826
      %v835 = vpack.c.b16 %v829, %v828
      %v836 = vpack.c.b16 %v831, %v830
      %v837 = vpack.c.b16 %v833, %v832
      %v850 = vunpack.c.l.b16 %v642
      %v851 = vunpack.c.l.b16 %v643
      %v852 = vunpack.c.l.b16 %v644
      %v853 = vunpack.c.l.b16 %v645
      %v854 = vunpack.c.l.b16 %v646
      %v855 = vunpack.c.l.b16 %v647
      %v856 = vunpack.c.l.b16 %v648
      %v857 = vunpack.c.l.b16 %v649
      %v858 = vpack.c.b16 %v851, %v850
      %v859 = vpack.c.b16 %v853, %v852
      %v860 = vpack.c.b16 %v855, %v854
      %v861 = vpack.c.b16 %v857, %v856
      %v874 = vunpack.c.l.b16 %v666
      %v875 = vunpack.c.l.b16 %v667
      %v876 = vunpack.c.l.b16 %v668
      %v877 = vunpack.c.l.b16 %v669
      %v878 = vunpack.c.l.b16 %v670
      %v879 = vunpack.c.l.b16 %v671
      %v880 = vunpack.c.l.b16 %v672
      %v881 = vunpack.c.l.b16 %v673
      %v882 = vpack.c.b16 %v875, %v874
      %v883 = vpack.c.b16 %v877, %v876
      %v884 = vpack.c.b16 %v879, %v878
      %v885 = vpack.c.b16 %v881, %v880
      %v890 = vld [vmem:[%s2] sm:$0xf]
      %v891 = vld [vmem:[%s2 + $0x4] sm:$0xf]
      %v892 = vld [vmem:[%s2 + $0x8] sm:$0xf]
      %v893 = vld [vmem:[%s2 + $0xc] sm:$0xf]
      %v894 = vld [vmem:[%s2 + $0x10] sm:$0xf]
      %v895 = vld [vmem:[%s2 + $0x14] sm:$0xf]
      %v896 = vld [vmem:[%s2 + $0x18] sm:$0xf]
      %v897 = vld [vmem:[%s2 + $0x1c] sm:$0xf]
      %v898 = vld [vmem:[%s2 + $0x20] sm:$0xf]
      %v899 = vld [vmem:[%s2 + $0x24] sm:$0xf]
      %v900 = vld [vmem:[%s2 + $0x28] sm:$0xf]
      %v901 = vld [vmem:[%s2 + $0x2c] sm:$0xf]
      %v902 = vld [vmem:[%s2 + $0x30] sm:$0xf]
      %v903 = vld [vmem:[%s2 + $0x34] sm:$0xf]
      %v904 = vld [vmem:[%s2 + $0x38] sm:$0xf]
      %v905 = vld [vmem:[%s2 + $0x3c] sm:$0xf]
      %v906 = vld [vmem:[%s2 + $0x40] sm:$0xf]
      %v907 = vld [vmem:[%s2 + $0x44] sm:$0xf]
      %v908 = vld [vmem:[%s2 + $0x48] sm:$0xf]
      %v909 = vld [vmem:[%s2 + $0x4c] sm:$0xf]
      %v910 = vld [vmem:[%s2 + $0x50] sm:$0xf]
      %v911 = vld [vmem:[%s2 + $0x54] sm:$0xf]
      %v912 = vld [vmem:[%s2 + $0x58] sm:$0xf]
      %v913 = vld [vmem:[%s2 + $0x5c] sm:$0xf]
      %v914 = vld [vmem:[%s2 + $0x60] sm:$0xf]
      %v915 = vld [vmem:[%s2 + $0x64] sm:$0xf]
      %v916 = vld [vmem:[%s2 + $0x68] sm:$0xf]
      %v917 = vld [vmem:[%s2 + $0x6c] sm:$0xf]
      %v918 = vld [vmem:[%s2 + $0x70] sm:$0xf]
      %v919 = vld [vmem:[%s2 + $0x74] sm:$0xf]
      %v920 = vld [vmem:[%s2 + $0x78] sm:$0xf]
      %v921 = vld [vmem:[%s2 + $0x7c] sm:$0xf]
      %v922 = vld [vmem:[%s2 + $0x80] sm:$0xf]
      %v923 = vld [vmem:[%s2 + $0x84] sm:$0xf]
      %v924 = vld [vmem:[%s2 + $0x88] sm:$0xf]
      %v925 = vld [vmem:[%s2 + $0x8c] sm:$0xf]
      %v926 = vld [vmem:[%s2 + $0x90] sm:$0xf]
      %v927 = vld [vmem:[%s2 + $0x94] sm:$0xf]
      %v928 = vld [vmem:[%s2 + $0x98] sm:$0xf]
      %v929 = vld [vmem:[%s2 + $0x9c] sm:$0xf]
      %v930 = vld [vmem:[%s2 + $0xa0] sm:$0xf]
      %v931 = vld [vmem:[%s2 + $0xa4] sm:$0xf]
      %v932 = vld [vmem:[%s2 + $0xa8] sm:$0xf]
      %v933 = vld [vmem:[%s2 + $0xac] sm:$0xf]
      %v934 = vld [vmem:[%s2 + $0xb0] sm:$0xf]
      %v935 = vld [vmem:[%s2 + $0xb4] sm:$0xf]
      %v936 = vld [vmem:[%s2 + $0xb8] sm:$0xf]
      %v937 = vld [vmem:[%s2 + $0xbc] sm:$0xf]
      %v938 = vld [vmem:[%s2 + $0xc0] sm:$0xf]
      %v939 = vld [vmem:[%s2 + $0xc4] sm:$0xf]
      %v940 = vld [vmem:[%s2 + $0xc8] sm:$0xf]
      %v941 = vld [vmem:[%s2 + $0xcc] sm:$0xf]
      %v942 = vld [vmem:[%s2 + $0xd0] sm:$0xf]
      %v943 = vld [vmem:[%s2 + $0xd4] sm:$0xf]
      %v944 = vld [vmem:[%s2 + $0xd8] sm:$0xf]
      %v945 = vld [vmem:[%s2 + $0xdc] sm:$0xf]
      %v946 = vld [vmem:[%s2 + $0xe0] sm:$0xf]
      %v947 = vld [vmem:[%s2 + $0xe4] sm:$0xf]
      %v948 = vld [vmem:[%s2 + $0xe8] sm:$0xf]
      %v949 = vld [vmem:[%s2 + $0xec] sm:$0xf]
      %v950 = vld [vmem:[%s2 + $0xf0] sm:$0xf]
      %v951 = vld [vmem:[%s2 + $0xf4] sm:$0xf]
      %v952 = vld [vmem:[%s2 + $0xf8] sm:$0xf]
      %v953 = vld [vmem:[%s2 + $0xfc] sm:$0xf]
      %v954 = vld [vmem:[%s2 + $0x100] sm:$0xf]
      %v955 = vld [vmem:[%s2 + $0x104] sm:$0xf]
      %v956 = vld [vmem:[%s2 + $0x108] sm:$0xf]
      %v957 = vld [vmem:[%s2 + $0x10c] sm:$0xf]
      %v958 = vld [vmem:[%s2 + $0x110] sm:$0xf]
      %v959 = vld [vmem:[%s2 + $0x114] sm:$0xf]
      %v960 = vld [vmem:[%s2 + $0x118] sm:$0xf]
      %v961 = vld [vmem:[%s2 + $0x11c] sm:$0xf]
      %v962 = vld [vmem:[%s2 + $0x120] sm:$0xf]
      %v963 = vld [vmem:[%s2 + $0x124] sm:$0xf]
      %v964 = vld [vmem:[%s2 + $0x128] sm:$0xf]
      %v965 = vld [vmem:[%s2 + $0x12c] sm:$0xf]
      %v966 = vld [vmem:[%s2 + $0x130] sm:$0xf]
      %v967 = vld [vmem:[%s2 + $0x134] sm:$0xf]
      %v968 = vld [vmem:[%s2 + $0x138] sm:$0xf]
      %v969 = vld [vmem:[%s2 + $0x13c] sm:$0xf]
      %v970 = vld [vmem:[%s2 + $0x140] sm:$0xf]
      %v971 = vld [vmem:[%s2 + $0x144] sm:$0xf]
      %v972 = vld [vmem:[%s2 + $0x148] sm:$0xf]
      %v973 = vld [vmem:[%s2 + $0x14c] sm:$0xf]
      %v974 = vld [vmem:[%s2 + $0x150] sm:$0xf]
      %v975 = vld [vmem:[%s2 + $0x154] sm:$0xf]
      %v976 = vld [vmem:[%s2 + $0x158] sm:$0xf]
      %v977 = vld [vmem:[%s2 + $0x15c] sm:$0xf]
      %v978 = vld [vmem:[%s2 + $0x160] sm:$0xf]
      %v979 = vld [vmem:[%s2 + $0x164] sm:$0xf]
      %v980 = vld [vmem:[%s2 + $0x168] sm:$0xf]
      %v981 = vld [vmem:[%s2 + $0x16c] sm:$0xf]
      %v982 = vld [vmem:[%s2 + $0x170] sm:$0xf]
      %v983 = vld [vmem:[%s2 + $0x174] sm:$0xf]
      %v984 = vld [vmem:[%s2 + $0x178] sm:$0xf]
      %v985 = vld [vmem:[%s2 + $0x17c] sm:$0xf]
      %v986 = vld [vmem:[%s2 + $0x180] sm:$0xf]
      %v987 = vld [vmem:[%s2 + $0x184] sm:$0xf]
      %v988 = vld [vmem:[%s2 + $0x188] sm:$0xf]
      %v989 = vld [vmem:[%s2 + $0x18c] sm:$0xf]
      %v990 = vld [vmem:[%s2 + $0x190] sm:$0xf]
      %v991 = vld [vmem:[%s2 + $0x194] sm:$0xf]
      %v992 = vld [vmem:[%s2 + $0x198] sm:$0xf]
      %v993 = vld [vmem:[%s2 + $0x19c] sm:$0xf]
      %v994 = vld [vmem:[%s2 + $0x1a0] sm:$0xf]
      %v995 = vld [vmem:[%s2 + $0x1a4] sm:$0xf]
      %v996 = vld [vmem:[%s2 + $0x1a8] sm:$0xf]
      %v997 = vld [vmem:[%s2 + $0x1ac] sm:$0xf]
      %v998 = vld [vmem:[%s2 + $0x1b0] sm:$0xf]
      %v999 = vld [vmem:[%s2 + $0x1b4] sm:$0xf]
      %v1000 = vld [vmem:[%s2 + $0x1b8] sm:$0xf]
      %v1001 = vld [vmem:[%s2 + $0x1bc] sm:$0xf]
      %v1002 = vld [vmem:[%s2 + $0x1c0] sm:$0xf]
      %v1003 = vld [vmem:[%s2 + $0x1c4] sm:$0xf]
      %v1004 = vld [vmem:[%s2 + $0x1c8] sm:$0xf]
      %v1005 = vld [vmem:[%s2 + $0x1cc] sm:$0xf]
      %v1006 = vld [vmem:[%s2 + $0x1d0] sm:$0xf]
      %v1007 = vld [vmem:[%s2 + $0x1d4] sm:$0xf]
      %v1008 = vld [vmem:[%s2 + $0x1d8] sm:$0xf]
      %v1009 = vld [vmem:[%s2 + $0x1dc] sm:$0xf]
      %v1010 = vld [vmem:[%s2 + $0x1e0] sm:$0xf]
      %v1011 = vld [vmem:[%s2 + $0x1e4] sm:$0xf]
      %v1012 = vld [vmem:[%s2 + $0x1e8] sm:$0xf]
      %v1013 = vld [vmem:[%s2 + $0x1ec] sm:$0xf]
      %v1014 = vld [vmem:[%s2 + $0x1f0] sm:$0xf]
      %v1015 = vld [vmem:[%s2 + $0x1f4] sm:$0xf]
      %v1016 = vld [vmem:[%s2 + $0x1f8] sm:$0xf]
      %v1017 = vld [vmem:[%s2 + $0x1fc] sm:$0xf]
      %v1018 = vld [vmem:[%s2 + $0x200] sm:$0xf]
      %v1019 = vld [vmem:[%s2 + $0x204] sm:$0xf]
      %v1020 = vld [vmem:[%s2 + $0x208] sm:$0xf]
      %v1021 = vld [vmem:[%s2 + $0x20c] sm:$0xf]
      %v1022 = vld [vmem:[%s2 + $0x210] sm:$0xf]
      %v1023 = vld [vmem:[%s2 + $0x214] sm:$0xf]
      %v1024 = vld [vmem:[%s2 + $0x218] sm:$0xf]
      %v1025 = vld [vmem:[%s2 + $0x21c] sm:$0xf]
      %v1026 = vld [vmem:[%s2 + $0x220] sm:$0xf]
      %v1027 = vld [vmem:[%s2 + $0x224] sm:$0xf]
      %v1028 = vld [vmem:[%s2 + $0x228] sm:$0xf]
      %v1029 = vld [vmem:[%s2 + $0x22c] sm:$0xf]
      %v1030 = vld [vmem:[%s2 + $0x230] sm:$0xf]
      %v1031 = vld [vmem:[%s2 + $0x234] sm:$0xf]
      %v1032 = vld [vmem:[%s2 + $0x238] sm:$0xf]
      %v1033 = vld [vmem:[%s2 + $0x23c] sm:$0xf]
      %v1034 = vld [vmem:[%s3] sm:$0x1]
      %v1036 = vperm.slane %v1034, 0
      %v1182 = vunpack.c.l.b16 %v890
      %v1183 = vunpack.c.l.b16 %v891
      %v1184 = vunpack.c.l.b16 %v892
      %v1185 = vunpack.c.l.b16 %v893
      %v1186 = vunpack.c.l.b16 %v894
      %v1187 = vunpack.c.l.b16 %v895
      %v1188 = vunpack.c.l.b16 %v896
      %v1189 = vunpack.c.l.b16 %v897
      %v1190 = vunpack.c.l.b16 %v898
      %v1191 = vunpack.c.l.b16 %v899
      %v1192 = vunpack.c.l.b16 %v900
      %v1193 = vunpack.c.l.b16 %v901
      %v1194 = vunpack.c.l.b16 %v902
      %v1195 = vunpack.c.l.b16 %v903
      %v1196 = vunpack.c.l.b16 %v904
      %v1197 = vunpack.c.l.b16 %v905
      %v1198 = vunpack.c.l.b16 %v906
      %v1199 = vunpack.c.l.b16 %v907
      %v1200 = vunpack.c.l.b16 %v908
      %v1201 = vunpack.c.l.b16 %v909
      %v1202 = vunpack.c.l.b16 %v910
      %v1203 = vunpack.c.l.b16 %v911
      %v1204 = vunpack.c.l.b16 %v912
      %v1205 = vunpack.c.l.b16 %v913
      %v1206 = vunpack.c.l.b16 %v914
      %v1207 = vunpack.c.l.b16 %v915
      %v1208 = vunpack.c.l.b16 %v916
      %v1209 = vunpack.c.l.b16 %v917
      %v1210 = vunpack.c.l.b16 %v918
      %v1211 = vunpack.c.l.b16 %v919
      %v1212 = vunpack.c.l.b16 %v920
      %v1213 = vunpack.c.l.b16 %v921
      %v1214 = vunpack.c.l.b16 %v922
      %v1215 = vunpack.c.l.b16 %v923
      %v1216 = vunpack.c.l.b16 %v924
      %v1217 = vunpack.c.l.b16 %v925
      %v1218 = vunpack.c.l.b16 %v926
      %v1219 = vunpack.c.l.b16 %v927
      %v1220 = vunpack.c.l.b16 %v928
      %v1221 = vunpack.c.l.b16 %v929
      %v1222 = vunpack.c.l.b16 %v930
      %v1223 = vunpack.c.l.b16 %v931
      %v1224 = vunpack.c.l.b16 %v932
      %v1225 = vunpack.c.l.b16 %v933
      %v1226 = vunpack.c.l.b16 %v934
      %v1227 = vunpack.c.l.b16 %v935
      %v1228 = vunpack.c.l.b16 %v936
      %v1229 = vunpack.c.l.b16 %v937
      %v1230 = vunpack.c.l.b16 %v938
      %v1231 = vunpack.c.l.b16 %v939
      %v1232 = vunpack.c.l.b16 %v940
      %v1233 = vunpack.c.l.b16 %v941
      %v1234 = vunpack.c.l.b16 %v942
      %v1235 = vunpack.c.l.b16 %v943
      %v1236 = vunpack.c.l.b16 %v944
      %v1237 = vunpack.c.l.b16 %v945
      %v1238 = vunpack.c.l.b16 %v946
      %v1239 = vunpack.c.l.b16 %v947
      %v1240 = vunpack.c.l.b16 %v948
      %v1241 = vunpack.c.l.b16 %v949
      %v1242 = vunpack.c.l.b16 %v950
      %v1243 = vunpack.c.l.b16 %v951
      %v1244 = vunpack.c.l.b16 %v952
      %v1245 = vunpack.c.l.b16 %v953
      %v1246 = vunpack.c.l.b16 %v954
      %v1247 = vunpack.c.l.b16 %v955
      %v1248 = vunpack.c.l.b16 %v956
      %v1249 = vunpack.c.l.b16 %v957
      %v1250 = vunpack.c.l.b16 %v958
      %v1251 = vunpack.c.l.b16 %v959
      %v1252 = vunpack.c.l.b16 %v960
      %v1253 = vunpack.c.l.b16 %v961
      %v1254 = vunpack.c.l.b16 %v962
      %v1255 = vunpack.c.l.b16 %v963
      %v1256 = vunpack.c.l.b16 %v964
      %v1257 = vunpack.c.l.b16 %v965
      %v1258 = vunpack.c.l.b16 %v966
      %v1259 = vunpack.c.l.b16 %v967
      %v1260 = vunpack.c.l.b16 %v968
      %v1261 = vunpack.c.l.b16 %v969
      %v1262 = vunpack.c.l.b16 %v970
      %v1263 = vunpack.c.l.b16 %v971
      %v1264 = vunpack.c.l.b16 %v972
      %v1265 = vunpack.c.l.b16 %v973
      %v1266 = vunpack.c.l.b16 %v974
      %v1267 = vunpack.c.l.b16 %v975
      %v1268 = vunpack.c.l.b16 %v976
      %v1269 = vunpack.c.l.b16 %v977
      %v1270 = vunpack.c.l.b16 %v978
      %v1271 = vunpack.c.l.b16 %v979
      %v1272 = vunpack.c.l.b16 %v980
      %v1273 = vunpack.c.l.b16 %v981
      %v1274 = vunpack.c.l.b16 %v982
      %v1275 = vunpack.c.l.b16 %v983
      %v1276 = vunpack.c.l.b16 %v984
      %v1277 = vunpack.c.l.b16 %v985
      %v1278 = vunpack.c.l.b16 %v986
      %v1279 = vunpack.c.l.b16 %v987
      %v1280 = vunpack.c.l.b16 %v988
      %v1281 = vunpack.c.l.b16 %v989
      %v1282 = vunpack.c.l.b16 %v990
      %v1283 = vunpack.c.l.b16 %v991
      %v1284 = vunpack.c.l.b16 %v992
      %v1285 = vunpack.c.l.b16 %v993
      %v1286 = vunpack.c.l.b16 %v994
      %v1287 = vunpack.c.l.b16 %v995
      %v1288 = vunpack.c.l.b16 %v996
      %v1289 = vunpack.c.l.b16 %v997
      %v1290 = vunpack.c.l.b16 %v998
      %v1291 = vunpack.c.l.b16 %v999
      %v1292 = vunpack.c.l.b16 %v1000
      %v1293 = vunpack.c.l.b16 %v1001
      %v1294 = vunpack.c.l.b16 %v1002
      %v1295 = vunpack.c.l.b16 %v1003
      %v1296 = vunpack.c.l.b16 %v1004
      %v1297 = vunpack.c.l.b16 %v1005
      %v1298 = vunpack.c.l.b16 %v1006
      %v1299 = vunpack.c.l.b16 %v1007
      %v1300 = vunpack.c.l.b16 %v1008
      %v1301 = vunpack.c.l.b16 %v1009
      %v1302 = vunpack.c.l.b16 %v1010
      %v1303 = vunpack.c.l.b16 %v1011
      %v1304 = vunpack.c.l.b16 %v1012
      %v1305 = vunpack.c.l.b16 %v1013
      %v1306 = vunpack.c.l.b16 %v1014
      %v1307 = vunpack.c.l.b16 %v1015
      %v1308 = vunpack.c.l.b16 %v1016
      %v1309 = vunpack.c.l.b16 %v1017
      %v1310 = vunpack.c.l.b16 %v1018
      %v1311 = vunpack.c.l.b16 %v1019
      %v1312 = vunpack.c.l.b16 %v1020
      %v1313 = vunpack.c.l.b16 %v1021
      %v1314 = vunpack.c.l.b16 %v1022
      %v1315 = vunpack.c.l.b16 %v1023
      %v1316 = vunpack.c.l.b16 %v1024
      %v1317 = vunpack.c.l.b16 %v1025
      %v1318 = vunpack.c.l.b16 %v1026
      %v1319 = vunpack.c.l.b16 %v1027
      %v1320 = vunpack.c.l.b16 %v1028
      %v1321 = vunpack.c.l.b16 %v1029
      %v1322 = vunpack.c.l.b16 %v1030
      %v1323 = vunpack.c.l.b16 %v1031
      %v1324 = vunpack.c.l.b16 %v1032
      %v1325 = vunpack.c.l.b16 %v1033
      %v1326 = vpack.c.b16 %v1183, %v1182
      %v1327 = vpack.c.b16 %v1185, %v1184
      %v1328 = vpack.c.b16 %v1187, %v1186
      %v1329 = vpack.c.b16 %v1189, %v1188
      %v1330 = vpack.c.b16 %v1191, %v1190
      %v1331 = vpack.c.b16 %v1193, %v1192
      %v1332 = vpack.c.b16 %v1195, %v1194
      %v1333 = vpack.c.b16 %v1197, %v1196
      %v1334 = vpack.c.b16 %v1199, %v1198
      %v1335 = vpack.c.b16 %v1201, %v1200
      %v1336 = vpack.c.b16 %v1203, %v1202
      %v1337 = vpack.c.b16 %v1205, %v1204
      %v1338 = vpack.c.b16 %v1207, %v1206
      %v1339 = vpack.c.b16 %v1209, %v1208
      %v1340 = vpack.c.b16 %v1211, %v1210
      %v1341 = vpack.c.b16 %v1213, %v1212
      %v1342 = vpack.c.b16 %v1215, %v1214
      %v1343 = vpack.c.b16 %v1217, %v1216
      %v1344 = vpack.c.b16 %v1219, %v1218
      %v1345 = vpack.c.b16 %v1221, %v1220
      %v1346 = vpack.c.b16 %v1223, %v1222
      %v1347 = vpack.c.b16 %v1225, %v1224
      %v1348 = vpack.c.b16 %v1227, %v1226
      %v1349 = vpack.c.b16 %v1229, %v1228
      %v1350 = vpack.c.b16 %v1231, %v1230
      %v1351 = vpack.c.b16 %v1233, %v1232
      %v1352 = vpack.c.b16 %v1235, %v1234
      %v1353 = vpack.c.b16 %v1237, %v1236
      %v1354 = vpack.c.b16 %v1239, %v1238
      %v1355 = vpack.c.b16 %v1241, %v1240
      %v1356 = vpack.c.b16 %v1243, %v1242
      %v1357 = vpack.c.b16 %v1245, %v1244
      %v1358 = vpack.c.b16 %v1247, %v1246
      %v1359 = vpack.c.b16 %v1249, %v1248
      %v1360 = vpack.c.b16 %v1251, %v1250
      %v1361 = vpack.c.b16 %v1253, %v1252
      %v1362 = vpack.c.b16 %v1255, %v1254
      %v1363 = vpack.c.b16 %v1257, %v1256
      %v1364 = vpack.c.b16 %v1259, %v1258
      %v1365 = vpack.c.b16 %v1261, %v1260
      %v1366 = vpack.c.b16 %v1263, %v1262
      %v1367 = vpack.c.b16 %v1265, %v1264
      %v1368 = vpack.c.b16 %v1267, %v1266
      %v1369 = vpack.c.b16 %v1269, %v1268
      %v1370 = vpack.c.b16 %v1271, %v1270
      %v1371 = vpack.c.b16 %v1273, %v1272
      %v1372 = vpack.c.b16 %v1275, %v1274
      %v1373 = vpack.c.b16 %v1277, %v1276
      %v1374 = vpack.c.b16 %v1279, %v1278
      %v1375 = vpack.c.b16 %v1281, %v1280
      %v1376 = vpack.c.b16 %v1283, %v1282
      %v1377 = vpack.c.b16 %v1285, %v1284
      %v1378 = vpack.c.b16 %v1287, %v1286
      %v1379 = vpack.c.b16 %v1289, %v1288
      %v1380 = vpack.c.b16 %v1291, %v1290
      %v1381 = vpack.c.b16 %v1293, %v1292
      %v1382 = vpack.c.b16 %v1295, %v1294
      %v1383 = vpack.c.b16 %v1297, %v1296
      %v1384 = vpack.c.b16 %v1299, %v1298
      %v1385 = vpack.c.b16 %v1301, %v1300
      %v1386 = vpack.c.b16 %v1303, %v1302
      %v1387 = vpack.c.b16 %v1305, %v1304
      %v1388 = vpack.c.b16 %v1307, %v1306
      %v1389 = vpack.c.b16 %v1309, %v1308
      %v1390 = vpack.c.b16 %v1311, %v1310
      %v1391 = vpack.c.b16 %v1313, %v1312
      %v1392 = vpack.c.b16 %v1315, %v1314
      %v1393 = vpack.c.b16 %v1317, %v1316
      %v1394 = vpack.c.b16 %v1319, %v1318
      %v1395 = vpack.c.b16 %v1321, %v1320
      %v1396 = vpack.c.b16 %v1323, %v1322
      %v1397 = vpack.c.b16 %v1325, %v1324
      %1470 = vmatpush.bf16.msra.mxu0 %v1333
      %1471 = vmatpush.bf16.msra.mxu0 %v1332
      %1472 = vmatpush.bf16.msra.mxu0 %v1331
      %1473 = vmatpush.bf16.msra.mxu0 %v1330
      %1474 = vmatpush.bf16.msra.mxu0 %v1329
      %1475 = vmatpush.bf16.msra.mxu0 %v1328
      %1476 = vmatpush.bf16.msra.mxu0 %v1327
      %1477 = vmatpush.bf16.msra.mxu0 %v1326
      %1478 = vmatmul.bf16.gmra.mxu0 %v690
      %v1479 = vpop.f32.mrf.mxu0
      %v1480 = vadd.f32 %v1036, %v1479
      %v1481 = vpop.f32.mrf.mxu0
      %v1482 = vadd.f32 %v1036, %v1481
      %1483 = vmatmul.bf16.gmra.mxu0 %v691
      %v1484 = vpop.f32.mrf.mxu0
      %v1485 = vadd.f32 %v1036, %v1484
      %v1486 = vpop.f32.mrf.mxu0
      %v1487 = vadd.f32 %v1036, %v1486
      %1488 = vmatmul.bf16.gmra.mxu0 %v692
      %v1489 = vpop.f32.mrf.mxu0
      %v1490 = vadd.f32 %v1036, %v1489
      %v1491 = vpop.f32.mrf.mxu0
      %v1492 = vadd.f32 %v1036, %v1491
      %1493 = vmatmul.bf16.gmra.mxu0 %v693
      %v1494 = vpop.f32.mrf.mxu0
      %v1495 = vadd.f32 %v1036, %v1494
      %v1496 = vpop.f32.mrf.mxu0
      %v1497 = vadd.f32 %v1036, %v1496
      %1498 = vdwg.mxu0
      %1499 = vmatpush.bf16.msra.mxu0 %v1341
      %1500 = vmatpush.bf16.msra.mxu0 %v1340
      %1501 = vmatpush.bf16.msra.mxu0 %v1339
      %1502 = vmatpush.bf16.msra.mxu0 %v1338
      %1503 = vmatpush.bf16.msra.mxu0 %v1337
      %1504 = vmatpush.bf16.msra.mxu0 %v1336
      %1505 = vmatpush.bf16.msra.mxu0 %v1335
      %1506 = vmatpush.bf16.msra.mxu0 %v1334
      %1507 = vmatmul.bf16.gmra.mxu0 %v714
      %v1508 = vpop.f32.mrf.mxu0
      %v1509 = vadd.f32 %v1480, %v1508
      %v1510 = vpop.f32.mrf.mxu0
      %v1511 = vadd.f32 %v1482, %v1510
      %1512 = vmatmul.bf16.gmra.mxu0 %v715
      %v1513 = vpop.f32.mrf.mxu0
      %v1514 = vadd.f32 %v1485, %v1513
      %v1515 = vpop.f32.mrf.mxu0
      %v1516 = vadd.f32 %v1487, %v1515
      %1517 = vmatmul.bf16.gmra.mxu0 %v716
      %v1518 = vpop.f32.mrf.mxu0
      %v1519 = vadd.f32 %v1490, %v1518
      %v1520 = vpop.f32.mrf.mxu0
      %v1521 = vadd.f32 %v1492, %v1520
      %1522 = vmatmul.bf16.gmra.mxu0 %v717
      %v1523 = vpop.f32.mrf.mxu0
      %v1524 = vadd.f32 %v1495, %v1523
      %v1525 = vpop.f32.mrf.mxu0
      %v1526 = vadd.f32 %v1497, %v1525
      %1527 = vdwg.mxu0
      %1528 = vmatpush.bf16.msra.mxu0 %v1349
      %1529 = vmatpush.bf16.msra.mxu0 %v1348
      %1530 = vmatpush.bf16.msra.mxu0 %v1347
      %1531 = vmatpush.bf16.msra.mxu0 %v1346
      %1532 = vmatpush.bf16.msra.mxu0 %v1345
      %1533 = vmatpush.bf16.msra.mxu0 %v1344
      %1534 = vmatpush.bf16.msra.mxu0 %v1343
      %1535 = vmatpush.bf16.msra.mxu0 %v1342
      %1536 = vmatmul.bf16.gmra.mxu0 %v738
      %v1537 = vpop.f32.mrf.mxu0
      %v1538 = vadd.f32 %v1509, %v1537
      %v1539 = vpop.f32.mrf.mxu0
      %v1540 = vadd.f32 %v1511, %v1539
      %1541 = vmatmul.bf16.gmra.mxu0 %v739
      %v1542 = vpop.f32.mrf.mxu0
      %v1543 = vadd.f32 %v1514, %v1542
      %v1544 = vpop.f32.mrf.mxu0
      %v1545 = vadd.f32 %v1516, %v1544
      %1546 = vmatmul.bf16.gmra.mxu0 %v740
      %v1547 = vpop.f32.mrf.mxu0
      %v1548 = vadd.f32 %v1519, %v1547
      %v1549 = vpop.f32.mrf.mxu0
      %v1550 = vadd.f32 %v1521, %v1549
      %1551 = vmatmul.bf16.gmra.mxu0 %v741
      %v1552 = vpop.f32.mrf.mxu0
      %v1553 = vadd.f32 %v1524, %v1552
      %v1554 = vpop.f32.mrf.mxu0
      %v1555 = vadd.f32 %v1526, %v1554
      %1556 = vdwg.mxu0
      %1557 = vmatpush.bf16.msra.mxu0 %v1357
      %1558 = vmatpush.bf16.msra.mxu0 %v1356
      %1559 = vmatpush.bf16.msra.mxu0 %v1355
      %1560 = vmatpush.bf16.msra.mxu0 %v1354
      %1561 = vmatpush.bf16.msra.mxu0 %v1353
      %1562 = vmatpush.bf16.msra.mxu0 %v1352
      %1563 = vmatpush.bf16.msra.mxu0 %v1351
      %1564 = vmatpush.bf16.msra.mxu0 %v1350
      %1565 = vmatmul.bf16.gmra.mxu0 %v762
      %v1566 = vpop.f32.mrf.mxu0
      %v1567 = vadd.f32 %v1538, %v1566
      %v1568 = vpop.f32.mrf.mxu0
      %v1569 = vadd.f32 %v1540, %v1568
      %1570 = vmatmul.bf16.gmra.mxu0 %v763
      %v1571 = vpop.f32.mrf.mxu0
      %v1572 = vadd.f32 %v1543, %v1571
      %v1573 = vpop.f32.mrf.mxu0
      %v1574 = vadd.f32 %v1545, %v1573
      %1575 = vmatmul.bf16.gmra.mxu0 %v764
      %v1576 = vpop.f32.mrf.mxu0
      %v1577 = vadd.f32 %v1548, %v1576
      %v1578 = vpop.f32.mrf.mxu0
      %v1579 = vadd.f32 %v1550, %v1578
      %1580 = vmatmul.bf16.gmra.mxu0 %v765
      %v1581 = vpop.f32.mrf.mxu0
      %v1582 = vadd.f32 %v1553, %v1581
      %v1583 = vpop.f32.mrf.mxu0
      %v1584 = vadd.f32 %v1555, %v1583
      %1585 = vdwg.mxu0
      %1586 = vmatpush.bf16.msra.mxu0 %v1365
      %1587 = vmatpush.bf16.msra.mxu0 %v1364
      %1588 = vmatpush.bf16.msra.mxu0 %v1363
      %1589 = vmatpush.bf16.msra.mxu0 %v1362
      %1590 = vmatpush.bf16.msra.mxu0 %v1361
      %1591 = vmatpush.bf16.msra.mxu0 %v1360
      %1592 = vmatpush.bf16.msra.mxu0 %v1359
      %1593 = vmatpush.bf16.msra.mxu0 %v1358
      %1594 = vmatmul.bf16.gmra.mxu0 %v786
      %v1595 = vpop.f32.mrf.mxu0
      %v1596 = vadd.f32 %v1567, %v1595
      %v1597 = vpop.f32.mrf.mxu0
      %v1598 = vadd.f32 %v1569, %v1597
      %1599 = vmatmul.bf16.gmra.mxu0 %v787
      %v1600 = vpop.f32.mrf.mxu0
      %v1601 = vadd.f32 %v1572, %v1600
      %v1602 = vpop.f32.mrf.mxu0
      %v1603 = vadd.f32 %v1574, %v1602
      %1604 = vmatmul.bf16.gmra.mxu0 %v788
      %v1605 = vpop.f32.mrf.mxu0
      %v1606 = vadd.f32 %v1577, %v1605
      %v1607 = vpop.f32.mrf.mxu0
      %v1608 = vadd.f32 %v1579, %v1607
      %1609 = vmatmul.bf16.gmra.mxu0 %v789
      %v1610 = vpop.f32.mrf.mxu0
      %v1611 = vadd.f32 %v1582, %v1610
      %v1612 = vpop.f32.mrf.mxu0
      %v1613 = vadd.f32 %v1584, %v1612
      %1614 = vdwg.mxu0
      %1615 = vmatpush.bf16.msra.mxu0 %v1373
      %1616 = vmatpush.bf16.msra.mxu0 %v1372
      %1617 = vmatpush.bf16.msra.mxu0 %v1371
      %1618 = vmatpush.bf16.msra.mxu0 %v1370
      %1619 = vmatpush.bf16.msra.mxu0 %v1369
      %1620 = vmatpush.bf16.msra.mxu0 %v1368
      %1621 = vmatpush.bf16.msra.mxu0 %v1367
      %1622 = vmatpush.bf16.msra.mxu0 %v1366
      %1623 = vmatmul.bf16.gmra.mxu0 %v810
      %v1624 = vpop.f32.mrf.mxu0
      %v1625 = vadd.f32 %v1596, %v1624
      %v1626 = vpop.f32.mrf.mxu0
      %v1627 = vadd.f32 %v1598, %v1626
      %1628 = vmatmul.bf16.gmra.mxu0 %v811
      %v1629 = vpop.f32.mrf.mxu0
      %v1630 = vadd.f32 %v1601, %v1629
      %v1631 = vpop.f32.mrf.mxu0
      %v1632 = vadd.f32 %v1603, %v1631
      %1633 = vmatmul.bf16.gmra.mxu0 %v812
      %v1634 = vpop.f32.mrf.mxu0
      %v1635 = vadd.f32 %v1606, %v1634
      %v1636 = vpop.f32.mrf.mxu0
      %v1637 = vadd.f32 %v1608, %v1636
      %1638 = vmatmul.bf16.gmra.mxu0 %v813
      %v1639 = vpop.f32.mrf.mxu0
      %v1640 = vadd.f32 %v1611, %v1639
      %v1641 = vpop.f32.mrf.mxu0
      %v1642 = vadd.f32 %v1613, %v1641
      %1643 = vdwg.mxu0
      %1644 = vmatpush.bf16.msra.mxu0 %v1381
      %1645 = vmatpush.bf16.msra.mxu0 %v1380
      %1646 = vmatpush.bf16.msra.mxu0 %v1379
      %1647 = vmatpush.bf16.msra.mxu0 %v1378
      %1648 = vmatpush.bf16.msra.mxu0 %v1377
      %1649 = vmatpush.bf16.msra.mxu0 %v1376
      %1650 = vmatpush.bf16.msra.mxu0 %v1375
      %1651 = vmatpush.bf16.msra.mxu0 %v1374
      %1652 = vmatmul.bf16.gmra.mxu0 %v834
      %v1653 = vpop.f32.mrf.mxu0
      %v1654 = vadd.f32 %v1625, %v1653
      %v1655 = vpop.f32.mrf.mxu0
      %v1656 = vadd.f32 %v1627, %v1655
      %1657 = vmatmul.bf16.gmra.mxu0 %v835
      %v1658 = vpop.f32.mrf.mxu0
      %v1659 = vadd.f32 %v1630, %v1658
      %v1660 = vpop.f32.mrf.mxu0
      %v1661 = vadd.f32 %v1632, %v1660
      %1662 = vmatmul.bf16.gmra.mxu0 %v836
      %v1663 = vpop.f32.mrf.mxu0
      %v1664 = vadd.f32 %v1635, %v1663
      %v1665 = vpop.f32.mrf.mxu0
      %v1666 = vadd.f32 %v1637, %v1665
      %1667 = vmatmul.bf16.gmra.mxu0 %v837
      %v1668 = vpop.f32.mrf.mxu0
      %v1669 = vadd.f32 %v1640, %v1668
      %v1670 = vpop.f32.mrf.mxu0
      %v1671 = vadd.f32 %v1642, %v1670
      %1672 = vdwg.mxu0
      %1673 = vmatpush.bf16.msra.mxu0 %v1389
      %1674 = vmatpush.bf16.msra.mxu0 %v1388
      %1675 = vmatpush.bf16.msra.mxu0 %v1387
      %1676 = vmatpush.bf16.msra.mxu0 %v1386
      %1677 = vmatpush.bf16.msra.mxu0 %v1385
      %1678 = vmatpush.bf16.msra.mxu0 %v1384
      %1679 = vmatpush.bf16.msra.mxu0 %v1383
      %1680 = vmatpush.bf16.msra.mxu0 %v1382
      %1681 = vmatmul.bf16.gmra.mxu0 %v858
      %v1682 = vpop.f32.mrf.mxu0
      %v1683 = vadd.f32 %v1654, %v1682
      %v1684 = vpop.f32.mrf.mxu0
      %v1685 = vadd.f32 %v1656, %v1684
      %1686 = vmatmul.bf16.gmra.mxu0 %v859
      %v1687 = vpop.f32.mrf.mxu0
      %v1688 = vadd.f32 %v1659, %v1687
      %v1689 = vpop.f32.mrf.mxu0
      %v1690 = vadd.f32 %v1661, %v1689
      %1691 = vmatmul.bf16.gmra.mxu0 %v860
      %v1692 = vpop.f32.mrf.mxu0
      %v1693 = vadd.f32 %v1664, %v1692
      %v1694 = vpop.f32.mrf.mxu0
      %v1695 = vadd.f32 %v1666, %v1694
      %1696 = vmatmul.bf16.gmra.mxu0 %v861
      %v1697 = vpop.f32.mrf.mxu0
      %v1698 = vadd.f32 %v1669, %v1697
      %v1699 = vpop.f32.mrf.mxu0
      %v1700 = vadd.f32 %v1671, %v1699
      %1701 = vdwg.mxu0
      %1702 = vmatpush.bf16.msra.mxu0 %v1397
      %1703 = vmatpush.bf16.msra.mxu0 %v1396
      %1704 = vmatpush.bf16.msra.mxu0 %v1395
      %1705 = vmatpush.bf16.msra.mxu0 %v1394
      %1706 = vmatpush.bf16.msra.mxu0 %v1393
      %1707 = vmatpush.bf16.msra.mxu0 %v1392
      %1708 = vmatpush.bf16.msra.mxu0 %v1391
      %1709 = vmatpush.bf16.msra.mxu0 %v1390
      %1710 = vmatmul.bf16.gmra.mxu0 %v882
      %v1711 = vpop.f32.mrf.mxu0
      %v1712 = vadd.f32 %v1683, %v1711
      %v1713 = vpop.f32.mrf.mxu0
      %v1714 = vadd.f32 %v1685, %v1713
      %1715 = vmatmul.bf16.gmra.mxu0 %v883
      %v1716 = vpop.f32.mrf.mxu0
      %v1717 = vadd.f32 %v1688, %v1716
      %v1718 = vpop.f32.mrf.mxu0
      %v1719 = vadd.f32 %v1690, %v1718
      %1720 = vmatmul.bf16.gmra.mxu0 %v884
      %v1721 = vpop.f32.mrf.mxu0
      %v1722 = vadd.f32 %v1693, %v1721
      %v1723 = vpop.f32.mrf.mxu0
      %v1724 = vadd.f32 %v1695, %v1723
      %1725 = vmatmul.bf16.gmra.mxu0 %v885
      %v1726 = vpop.f32.mrf.mxu0
      %v1727 = vadd.f32 %v1698, %v1726
      %v1728 = vpop.f32.mrf.mxu0
      %v1729 = vadd.f32 %v1700, %v1728
      %1730 = vdwg.mxu0
      %vm1731 = vcmp.ge.f32.partialorder %v1712, 0.0
      %vm1732 = vcmp.ge.f32.partialorder %v1714, 0.0
      %vm1733 = vcmp.ge.f32.partialorder %v1717, 0.0
      %vm1734 = vcmp.ge.f32.partialorder %v1719, 0.0
      %vm1735 = vcmp.ge.f32.partialorder %v1722, 0.0
      %vm1736 = vcmp.ge.f32.partialorder %v1724, 0.0
      %vm1737 = vcmp.ge.f32.partialorder %v1727, 0.0
      %vm1738 = vcmp.ge.f32.partialorder %v1729, 0.0
      %v1739 = vmul.f32 %v1712, 0.1
      %v1740 = vmul.f32 %v1714, 0.1
      %v1741 = vmul.f32 %v1717, 0.1
      %v1742 = vmul.f32 %v1719, 0.1
      %v1743 = vmul.f32 %v1722, 0.1
      %v1744 = vmul.f32 %v1724, 0.1
      %v1745 = vmul.f32 %v1727, 0.1
      %v1746 = vmul.f32 %v1729, 0.1
      %v1747 = vsel %vm1731, %v1712, %v1739
      %v1748 = vsel %vm1732, %v1714, %v1740
      %v1749 = vsel %vm1733, %v1717, %v1741
      %v1750 = vsel %vm1734, %v1719, %v1742
      %v1751 = vsel %vm1735, %v1722, %v1743
      %v1752 = vsel %vm1736, %v1724, %v1744
      %v1753 = vsel %vm1737, %v1727, %v1745
      %v1754 = vsel %vm1738, %v1729, %v1746
      %v1755 = vpack.c.bf16 %v1748, %v1747
      %v1756 = vpack.c.bf16 %v1750, %v1749
      %v1757 = vpack.c.bf16 %v1752, %v1751
      %v1758 = vpack.c.bf16 %v1754, %v1753
      %v1759 = vld [vmem:[%s4] sm:$0xf]
      %v1760 = vld [vmem:[%s4 + $0x4] sm:$0xf]
      %v1761 = vld [vmem:[%s4 + $0x8] sm:$0xf]
      %v1762 = vld [vmem:[%s4 + $0xc] sm:$0xf]
      %v1763 = vld [vmem:[%s4 + $0x10] sm:$0xf]
      %v1764 = vld [vmem:[%s4 + $0x14] sm:$0xf]
      %v1765 = vld [vmem:[%s4 + $0x18] sm:$0xf]
      %v1766 = vld [vmem:[%s4 + $0x1c] sm:$0xf]
      %v1767 = vld [vmem:[%s4 + $0x20] sm:$0xf]
      %v1768 = vld [vmem:[%s4 + $0x24] sm:$0xf]
      %v1769 = vld [vmem:[%s4 + $0x28] sm:$0xf]
      %v1770 = vld [vmem:[%s4 + $0x2c] sm:$0xf]
      %v1771 = vld [vmem:[%s4 + $0x30] sm:$0xf]
      %v1772 = vld [vmem:[%s4 + $0x34] sm:$0xf]
      %v1773 = vld [vmem:[%s4 + $0x38] sm:$0xf]
      %v1774 = vld [vmem:[%s4 + $0x3c] sm:$0xf]
      %v1775 = vld [vmem:[%s5] sm:$0x1]
      %v1777 = vperm.slane %v1775, 0
      %v1795 = vunpack.c.l.b16 %v1759
      %v1796 = vunpack.c.l.b16 %v1760
      %v1797 = vunpack.c.l.b16 %v1761
      %v1798 = vunpack.c.l.b16 %v1762
      %v1799 = vunpack.c.l.b16 %v1763
      %v1800 = vunpack.c.l.b16 %v1764
      %v1801 = vunpack.c.l.b16 %v1765
      %v1802 = vunpack.c.l.b16 %v1766
      %v1803 = vunpack.c.l.b16 %v1767
      %v1804 = vunpack.c.l.b16 %v1768
      %v1805 = vunpack.c.l.b16 %v1769
      %v1806 = vunpack.c.l.b16 %v1770
      %v1807 = vunpack.c.l.b16 %v1771
      %v1808 = vunpack.c.l.b16 %v1772
      %v1809 = vunpack.c.l.b16 %v1773
      %v1810 = vunpack.c.l.b16 %v1774
      %v1811 = vpack.c.b16 %v1796, %v1795
      %v1812 = vpack.c.b16 %v1798, %v1797
      %v1813 = vpack.c.b16 %v1800, %v1799
      %v1814 = vpack.c.b16 %v1802, %v1801
      %v1815 = vpack.c.b16 %v1804, %v1803
      %v1816 = vpack.c.b16 %v1806, %v1805
      %v1817 = vpack.c.b16 %v1808, %v1807
      %v1818 = vpack.c.b16 %v1810, %v1809
      %1827 = vmatpush.bf16.msra.mxu0 %v1818
      %1828 = vmatpush.bf16.msra.mxu0 %v1817
      %1829 = vmatpush.bf16.msra.mxu0 %v1816
      %1830 = vmatpush.bf16.msra.mxu0 %v1815
      %1831 = vmatpush.bf16.msra.mxu0 %v1814
      %1832 = vmatpush.bf16.msra.mxu0 %v1813
      %1833 = vmatpush.bf16.msra.mxu0 %v1812
      %1834 = vmatpush.bf16.msra.mxu0 %v1811
      %1835 = vmatmul.bf16.gmra.mxu0 %v1755
      %v1836 = vpop.f32.mrf.mxu0
      %v1837 = vadd.f32 %v1777, %v1836
      %v1838 = vpop.f32.mrf.mxu0
      %v1839 = vadd.f32 %v1777, %v1838
      %1840 = vmatmul.bf16.gmra.mxu0 %v1756
      %v1841 = vpop.f32.mrf.mxu0
      %v1842 = vadd.f32 %v1777, %v1841
      %v1843 = vpop.f32.mrf.mxu0
      %v1844 = vadd.f32 %v1777, %v1843
      %1845 = vmatmul.bf16.gmra.mxu0 %v1757
      %v1846 = vpop.f32.mrf.mxu0
      %v1847 = vadd.f32 %v1777, %v1846
      %v1848 = vpop.f32.mrf.mxu0
      %v1849 = vadd.f32 %v1777, %v1848
      %1850 = vmatmul.bf16.gmra.mxu0 %v1758
      %v1851 = vpop.f32.mrf.mxu0
      %v1852 = vadd.f32 %v1777, %v1851
      %v1853 = vpop.f32.mrf.mxu0
      %v1854 = vadd.f32 %v1777, %v1853
      %1855 = vdwg.mxu0
      %vm1856 = vcmp.ge.f32.partialorder %v1837, 0.0
      %vm1857 = vcmp.ge.f32.partialorder %v1839, 0.0
      %vm1858 = vcmp.ge.f32.partialorder %v1842, 0.0
      %vm1859 = vcmp.ge.f32.partialorder %v1844, 0.0
      %vm1860 = vcmp.ge.f32.partialorder %v1847, 0.0
      %vm1861 = vcmp.ge.f32.partialorder %v1849, 0.0
      %vm1862 = vcmp.ge.f32.partialorder %v1852, 0.0
      %vm1863 = vcmp.ge.f32.partialorder %v1854, 0.0
      %v1864 = vmul.f32 %v1837, 0.1
      %v1865 = vmul.f32 %v1839, 0.1
      %v1866 = vmul.f32 %v1842, 0.1
      %v1867 = vmul.f32 %v1844, 0.1
      %v1868 = vmul.f32 %v1847, 0.1
      %v1869 = vmul.f32 %v1849, 0.1
      %v1870 = vmul.f32 %v1852, 0.1
      %v1871 = vmul.f32 %v1854, 0.1
      %v1872 = vsel %vm1856, %v1837, %v1864
      %v1873 = vsel %vm1857, %v1839, %v1865
      %v1874 = vsel %vm1858, %v1842, %v1866
      %v1875 = vsel %vm1859, %v1844, %v1867
      %v1876 = vsel %vm1860, %v1847, %v1868
      %v1877 = vsel %vm1861, %v1849, %v1869
      %v1878 = vsel %vm1862, %v1852, %v1870
      %v1879 = vsel %vm1863, %v1854, %v1871
      %v1880 = vpack.c.bf16 %v1873, %v1872
      %v1881 = vpack.c.bf16 %v1875, %v1874
      %v1882 = vpack.c.bf16 %v1877, %v1876
      %v1883 = vpack.c.bf16 %v1879, %v1878
      %v1884 = vld [vmem:[%s6] sm:$0xf]
      %v1885 = vld [vmem:[%s6 + $0x4] sm:$0xf]
      %v1886 = vld [vmem:[%s6 + $0x8] sm:$0xf]
      %v1887 = vld [vmem:[%s6 + $0xc] sm:$0xf]
      %v1888 = vld [vmem:[%s6 + $0x10] sm:$0xf]
      %v1889 = vld [vmem:[%s6 + $0x14] sm:$0xf]
      %v1890 = vld [vmem:[%s6 + $0x18] sm:$0xf]
      %v1891 = vld [vmem:[%s6 + $0x1c] sm:$0xf]
      %v1892 = vld [vmem:[%s6 + $0x20] sm:$0xf]
      %v1893 = vld [vmem:[%s6 + $0x24] sm:$0xf]
      %v1894 = vld [vmem:[%s6 + $0x28] sm:$0xf]
      %v1895 = vld [vmem:[%s6 + $0x2c] sm:$0xf]
      %v1896 = vld [vmem:[%s6 + $0x30] sm:$0xf]
      %v1897 = vld [vmem:[%s6 + $0x34] sm:$0xf]
      %v1898 = vld [vmem:[%s6 + $0x38] sm:$0xf]
      %v1899 = vld [vmem:[%s6 + $0x3c] sm:$0xf]
      %v1900 = vld [vmem:[%s401] sm:$0xf]
      %v1901 = vld [vmem:[%s401 + $0x4] sm:$0xf]
      %v1902 = vld [vmem:[%s401 + $0x8] sm:$0xf]
      %v1903 = vld [vmem:[%s401 + $0xc] sm:$0xf]
      %v1904 = vld [vmem:[%s401 + $0x10] sm:$0xf]
      %v1905 = vld [vmem:[%s401 + $0x14] sm:$0xf]
      %v1906 = vld [vmem:[%s401 + $0x18] sm:$0xf]
      %v1907 = vld [vmem:[%s401 + $0x1c] sm:$0xf]
      %v1908 = vld [vmem:[%s7] sm:$0xf]
      %v1909 = vld [vmem:[%s7 + $0x4] sm:$0xf]
      %v1910 = vld [vmem:[%s7 + $0x8] sm:$0xf]
      %v1911 = vld [vmem:[%s7 + $0xc] sm:$0xf]
      %v1912 = vld [vmem:[%s7 + $0x10] sm:$0xf]
      %v1913 = vld [vmem:[%s7 + $0x14] sm:$0xf]
      %v1914 = vld [vmem:[%s7 + $0x18] sm:$0xf]
      %v1915 = vld [vmem:[%s7 + $0x1c] sm:$0xf]
      %v1916 = vld [vmem:[%s7 + $0x20] sm:$0xf]
      %v1917 = vld [vmem:[%s7 + $0x24] sm:$0xf]
      %v1918 = vld [vmem:[%s7 + $0x28] sm:$0xf]
      %v1919 = vld [vmem:[%s7 + $0x2c] sm:$0xf]
      %v1920 = vld [vmem:[%s7 + $0x30] sm:$0xf]
      %v1921 = vld [vmem:[%s7 + $0x34] sm:$0xf]
      %v1922 = vld [vmem:[%s7 + $0x38] sm:$0xf]
      %v1923 = vld [vmem:[%s7 + $0x3c] sm:$0xf]
      %v1932 = vunpack.c.l.b16 %v1900
      %v1933 = vunpack.c.l.b16 %v1901
      %v1934 = vunpack.c.l.b16 %v1902
      %v1935 = vunpack.c.l.b16 %v1903
      %v1936 = vunpack.c.l.b16 %v1904
      %v1937 = vunpack.c.l.b16 %v1905
      %v1938 = vunpack.c.l.b16 %v1906
      %v1939 = vunpack.c.l.b16 %v1907
      %v1940 = vpack.c.b16 %v1933, %v1932
      %v1941 = vpack.c.b16 %v1935, %v1934
      %v1942 = vpack.c.b16 %v1937, %v1936
      %v1943 = vpack.c.b16 %v1939, %v1938
      %v1964 = vunpack.c.l.b16 %v1908
      %v1965 = vunpack.c.l.b16 %v1909
      %v1966 = vunpack.c.l.b16 %v1910
      %v1967 = vunpack.c.l.b16 %v1911
      %v1968 = vunpack.c.l.b16 %v1912
      %v1969 = vunpack.c.l.b16 %v1913
      %v1970 = vunpack.c.l.b16 %v1914
      %v1971 = vunpack.c.l.b16 %v1915
      %v1972 = vunpack.c.l.b16 %v1916
      %v1973 = vunpack.c.l.b16 %v1917
      %v1974 = vunpack.c.l.b16 %v1918
      %v1975 = vunpack.c.l.b16 %v1919
      %v1976 = vunpack.c.l.b16 %v1920
      %v1977 = vunpack.c.l.b16 %v1921
      %v1978 = vunpack.c.l.b16 %v1922
      %v1979 = vunpack.c.l.b16 %v1923
      %v1980 = vpack.c.b16 %v1965, %v1964
      %v1981 = vpack.c.b16 %v1967, %v1966
      %v1982 = vpack.c.b16 %v1969, %v1968
      %v1983 = vpack.c.b16 %v1971, %v1970
      %v1984 = vpack.c.b16 %v1973, %v1972
      %v1985 = vpack.c.b16 %v1975, %v1974
      %v1986 = vpack.c.b16 %v1977, %v1976
      %v1987 = vpack.c.b16 %v1979, %v1978
      %1996 = vmatpush.bf16.msra.mxu0 %v1987
      %1997 = vmatpush.bf16.msra.mxu0 %v1986
      %1998 = vmatpush.bf16.msra.mxu0 %v1985
      %1999 = vmatpush.bf16.msra.mxu0 %v1984
      %2000 = vmatpush.bf16.msra.mxu0 %v1983
      %2001 = vmatpush.bf16.msra.mxu0 %v1982
      %2002 = vmatpush.bf16.msra.mxu0 %v1981
      %2003 = vmatpush.bf16.msra.mxu0 %v1980
      %2004 = vmatmul.bf16.gmra.mxu0 %v1940
      %v2005 = vpop.f32.mrf.mxu0
      %v2006 = vadd.f32 0.0, %v2005
      %v2007 = vpop.f32.mrf.mxu0
      %v2008 = vadd.f32 0.0, %v2007
      %2009 = vmatmul.bf16.gmra.mxu0 %v1941
      %v2010 = vpop.f32.mrf.mxu0
      %v2011 = vadd.f32 0.0, %v2010
      %v2012 = vpop.f32.mrf.mxu0
      %v2013 = vadd.f32 0.0, %v2012
      %2014 = vmatmul.bf16.gmra.mxu0 %v1942
      %v2015 = vpop.f32.mrf.mxu0
      %v2016 = vadd.f32 0.0, %v2015
      %v2017 = vpop.f32.mrf.mxu0
      %v2018 = vadd.f32 0.0, %v2017
      %2019 = vmatmul.bf16.gmra.mxu0 %v1943
      %v2020 = vpop.f32.mrf.mxu0
      %v2021 = vadd.f32 0.0, %v2020
      %v2022 = vpop.f32.mrf.mxu0
      %v2023 = vadd.f32 0.0, %v2022
      %2024 = vdwg.mxu0
      %v2041 = vunpack.c.l.b16 %v1884
      %v2042 = vunpack.c.l.b16 %v1885
      %v2043 = vunpack.c.l.b16 %v1886
      %v2044 = vunpack.c.l.b16 %v1887
      %v2045 = vunpack.c.l.b16 %v1888
      %v2046 = vunpack.c.l.b16 %v1889
      %v2047 = vunpack.c.l.b16 %v1890
      %v2048 = vunpack.c.l.b16 %v1891
      %v2049 = vunpack.c.l.b16 %v1892
      %v2050 = vunpack.c.l.b16 %v1893
      %v2051 = vunpack.c.l.b16 %v1894
      %v2052 = vunpack.c.l.b16 %v1895
      %v2053 = vunpack.c.l.b16 %v1896
      %v2054 = vunpack.c.l.b16 %v1897
      %v2055 = vunpack.c.l.b16 %v1898
      %v2056 = vunpack.c.l.b16 %v1899
      %v2057 = vpack.c.b16 %v2042, %v2041
      %v2058 = vpack.c.b16 %v2044, %v2043
      %v2059 = vpack.c.b16 %v2046, %v2045
      %v2060 = vpack.c.b16 %v2048, %v2047
      %v2061 = vpack.c.b16 %v2050, %v2049
      %v2062 = vpack.c.b16 %v2052, %v2051
      %v2063 = vpack.c.b16 %v2054, %v2053
      %v2064 = vpack.c.b16 %v2056, %v2055
      %2073 = vmatpush.bf16.msra.mxu0 %v2064
      %2074 = vmatpush.bf16.msra.mxu0 %v2063
      %2075 = vmatpush.bf16.msra.mxu0 %v2062
      %2076 = vmatpush.bf16.msra.mxu0 %v2061
      %2077 = vmatpush.bf16.msra.mxu0 %v2060
      %2078 = vmatpush.bf16.msra.mxu0 %v2059
      %2079 = vmatpush.bf16.msra.mxu0 %v2058
      %2080 = vmatpush.bf16.msra.mxu0 %v2057
      %2081 = vmatmul.bf16.gmra.mxu0 %v1880
      %v2082 = vpop.f32.mrf.mxu0
      %v2083 = vadd.f32 %v2006, %v2082
      %v2084 = vpop.f32.mrf.mxu0
      %v2085 = vadd.f32 %v2008, %v2084
      %2086 = vmatmul.bf16.gmra.mxu0 %v1881
      %v2087 = vpop.f32.mrf.mxu0
      %v2088 = vadd.f32 %v2011, %v2087
      %v2089 = vpop.f32.mrf.mxu0
      %v2090 = vadd.f32 %v2013, %v2089
      %2091 = vmatmul.bf16.gmra.mxu0 %v1882
      %v2092 = vpop.f32.mrf.mxu0
      %v2093 = vadd.f32 %v2016, %v2092
      %v2094 = vpop.f32.mrf.mxu0
      %v2095 = vadd.f32 %v2018, %v2094
      %2096 = vmatmul.bf16.gmra.mxu0 %v1883
      %v2097 = vpop.f32.mrf.mxu0
      %v2098 = vadd.f32 %v2021, %v2097
      %v2099 = vpop.f32.mrf.mxu0
      %v2100 = vadd.f32 %v2023, %v2099
      %2101 = vdwg.mxu0
      %v2102 = vld [vmem:[%s8] sm:$0x1]
      %v2104 = vperm.slane %v2102, 0
      %v2106 = vadd.f32 %v2083, %v2104
      %v2107 = vadd.f32 %v2085, %v2104
      %v2108 = vadd.f32 %v2088, %v2104
      %v2109 = vadd.f32 %v2090, %v2104
      %v2110 = vadd.f32 %v2093, %v2104
      %v2111 = vadd.f32 %v2095, %v2104
      %v2112 = vadd.f32 %v2098, %v2104
      %v2113 = vadd.f32 %v2100, %v2104
      %vm2114 = vcmp.ge.f32.partialorder %v2106, 0.0
      %vm2115 = vcmp.ge.f32.partialorder %v2107, 0.0
      %vm2116 = vcmp.ge.f32.partialorder %v2108, 0.0
      %vm2117 = vcmp.ge.f32.partialorder %v2109, 0.0
      %vm2118 = vcmp.ge.f32.partialorder %v2110, 0.0
      %vm2119 = vcmp.ge.f32.partialorder %v2111, 0.0
      %vm2120 = vcmp.ge.f32.partialorder %v2112, 0.0
      %vm2121 = vcmp.ge.f32.partialorder %v2113, 0.0
      %v2122 = vmul.f32 %v2106, 0.1
      %v2123 = vmul.f32 %v2107, 0.1
      %v2124 = vmul.f32 %v2108, 0.1
      %v2125 = vmul.f32 %v2109, 0.1
      %v2126 = vmul.f32 %v2110, 0.1
      %v2127 = vmul.f32 %v2111, 0.1
      %v2128 = vmul.f32 %v2112, 0.1
      %v2129 = vmul.f32 %v2113, 0.1
      %v2130 = vsel %vm2114, %v2106, %v2122
      %v2131 = vsel %vm2115, %v2107, %v2123
      %v2132 = vsel %vm2116, %v2108, %v2124
      %v2133 = vsel %vm2117, %v2109, %v2125
      %v2134 = vsel %vm2118, %v2110, %v2126
      %v2135 = vsel %vm2119, %v2111, %v2127
      %v2136 = vsel %vm2120, %v2112, %v2128
      %v2137 = vsel %vm2121, %v2113, %v2129
      %v2138 = vpack.c.bf16 %v2131, %v2130
      %v2139 = vpack.c.bf16 %v2133, %v2132
      %v2140 = vpack.c.bf16 %v2135, %v2134
      %v2141 = vpack.c.bf16 %v2137, %v2136
      %v2142 = vld [vmem:[%s9] sm:$0xf]
      %v2143 = vld [vmem:[%s9 + $0x4] sm:$0xf]
      %v2144 = vld [vmem:[%s9 + $0x8] sm:$0xf]
      %v2145 = vld [vmem:[%s9 + $0xc] sm:$0xf]
      %v2146 = vld [vmem:[%s9 + $0x10] sm:$0xf]
      %v2147 = vld [vmem:[%s9 + $0x14] sm:$0xf]
      %v2148 = vld [vmem:[%s9 + $0x18] sm:$0xf]
      %v2149 = vld [vmem:[%s9 + $0x1c] sm:$0xf]
      %v2150 = vld [vmem:[%s9 + $0x20] sm:$0xf]
      %v2151 = vld [vmem:[%s9 + $0x24] sm:$0xf]
      %v2152 = vld [vmem:[%s9 + $0x28] sm:$0xf]
      %v2153 = vld [vmem:[%s9 + $0x2c] sm:$0xf]
      %v2154 = vld [vmem:[%s9 + $0x30] sm:$0xf]
      %v2155 = vld [vmem:[%s9 + $0x34] sm:$0xf]
      %v2156 = vld [vmem:[%s9 + $0x38] sm:$0xf]
      %v2157 = vld [vmem:[%s9 + $0x3c] sm:$0xf]
      %v2158 = vld [vmem:[%s10] sm:$0x1]
      %v2160 = vperm.slane %v2158, 0
      %v2178 = vunpack.c.l.b16 %v2142
      %v2179 = vunpack.c.l.b16 %v2143
      %v2180 = vunpack.c.l.b16 %v2144
      %v2181 = vunpack.c.l.b16 %v2145
      %v2182 = vunpack.c.l.b16 %v2146
      %v2183 = vunpack.c.l.b16 %v2147
      %v2184 = vunpack.c.l.b16 %v2148
      %v2185 = vunpack.c.l.b16 %v2149
      %v2186 = vunpack.c.l.b16 %v2150
      %v2187 = vunpack.c.l.b16 %v2151
      %v2188 = vunpack.c.l.b16 %v2152
      %v2189 = vunpack.c.l.b16 %v2153
      %v2190 = vunpack.c.l.b16 %v2154
      %v2191 = vunpack.c.l.b16 %v2155
      %v2192 = vunpack.c.l.b16 %v2156
      %v2193 = vunpack.c.l.b16 %v2157
      %v2194 = vpack.c.b16 %v2179, %v2178
      %v2195 = vpack.c.b16 %v2181, %v2180
      %v2196 = vpack.c.b16 %v2183, %v2182
      %v2197 = vpack.c.b16 %v2185, %v2184
      %v2198 = vpack.c.b16 %v2187, %v2186
      %v2199 = vpack.c.b16 %v2189, %v2188
      %v2200 = vpack.c.b16 %v2191, %v2190
      %v2201 = vpack.c.b16 %v2193, %v2192
      %2210 = vmatpush.bf16.msra.mxu0 %v2201
      %2211 = vmatpush.bf16.msra.mxu0 %v2200
      %2212 = vmatpush.bf16.msra.mxu0 %v2199
      %2213 = vmatpush.bf16.msra.mxu0 %v2198
      %2214 = vmatpush.bf16.msra.mxu0 %v2197
      %2215 = vmatpush.bf16.msra.mxu0 %v2196
      %2216 = vmatpush.bf16.msra.mxu0 %v2195
      %2217 = vmatpush.bf16.msra.mxu0 %v2194
      %2218 = vmatmul.bf16.gmra.mxu0 %v2138
      %v2219 = vpop.f32.mrf.mxu0
      %v2220 = vadd.f32 %v2160, %v2219
      %v2221 = vpop.f32.mrf.mxu0
      %v2222 = vadd.f32 %v2160, %v2221
      %2223 = vmatmul.bf16.gmra.mxu0 %v2139
      %v2224 = vpop.f32.mrf.mxu0
      %v2225 = vadd.f32 %v2160, %v2224
      %v2226 = vpop.f32.mrf.mxu0
      %v2227 = vadd.f32 %v2160, %v2226
      %2228 = vmatmul.bf16.gmra.mxu0 %v2140
      %v2229 = vpop.f32.mrf.mxu0
      %v2230 = vadd.f32 %v2160, %v2229
      %v2231 = vpop.f32.mrf.mxu0
      %v2232 = vadd.f32 %v2160, %v2231
      %2233 = vmatmul.bf16.gmra.mxu0 %v2141
      %v2234 = vpop.f32.mrf.mxu0
      %v2235 = vadd.f32 %v2160, %v2234
      %v2236 = vpop.f32.mrf.mxu0
      %v2237 = vadd.f32 %v2160, %v2236
      %2238 = vdwg.mxu0
      %2239 = vst [vmem:[%s406] sm:$0xff] %v2220
      %2240 = vst [vmem:[%s406 + $0x8] sm:$0xff] %v2222
      %2241 = vst [vmem:[%s406 + $0x10] sm:$0xff] %v2225
      %2242 = vst [vmem:[%s406 + $0x18] sm:$0xff] %v2227
      %2243 = vst [vmem:[%s406 + $0x20] sm:$0xff] %v2230
      %2244 = vst [vmem:[%s406 + $0x28] sm:$0xff] %v2232
      %2245 = vst [vmem:[%s406 + $0x30] sm:$0xff] %v2235
      %2246 = vst [vmem:[%s406 + $0x38] sm:$0xff] %v2237
      %p2247 = scmp.lt.s32.totalorder %s22, 1
      %s2248 = scalar_select %p2247, %s22, 1
      %s2249 = smul.addr %s2248, 8
      %s2250 = smul.addr %s2249, 8
      %s2251 = scalar_lea.vmem %s11, %s2250
      // Predicated region
      $region65: #{yolov1_forward.11} parent=63 // pred_check
        %p2252 = pneg %p281
      $region66: #{yolov1_forward.11} parent=63 // pred_check_branch
        %2254 = sbr.rel (%p2252) target = $region68
      $region67: #{yolov1_forward.11} parent=63 // pred_region
        _
      $region68: #{yolov1_forward.11} parent=63 // pred_fallthru
        _
    $region64: #{yolov1_forward.11} parent=5 // pred_fallthru
      _
    %p2255 = scmp.le.s32.totalorder 2, %s17
    // Predicated region
    $region69: #{yolov1_forward.11} parent=5 // pred_check
      %p2256 = pneg %p2255
    $region70: #{yolov1_forward.11} parent=5 // pred_check_branch
      %2258 = sbr.rel (%p2256) target = $region72
    $region71: #{yolov1_forward.11} parent=5 // pred_region
      %s2259 = ssub.s32 %s17, 2
      // Predicated region
      $region73: #{yolov1_forward.11} parent=71 // pred_check
        %p2260 = pneg %p287
      $region74: #{yolov1_forward.11} parent=71 // pred_check_branch
        %2262 = sbr.rel (%p2260) target = $region76
      $region75: #{yolov1_forward.11} parent=71 // pred_region
        %p2263 = scmp.lt.s32.totalorder %s23, 1
        %s2264 = scalar_select %p2263, %s23, 1
        %s2265 = smul.addr %s2264, 8
        %s2266 = smul.addr %s2265, 8
        %s2267 = scalar_lea.vmem %s11, %s2266
      $region76: #{yolov1_forward.11} parent=71 // pred_fallthru
        _
    $region72: #{yolov1_forward.11} parent=5 // pred_fallthru
      _
  $region6: #{yolov1_forward.11} parent=0 // loop_footer
    %s21 = sadd.s32 1, %s17
  $region7: #{yolov1_forward.11} parent=0 // loop_footer_branch
    %16 = sbr.rel target = $region3
  $region8: #{yolov1_forward.11} parent=0 // loop_exit
    _

</llo_original>
